<compile_context>
chip_gen: v7x
topology: tpu7x:2x2x1
jax: 0.10.0
libtpu: 0.0.40
codegen_flags: <defaults>
</compile_context>

<pallas_src>
import functools

import jax
import jax.numpy as jnp
from jax.experimental import pallas as pl
from jax.experimental.pallas import tpu as pltpu

EPS = 1e-5
LANES = 128


def _round_up(x, m):
    return (x + m - 1) // m * m


def _vmem_limit_bytes(frac=0.75, fallback=48 * 1024 * 1024):
    """Generation-aware scoped VMEM budget (48 MiB on v7x, 96 MiB on v5e/v6e)."""
    try:
        cap = int(pltpu.get_tpu_info().vmem_capacity_bytes)
        return int(cap * frac)
    except Exception:
        return fallback


# ----------------------------------------------------------------------------------
# Pass 1: conv1 (3x3 / stride) + per-grid-step BN1 partial statistics.
# ----------------------------------------------------------------------------------
def _conv1_stats_kernel(x_ref, w_ref, acc_ref, s_ref, q_ref, *, ho, wo, stride, cin_p):
    m = ho * wo
    acc = None
    for dy in range(3):
        for dx in range(3):
            if stride == 1:
                tap = x_ref[0, dy:dy + ho, dx:dx + wo, :]
            else:
                # stride-2 decimation pushed into the load (strided ref indexing).
                tap = x_ref[0, pl.ds(dy, ho, stride), pl.ds(dx, wo, stride), :]
            k = dy * 3 + dx
            d = jnp.dot(tap.reshape(m, cin_p),
                        w_ref[k * cin_p:(k + 1) * cin_p, :],
                        preferred_element_type=jnp.float32)
            acc = d if acc is None else acc + d
    # BN partials straight from the in-register accumulator (no slab re-read).
    s_ref[...] = jnp.sum(acc, axis=0, keepdims=True).reshape(s_ref.shape)
    q_ref[...] = jnp.sum(acc * acc, axis=0, keepdims=True).reshape(q_ref.shape)
    acc_ref[...] = acc.reshape(acc_ref.shape)


# ----------------------------------------------------------------------------------
# Pass 2: bn1-apply + ReLU -> bf16 aligned padded scratch -> conv2 + BN2 partials.
# ----------------------------------------------------------------------------------
def _bnrelu_conv2_stats_kernel(a_ref, sc_ref, sh_ref, w_ref,
                               acc_ref, s_ref, q_ref, hpad_ref, *, ho, wo, pp):
    m = ho * wo
    wtot = wo + 32                      # 16-wide left/right W halos (bf16 tile = 16 rows)

    # bn1 (batch-stat scale/shift, f32) + relu; single cast to bf16 for the MXU.
    h1 = jnp.maximum(a_ref[0] * sc_ref[...] + sh_ref[...], 0.0).astype(jnp.bfloat16)

    # Halo zeroing with aligned stores only (rows full-width; W halos are 16-wide tiles).
    zrow = jnp.zeros((1, wtot, pp), jnp.bfloat16)
    hpad_ref[0:1, :, :] = zrow
    hpad_ref[ho + 1:ho + 2, :, :] = zrow
    zcol = jnp.zeros((ho + 2, 16, pp), jnp.bfloat16)
    hpad_ref[:, 0:16, :] = zcol
    hpad_ref[:, 16 + wo:wtot, :] = zcol

    # Interior store at W offset 16 -> sublane-aligned (unmasked) bf16 stores.
    hpad_ref[1:ho + 1, 16:16 + wo, :] = h1

    acc = None
    for dy in range(3):
        for dx in range(3):
            tap = hpad_ref[dy:dy + ho, 15 + dx:15 + dx + wo, :]
            k = dy * 3 + dx
            d = jnp.dot(tap.reshape(m, pp),
                        w_ref[k * pp:(k + 1) * pp, :],
                        preferred_element_type=jnp.float32)
            acc = d if acc is None else acc + d
    s_ref[...] = jnp.sum(acc, axis=0, keepdims=True).reshape(s_ref.shape)
    q_ref[...] = jnp.sum(acc * acc, axis=0, keepdims=True).reshape(q_ref.shape)
    acc_ref[...] = acc.reshape(acc_ref.shape)


# ----------------------------------------------------------------------------------
# Pass 3: bn2-apply + ReLU (lane-dense Pp=128 output).
# ----------------------------------------------------------------------------------
def _bn_relu_kernel(a_ref, sc_ref, sh_ref, o_ref):
    o_ref[...] = jnp.maximum(a_ref[...] * sc_ref[...] + sh_ref[...], 0.0).astype(o_ref.dtype)


def _bn_finalize(sums, sumsq, count, gamma_p, beta_p):
    """Tiny finalize: per-grid-step partials -> per-channel scale/shift (f32)."""
    s = jnp.sum(sums, axis=0)                      # (1, Pp)
    q = jnp.sum(sumsq, axis=0)                     # (1, Pp)
    mean = s / count
    var = jnp.maximum(q / count - mean * mean, 0.0)   # biased variance, clamped
    scale = gamma_p.reshape(1, -1) * jax.lax.rsqrt(var + EPS)
    shift = beta_p.reshape(1, -1) - mean * scale
    return scale.reshape(1, 1, -1), shift.reshape(1, 1, -1)


@functools.partial(jax.jit, static_argnames=("stride",))
def basic_block_forward(x_nchw, w1, g1, b1, w2, g2, b2, *, stride=1):
    """x: (N, Cin, H, W). w1: (P, Cin, 3, 3), w2: (P, P, 3, 3) (PyTorch layout)."""
    N, Cin, H, W = x_nchw.shape
    P = w1.shape[0]
    Ho = (H + 2 - 3) // stride + 1
    Wo = (W + 2 - 3) // stride + 1
    Cp = _round_up(Cin, LANES)
    Pp = _round_up(P, LANES)
    M = Ho * Wo
    count = N * M
    Hp, Wp = H + 2, W + 2

    # Wrapper glue: NCHW -> NHWC, spatial pad 1, channel pad (1x, not 9x-replicated),
    # bf16 matmul operands, weights reshaped to per-tap (K, Pp) rows.
    x_nhwc = jnp.transpose(x_nchw, (0, 2, 3, 1))
    x_pad = jnp.pad(x_nhwc, ((0, 0), (1, 1), (1, 1), (0, Cp - Cin))).astype(jnp.bfloat16)

    w1_mat = jnp.pad(jnp.transpose(w1, (2, 3, 1, 0)),
                     ((0, 0), (0, 0), (0, Cp - Cin), (0, Pp - P))
                     ).reshape(9 * Cp, Pp).astype(jnp.bfloat16)
    w2_mat = jnp.pad(jnp.transpose(w2, (2, 3, 1, 0)),
                     ((0, 0), (0, 0), (0, Pp - P), (0, Pp - P))
                     ).reshape(9 * Pp, Pp).astype(jnp.bfloat16)

    # Padded lanes get gamma=beta=0 -> scale=shift=0 -> exactly zero (no eps blow-up).
    g1p = jnp.pad(g1.astype(jnp.float32), (0, Pp - P))
    b1p = jnp.pad(b1.astype(jnp.float32), (0, Pp - P))
    g2p = jnp.pad(g2.astype(jnp.float32), (0, Pp - P))
    b2p = jnp.pad(b2.astype(jnp.float32), (0, Pp - P))

    cparams = pltpu.CompilerParams(dimension_semantics=("parallel",),
                                   vmem_limit_bytes=_vmem_limit_bytes())

    # ---------------- pass 1: conv1 + BN1 partials ----------------
    acc1, s1, q1 = pl.pallas_call(
        functools.partial(_conv1_stats_kernel, ho=Ho, wo=Wo, stride=stride, cin_p=Cp),
        grid=(N,),
        in_specs=[pl.BlockSpec((1, Hp, Wp, Cp), lambda n: (n, 0, 0, 0)),
                  pl.BlockSpec((9 * Cp, Pp), lambda n: (0, 0))],
        out_specs=(pl.BlockSpec((1, Ho, Wo, Pp), lambda n: (n, 0, 0, 0)),
                   pl.BlockSpec((1, 1, Pp), lambda n: (n, 0, 0)),
                   pl.BlockSpec((1, 1, Pp), lambda n: (n, 0, 0))),
        out_shape=(jax.ShapeDtypeStruct((N, Ho, Wo, Pp), jnp.float32),
                   jax.ShapeDtypeStruct((N, 1, Pp), jnp.float32),
                   jax.ShapeDtypeStruct((N, 1, Pp), jnp.float32)),
        compiler_params=cparams,
        cost_estimate=pl.CostEstimate(
            flops=2 * N * M * 9 * Cp * Pp, transcendentals=0,
            bytes_accessed=x_pad.size * 2 + w1_mat.size * 2 + N * M * Pp * 4),
    )(x_pad, w1_mat)

    scale1, shift1 = _bn_finalize(s1, q1, count, g1p, b1p)

    # ---------------- pass 2: bn1+relu -> conv2 + BN2 partials ----------------
    acc2, s2, q2 = pl.pallas_call(
        functools.partial(_bnrelu_conv2_stats_kernel, ho=Ho, wo=Wo, pp=Pp),
        grid=(N,),
        in_specs=[pl.BlockSpec((1, Ho, Wo, Pp), lambda n: (n, 0, 0, 0)),
                  pl.BlockSpec((1, 1, Pp), lambda n: (0, 0, 0)),
                  pl.BlockSpec((1, 1, Pp), lambda n: (0, 0, 0)),
                  pl.BlockSpec((9 * Pp, Pp), lambda n: (0, 0))],
        out_specs=(pl.BlockSpec((1, Ho, Wo, Pp), lambda n: (n, 0, 0, 0)),
                   pl.BlockSpec((1, 1, Pp), lambda n: (n, 0, 0)),
                   pl.BlockSpec((1, 1, Pp), lambda n: (n, 0, 0))),
        out_shape=(jax.ShapeDtypeStruct((N, Ho, Wo, Pp), jnp.float32),
                   jax.ShapeDtypeStruct((N, 1, Pp), jnp.float32),
                   jax.ShapeDtypeStruct((N, 1, Pp), jnp.float32)),
        scratch_shapes=[pltpu.VMEM((Ho + 2, Wo + 32, Pp), jnp.bfloat16)],
        compiler_params=cparams,
        cost_estimate=pl.CostEstimate(
            flops=2 * N * M * 9 * Pp * Pp, transcendentals=0,
            bytes_accessed=2 * N * M * Pp * 4 + w2_mat.size * 2),
    )(acc1, scale1, shift1, w2_mat)

    scale2, shift2 = _bn_finalize(s2, q2, count, g2p, b2p)

    # ---------------- pass 3: bn2-apply + relu ----------------
    out4 = pl.pallas_call(
        _bn_relu_kernel,
        grid=(N,),
        in_specs=[pl.BlockSpec((1, Ho, Wo, Pp), lambda n: (n, 0, 0, 0)),
                  pl.BlockSpec((1, 1, Pp), lambda n: (0, 0, 0)),
                  pl.BlockSpec((1, 1, Pp), lambda n: (0, 0, 0))],
        out_specs=pl.BlockSpec((1, Ho, Wo, Pp), lambda n: (n, 0, 0, 0)),
        out_shape=jax.ShapeDtypeStruct((N, Ho, Wo, Pp), jnp.float32),
        compiler_params=cparams,
        cost_estimate=pl.CostEstimate(flops=3 * N * M * Pp, transcendentals=0,
                                      bytes_accessed=2 * N * M * Pp * 4),
    )(acc2, scale2, shift2)

    # Strip channel padding, back to NCHW.
    return jnp.transpose(out4[..., :P], (0, 3, 1, 2))


# ----------------------------------------------------------------------------------
# Pure-JAX f32 reference (same training-mode BN semantics) for validation.
# ----------------------------------------------------------------------------------
def _reference_forward(x, w1, g1, b1, w2, g2, b2, stride):
    def conv(inp, w, s):
        return jax.lax.conv_general_dilated(
            inp, w, (s, s), ((1, 1), (1, 1)),
            dimension_numbers=("NCHW", "OIHW", "NCHW"))

    def bn(inp, g, b):
        mean = jnp.mean(inp, axis=(0, 2, 3), keepdims=True)
        var = jnp.mean((inp - mean) ** 2, axis=(0, 2, 3), keepdims=True)
        return ((inp - mean) * jax.lax.rsqrt(var + EPS) * g.reshape(1, -1, 1, 1)
                + b.reshape(1, -1, 1, 1))

    h = jax.nn.relu(bn(conv(x, w1, stride), g1, b1))
    return jax.nn.relu(bn(conv(h, w2, 1), g2, b2))


if __name__ == "__main__":
    # Small shapes consistent with the module: batch=2, in_planes=4, planes=8, 16x16.
    N, Cin, H, W = 2, 4, 16, 16
    P, stride = 8, 1

    key = jax.random.PRNGKey(0)
    kx, kw1, kw2, kg1, kb1, kg2, kb2 = jax.random.split(key, 7)

    x = jax.random.normal(kx, (N, Cin, H, W), dtype=jnp.float32)
    w1 = 0.1 * jax.random.normal(kw1, (P, Cin, 3, 3), dtype=jnp.float32)
    w2 = 0.1 * jax.random.normal(kw2, (P, P, 3, 3), dtype=jnp.float32)
    g1 = 1.0 + 0.1 * jax.random.normal(kg1, (P,), dtype=jnp.float32)
    b1 = 0.1 * jax.random.normal(kb1, (P,), dtype=jnp.float32)
    g2 = 1.0 + 0.1 * jax.random.normal(kg2, (P,), dtype=jnp.float32)
    b2 = 0.1 * jax.random.normal(kb2, (P,), dtype=jnp.float32)

    out = basic_block_forward(x, w1, g1, b1, w2, g2, b2, stride=stride)
    out = jax.block_until_ready(out)

    Ho = (H + 2 - 3) // stride + 1
    Wo = (W + 2 - 3) // stride + 1
    assert out.shape == (N, P, Ho, Wo), out.shape
    assert bool(jnp.all(jnp.isfinite(out)))
    assert bool(jnp.all(out >= 0.0))   # final ReLU

    ref = _reference_forward(x, w1, g1, b1, w2, g2, b2, stride)
    max_err = float(jnp.max(jnp.abs(out - ref)))
    # bf16 matmul operands + batch-stat BN -> loose tolerance vs the f32 reference.
    assert max_err < 1e-1, f"max abs err vs f32 reference: {max_err}"

    print("KERNEL_OK")
</pallas_src>

<mosaic_0001>
module attributes {stable_mosaic.version = 11 : i64} {
  func.func @_conv1_stats_kernel(%arg0: i32, %arg1: memref<1x18x18x128xbf16, #tpu.memory_space<vmem>>, %arg2: memref<1152x128xbf16, #tpu.memory_space<vmem>>, %arg3: memref<1x16x16x128xf32, #tpu.memory_space<vmem>>, %arg4: memref<1x1x128xf32, #tpu.memory_space<vmem>>, %arg5: memref<1x1x128xf32, #tpu.memory_space<vmem>>) attributes {dimension_semantics = [#tpu.dimension_semantics<parallel>], iteration_bounds = array<i64: 2>, scalar_prefetch = 0 : i64, scratch_operands = 0 : i64, tpu.core_type = #tpu.core_type<tc>, window_params = [{transform_indices = @transform_0, window_bounds = array<i64: 1, 18, 18, 128>}, {pipeline_mode = #tpu.pipeline_mode<synchronous>, transform_indices = @transform_1, window_bounds = array<i64: 1152, 128>}, {transform_indices = @transform_2, window_bounds = array<i64: 1, 16, 16, 128>}, {transform_indices = @transform_3, window_bounds = array<i64: 1, 1, 128>}, {transform_indices = @transform_4, window_bounds = array<i64: 1, 1, 128>}]} {
    %c0 = arith.constant 0 : index
    %c0_0 = arith.constant 0 : index
    %c0_1 = arith.constant 0 : index
    %c0_2 = arith.constant 0 : index
    %0 = vector.load %arg1[%c0, %c0_0, %c0_1, %c0_2] : memref<1x18x18x128xbf16, #tpu.memory_space<vmem>>, vector<1x16x16x128xbf16>
    %1 = vector.shape_cast %0 : vector<1x16x16x128xbf16> to vector<16x16x128xbf16>
    %2 = vector.shape_cast %1 : vector<16x16x128xbf16> to vector<256x128xbf16>
    %c0_3 = arith.constant 0 : index
    %c0_4 = arith.constant 0 : index
    %3 = vector.load %arg2[%c0_3, %c0_4] : memref<1152x128xbf16, #tpu.memory_space<vmem>>, vector<128x128xbf16>
    %cst = arith.constant dense<0.000000e+00> : vector<256x128xf32>
    %4 = tpu.matmul %2, %3, %cst {dimension_numbers = #tpu.dot_dimension_numbers<[1], [0], [0], [1], [0, 0, 1, 1], [], []>} : vector<256x128xbf16>, vector<128x128xbf16>, vector<256x128xf32> -> vector<256x128xf32>
    %c0_5 = arith.constant 0 : index
    %c0_6 = arith.constant 0 : index
    %c1 = arith.constant 1 : index
    %c0_7 = arith.constant 0 : index
    %5 = vector.load %arg1[%c0_5, %c0_6, %c1, %c0_7] : memref<1x18x18x128xbf16, #tpu.memory_space<vmem>>, vector<1x16x16x128xbf16>
    %6 = vector.shape_cast %5 : vector<1x16x16x128xbf16> to vector<16x16x128xbf16>
    %7 = vector.shape_cast %6 : vector<16x16x128xbf16> to vector<256x128xbf16>
    %c128 = arith.constant 128 : index
    %c0_8 = arith.constant 0 : index
    %8 = vector.load %arg2[%c128, %c0_8] : memref<1152x128xbf16, #tpu.memory_space<vmem>>, vector<128x128xbf16>
    %cst_9 = arith.constant dense<0.000000e+00> : vector<256x128xf32>
    %9 = tpu.matmul %7, %8, %cst_9 {dimension_numbers = #tpu.dot_dimension_numbers<[1], [0], [0], [1], [0, 0, 1, 1], [], []>} : vector<256x128xbf16>, vector<128x128xbf16>, vector<256x128xf32> -> vector<256x128xf32>
    %10 = arith.addf %4, %9 : vector<256x128xf32>
    %c0_10 = arith.constant 0 : index
    %c0_11 = arith.constant 0 : index
    %c2 = arith.constant 2 : index
    %c0_12 = arith.constant 0 : index
    %11 = vector.load %arg1[%c0_10, %c0_11, %c2, %c0_12] : memref<1x18x18x128xbf16, #tpu.memory_space<vmem>>, vector<1x16x16x128xbf16>
    %12 = vector.shape_cast %11 : vector<1x16x16x128xbf16> to vector<16x16x128xbf16>
    %13 = vector.shape_cast %12 : vector<16x16x128xbf16> to vector<256x128xbf16>
    %c256 = arith.constant 256 : index
    %c0_13 = arith.constant 0 : index
    %14 = vector.load %arg2[%c256, %c0_13] : memref<1152x128xbf16, #tpu.memory_space<vmem>>, vector<128x128xbf16>
    %cst_14 = arith.constant dense<0.000000e+00> : vector<256x128xf32>
    %15 = tpu.matmul %13, %14, %cst_14 {dimension_numbers = #tpu.dot_dimension_numbers<[1], [0], [0], [1], [0, 0, 1, 1], [], []>} : vector<256x128xbf16>, vector<128x128xbf16>, vector<256x128xf32> -> vector<256x128xf32>
    %16 = arith.addf %10, %15 : vector<256x128xf32>
    %c0_15 = arith.constant 0 : index
    %c1_16 = arith.constant 1 : index
    %c0_17 = arith.constant 0 : index
    %c0_18 = arith.constant 0 : index
    %17 = vector.load %arg1[%c0_15, %c1_16, %c0_17, %c0_18] : memref<1x18x18x128xbf16, #tpu.memory_space<vmem>>, vector<1x16x16x128xbf16>
    %18 = vector.shape_cast %17 : vector<1x16x16x128xbf16> to vector<16x16x128xbf16>
    %19 = vector.shape_cast %18 : vector<16x16x128xbf16> to vector<256x128xbf16>
    %c384 = arith.constant 384 : index
    %c0_19 = arith.constant 0 : index
    %20 = vector.load %arg2[%c384, %c0_19] : memref<1152x128xbf16, #tpu.memory_space<vmem>>, vector<128x128xbf16>
    %cst_20 = arith.constant dense<0.000000e+00> : vector<256x128xf32>
    %21 = tpu.matmul %19, %20, %cst_20 {dimension_numbers = #tpu.dot_dimension_numbers<[1], [0], [0], [1], [0, 0, 1, 1], [], []>} : vector<256x128xbf16>, vector<128x128xbf16>, vector<256x128xf32> -> vector<256x128xf32>
    %22 = arith.addf %16, %21 : vector<256x128xf32>
    %c0_21 = arith.constant 0 : index
    %c1_22 = arith.constant 1 : index
    %c1_23 = arith.constant 1 : index
    %c0_24 = arith.constant 0 : index
    %23 = vector.load %arg1[%c0_21, %c1_22, %c1_23, %c0_24] : memref<1x18x18x128xbf16, #tpu.memory_space<vmem>>, vector<1x16x16x128xbf16>
    %24 = vector.shape_cast %23 : vector<1x16x16x128xbf16> to vector<16x16x128xbf16>
    %25 = vector.shape_cast %24 : vector<16x16x128xbf16> to vector<256x128xbf16>
    %c512 = arith.constant 512 : index
    %c0_25 = arith.constant 0 : index
    %26 = vector.load %arg2[%c512, %c0_25] : memref<1152x128xbf16, #tpu.memory_space<vmem>>, vector<128x128xbf16>
    %cst_26 = arith.constant dense<0.000000e+00> : vector<256x128xf32>
    %27 = tpu.matmul %25, %26, %cst_26 {dimension_numbers = #tpu.dot_dimension_numbers<[1], [0], [0], [1], [0, 0, 1, 1], [], []>} : vector<256x128xbf16>, vector<128x128xbf16>, vector<256x128xf32> -> vector<256x128xf32>
    %28 = arith.addf %22, %27 : vector<256x128xf32>
    %c0_27 = arith.constant 0 : index
    %c1_28 = arith.constant 1 : index
    %c2_29 = arith.constant 2 : index
    %c0_30 = arith.constant 0 : index
    %29 = vector.load %arg1[%c0_27, %c1_28, %c2_29, %c0_30] : memref<1x18x18x128xbf16, #tpu.memory_space<vmem>>, vector<1x16x16x128xbf16>
    %30 = vector.shape_cast %29 : vector<1x16x16x128xbf16> to vector<16x16x128xbf16>
    %31 = vector.shape_cast %30 : vector<16x16x128xbf16> to vector<256x128xbf16>
    %c640 = arith.constant 640 : index
    %c0_31 = arith.constant 0 : index
    %32 = vector.load %arg2[%c640, %c0_31] : memref<1152x128xbf16, #tpu.memory_space<vmem>>, vector<128x128xbf16>
    %cst_32 = arith.constant dense<0.000000e+00> : vector<256x128xf32>
    %33 = tpu.matmul %31, %32, %cst_32 {dimension_numbers = #tpu.dot_dimension_numbers<[1], [0], [0], [1], [0, 0, 1, 1], [], []>} : vector<256x128xbf16>, vector<128x128xbf16>, vector<256x128xf32> -> vector<256x128xf32>
    %34 = arith.addf %28, %33 : vector<256x128xf32>
    %c0_33 = arith.constant 0 : index
    %c2_34 = arith.constant 2 : index
    %c0_35 = arith.constant 0 : index
    %c0_36 = arith.constant 0 : index
    %35 = vector.load %arg1[%c0_33, %c2_34, %c0_35, %c0_36] : memref<1x18x18x128xbf16, #tpu.memory_space<vmem>>, vector<1x16x16x128xbf16>
    %36 = vector.shape_cast %35 : vector<1x16x16x128xbf16> to vector<16x16x128xbf16>
    %37 = vector.shape_cast %36 : vector<16x16x128xbf16> to vector<256x128xbf16>
    %c768 = arith.constant 768 : index
    %c0_37 = arith.constant 0 : index
    %38 = vector.load %arg2[%c768, %c0_37] : memref<1152x128xbf16, #tpu.memory_space<vmem>>, vector<128x128xbf16>
    %cst_38 = arith.constant dense<0.000000e+00> : vector<256x128xf32>
    %39 = tpu.matmul %37, %38, %cst_38 {dimension_numbers = #tpu.dot_dimension_numbers<[1], [0], [0], [1], [0, 0, 1, 1], [], []>} : vector<256x128xbf16>, vector<128x128xbf16>, vector<256x128xf32> -> vector<256x128xf32>
    %40 = arith.addf %34, %39 : vector<256x128xf32>
    %c0_39 = arith.constant 0 : index
    %c2_40 = arith.constant 2 : index
    %c1_41 = arith.constant 1 : index
    %c0_42 = arith.constant 0 : index
    %41 = vector.load %arg1[%c0_39, %c2_40, %c1_41, %c0_42] : memref<1x18x18x128xbf16, #tpu.memory_space<vmem>>, vector<1x16x16x128xbf16>
    %42 = vector.shape_cast %41 : vector<1x16x16x128xbf16> to vector<16x16x128xbf16>
    %43 = vector.shape_cast %42 : vector<16x16x128xbf16> to vector<256x128xbf16>
    %c896 = arith.constant 896 : index
    %c0_43 = arith.constant 0 : index
    %44 = vector.load %arg2[%c896, %c0_43] : memref<1152x128xbf16, #tpu.memory_space<vmem>>, vector<128x128xbf16>
    %cst_44 = arith.constant dense<0.000000e+00> : vector<256x128xf32>
    %45 = tpu.matmul %43, %44, %cst_44 {dimension_numbers = #tpu.dot_dimension_numbers<[1], [0], [0], [1], [0, 0, 1, 1], [], []>} : vector<256x128xbf16>, vector<128x128xbf16>, vector<256x128xf32> -> vector<256x128xf32>
    %46 = arith.addf %40, %45 : vector<256x128xf32>
    %c0_45 = arith.constant 0 : index
    %c2_46 = arith.constant 2 : index
    %c2_47 = arith.constant 2 : index
    %c0_48 = arith.constant 0 : index
    %47 = vector.load %arg1[%c0_45, %c2_46, %c2_47, %c0_48] : memref<1x18x18x128xbf16, #tpu.memory_space<vmem>>, vector<1x16x16x128xbf16>
    %48 = vector.shape_cast %47 : vector<1x16x16x128xbf16> to vector<16x16x128xbf16>
    %49 = vector.shape_cast %48 : vector<16x16x128xbf16> to vector<256x128xbf16>
    %c1024 = arith.constant 1024 : index
    %c0_49 = arith.constant 0 : index
    %50 = vector.load %arg2[%c1024, %c0_49] : memref<1152x128xbf16, #tpu.memory_space<vmem>>, vector<128x128xbf16>
    %cst_50 = arith.constant dense<0.000000e+00> : vector<256x128xf32>
    %51 = tpu.matmul %49, %50, %cst_50 {dimension_numbers = #tpu.dot_dimension_numbers<[1], [0], [0], [1], [0, 0, 1, 1], [], []>} : vector<256x128xbf16>, vector<128x128xbf16>, vector<256x128xf32> -> vector<256x128xf32>
    %52 = arith.addf %46, %51 : vector<256x128xf32>
    %cst_51 = arith.constant dense<0.000000e+00> : vector<128xf32>
    %53 = vector.multi_reduction <add>, %52, %cst_51 [0] : vector<256x128xf32> to vector<128xf32>
    %54 = vector.shape_cast %53 : vector<128xf32> to vector<1x128xf32>
    %55 = vector.shape_cast %54 : vector<1x128xf32> to vector<1x1x128xf32>
    %c0_52 = arith.constant 0 : index
    %c0_53 = arith.constant 0 : index
    %c0_54 = arith.constant 0 : index
    %56 = vector.load %arg4[%c0_52, %c0_53, %c0_54] : memref<1x1x128xf32, #tpu.memory_space<vmem>>, vector<1x1x128xf32>
    tpu.vector_store %arg4[%c0_52, %c0_53, %c0_54], %55 {strides = array<i32>} : memref<1x1x128xf32, #tpu.memory_space<vmem>>, vector<1x1x128xf32>,
    %57 = arith.mulf %52, %52 : vector<256x128xf32>
    %cst_55 = arith.constant dense<0.000000e+00> : vector<128xf32>
    %58 = vector.multi_reduction <add>, %57, %cst_55 [0] : vector<256x128xf32> to vector<128xf32>
    %59 = vector.shape_cast %58 : vector<128xf32> to vector<1x128xf32>
    %60 = vector.shape_cast %59 : vector<1x128xf32> to vector<1x1x128xf32>
    %c0_56 = arith.constant 0 : index
    %c0_57 = arith.constant 0 : index
    %c0_58 = arith.constant 0 : index
    %61 = vector.load %arg5[%c0_56, %c0_57, %c0_58] : memref<1x1x128xf32, #tpu.memory_space<vmem>>, vector<1x1x128xf32>
    tpu.vector_store %arg5[%c0_56, %c0_57, %c0_58], %60 {strides = array<i32>} : memref<1x1x128xf32, #tpu.memory_space<vmem>>, vector<1x1x128xf32>,
    %62 = vector.shape_cast %52 : vector<256x128xf32> to vector<1x16x16x128xf32>
    %c0_59 = arith.constant 0 : index
    %c0_60 = arith.constant 0 : index
    %c0_61 = arith.constant 0 : index
    %c0_62 = arith.constant 0 : index
    %63 = vector.load %arg3[%c0_59, %c0_60, %c0_61, %c0_62] : memref<1x16x16x128xf32, #tpu.memory_space<vmem>>, vector<1x16x16x128xf32>
    tpu.vector_store %arg3[%c0_59, %c0_60, %c0_61, %c0_62], %62 {strides = array<i32>} : memref<1x16x16x128xf32, #tpu.memory_space<vmem>>, vector<1x16x16x128xf32>,
    return
  }
  func.func @transform_0(%arg0: i32) -> (i32, i32, i32, i32) {
    %c0_i32 = arith.constant 0 : i32
    %c0_i32_0 = arith.constant 0 : i32
    %c0_i32_1 = arith.constant 0 : i32
    %c0_i32_2 = arith.constant 0 : i32
    return %arg0, %c0_i32, %c0_i32_0, %c0_i32_1 : i32, i32, i32, i32
  }
  func.func @transform_1(%arg0: i32) -> (i32, i32) {
    %c0_i32 = arith.constant 0 : i32
    %c0_i32_0 = arith.constant 0 : i32
    %c0_i32_1 = arith.constant 0 : i32
    return %c0_i32, %c0_i32_0 : i32, i32
  }
  func.func @transform_2(%arg0: i32) -> (i32, i32, i32, i32) {
    %c0_i32 = arith.constant 0 : i32
    %c0_i32_0 = arith.constant 0 : i32
    %c0_i32_1 = arith.constant 0 : i32
    %c0_i32_2 = arith.constant 0 : i32
    return %arg0, %c0_i32, %c0_i32_0, %c0_i32_1 : i32, i32, i32, i32
  }
  func.func @transform_3(%arg0: i32) -> (i32, i32, i32) {
    %c0_i32 = arith.constant 0 : i32
    %c0_i32_0 = arith.constant 0 : i32
    %c0_i32_1 = arith.constant 0 : i32
    return %arg0, %c0_i32, %c0_i32_0 : i32, i32, i32
  }
  func.func @transform_4(%arg0: i32) -> (i32, i32, i32) {
    %c0_i32 = arith.constant 0 : i32
    %c0_i32_0 = arith.constant 0 : i32
    %c0_i32_1 = arith.constant 0 : i32
    return %arg0, %c0_i32, %c0_i32_0 : i32, i32, i32
  }
}

module attributes {stable_mosaic.version = 11 : i64} {
  func.func @_bnrelu_conv2_stats_kernel(%arg0: i32, %arg1: memref<1x16x16x128xf32, #tpu.memory_space<vmem>>, %arg2: memref<1x1x128xf32, #tpu.memory_space<vmem>>, %arg3: memref<1x1x128xf32, #tpu.memory_space<vmem>>, %arg4: memref<1152x128xbf16, #tpu.memory_space<vmem>>, %arg5: memref<1x16x16x128xf32, #tpu.memory_space<vmem>>, %arg6: memref<1x1x128xf32, #tpu.memory_space<vmem>>, %arg7: memref<1x1x128xf32, #tpu.memory_space<vmem>>, %arg8: memref<18x48x128xbf16, #tpu.memory_space<vmem>>) attributes {dimension_semantics = [#tpu.dimension_semantics<parallel>], iteration_bounds = array<i64: 2>, scalar_prefetch = 0 : i64, scratch_operands = 1 : i64, tpu.core_type = #tpu.core_type<tc>, window_params = [{transform_indices = @transform_0, window_bounds = array<i64: 1, 16, 16, 128>}, {pipeline_mode = #tpu.pipeline_mode<synchronous>, transform_indices = @transform_1, window_bounds = array<i64: 1, 1, 128>}, {pipeline_mode = #tpu.pipeline_mode<synchronous>, transform_indices = @transform_2, window_bounds = array<i64: 1, 1, 128>}, {pipeline_mode = #tpu.pipeline_mode<synchronous>, transform_indices = @transform_3, window_bounds = array<i64: 1152, 128>}, {transform_indices = @transform_4, window_bounds = array<i64: 1, 16, 16, 128>}, {transform_indices = @transform_5, window_bounds = array<i64: 1, 1, 128>}, {transform_indices = @transform_6, window_bounds = array<i64: 1, 1, 128>}]} {
    %c0 = arith.constant 0 : index
    %c0_0 = arith.constant 0 : index
    %c0_1 = arith.constant 0 : index
    %c0_2 = arith.constant 0 : index
    %0 = vector.load %arg1[%c0, %c0_0, %c0_1, %c0_2] : memref<1x16x16x128xf32, #tpu.memory_space<vmem>>, vector<1x16x16x128xf32>
    %1 = vector.shape_cast %0 : vector<1x16x16x128xf32> to vector<16x16x128xf32>
    %c0_3 = arith.constant 0 : index
    %c0_4 = arith.constant 0 : index
    %c0_5 = arith.constant 0 : index
    %2 = vector.load %arg2[%c0_3, %c0_4, %c0_5] : memref<1x1x128xf32, #tpu.memory_space<vmem>>, vector<1x1x128xf32>
    %3 = vector.broadcast %2 : vector<1x1x128xf32> to vector<16x16x128xf32>
    %4 = arith.mulf %1, %3 : vector<16x16x128xf32>
    %c0_6 = arith.constant 0 : index
    %c0_7 = arith.constant 0 : index
    %c0_8 = arith.constant 0 : index
    %5 = vector.load %arg3[%c0_6, %c0_7, %c0_8] : memref<1x1x128xf32, #tpu.memory_space<vmem>>, vector<1x1x128xf32>
    %6 = vector.broadcast %5 : vector<1x1x128xf32> to vector<16x16x128xf32>
    %7 = arith.addf %4, %6 : vector<16x16x128xf32>
    %cst = arith.constant 0.000000e+00 : f32
    %8 = vector.broadcast %cst : f32 to vector<16x16x128xf32>
    %9 = arith.maximumf %7, %8 : vector<16x16x128xf32>
    %10 = arith.truncf %9 : vector<16x16x128xf32> to vector<16x16x128xbf16>
    %cst_9 = arith.constant 0.000000e+00 : bf16
    %11 = vector.broadcast %cst_9 : bf16 to vector<1x48x128xbf16>
    %c0_10 = arith.constant 0 : index
    %c0_11 = arith.constant 0 : index
    %c0_12 = arith.constant 0 : index
    %12 = vector.load %arg8[%c0_10, %c0_11, %c0_12] : memref<18x48x128xbf16, #tpu.memory_space<vmem>>, vector<1x48x128xbf16>
    tpu.vector_store %arg8[%c0_10, %c0_11, %c0_12], %11 {strides = array<i32>} : memref<18x48x128xbf16, #tpu.memory_space<vmem>>, vector<1x48x128xbf16>,
    %c17 = arith.constant 17 : index
    %c0_13 = arith.constant 0 : index
    %c0_14 = arith.constant 0 : index
    %13 = vector.load %arg8[%c17, %c0_13, %c0_14] : memref<18x48x128xbf16, #tpu.memory_space<vmem>>, vector<1x48x128xbf16>
    tpu.vector_store %arg8[%c17, %c0_13, %c0_14], %11 {strides = array<i32>} : memref<18x48x128xbf16, #tpu.memory_space<vmem>>, vector<1x48x128xbf16>,
    %cst_15 = arith.constant 0.000000e+00 : bf16
    %14 = vector.broadcast %cst_15 : bf16 to vector<18x16x128xbf16>
    %c0_16 = arith.constant 0 : index
    %c0_17 = arith.constant 0 : index
    %c0_18 = arith.constant 0 : index
    %15 = vector.load %arg8[%c0_16, %c0_17, %c0_18] : memref<18x48x128xbf16, #tpu.memory_space<vmem>>, vector<18x16x128xbf16>
    tpu.vector_store %arg8[%c0_16, %c0_17, %c0_18], %14 {strides = array<i32>} : memref<18x48x128xbf16, #tpu.memory_space<vmem>>, vector<18x16x128xbf16>,
    %c0_19 = arith.constant 0 : index
    %c32 = arith.constant 32 : index
    %c0_20 = arith.constant 0 : index
    %16 = vector.load %arg8[%c0_19, %c32, %c0_20] : memref<18x48x128xbf16, #tpu.memory_space<vmem>>, vector<18x16x128xbf16>
    tpu.vector_store %arg8[%c0_19, %c32, %c0_20], %14 {strides = array<i32>} : memref<18x48x128xbf16, #tpu.memory_space<vmem>>, vector<18x16x128xbf16>,
    %c1 = arith.constant 1 : index
    %c16 = arith.constant 16 : index
    %c0_21 = arith.constant 0 : index
    %17 = vector.load %arg8[%c1, %c16, %c0_21] : memref<18x48x128xbf16, #tpu.memory_space<vmem>>, vector<16x16x128xbf16>
    tpu.vector_store %arg8[%c1, %c16, %c0_21], %10 {strides = array<i32>} : memref<18x48x128xbf16, #tpu.memory_space<vmem>>, vector<16x16x128xbf16>,
    %c0_22 = arith.constant 0 : index
    %c15 = arith.constant 15 : index
    %c0_23 = arith.constant 0 : index
    %18 = vector.load %arg8[%c0_22, %c15, %c0_23] : memref<18x48x128xbf16, #tpu.memory_space<vmem>>, vector<16x16x128xbf16>
    %19 = vector.shape_cast %18 : vector<16x16x128xbf16> to vector<256x128xbf16>
    %c0_24 = arith.constant 0 : index
    %c0_25 = arith.constant 0 : index
    %20 = vector.load %arg4[%c0_24, %c0_25] : memref<1152x128xbf16, #tpu.memory_space<vmem>>, vector<128x128xbf16>
    %cst_26 = arith.constant dense<0.000000e+00> : vector<256x128xf32>
    %21 = tpu.matmul %19, %20, %cst_26 {dimension_numbers = #tpu.dot_dimension_numbers<[1], [0], [0], [1], [0, 0, 1, 1], [], []>} : vector<256x128xbf16>, vector<128x128xbf16>, vector<256x128xf32> -> vector<256x128xf32>
    %c0_27 = arith.constant 0 : index
    %c16_28 = arith.constant 16 : index
    %c0_29 = arith.constant 0 : index
    %22 = vector.load %arg8[%c0_27, %c16_28, %c0_29] : memref<18x48x128xbf16, #tpu.memory_space<vmem>>, vector<16x16x128xbf16>
    %23 = vector.shape_cast %22 : vector<16x16x128xbf16> to vector<256x128xbf16>
    %c128 = arith.constant 128 : index
    %c0_30 = arith.constant 0 : index
    %24 = vector.load %arg4[%c128, %c0_30] : memref<1152x128xbf16, #tpu.memory_space<vmem>>, vector<128x128xbf16>
    %cst_31 = arith.constant dense<0.000000e+00> : vector<256x128xf32>
    %25 = tpu.matmul %23, %24, %cst_31 {dimension_numbers = #tpu.dot_dimension_numbers<[1], [0], [0], [1], [0, 0, 1, 1], [], []>} : vector<256x128xbf16>, vector<128x128xbf16>, vector<256x128xf32> -> vector<256x128xf32>
    %26 = arith.addf %21, %25 : vector<256x128xf32>
    %c0_32 = arith.constant 0 : index
    %c17_33 = arith.constant 17 : index
    %c0_34 = arith.constant 0 : index
    %27 = vector.load %arg8[%c0_32, %c17_33, %c0_34] : memref<18x48x128xbf16, #tpu.memory_space<vmem>>, vector<16x16x128xbf16>
    %28 = vector.shape_cast %27 : vector<16x16x128xbf16> to vector<256x128xbf16>
    %c256 = arith.constant 256 : index
    %c0_35 = arith.constant 0 : index
    %29 = vector.load %arg4[%c256, %c0_35] : memref<1152x128xbf16, #tpu.memory_space<vmem>>, vector<128x128xbf16>
    %cst_36 = arith.constant dense<0.000000e+00> : vector<256x128xf32>
    %30 = tpu.matmul %28, %29, %cst_36 {dimension_numbers = #tpu.dot_dimension_numbers<[1], [0], [0], [1], [0, 0, 1, 1], [], []>} : vector<256x128xbf16>, vector<128x128xbf16>, vector<256x128xf32> -> vector<256x128xf32>
    %31 = arith.addf %26, %30 : vector<256x128xf32>
    %c1_37 = arith.constant 1 : index
    %c15_38 = arith.constant 15 : index
    %c0_39 = arith.constant 0 : index
    %32 = vector.load %arg8[%c1_37, %c15_38, %c0_39] : memref<18x48x128xbf16, #tpu.memory_space<vmem>>, vector<16x16x128xbf16>
    %33 = vector.shape_cast %32 : vector<16x16x128xbf16> to vector<256x128xbf16>
    %c384 = arith.constant 384 : index
    %c0_40 = arith.constant 0 : index
    %34 = vector.load %arg4[%c384, %c0_40] : memref<1152x128xbf16, #tpu.memory_space<vmem>>, vector<128x128xbf16>
    %cst_41 = arith.constant dense<0.000000e+00> : vector<256x128xf32>
    %35 = tpu.matmul %33, %34, %cst_41 {dimension_numbers = #tpu.dot_dimension_numbers<[1], [0], [0], [1], [0, 0, 1, 1], [], []>} : vector<256x128xbf16>, vector<128x128xbf16>, vector<256x128xf32> -> vector<256x128xf32>
    %36 = arith.addf %31, %35 : vector<256x128xf32>
    %c1_42 = arith.constant 1 : index
    %c16_43 = arith.constant 16 : index
    %c0_44 = arith.constant 0 : index
    %37 = vector.load %arg8[%c1_42, %c16_43, %c0_44] : memref<18x48x128xbf16, #tpu.memory_space<vmem>>, vector<16x16x128xbf16>
    %38 = vector.shape_cast %37 : vector<16x16x128xbf16> to vector<256x128xbf16>
    %c512 = arith.constant 512 : index
    %c0_45 = arith.constant 0 : index
    %39 = vector.load %arg4[%c512, %c0_45] : memref<1152x128xbf16, #tpu.memory_space<vmem>>, vector<128x128xbf16>
    %cst_46 = arith.constant dense<0.000000e+00> : vector<256x128xf32>
    %40 = tpu.matmul %38, %39, %cst_46 {dimension_numbers = #tpu.dot_dimension_numbers<[1], [0], [0], [1], [0, 0, 1, 1], [], []>} : vector<256x128xbf16>, vector<128x128xbf16>, vector<256x128xf32> -> vector<256x128xf32>
    %41 = arith.addf %36, %40 : vector<256x128xf32>
    %c1_47 = arith.constant 1 : index
    %c17_48 = arith.constant 17 : index
    %c0_49 = arith.constant 0 : index
    %42 = vector.load %arg8[%c1_47, %c17_48, %c0_49] : memref<18x48x128xbf16, #tpu.memory_space<vmem>>, vector<16x16x128xbf16>
    %43 = vector.shape_cast %42 : vector<16x16x128xbf16> to vector<256x128xbf16>
    %c640 = arith.constant 640 : index
    %c0_50 = arith.constant 0 : index
    %44 = vector.load %arg4[%c640, %c0_50] : memref<1152x128xbf16, #tpu.memory_space<vmem>>, vector<128x128xbf16>
    %cst_51 = arith.constant dense<0.000000e+00> : vector<256x128xf32>
    %45 = tpu.matmul %43, %44, %cst_51 {dimension_numbers = #tpu.dot_dimension_numbers<[1], [0], [0], [1], [0, 0, 1, 1], [], []>} : vector<256x128xbf16>, vector<128x128xbf16>, vector<256x128xf32> -> vector<256x128xf32>
    %46 = arith.addf %41, %45 : vector<256x128xf32>
    %c2 = arith.constant 2 : index
    %c15_52 = arith.constant 15 : index
    %c0_53 = arith.constant 0 : index
    %47 = vector.load %arg8[%c2, %c15_52, %c0_53] : memref<18x48x128xbf16, #tpu.memory_space<vmem>>, vector<16x16x128xbf16>
    %48 = vector.shape_cast %47 : vector<16x16x128xbf16> to vector<256x128xbf16>
    %c768 = arith.constant 768 : index
    %c0_54 = arith.constant 0 : index
    %49 = vector.load %arg4[%c768, %c0_54] : memref<1152x128xbf16, #tpu.memory_space<vmem>>, vector<128x128xbf16>
    %cst_55 = arith.constant dense<0.000000e+00> : vector<256x128xf32>
    %50 = tpu.matmul %48, %49, %cst_55 {dimension_numbers = #tpu.dot_dimension_numbers<[1], [0], [0], [1], [0, 0, 1, 1], [], []>} : vector<256x128xbf16>, vector<128x128xbf16>, vector<256x128xf32> -> vector<256x128xf32>
    %51 = arith.addf %46, %50 : vector<256x128xf32>
    %c2_56 = arith.constant 2 : index
    %c16_57 = arith.constant 16 : index
    %c0_58 = arith.constant 0 : index
    %52 = vector.load %arg8[%c2_56, %c16_57, %c0_58] : memref<18x48x128xbf16, #tpu.memory_space<vmem>>, vector<16x16x128xbf16>
    %53 = vector.shape_cast %52 : vector<16x16x128xbf16> to vector<256x128xbf16>
    %c896 = arith.constant 896 : index
    %c0_59 = arith.constant 0 : index
    %54 = vector.load %arg4[%c896, %c0_59] : memref<1152x128xbf16, #tpu.memory_space<vmem>>, vector<128x128xbf16>
    %cst_60 = arith.constant dense<0.000000e+00> : vector<256x128xf32>
    %55 = tpu.matmul %53, %54, %cst_60 {dimension_numbers = #tpu.dot_dimension_numbers<[1], [0], [0], [1], [0, 0, 1, 1], [], []>} : vector<256x128xbf16>, vector<128x128xbf16>, vector<256x128xf32> -> vector<256x128xf32>
    %56 = arith.addf %51, %55 : vector<256x128xf32>
    %c2_61 = arith.constant 2 : index
    %c17_62 = arith.constant 17 : index
    %c0_63 = arith.constant 0 : index
    %57 = vector.load %arg8[%c2_61, %c17_62, %c0_63] : memref<18x48x128xbf16, #tpu.memory_space<vmem>>, vector<16x16x128xbf16>
    %58 = vector.shape_cast %57 : vector<16x16x128xbf16> to vector<256x128xbf16>
    %c1024 = arith.constant 1024 : index
    %c0_64 = arith.constant 0 : index
    %59 = vector.load %arg4[%c1024, %c0_64] : memref<1152x128xbf16, #tpu.memory_space<vmem>>, vector<128x128xbf16>
    %cst_65 = arith.constant dense<0.000000e+00> : vector<256x128xf32>
    %60 = tpu.matmul %58, %59, %cst_65 {dimension_numbers = #tpu.dot_dimension_numbers<[1], [0], [0], [1], [0, 0, 1, 1], [], []>} : vector<256x128xbf16>, vector<128x128xbf16>, vector<256x128xf32> -> vector<256x128xf32>
    %61 = arith.addf %56, %60 : vector<256x128xf32>
    %cst_66 = arith.constant dense<0.000000e+00> : vector<128xf32>
    %62 = vector.multi_reduction <add>, %61, %cst_66 [0] : vector<256x128xf32> to vector<128xf32>
    %63 = vector.shape_cast %62 : vector<128xf32> to vector<1x128xf32>
    %64 = vector.shape_cast %63 : vector<1x128xf32> to vector<1x1x128xf32>
    %c0_67 = arith.constant 0 : index
    %c0_68 = arith.constant 0 : index
    %c0_69 = arith.constant 0 : index
    %65 = vector.load %arg6[%c0_67, %c0_68, %c0_69] : memref<1x1x128xf32, #tpu.memory_space<vmem>>, vector<1x1x128xf32>
    tpu.vector_store %arg6[%c0_67, %c0_68, %c0_69], %64 {strides = array<i32>} : memref<1x1x128xf32, #tpu.memory_space<vmem>>, vector<1x1x128xf32>,
    %66 = arith.mulf %61, %61 : vector<256x128xf32>
    %cst_70 = arith.constant dense<0.000000e+00> : vector<128xf32>
    %67 = vector.multi_reduction <add>, %66, %cst_70 [0] : vector<256x128xf32> to vector<128xf32>
    %68 = vector.shape_cast %67 : vector<128xf32> to vector<1x128xf32>
    %69 = vector.shape_cast %68 : vector<1x128xf32> to vector<1x1x128xf32>
    %c0_71 = arith.constant 0 : index
    %c0_72 = arith.constant 0 : index
    %c0_73 = arith.constant 0 : index
    %70 = vector.load %arg7[%c0_71, %c0_72, %c0_73] : memref<1x1x128xf32, #tpu.memory_space<vmem>>, vector<1x1x128xf32>
    tpu.vector_store %arg7[%c0_71, %c0_72, %c0_73], %69 {strides = array<i32>} : memref<1x1x128xf32, #tpu.memory_space<vmem>>, vector<1x1x128xf32>,
    %71 = vector.shape_cast %61 : vector<256x128xf32> to vector<1x16x16x128xf32>
    %c0_74 = arith.constant 0 : index
    %c0_75 = arith.constant 0 : index
    %c0_76 = arith.constant 0 : index
    %c0_77 = arith.constant 0 : index
    %72 = vector.load %arg5[%c0_74, %c0_75, %c0_76, %c0_77] : memref<1x16x16x128xf32, #tpu.memory_space<vmem>>, vector<1x16x16x128xf32>
    tpu.vector_store %arg5[%c0_74, %c0_75, %c0_76, %c0_77], %71 {strides = array<i32>} : memref<1x16x16x128xf32, #tpu.memory_space<vmem>>, vector<1x16x16x128xf32>,
    return
  }
  func.func @transform_0(%arg0: i32) -> (i32, i32, i32, i32) {
    %c0_i32 = arith.constant 0 : i32
    %c0_i32_0 = arith.constant 0 : i32
    %c0_i32_1 = arith.constant 0 : i32
    %c0_i32_2 = arith.constant 0 : i32
    return %arg0, %c0_i32, %c0_i32_0, %c0_i32_1 : i32, i32, i32, i32
  }
  func.func @transform_1(%arg0: i32) -> (i32, i32, i32) {
    %c0_i32 = arith.constant 0 : i32
    %c0_i32_0 = arith.constant 0 : i32
    %c0_i32_1 = arith.constant 0 : i32
    %c0_i32_2 = arith.constant 0 : i32
    return %c0_i32, %c0_i32_0, %c0_i32_1 : i32, i32, i32
  }
  func.func @transform_2(%arg0: i32) -> (i32, i32, i32) {
    %c0_i32 = arith.constant 0 : i32
    %c0_i32_0 = arith.constant 0 : i32
    %c0_i32_1 = arith.constant 0 : i32
    %c0_i32_2 = arith.constant 0 : i32
    return %c0_i32, %c0_i32_0, %c0_i32_1 : i32, i32, i32
  }
  func.func @transform_3(%arg0: i32) -> (i32, i32) {
    %c0_i32 = arith.constant 0 : i32
    %c0_i32_0 = arith.constant 0 : i32
    %c0_i32_1 = arith.constant 0 : i32
    return %c0_i32, %c0_i32_0 : i32, i32
  }
  func.func @transform_4(%arg0: i32) -> (i32, i32, i32, i32) {
    %c0_i32 = arith.constant 0 : i32
    %c0_i32_0 = arith.constant 0 : i32
    %c0_i32_1 = arith.constant 0 : i32
    %c0_i32_2 = arith.constant 0 : i32
    return %arg0, %c0_i32, %c0_i32_0, %c0_i32_1 : i32, i32, i32, i32
  }
  func.func @transform_5(%arg0: i32) -> (i32, i32, i32) {
    %c0_i32 = arith.constant 0 : i32
    %c0_i32_0 = arith.constant 0 : i32
    %c0_i32_1 = arith.constant 0 : i32
    return %arg0, %c0_i32, %c0_i32_0 : i32, i32, i32
  }
  func.func @transform_6(%arg0: i32) -> (i32, i32, i32) {
    %c0_i32 = arith.constant 0 : i32
    %c0_i32_0 = arith.constant 0 : i32
    %c0_i32_1 = arith.constant 0 : i32
    return %arg0, %c0_i32, %c0_i32_0 : i32, i32, i32
  }
}

module attributes {stable_mosaic.version = 11 : i64} {
  func.func @_bn_relu_kernel(%arg0: i32, %arg1: memref<1x16x16x128xf32, #tpu.memory_space<vmem>>, %arg2: memref<1x1x128xf32, #tpu.memory_space<vmem>>, %arg3: memref<1x1x128xf32, #tpu.memory_space<vmem>>, %arg4: memref<1x16x16x128xf32, #tpu.memory_space<vmem>>) attributes {dimension_semantics = [#tpu.dimension_semantics<parallel>], iteration_bounds = array<i64: 2>, scalar_prefetch = 0 : i64, scratch_operands = 0 : i64, tpu.core_type = #tpu.core_type<tc>, window_params = [{transform_indices = @transform_0, window_bounds = array<i64: 1, 16, 16, 128>}, {pipeline_mode = #tpu.pipeline_mode<synchronous>, transform_indices = @transform_1, window_bounds = array<i64: 1, 1, 128>}, {pipeline_mode = #tpu.pipeline_mode<synchronous>, transform_indices = @transform_2, window_bounds = array<i64: 1, 1, 128>}, {transform_indices = @transform_3, window_bounds = array<i64: 1, 16, 16, 128>}]} {
    %c0 = arith.constant 0 : index
    %c0_0 = arith.constant 0 : index
    %c0_1 = arith.constant 0 : index
    %c0_2 = arith.constant 0 : index
    %0 = vector.load %arg1[%c0, %c0_0, %c0_1, %c0_2] : memref<1x16x16x128xf32, #tpu.memory_space<vmem>>, vector<1x16x16x128xf32>
    %c0_3 = arith.constant 0 : index
    %c0_4 = arith.constant 0 : index
    %c0_5 = arith.constant 0 : index
    %1 = vector.load %arg2[%c0_3, %c0_4, %c0_5] : memref<1x1x128xf32, #tpu.memory_space<vmem>>, vector<1x1x128xf32>
    %2 = vector.shape_cast %1 : vector<1x1x128xf32> to vector<1x1x1x128xf32>
    %3 = vector.broadcast %2 : vector<1x1x1x128xf32> to vector<1x16x16x128xf32>
    %4 = arith.mulf %0, %3 : vector<1x16x16x128xf32>
    %c0_6 = arith.constant 0 : index
    %c0_7 = arith.constant 0 : index
    %c0_8 = arith.constant 0 : index
    %5 = vector.load %arg3[%c0_6, %c0_7, %c0_8] : memref<1x1x128xf32, #tpu.memory_space<vmem>>, vector<1x1x128xf32>
    %6 = vector.shape_cast %5 : vector<1x1x128xf32> to vector<1x1x1x128xf32>
    %7 = vector.broadcast %6 : vector<1x1x1x128xf32> to vector<1x16x16x128xf32>
    %8 = arith.addf %4, %7 : vector<1x16x16x128xf32>
    %cst = arith.constant 0.000000e+00 : f32
    %9 = vector.broadcast %cst : f32 to vector<1x16x16x128xf32>
    %10 = arith.maximumf %8, %9 : vector<1x16x16x128xf32>
    %c0_9 = arith.constant 0 : index
    %c0_10 = arith.constant 0 : index
    %c0_11 = arith.constant 0 : index
    %c0_12 = arith.constant 0 : index
    %11 = vector.load %arg4[%c0_9, %c0_10, %c0_11, %c0_12] : memref<1x16x16x128xf32, #tpu.memory_space<vmem>>, vector<1x16x16x128xf32>
    tpu.vector_store %arg4[%c0_9, %c0_10, %c0_11, %c0_12], %10 {strides = array<i32>} : memref<1x16x16x128xf32, #tpu.memory_space<vmem>>, vector<1x16x16x128xf32>,
    return
  }
  func.func @transform_0(%arg0: i32) -> (i32, i32, i32, i32) {
    %c0_i32 = arith.constant 0 : i32
    %c0_i32_0 = arith.constant 0 : i32
    %c0_i32_1 = arith.constant 0 : i32
    %c0_i32_2 = arith.constant 0 : i32
    return %arg0, %c0_i32, %c0_i32_0, %c0_i32_1 : i32, i32, i32, i32
  }
  func.func @transform_1(%arg0: i32) -> (i32, i32, i32) {
    %c0_i32 = arith.constant 0 : i32
    %c0_i32_0 = arith.constant 0 : i32
    %c0_i32_1 = arith.constant 0 : i32
    %c0_i32_2 = arith.constant 0 : i32
    return %c0_i32, %c0_i32_0, %c0_i32_1 : i32, i32, i32
  }
  func.func @transform_2(%arg0: i32) -> (i32, i32, i32) {
    %c0_i32 = arith.constant 0 : i32
    %c0_i32_0 = arith.constant 0 : i32
    %c0_i32_1 = arith.constant 0 : i32
    %c0_i32_2 = arith.constant 0 : i32
    return %c0_i32, %c0_i32_0, %c0_i32_1 : i32, i32, i32
  }
  func.func @transform_3(%arg0: i32) -> (i32, i32, i32, i32) {
    %c0_i32 = arith.constant 0 : i32
    %c0_i32_0 = arith.constant 0 : i32
    %c0_i32_1 = arith.constant 0 : i32
    %c0_i32_2 = arith.constant 0 : i32
    return %arg0, %c0_i32, %c0_i32_0, %c0_i32_1 : i32, i32, i32, i32
  }
}

</mosaic_0001>

<llo_original>
// kernel: basic_block_forward.5
$region0: #{basic_block_forward.5}
  #allocation0 [shape = 'u32[]', space=smem, size = 0x4, offset = 0x4, fixed_abs, tag = 'smem constant byte address 0x4 - core index']
  #allocation1 [shape = 'u32[144,128]{1,0:T(1,128)}', space=vmem, size = 0x12000, scoped, tag = 'internal scratch']
  %s0 = inlined_call_operand.vmem [shape: f32[2,16,16,128], index: 0, kind: input, shape index: {}]
  %s1 = inlined_call_operand.vmem [shape: f32[1,1,128], index: 1, kind: input, shape index: {}]
  %s2 = inlined_call_operand.vmem [shape: f32[1,1,128], index: 2, kind: input, shape index: {}]
  %s3 = inlined_call_operand.vmem [shape: f32[2,16,16,128], index: 3, kind: output, shape index: {}]
  %s4 = sld [smem:[#allocation0]]
  $region45: #{basic_block_forward.5} parent=0
    _
  %s6 = ssub.s32 1, %s4
  %s7 = scalar_select 0, %s6, %s4
  loop: start=0, step=1, limit=4
  $region2: #{basic_block_forward.5} parent=0 // loop_pre_header
    _
  $region3: #{basic_block_forward.5} parent=0 // loop_header
    %s9 = sphi 0, %s13
    %p10 = scmp.ge.s32.totalorder %s9, 4
    %s19 = sphi 0, %s21
    %s22 = sphi 0, %s19
    %s23 = sphi 0, %s22
    %s39 = sphi 0, %s23
    %s43 = sphi 0, %s43
    %s45 = sphi 0, %s43
    %s46 = sphi 0, %s45
    %s60 = sphi 0, %s46
    %s64 = sphi 0, %s64
    %s66 = sphi 0, %s64
    %s67 = sphi 0, %s66
    %s81 = sphi 0, %s67
    %s87 = sphi 0, %s89
    %s90 = sphi 0, %s87
    %s91 = sphi 0, %s90
    %s107 = sphi 0, %s91
  $region4: #{basic_block_forward.5} parent=0 // loop_header_branch
    %12 = sbr.rel (%p10) target = $region8
  $region5: #{basic_block_forward.5} parent=0 // loop_body
    %s14 = ssub.s32 %s9, 1
    %s15 = ssub.s32 %s9, 2
    %s16 = sadd.s32 %s9, 1
    %s17 = ssub.s32 %s9, %s16
    %p18 = scmp.eq.s32.totalorder %s17, 0
    %s20 = sadd.s32 %s19, 1
    %s21 = scalar_select %p18, %s19, %s20
    %p24 = pneg %p18
    %p25 = scmp.eq.s32.totalorder %s9, 1
    %p26 = por %p24, %p25
    %p27 = scmp.ne.s32.totalorder %s19, %s22
    %p28 = scmp.eq.s32.totalorder %s9, 0
    %p29 = por %p27, %p28
    %p30 = scmp.ne.s32.totalorder %s19, %s22
    %p31 = scmp.eq.s32.totalorder %s14, 1
    %p32 = por %p30, %p31
    %p33 = scmp.ne.s32.totalorder %s22, %s23
    %p34 = scmp.eq.s32.totalorder %s14, 0
    %p35 = por %p33, %p34
    %p36 = scmp.ne.s32.totalorder %s22, %s23
    %p37 = scmp.eq.s32.totalorder %s15, 1
    %p38 = por %p36, %p37
    %p40 = scmp.ne.s32.totalorder %s23, %s39
    %p41 = scmp.eq.s32.totalorder %s15, 0
    %p42 = por %p40, %p41
    %s44 = sadd.s32 %s43, 1
    %p47 = scmp.eq.s32.totalorder %s9, 1
    %p48 = scmp.ne.s32.totalorder %s43, %s45
    %p49 = scmp.eq.s32.totalorder %s9, 0
    %p50 = por %p48, %p49
    %p51 = scmp.ne.s32.totalorder %s43, %s45
    %p52 = scmp.eq.s32.totalorder %s14, 1
    %p53 = por %p51, %p52
    %p54 = scmp.ne.s32.totalorder %s45, %s46
    %p55 = scmp.eq.s32.totalorder %s14, 0
    %p56 = por %p54, %p55
    %p57 = scmp.ne.s32.totalorder %s45, %s46
    %p58 = scmp.eq.s32.totalorder %s15, 1
    %p59 = por %p57, %p58
    %p61 = scmp.ne.s32.totalorder %s46, %s60
    %p62 = scmp.eq.s32.totalorder %s15, 0
    %p63 = por %p61, %p62
    %s65 = sadd.s32 %s64, 1
    %p68 = scmp.eq.s32.totalorder %s9, 1
    %p69 = scmp.ne.s32.totalorder %s64, %s66
    %p70 = scmp.eq.s32.totalorder %s9, 0
    %p71 = por %p69, %p70
    %p72 = scmp.ne.s32.totalorder %s64, %s66
    %p73 = scmp.eq.s32.totalorder %s14, 1
    %p74 = por %p72, %p73
    %p75 = scmp.ne.s32.totalorder %s66, %s67
    %p76 = scmp.eq.s32.totalorder %s14, 0
    %p77 = por %p75, %p76
    %p78 = scmp.ne.s32.totalorder %s66, %s67
    %p79 = scmp.eq.s32.totalorder %s15, 1
    %p80 = por %p78, %p79
    %p82 = scmp.ne.s32.totalorder %s67, %s81
    %p83 = scmp.eq.s32.totalorder %s15, 0
    %p84 = por %p82, %p83
    %s85 = ssub.s32 %s9, %s16
    %p86 = scmp.eq.s32.totalorder %s85, 0
    %s88 = sadd.s32 %s87, 1
    %s89 = scalar_select %p86, %s87, %s88
    %p92 = pneg %p86
    %p93 = scmp.eq.s32.totalorder %s9, 1
    %p94 = por %p92, %p93
    %p95 = scmp.ne.s32.totalorder %s87, %s90
    %p96 = scmp.eq.s32.totalorder %s9, 0
    %p97 = por %p95, %p96
    %p98 = scmp.ne.s32.totalorder %s87, %s90
    %p99 = scmp.eq.s32.totalorder %s14, 1
    %p100 = por %p98, %p99
    %p101 = scmp.ne.s32.totalorder %s90, %s91
    %p102 = scmp.eq.s32.totalorder %s14, 0
    %p103 = por %p101, %p102
    %p104 = scmp.ne.s32.totalorder %s90, %s91
    %p105 = scmp.eq.s32.totalorder %s15, 1
    %p106 = por %p104, %p105
    %p108 = scmp.ne.s32.totalorder %s91, %s107
    %p109 = scmp.eq.s32.totalorder %s15, 0
    %p110 = por %p108, %p109
    %p111 = scmp.le.s32.totalorder 1, %s9
    %p112 = scmp.lt.s32.totalorder %s9, 3
    %p113 = pnand %p111, %p112
    %p114 = pneg %p113
    // Predicated region
    $region9: #{basic_block_forward.5} parent=5 // pred_check
      _
    $region10: #{basic_block_forward.5} parent=5 // pred_check_branch
      %116 = sbr.rel (%p113) target = $region12
    $region11: #{basic_block_forward.5} parent=5 // pred_region
      %s117 = ssub.s32 %s9, 1
      // Predicated region
      $region13: #{basic_block_forward.5} parent=11 // pred_check
        %p118 = pneg %p56
      $region14: #{basic_block_forward.5} parent=11 // pred_check_branch
        %120 = sbr.rel (%p118) target = $region16
      $region15: #{basic_block_forward.5} parent=11 // pred_region
        _
      $region16: #{basic_block_forward.5} parent=11 // pred_fallthru
        _
      // Predicated region
      $region17: #{basic_block_forward.5} parent=11 // pred_check
        %p121 = pneg %p77
      $region18: #{basic_block_forward.5} parent=11 // pred_check_branch
        %123 = sbr.rel (%p121) target = $region20
      $region19: #{basic_block_forward.5} parent=11 // pred_region
        _
      $region20: #{basic_block_forward.5} parent=11 // pred_fallthru
        _
    $region12: #{basic_block_forward.5} parent=5 // pred_fallthru
      _
    %p124 = scmp.lt.s32.totalorder %s9, 2
    // Predicated region
    $region21: #{basic_block_forward.5} parent=5 // pred_check
      %p125 = pneg %p124
    $region22: #{basic_block_forward.5} parent=5 // pred_check_branch
      %127 = sbr.rel (%p125) target = $region24
    $region23: #{basic_block_forward.5} parent=5 // pred_region
      // Predicated region
      $region25: #{basic_block_forward.5} parent=23 // pred_check
        %p128 = pneg %p29
      $region26: #{basic_block_forward.5} parent=23 // pred_check_branch
        %130 = sbr.rel (%p128) target = $region28
      $region27: #{basic_block_forward.5} parent=23 // pred_region
        %p131 = scmp.lt.s32.totalorder %s9, 1
        %s132 = scalar_select %p131, %s9, 1
        %s133 = smul.addr %s132, 32
        %s134 = smul.addr %s133, 8
        %s135 = scalar_lea.vmem %s0, %s134
      $region28: #{basic_block_forward.5} parent=23 // pred_fallthru
        _
    $region24: #{basic_block_forward.5} parent=5 // pred_fallthru
      _
    %p136 = scmp.le.s32.totalorder 1, %s9
    %p137 = scmp.lt.s32.totalorder %s9, 3
    %p138 = pnand %p136, %p137
    %p139 = pneg %p138
    // Predicated region
    $region29: #{basic_block_forward.5} parent=5 // pred_check
      _
    $region30: #{basic_block_forward.5} parent=5 // pred_check_branch
      %141 = sbr.rel (%p138) target = $region32
    $region31: #{basic_block_forward.5} parent=5 // pred_region
      %s142 = ssub.s32 %s9, 1
      %p143 = scmp.lt.s32.totalorder %s14, 1
      %s144 = scalar_select %p143, %s14, 1
      %s145 = smul.addr %s144, 32
      %s146 = smul.addr %s145, 8
      %s147 = scalar_lea.vmem %s0, %s146
      %p148 = pneg %p35
      %p149 = pneg %p32
      %p150 = pneg %p56
      %p151 = pneg %p53
      %p152 = pneg %p77
      %p153 = pneg %p74
      %p154 = pneg %p103
      %p155 = pneg %p100
      %p156 = scmp.lt.s32.totalorder %s14, 1
      %s157 = scalar_select %p156, %s14, 1
      %s158 = smul.addr %s157, 32
      %s159 = smul.addr %s158, 8
      %s160 = scalar_lea.vmem %s3, %s159
      %p161 = scmp.lt.s32.totalorder %s14, 1
      %s162 = scalar_select %p161, %s14, 1
      %s163 = smul.addr %s162, 32
      %s164 = smul.addr %s163, 8
      %s165 = scalar_lea.vmem %s0, %s164
      %p166 = scmp.lt.s32.totalorder %s14, 1
      %s167 = scalar_select %p166, %s14, 1
      %s168 = smul.addr %s167, 32
      %s169 = smul.addr %s168, 8
      %s170 = scalar_lea.vmem %s3, %s169
      %v171 = vld [vmem:[%s165] sm:$0xff]
      %v172 = vld [vmem:[%s165 + $0x8] sm:$0xff]
      %v173 = vld [vmem:[%s165 + $0x10] sm:$0xff]
      %v174 = vld [vmem:[%s165 + $0x18] sm:$0xff]
      %v175 = vld [vmem:[%s165 + $0x20] sm:$0xff]
      %v176 = vld [vmem:[%s165 + $0x28] sm:$0xff]
      %v177 = vld [vmem:[%s165 + $0x30] sm:$0xff]
      %v178 = vld [vmem:[%s165 + $0x38] sm:$0xff]
      %v179 = vld [vmem:[%s165 + $0x40] sm:$0xff]
      %v180 = vld [vmem:[%s165 + $0x48] sm:$0xff]
      %v181 = vld [vmem:[%s165 + $0x50] sm:$0xff]
      %v182 = vld [vmem:[%s165 + $0x58] sm:$0xff]
      %v183 = vld [vmem:[%s165 + $0x60] sm:$0xff]
      %v184 = vld [vmem:[%s165 + $0x68] sm:$0xff]
      %v185 = vld [vmem:[%s165 + $0x70] sm:$0xff]
      %v186 = vld [vmem:[%s165 + $0x78] sm:$0xff]
      %v187 = vld [vmem:[%s165 + $0x80] sm:$0xff]
      %v188 = vld [vmem:[%s165 + $0x88] sm:$0xff]
      %v189 = vld [vmem:[%s165 + $0x90] sm:$0xff]
      %v190 = vld [vmem:[%s165 + $0x98] sm:$0xff]
      %v191 = vld [vmem:[%s165 + $0xa0] sm:$0xff]
      %v192 = vld [vmem:[%s165 + $0xa8] sm:$0xff]
      %v193 = vld [vmem:[%s165 + $0xb0] sm:$0xff]
      %v194 = vld [vmem:[%s165 + $0xb8] sm:$0xff]
      %v195 = vld [vmem:[%s165 + $0xc0] sm:$0xff]
      %v196 = vld [vmem:[%s165 + $0xc8] sm:$0xff]
      %v197 = vld [vmem:[%s165 + $0xd0] sm:$0xff]
      %v198 = vld [vmem:[%s165 + $0xd8] sm:$0xff]
      %v199 = vld [vmem:[%s165 + $0xe0] sm:$0xff]
      %v200 = vld [vmem:[%s165 + $0xe8] sm:$0xff]
      %v201 = vld [vmem:[%s165 + $0xf0] sm:$0xff]
      %v202 = vld [vmem:[%s165 + $0xf8] sm:$0xff]
      %v203 = vld [vmem:[%s1] sm:$0x1]
      %v205 = vlaneseq
      %v206 = vshrl.u32 %v205, 7
      %v207 = vsub.s32 0, %v206
      %v208 = vrot.slane %v203, %v207
      %v210 = vmul.f32 %v171, %v208
      %v211 = vmul.f32 %v172, %v208
      %v212 = vmul.f32 %v173, %v208
      %v213 = vmul.f32 %v174, %v208
      %v214 = vmul.f32 %v175, %v208
      %v215 = vmul.f32 %v176, %v208
      %v216 = vmul.f32 %v177, %v208
      %v217 = vmul.f32 %v178, %v208
      %v218 = vmul.f32 %v179, %v208
      %v219 = vmul.f32 %v180, %v208
      %v220 = vmul.f32 %v181, %v208
      %v221 = vmul.f32 %v182, %v208
      %v222 = vmul.f32 %v183, %v208
      %v223 = vmul.f32 %v184, %v208
      %v224 = vmul.f32 %v185, %v208
      %v225 = vmul.f32 %v186, %v208
      %v226 = vmul.f32 %v187, %v208
      %v227 = vmul.f32 %v188, %v208
      %v228 = vmul.f32 %v189, %v208
      %v229 = vmul.f32 %v190, %v208
      %v230 = vmul.f32 %v191, %v208
      %v231 = vmul.f32 %v192, %v208
      %v232 = vmul.f32 %v193, %v208
      %v233 = vmul.f32 %v194, %v208
      %v234 = vmul.f32 %v195, %v208
      %v235 = vmul.f32 %v196, %v208
      %v236 = vmul.f32 %v197, %v208
      %v237 = vmul.f32 %v198, %v208
      %v238 = vmul.f32 %v199, %v208
      %v239 = vmul.f32 %v200, %v208
      %v240 = vmul.f32 %v201, %v208
      %v241 = vmul.f32 %v202, %v208
      %v242 = vld [vmem:[%s2] sm:$0x1]
      %v244 = vlaneseq
      %v245 = vshrl.u32 %v244, 7
      %v246 = vsub.s32 0, %v245
      %v247 = vrot.slane %v242, %v246
      %v249 = vadd.f32 %v210, %v247
      %v250 = vadd.f32 %v211, %v247
      %v251 = vadd.f32 %v212, %v247
      %v252 = vadd.f32 %v213, %v247
      %v253 = vadd.f32 %v214, %v247
      %v254 = vadd.f32 %v215, %v247
      %v255 = vadd.f32 %v216, %v247
      %v256 = vadd.f32 %v217, %v247
      %v257 = vadd.f32 %v218, %v247
      %v258 = vadd.f32 %v219, %v247
      %v259 = vadd.f32 %v220, %v247
      %v260 = vadd.f32 %v221, %v247
      %v261 = vadd.f32 %v222, %v247
      %v262 = vadd.f32 %v223, %v247
      %v263 = vadd.f32 %v224, %v247
      %v264 = vadd.f32 %v225, %v247
      %v265 = vadd.f32 %v226, %v247
      %v266 = vadd.f32 %v227, %v247
      %v267 = vadd.f32 %v228, %v247
      %v268 = vadd.f32 %v229, %v247
      %v269 = vadd.f32 %v230, %v247
      %v270 = vadd.f32 %v231, %v247
      %v271 = vadd.f32 %v232, %v247
      %v272 = vadd.f32 %v233, %v247
      %v273 = vadd.f32 %v234, %v247
      %v274 = vadd.f32 %v235, %v247
      %v275 = vadd.f32 %v236, %v247
      %v276 = vadd.f32 %v237, %v247
      %v277 = vadd.f32 %v238, %v247
      %v278 = vadd.f32 %v239, %v247
      %v279 = vadd.f32 %v240, %v247
      %v280 = vadd.f32 %v241, %v247
      %v281 = vmax.f32 %v249, 0.0
      %v282 = vmax.f32 %v250, 0.0
      %v283 = vmax.f32 %v251, 0.0
      %v284 = vmax.f32 %v252, 0.0
      %v285 = vmax.f32 %v253, 0.0
      %v286 = vmax.f32 %v254, 0.0
      %v287 = vmax.f32 %v255, 0.0
      %v288 = vmax.f32 %v256, 0.0
      %v289 = vmax.f32 %v257, 0.0
      %v290 = vmax.f32 %v258, 0.0
      %v291 = vmax.f32 %v259, 0.0
      %v292 = vmax.f32 %v260, 0.0
      %v293 = vmax.f32 %v261, 0.0
      %v294 = vmax.f32 %v262, 0.0
      %v295 = vmax.f32 %v263, 0.0
      %v296 = vmax.f32 %v264, 0.0
      %v297 = vmax.f32 %v265, 0.0
      %v298 = vmax.f32 %v266, 0.0
      %v299 = vmax.f32 %v267, 0.0
      %v300 = vmax.f32 %v268, 0.0
      %v301 = vmax.f32 %v269, 0.0
      %v302 = vmax.f32 %v270, 0.0
      %v303 = vmax.f32 %v271, 0.0
      %v304 = vmax.f32 %v272, 0.0
      %v305 = vmax.f32 %v273, 0.0
      %v306 = vmax.f32 %v274, 0.0
      %v307 = vmax.f32 %v275, 0.0
      %v308 = vmax.f32 %v276, 0.0
      %v309 = vmax.f32 %v277, 0.0
      %v310 = vmax.f32 %v278, 0.0
      %v311 = vmax.f32 %v279, 0.0
      %v312 = vmax.f32 %v280, 0.0
      %313 = vst [vmem:[%s170] sm:$0xff] %v281
      %314 = vst [vmem:[%s170 + $0x8] sm:$0xff] %v282
      %315 = vst [vmem:[%s170 + $0x10] sm:$0xff] %v283
      %316 = vst [vmem:[%s170 + $0x18] sm:$0xff] %v284
      %317 = vst [vmem:[%s170 + $0x20] sm:$0xff] %v285
      %318 = vst [vmem:[%s170 + $0x28] sm:$0xff] %v286
      %319 = vst [vmem:[%s170 + $0x30] sm:$0xff] %v287
      %320 = vst [vmem:[%s170 + $0x38] sm:$0xff] %v288
      %321 = vst [vmem:[%s170 + $0x40] sm:$0xff] %v289
      %322 = vst [vmem:[%s170 + $0x48] sm:$0xff] %v290
      %323 = vst [vmem:[%s170 + $0x50] sm:$0xff] %v291
      %324 = vst [vmem:[%s170 + $0x58] sm:$0xff] %v292
      %325 = vst [vmem:[%s170 + $0x60] sm:$0xff] %v293
      %326 = vst [vmem:[%s170 + $0x68] sm:$0xff] %v294
      %327 = vst [vmem:[%s170 + $0x70] sm:$0xff] %v295
      %328 = vst [vmem:[%s170 + $0x78] sm:$0xff] %v296
      %329 = vst [vmem:[%s170 + $0x80] sm:$0xff] %v297
      %330 = vst [vmem:[%s170 + $0x88] sm:$0xff] %v298
      %331 = vst [vmem:[%s170 + $0x90] sm:$0xff] %v299
      %332 = vst [vmem:[%s170 + $0x98] sm:$0xff] %v300
      %333 = vst [vmem:[%s170 + $0xa0] sm:$0xff] %v301
      %334 = vst [vmem:[%s170 + $0xa8] sm:$0xff] %v302
      %335 = vst [vmem:[%s170 + $0xb0] sm:$0xff] %v303
      %336 = vst [vmem:[%s170 + $0xb8] sm:$0xff] %v304
      %337 = vst [vmem:[%s170 + $0xc0] sm:$0xff] %v305
      %338 = vst [vmem:[%s170 + $0xc8] sm:$0xff] %v306
      %339 = vst [vmem:[%s170 + $0xd0] sm:$0xff] %v307
      %340 = vst [vmem:[%s170 + $0xd8] sm:$0xff] %v308
      %341 = vst [vmem:[%s170 + $0xe0] sm:$0xff] %v309
      %342 = vst [vmem:[%s170 + $0xe8] sm:$0xff] %v310
      %343 = vst [vmem:[%s170 + $0xf0] sm:$0xff] %v311
      %344 = vst [vmem:[%s170 + $0xf8] sm:$0xff] %v312
      %p345 = scmp.lt.s32.totalorder %s14, 1
      %s346 = scalar_select %p345, %s14, 1
      %s347 = smul.addr %s346, 32
      %s348 = smul.addr %s347, 8
      %s349 = scalar_lea.vmem %s3, %s348
      // Predicated region
      $region33: #{basic_block_forward.5} parent=31 // pred_check
        %p350 = pneg %p100
      $region34: #{basic_block_forward.5} parent=31 // pred_check_branch
        %352 = sbr.rel (%p350) target = $region36
      $region35: #{basic_block_forward.5} parent=31 // pred_region
        _
      $region36: #{basic_block_forward.5} parent=31 // pred_fallthru
        _
    $region32: #{basic_block_forward.5} parent=5 // pred_fallthru
      _
    %p353 = scmp.le.s32.totalorder 2, %s9
    // Predicated region
    $region37: #{basic_block_forward.5} parent=5 // pred_check
      %p354 = pneg %p353
    $region38: #{basic_block_forward.5} parent=5 // pred_check_branch
      %356 = sbr.rel (%p354) target = $region40
    $region39: #{basic_block_forward.5} parent=5 // pred_region
      %s357 = ssub.s32 %s9, 2
      // Predicated region
      $region41: #{basic_block_forward.5} parent=39 // pred_check
        %p358 = pneg %p106
      $region42: #{basic_block_forward.5} parent=39 // pred_check_branch
        %360 = sbr.rel (%p358) target = $region44
      $region43: #{basic_block_forward.5} parent=39 // pred_region
        %p361 = scmp.lt.s32.totalorder %s15, 1
        %s362 = scalar_select %p361, %s15, 1
        %s363 = smul.addr %s362, 32
        %s364 = smul.addr %s363, 8
        %s365 = scalar_lea.vmem %s3, %s364
      $region44: #{basic_block_forward.5} parent=39 // pred_fallthru
        _
    $region40: #{basic_block_forward.5} parent=5 // pred_fallthru
      _
  $region6: #{basic_block_forward.5} parent=0 // loop_footer
    %s13 = sadd.s32 1, %s9
  $region7: #{basic_block_forward.5} parent=0 // loop_footer_branch
    %8 = sbr.rel target = $region3
  $region8: #{basic_block_forward.5} parent=0 // loop_exit
    _

// kernel: basic_block_forward.4
$region0: #{basic_block_forward.4}
  #allocation0 [shape = 'u32[]', space=smem, size = 0x4, offset = 0x4, fixed_abs, tag = 'smem constant byte address 0x4 - core index']
  #allocation1 [shape = 'u32[144,128]{1,0:T(1,128)}', space=vmem, size = 0x12000, scoped, tag = 'internal scratch']
  #allocation2 [shape = 'bf16[18,48,128]{2,1,0:T(16,128)(2,1)}', space=vmem, size = 0x36000, scoped, tag = 'scratch operand']
  %s0 = inlined_call_operand.vmem [shape: f32[2,16,16,128], index: 0, kind: input, shape index: {}]
  %s1 = inlined_call_operand.vmem [shape: f32[1,1,128], index: 1, kind: input, shape index: {}]
  %s2 = inlined_call_operand.vmem [shape: f32[1,1,128], index: 2, kind: input, shape index: {}]
  %s3 = inlined_call_operand.vmem [shape: bf16[1152,128], index: 3, kind: input, shape index: {}]
  %s4 = inlined_call_operand.vmem [shape: f32[2,16,16,128], index: 4, kind: output, shape index: {0}]
  %s5 = inlined_call_operand.vmem [shape: f32[2,1,128], index: 5, kind: output, shape index: {1}]
  %s6 = inlined_call_operand.vmem [shape: f32[2,1,128], index: 6, kind: output, shape index: {2}]
  %7 = xla_tuple %s4, %s5, %s6
  %s8 = sld [smem:[#allocation0]]
  $region65: #{basic_block_forward.4} parent=0
    _
  %s10 = ssub.s32 1, %s8
  %s11 = scalar_select 0, %s10, %s8
  loop: start=0, step=1, limit=4
  $region2: #{basic_block_forward.4} parent=0 // loop_pre_header
    _
  $region3: #{basic_block_forward.4} parent=0 // loop_header
    %s13 = sphi 0, %s17
    %p14 = scmp.ge.s32.totalorder %s13, 4
    %s23 = sphi 0, %s25
    %s26 = sphi 0, %s23
    %s27 = sphi 0, %s26
    %s43 = sphi 0, %s27
    %s47 = sphi 0, %s47
    %s49 = sphi 0, %s47
    %s50 = sphi 0, %s49
    %s64 = sphi 0, %s50
    %s68 = sphi 0, %s68
    %s70 = sphi 0, %s68
    %s71 = sphi 0, %s70
    %s85 = sphi 0, %s71
    %s89 = sphi 0, %s89
    %s91 = sphi 0, %s89
    %s92 = sphi 0, %s91
    %s106 = sphi 0, %s92
    %s112 = sphi 0, %s114
    %s115 = sphi 0, %s112
    %s116 = sphi 0, %s115
    %s132 = sphi 0, %s116
    %s138 = sphi 0, %s140
    %s141 = sphi 0, %s138
    %s142 = sphi 0, %s141
    %s158 = sphi 0, %s142
    %s164 = sphi 0, %s166
    %s167 = sphi 0, %s164
    %s168 = sphi 0, %s167
    %s184 = sphi 0, %s168
  $region4: #{basic_block_forward.4} parent=0 // loop_header_branch
    %16 = sbr.rel (%p14) target = $region8
  $region5: #{basic_block_forward.4} parent=0 // loop_body
    %s18 = ssub.s32 %s13, 1
    %s19 = ssub.s32 %s13, 2
    %s20 = sadd.s32 %s13, 1
    %s21 = ssub.s32 %s13, %s20
    %p22 = scmp.eq.s32.totalorder %s21, 0
    %s24 = sadd.s32 %s23, 1
    %s25 = scalar_select %p22, %s23, %s24
    %p28 = pneg %p22
    %p29 = scmp.eq.s32.totalorder %s13, 1
    %p30 = por %p28, %p29
    %p31 = scmp.ne.s32.totalorder %s23, %s26
    %p32 = scmp.eq.s32.totalorder %s13, 0
    %p33 = por %p31, %p32
    %p34 = scmp.ne.s32.totalorder %s23, %s26
    %p35 = scmp.eq.s32.totalorder %s18, 1
    %p36 = por %p34, %p35
    %p37 = scmp.ne.s32.totalorder %s26, %s27
    %p38 = scmp.eq.s32.totalorder %s18, 0
    %p39 = por %p37, %p38
    %p40 = scmp.ne.s32.totalorder %s26, %s27
    %p41 = scmp.eq.s32.totalorder %s19, 1
    %p42 = por %p40, %p41
    %p44 = scmp.ne.s32.totalorder %s27, %s43
    %p45 = scmp.eq.s32.totalorder %s19, 0
    %p46 = por %p44, %p45
    %s48 = sadd.s32 %s47, 1
    %p51 = scmp.eq.s32.totalorder %s13, 1
    %p52 = scmp.ne.s32.totalorder %s47, %s49
    %p53 = scmp.eq.s32.totalorder %s13, 0
    %p54 = por %p52, %p53
    %p55 = scmp.ne.s32.totalorder %s47, %s49
    %p56 = scmp.eq.s32.totalorder %s18, 1
    %p57 = por %p55, %p56
    %p58 = scmp.ne.s32.totalorder %s49, %s50
    %p59 = scmp.eq.s32.totalorder %s18, 0
    %p60 = por %p58, %p59
    %p61 = scmp.ne.s32.totalorder %s49, %s50
    %p62 = scmp.eq.s32.totalorder %s19, 1
    %p63 = por %p61, %p62
    %p65 = scmp.ne.s32.totalorder %s50, %s64
    %p66 = scmp.eq.s32.totalorder %s19, 0
    %p67 = por %p65, %p66
    %s69 = sadd.s32 %s68, 1
    %p72 = scmp.eq.s32.totalorder %s13, 1
    %p73 = scmp.ne.s32.totalorder %s68, %s70
    %p74 = scmp.eq.s32.totalorder %s13, 0
    %p75 = por %p73, %p74
    %p76 = scmp.ne.s32.totalorder %s68, %s70
    %p77 = scmp.eq.s32.totalorder %s18, 1
    %p78 = por %p76, %p77
    %p79 = scmp.ne.s32.totalorder %s70, %s71
    %p80 = scmp.eq.s32.totalorder %s18, 0
    %p81 = por %p79, %p80
    %p82 = scmp.ne.s32.totalorder %s70, %s71
    %p83 = scmp.eq.s32.totalorder %s19, 1
    %p84 = por %p82, %p83
    %p86 = scmp.ne.s32.totalorder %s71, %s85
    %p87 = scmp.eq.s32.totalorder %s19, 0
    %p88 = por %p86, %p87
    %s90 = sadd.s32 %s89, 1
    %p93 = scmp.eq.s32.totalorder %s13, 1
    %p94 = scmp.ne.s32.totalorder %s89, %s91
    %p95 = scmp.eq.s32.totalorder %s13, 0
    %p96 = por %p94, %p95
    %p97 = scmp.ne.s32.totalorder %s89, %s91
    %p98 = scmp.eq.s32.totalorder %s18, 1
    %p99 = por %p97, %p98
    %p100 = scmp.ne.s32.totalorder %s91, %s92
    %p101 = scmp.eq.s32.totalorder %s18, 0
    %p102 = por %p100, %p101
    %p103 = scmp.ne.s32.totalorder %s91, %s92
    %p104 = scmp.eq.s32.totalorder %s19, 1
    %p105 = por %p103, %p104
    %p107 = scmp.ne.s32.totalorder %s92, %s106
    %p108 = scmp.eq.s32.totalorder %s19, 0
    %p109 = por %p107, %p108
    %s110 = ssub.s32 %s13, %s20
    %p111 = scmp.eq.s32.totalorder %s110, 0
    %s113 = sadd.s32 %s112, 1
    %s114 = scalar_select %p111, %s112, %s113
    %p117 = pneg %p111
    %p118 = scmp.eq.s32.totalorder %s13, 1
    %p119 = por %p117, %p118
    %p120 = scmp.ne.s32.totalorder %s112, %s115
    %p121 = scmp.eq.s32.totalorder %s13, 0
    %p122 = por %p120, %p121
    %p123 = scmp.ne.s32.totalorder %s112, %s115
    %p124 = scmp.eq.s32.totalorder %s18, 1
    %p125 = por %p123, %p124
    %p126 = scmp.ne.s32.totalorder %s115, %s116
    %p127 = scmp.eq.s32.totalorder %s18, 0
    %p128 = por %p126, %p127
    %p129 = scmp.ne.s32.totalorder %s115, %s116
    %p130 = scmp.eq.s32.totalorder %s19, 1
    %p131 = por %p129, %p130
    %p133 = scmp.ne.s32.totalorder %s116, %s132
    %p134 = scmp.eq.s32.totalorder %s19, 0
    %p135 = por %p133, %p134
    %s136 = ssub.s32 %s13, %s20
    %p137 = scmp.eq.s32.totalorder %s136, 0
    %s139 = sadd.s32 %s138, 1
    %s140 = scalar_select %p137, %s138, %s139
    %p143 = pneg %p137
    %p144 = scmp.eq.s32.totalorder %s13, 1
    %p145 = por %p143, %p144
    %p146 = scmp.ne.s32.totalorder %s138, %s141
    %p147 = scmp.eq.s32.totalorder %s13, 0
    %p148 = por %p146, %p147
    %p149 = scmp.ne.s32.totalorder %s138, %s141
    %p150 = scmp.eq.s32.totalorder %s18, 1
    %p151 = por %p149, %p150
    %p152 = scmp.ne.s32.totalorder %s141, %s142
    %p153 = scmp.eq.s32.totalorder %s18, 0
    %p154 = por %p152, %p153
    %p155 = scmp.ne.s32.totalorder %s141, %s142
    %p156 = scmp.eq.s32.totalorder %s19, 1
    %p157 = por %p155, %p156
    %p159 = scmp.ne.s32.totalorder %s142, %s158
    %p160 = scmp.eq.s32.totalorder %s19, 0
    %p161 = por %p159, %p160
    %s162 = ssub.s32 %s13, %s20
    %p163 = scmp.eq.s32.totalorder %s162, 0
    %s165 = sadd.s32 %s164, 1
    %s166 = scalar_select %p163, %s164, %s165
    %p169 = pneg %p163
    %p170 = scmp.eq.s32.totalorder %s13, 1
    %p171 = por %p169, %p170
    %p172 = scmp.ne.s32.totalorder %s164, %s167
    %p173 = scmp.eq.s32.totalorder %s13, 0
    %p174 = por %p172, %p173
    %p175 = scmp.ne.s32.totalorder %s164, %s167
    %p176 = scmp.eq.s32.totalorder %s18, 1
    %p177 = por %p175, %p176
    %p178 = scmp.ne.s32.totalorder %s167, %s168
    %p179 = scmp.eq.s32.totalorder %s18, 0
    %p180 = por %p178, %p179
    %p181 = scmp.ne.s32.totalorder %s167, %s168
    %p182 = scmp.eq.s32.totalorder %s19, 1
    %p183 = por %p181, %p182
    %p185 = scmp.ne.s32.totalorder %s168, %s184
    %p186 = scmp.eq.s32.totalorder %s19, 0
    %p187 = por %p185, %p186
    %p188 = scmp.le.s32.totalorder 1, %s13
    %p189 = scmp.lt.s32.totalorder %s13, 3
    %p190 = pnand %p188, %p189
    %p191 = pneg %p190
    // Predicated region
    $region9: #{basic_block_forward.4} parent=5 // pred_check
      _
    $region10: #{basic_block_forward.4} parent=5 // pred_check_branch
      %193 = sbr.rel (%p190) target = $region12
    $region11: #{basic_block_forward.4} parent=5 // pred_region
      %s194 = ssub.s32 %s13, 1
      // Predicated region
      $region13: #{basic_block_forward.4} parent=11 // pred_check
        %p195 = pneg %p60
      $region14: #{basic_block_forward.4} parent=11 // pred_check_branch
        %197 = sbr.rel (%p195) target = $region16
      $region15: #{basic_block_forward.4} parent=11 // pred_region
        _
      $region16: #{basic_block_forward.4} parent=11 // pred_fallthru
        _
      // Predicated region
      $region17: #{basic_block_forward.4} parent=11 // pred_check
        %p198 = pneg %p81
      $region18: #{basic_block_forward.4} parent=11 // pred_check_branch
        %200 = sbr.rel (%p198) target = $region20
      $region19: #{basic_block_forward.4} parent=11 // pred_region
        _
      $region20: #{basic_block_forward.4} parent=11 // pred_fallthru
        _
      // Predicated region
      $region21: #{basic_block_forward.4} parent=11 // pred_check
        %p201 = pneg %p102
      $region22: #{basic_block_forward.4} parent=11 // pred_check_branch
        %203 = sbr.rel (%p201) target = $region24
      $region23: #{basic_block_forward.4} parent=11 // pred_region
        _
      $region24: #{basic_block_forward.4} parent=11 // pred_fallthru
        _
    $region12: #{basic_block_forward.4} parent=5 // pred_fallthru
      _
    %p204 = scmp.lt.s32.totalorder %s13, 2
    // Predicated region
    $region25: #{basic_block_forward.4} parent=5 // pred_check
      %p205 = pneg %p204
    $region26: #{basic_block_forward.4} parent=5 // pred_check_branch
      %207 = sbr.rel (%p205) target = $region28
    $region27: #{basic_block_forward.4} parent=5 // pred_region
      // Predicated region
      $region29: #{basic_block_forward.4} parent=27 // pred_check
        %p208 = pneg %p33
      $region30: #{basic_block_forward.4} parent=27 // pred_check_branch
        %210 = sbr.rel (%p208) target = $region32
      $region31: #{basic_block_forward.4} parent=27 // pred_region
        %p211 = scmp.lt.s32.totalorder %s13, 1
        %s212 = scalar_select %p211, %s13, 1
        %s213 = smul.addr %s212, 32
        %s214 = smul.addr %s213, 8
        %s215 = scalar_lea.vmem %s0, %s214
      $region32: #{basic_block_forward.4} parent=27 // pred_fallthru
        _
    $region28: #{basic_block_forward.4} parent=5 // pred_fallthru
      _
    %p216 = scmp.le.s32.totalorder 1, %s13
    %p217 = scmp.lt.s32.totalorder %s13, 3
    %p218 = pnand %p216, %p217
    %p219 = pneg %p218
    // Predicated region
    $region33: #{basic_block_forward.4} parent=5 // pred_check
      _
    $region34: #{basic_block_forward.4} parent=5 // pred_check_branch
      %221 = sbr.rel (%p218) target = $region36
    $region35: #{basic_block_forward.4} parent=5 // pred_region
      %s222 = ssub.s32 %s13, 1
      %p223 = scmp.lt.s32.totalorder %s18, 1
      %s224 = scalar_select %p223, %s18, 1
      %s225 = smul.addr %s224, 32
      %s226 = smul.addr %s225, 8
      %s227 = scalar_lea.vmem %s0, %s226
      %p228 = pneg %p39
      %p229 = pneg %p36
      %p230 = pneg %p60
      %p231 = pneg %p57
      %p232 = pneg %p81
      %p233 = pneg %p78
      %p234 = pneg %p102
      %p235 = pneg %p99
      %p236 = pneg %p128
      %p237 = pneg %p125
      %p238 = scmp.lt.s32.totalorder %s18, 1
      %s239 = scalar_select %p238, %s18, 1
      %s240 = smul.addr %s239, 32
      %s241 = smul.addr %s240, 8
      %s242 = scalar_lea.vmem %s4, %s241
      %p243 = pneg %p154
      %p244 = pneg %p151
      %p245 = scmp.lt.s32.totalorder %s18, 1
      %s246 = scalar_select %p245, %s18, 1
      %s247 = scalar_lea.vmem %s5, %s246
      %p248 = pneg %p180
      %p249 = pneg %p177
      %p250 = scmp.lt.s32.totalorder %s18, 1
      %s251 = scalar_select %p250, %s18, 1
      %s252 = scalar_lea.vmem %s6, %s251
      %p253 = scmp.lt.s32.totalorder %s18, 1
      %s254 = scalar_select %p253, %s18, 1
      %s255 = smul.addr %s254, 32
      %s256 = smul.addr %s255, 8
      %s257 = scalar_lea.vmem %s0, %s256
      %p258 = scmp.lt.s32.totalorder %s18, 1
      %s259 = scalar_select %p258, %s18, 1
      %s260 = smul.addr %s259, 32
      %s261 = smul.addr %s260, 8
      %s262 = scalar_lea.vmem %s4, %s261
      %p263 = scmp.lt.s32.totalorder %s18, 1
      %s264 = scalar_select %p263, %s18, 1
      %s265 = scalar_lea.vmem %s5, %s264
      %p266 = scmp.lt.s32.totalorder %s18, 1
      %s267 = scalar_select %p266, %s18, 1
      %s268 = scalar_lea.vmem %s6, %s267
      %v270 = vld [vmem:[%s257] sm:$0xff]
      %v271 = vld [vmem:[%s257 + $0x8] sm:$0xff]
      %v272 = vld [vmem:[%s257 + $0x10] sm:$0xff]
      %v273 = vld [vmem:[%s257 + $0x18] sm:$0xff]
      %v274 = vld [vmem:[%s257 + $0x20] sm:$0xff]
      %v275 = vld [vmem:[%s257 + $0x28] sm:$0xff]
      %v276 = vld [vmem:[%s257 + $0x30] sm:$0xff]
      %v277 = vld [vmem:[%s257 + $0x38] sm:$0xff]
      %v278 = vld [vmem:[%s257 + $0x40] sm:$0xff]
      %v279 = vld [vmem:[%s257 + $0x48] sm:$0xff]
      %v280 = vld [vmem:[%s257 + $0x50] sm:$0xff]
      %v281 = vld [vmem:[%s257 + $0x58] sm:$0xff]
      %v282 = vld [vmem:[%s257 + $0x60] sm:$0xff]
      %v283 = vld [vmem:[%s257 + $0x68] sm:$0xff]
      %v284 = vld [vmem:[%s257 + $0x70] sm:$0xff]
      %v285 = vld [vmem:[%s257 + $0x78] sm:$0xff]
      %v286 = vld [vmem:[%s257 + $0x80] sm:$0xff]
      %v287 = vld [vmem:[%s257 + $0x88] sm:$0xff]
      %v288 = vld [vmem:[%s257 + $0x90] sm:$0xff]
      %v289 = vld [vmem:[%s257 + $0x98] sm:$0xff]
      %v290 = vld [vmem:[%s257 + $0xa0] sm:$0xff]
      %v291 = vld [vmem:[%s257 + $0xa8] sm:$0xff]
      %v292 = vld [vmem:[%s257 + $0xb0] sm:$0xff]
      %v293 = vld [vmem:[%s257 + $0xb8] sm:$0xff]
      %v294 = vld [vmem:[%s257 + $0xc0] sm:$0xff]
      %v295 = vld [vmem:[%s257 + $0xc8] sm:$0xff]
      %v296 = vld [vmem:[%s257 + $0xd0] sm:$0xff]
      %v297 = vld [vmem:[%s257 + $0xd8] sm:$0xff]
      %v298 = vld [vmem:[%s257 + $0xe0] sm:$0xff]
      %v299 = vld [vmem:[%s257 + $0xe8] sm:$0xff]
      %v300 = vld [vmem:[%s257 + $0xf0] sm:$0xff]
      %v301 = vld [vmem:[%s257 + $0xf8] sm:$0xff]
      %v302 = vld [vmem:[%s1] sm:$0x1]
      %v304 = vlaneseq
      %v305 = vshrl.u32 %v304, 7
      %v306 = vsub.s32 0, %v305
      %v307 = vrot.slane %v302, %v306
      %v309 = vmul.f32 %v270, %v307
      %v310 = vmul.f32 %v271, %v307
      %v311 = vmul.f32 %v272, %v307
      %v312 = vmul.f32 %v273, %v307
      %v313 = vmul.f32 %v274, %v307
      %v314 = vmul.f32 %v275, %v307
      %v315 = vmul.f32 %v276, %v307
      %v316 = vmul.f32 %v277, %v307
      %v317 = vmul.f32 %v278, %v307
      %v318 = vmul.f32 %v279, %v307
      %v319 = vmul.f32 %v280, %v307
      %v320 = vmul.f32 %v281, %v307
      %v321 = vmul.f32 %v282, %v307
      %v322 = vmul.f32 %v283, %v307
      %v323 = vmul.f32 %v284, %v307
      %v324 = vmul.f32 %v285, %v307
      %v325 = vmul.f32 %v286, %v307
      %v326 = vmul.f32 %v287, %v307
      %v327 = vmul.f32 %v288, %v307
      %v328 = vmul.f32 %v289, %v307
      %v329 = vmul.f32 %v290, %v307
      %v330 = vmul.f32 %v291, %v307
      %v331 = vmul.f32 %v292, %v307
      %v332 = vmul.f32 %v293, %v307
      %v333 = vmul.f32 %v294, %v307
      %v334 = vmul.f32 %v295, %v307
      %v335 = vmul.f32 %v296, %v307
      %v336 = vmul.f32 %v297, %v307
      %v337 = vmul.f32 %v298, %v307
      %v338 = vmul.f32 %v299, %v307
      %v339 = vmul.f32 %v300, %v307
      %v340 = vmul.f32 %v301, %v307
      %v341 = vld [vmem:[%s2] sm:$0x1]
      %v343 = vlaneseq
      %v344 = vshrl.u32 %v343, 7
      %v345 = vsub.s32 0, %v344
      %v346 = vrot.slane %v341, %v345
      %v348 = vadd.f32 %v309, %v346
      %v349 = vadd.f32 %v310, %v346
      %v350 = vadd.f32 %v311, %v346
      %v351 = vadd.f32 %v312, %v346
      %v352 = vadd.f32 %v313, %v346
      %v353 = vadd.f32 %v314, %v346
      %v354 = vadd.f32 %v315, %v346
      %v355 = vadd.f32 %v316, %v346
      %v356 = vadd.f32 %v317, %v346
      %v357 = vadd.f32 %v318, %v346
      %v358 = vadd.f32 %v319, %v346
      %v359 = vadd.f32 %v320, %v346
      %v360 = vadd.f32 %v321, %v346
      %v361 = vadd.f32 %v322, %v346
      %v362 = vadd.f32 %v323, %v346
      %v363 = vadd.f32 %v324, %v346
      %v364 = vadd.f32 %v325, %v346
      %v365 = vadd.f32 %v326, %v346
      %v366 = vadd.f32 %v327, %v346
      %v367 = vadd.f32 %v328, %v346
      %v368 = vadd.f32 %v329, %v346
      %v369 = vadd.f32 %v330, %v346
      %v370 = vadd.f32 %v331, %v346
      %v371 = vadd.f32 %v332, %v346
      %v372 = vadd.f32 %v333, %v346
      %v373 = vadd.f32 %v334, %v346
      %v374 = vadd.f32 %v335, %v346
      %v375 = vadd.f32 %v336, %v346
      %v376 = vadd.f32 %v337, %v346
      %v377 = vadd.f32 %v338, %v346
      %v378 = vadd.f32 %v339, %v346
      %v379 = vadd.f32 %v340, %v346
      %v380 = vmax.f32 %v348, 0.0
      %v381 = vmax.f32 %v349, 0.0
      %v382 = vmax.f32 %v350, 0.0
      %v383 = vmax.f32 %v351, 0.0
      %v384 = vmax.f32 %v352, 0.0
      %v385 = vmax.f32 %v353, 0.0
      %v386 = vmax.f32 %v354, 0.0
      %v387 = vmax.f32 %v355, 0.0
      %v388 = vmax.f32 %v356, 0.0
      %v389 = vmax.f32 %v357, 0.0
      %v390 = vmax.f32 %v358, 0.0
      %v391 = vmax.f32 %v359, 0.0
      %v392 = vmax.f32 %v360, 0.0
      %v393 = vmax.f32 %v361, 0.0
      %v394 = vmax.f32 %v362, 0.0
      %v395 = vmax.f32 %v363, 0.0
      %v396 = vmax.f32 %v364, 0.0
      %v397 = vmax.f32 %v365, 0.0
      %v398 = vmax.f32 %v366, 0.0
      %v399 = vmax.f32 %v367, 0.0
      %v400 = vmax.f32 %v368, 0.0
      %v401 = vmax.f32 %v369, 0.0
      %v402 = vmax.f32 %v370, 0.0
      %v403 = vmax.f32 %v371, 0.0
      %v404 = vmax.f32 %v372, 0.0
      %v405 = vmax.f32 %v373, 0.0
      %v406 = vmax.f32 %v374, 0.0
      %v407 = vmax.f32 %v375, 0.0
      %v408 = vmax.f32 %v376, 0.0
      %v409 = vmax.f32 %v377, 0.0
      %v410 = vmax.f32 %v378, 0.0
      %v411 = vmax.f32 %v379, 0.0
      %v412 = vpack.c.bf16 %v381, %v380
      %v413 = vpack.c.bf16 %v383, %v382
      %v414 = vpack.c.bf16 %v385, %v384
      %v415 = vpack.c.bf16 %v387, %v386
      %v416 = vpack.c.bf16 %v389, %v388
      %v417 = vpack.c.bf16 %v391, %v390
      %v418 = vpack.c.bf16 %v393, %v392
      %v419 = vpack.c.bf16 %v395, %v394
      %v420 = vpack.c.bf16 %v397, %v396
      %v421 = vpack.c.bf16 %v399, %v398
      %v422 = vpack.c.bf16 %v401, %v400
      %v423 = vpack.c.bf16 %v403, %v402
      %v424 = vpack.c.bf16 %v405, %v404
      %v425 = vpack.c.bf16 %v407, %v406
      %v426 = vpack.c.bf16 %v409, %v408
      %v427 = vpack.c.bf16 %v411, %v410
      %428 = vst [vmem:[#allocation2] sm:$0xff] 0
      %429 = vst [vmem:[#allocation2 + $0x8] sm:$0xff] 0
      %430 = vst [vmem:[#allocation2 + $0x10] sm:$0xff] 0
      %s431 = scalar_lea.vmem [#allocation2], 408
      %432 = vst [vmem:[%s431] sm:$0xff] 0
      %433 = vst [vmem:[%s431 + $0x8] sm:$0xff] 0
      %434 = vst [vmem:[%s431 + $0x10] sm:$0xff] 0
      %435 = vst [vmem:[#allocation2] sm:$0xff] 0
      %436 = vst [vmem:[#allocation2 + $0x18] sm:$0xff] 0
      %437 = vst [vmem:[#allocation2 + $0x30] sm:$0xff] 0
      %438 = vst [vmem:[#allocation2 + $0x48] sm:$0xff] 0
      %439 = vst [vmem:[#allocation2 + $0x60] sm:$0xff] 0
      %440 = vst [vmem:[#allocation2 + $0x78] sm:$0xff] 0
      %441 = vst [vmem:[#allocation2 + $0x90] sm:$0xff] 0
      %442 = vst [vmem:[#allocation2 + $0xa8] sm:$0xff] 0
      %443 = vst [vmem:[#allocation2 + $0xc0] sm:$0xff] 0
      %444 = vst [vmem:[#allocation2 + $0xd8] sm:$0xff] 0
      %445 = vst [vmem:[#allocation2 + $0xf0] sm:$0xff] 0
      %446 = vst [vmem:[#allocation2 + $0x108] sm:$0xff] 0
      %447 = vst [vmem:[#allocation2 + $0x120] sm:$0xff] 0
      %448 = vst [vmem:[#allocation2 + $0x138] sm:$0xff] 0
      %449 = vst [vmem:[#allocation2 + $0x150] sm:$0xff] 0
      %450 = vst [vmem:[#allocation2 + $0x168] sm:$0xff] 0
      %451 = vst [vmem:[#allocation2 + $0x180] sm:$0xff] 0
      %452 = vst [vmem:[#allocation2 + $0x198] sm:$0xff] 0
      %453 = vst [vmem:[#allocation2 + $0x10] sm:$0xff] 0
      %454 = vst [vmem:[#allocation2 + $0x28] sm:$0xff] 0
      %455 = vst [vmem:[#allocation2 + $0x40] sm:$0xff] 0
      %456 = vst [vmem:[#allocation2 + $0x58] sm:$0xff] 0
      %457 = vst [vmem:[#allocation2 + $0x70] sm:$0xff] 0
      %458 = vst [vmem:[#allocation2 + $0x88] sm:$0xff] 0
      %459 = vst [vmem:[#allocation2 + $0xa0] sm:$0xff] 0
      %460 = vst [vmem:[#allocation2 + $0xb8] sm:$0xff] 0
      %461 = vst [vmem:[#allocation2 + $0xd0] sm:$0xff] 0
      %462 = vst [vmem:[#allocation2 + $0xe8] sm:$0xff] 0
      %463 = vst [vmem:[#allocation2 + $0x100] sm:$0xff] 0
      %464 = vst [vmem:[#allocation2 + $0x118] sm:$0xff] 0
      %465 = vst [vmem:[#allocation2 + $0x130] sm:$0xff] 0
      %466 = vst [vmem:[#allocation2 + $0x148] sm:$0xff] 0
      %467 = vst [vmem:[#allocation2 + $0x160] sm:$0xff] 0
      %468 = vst [vmem:[#allocation2 + $0x178] sm:$0xff] 0
      %469 = vst [vmem:[#allocation2 + $0x190] sm:$0xff] 0
      %470 = vst [vmem:[#allocation2 + $0x1a8] sm:$0xff] 0
      %s471 = scalar_lea.vmem [#allocation2], 24
      %472 = vst [vmem:[%s471 + $0x8] sm:$0xff] %v412
      %473 = vst [vmem:[%s471 + $0x20] sm:$0xff] %v413
      %474 = vst [vmem:[%s471 + $0x38] sm:$0xff] %v414
      %475 = vst [vmem:[%s471 + $0x50] sm:$0xff] %v415
      %476 = vst [vmem:[%s471 + $0x68] sm:$0xff] %v416
      %477 = vst [vmem:[%s471 + $0x80] sm:$0xff] %v417
      %478 = vst [vmem:[%s471 + $0x98] sm:$0xff] %v418
      %479 = vst [vmem:[%s471 + $0xb0] sm:$0xff] %v419
      %480 = vst [vmem:[%s471 + $0xc8] sm:$0xff] %v420
      %481 = vst [vmem:[%s471 + $0xe0] sm:$0xff] %v421
      %482 = vst [vmem:[%s471 + $0xf8] sm:$0xff] %v422
      %483 = vst [vmem:[%s471 + $0x110] sm:$0xff] %v423
      %484 = vst [vmem:[%s471 + $0x128] sm:$0xff] %v424
      %485 = vst [vmem:[%s471 + $0x140] sm:$0xff] %v425
      %486 = vst [vmem:[%s471 + $0x158] sm:$0xff] %v426
      %487 = vst [vmem:[%s471 + $0x170] sm:$0xff] %v427
      %v488 = vld [vmem:[#allocation2] sm:$0x80]
      %v489 = vld [vmem:[#allocation2 + $0x8] sm:$0xff]
      %v490 = vld [vmem:[#allocation2 + $0x18] sm:$0x80]
      %v491 = vld [vmem:[#allocation2 + $0x20] sm:$0xff]
      %v492 = vld [vmem:[#allocation2 + $0x30] sm:$0x80]
      %v493 = vld [vmem:[#allocation2 + $0x38] sm:$0xff]
      %v494 = vld [vmem:[#allocation2 + $0x48] sm:$0x80]
      %v495 = vld [vmem:[#allocation2 + $0x50] sm:$0xff]
      %v496 = vld [vmem:[#allocation2 + $0x60] sm:$0x80]
      %v497 = vld [vmem:[#allocation2 + $0x68] sm:$0xff]
      %v498 = vld [vmem:[#allocation2 + $0x78] sm:$0x80]
      %v499 = vld [vmem:[#allocation2 + $0x80] sm:$0xff]
      %v500 = vld [vmem:[#allocation2 + $0x90] sm:$0x80]
      %v501 = vld [vmem:[#allocation2 + $0x98] sm:$0xff]
      %v502 = vld [vmem:[#allocation2 + $0xa8] sm:$0x80]
      %v503 = vld [vmem:[#allocation2 + $0xb0] sm:$0xff]
      %v504 = vld [vmem:[#allocation2 + $0xc0] sm:$0x80]
      %v505 = vld [vmem:[#allocation2 + $0xc8] sm:$0xff]
      %v506 = vld [vmem:[#allocation2 + $0xd8] sm:$0x80]
      %v507 = vld [vmem:[#allocation2 + $0xe0] sm:$0xff]
      %v508 = vld [vmem:[#allocation2 + $0xf0] sm:$0x80]
      %v509 = vld [vmem:[#allocation2 + $0xf8] sm:$0xff]
      %v510 = vld [vmem:[#allocation2 + $0x108] sm:$0x80]
      %v511 = vld [vmem:[#allocation2 + $0x110] sm:$0xff]
      %v512 = vld [vmem:[#allocation2 + $0x120] sm:$0x80]
      %v513 = vld [vmem:[#allocation2 + $0x128] sm:$0xff]
      %v514 = vld [vmem:[#allocation2 + $0x138] sm:$0x80]
      %v515 = vld [vmem:[#allocation2 + $0x140] sm:$0xff]
      %v516 = vld [vmem:[#allocation2 + $0x150] sm:$0x80]
      %v517 = vld [vmem:[#allocation2 + $0x158] sm:$0xff]
      %v518 = vld [vmem:[#allocation2 + $0x168] sm:$0x80]
      %v519 = vld [vmem:[#allocation2 + $0x170] sm:$0xff]
      %vm520 = vsmask.f32 256
      %v522 = vshrl.u32 %v488, 16
      %v524 = vrot.slane %v522, 7
      %v526 = vshrl.u32 %v489, 16
      %v528 = vrot.slane %v526, 7
      %v529 = vshll.u32 %v489, 16
      %v531 = vor.u32 %v528, %v529
      %v532 = vsel %vm520, %v524, %v531
      %v534 = vshrl.u32 %v490, 16
      %v536 = vrot.slane %v534, 7
      %v538 = vshrl.u32 %v491, 16
      %v540 = vrot.slane %v538, 7
      %v541 = vshll.u32 %v491, 16
      %v543 = vor.u32 %v540, %v541
      %v544 = vsel %vm520, %v536, %v543
      %v546 = vshrl.u32 %v492, 16
      %v548 = vrot.slane %v546, 7
      %v550 = vshrl.u32 %v493, 16
      %v552 = vrot.slane %v550, 7
      %v553 = vshll.u32 %v493, 16
      %v555 = vor.u32 %v552, %v553
      %v556 = vsel %vm520, %v548, %v555
      %v558 = vshrl.u32 %v494, 16
      %v560 = vrot.slane %v558, 7
      %v562 = vshrl.u32 %v495, 16
      %v564 = vrot.slane %v562, 7
      %v565 = vshll.u32 %v495, 16
      %v567 = vor.u32 %v564, %v565
      %v568 = vsel %vm520, %v560, %v567
      %v570 = vshrl.u32 %v496, 16
      %v572 = vrot.slane %v570, 7
      %v574 = vshrl.u32 %v497, 16
      %v576 = vrot.slane %v574, 7
      %v577 = vshll.u32 %v497, 16
      %v579 = vor.u32 %v576, %v577
      %v580 = vsel %vm520, %v572, %v579
      %v582 = vshrl.u32 %v498, 16
      %v584 = vrot.slane %v582, 7
      %v586 = vshrl.u32 %v499, 16
      %v588 = vrot.slane %v586, 7
      %v589 = vshll.u32 %v499, 16
      %v591 = vor.u32 %v588, %v589
      %v592 = vsel %vm520, %v584, %v591
      %v594 = vshrl.u32 %v500, 16
      %v596 = vrot.slane %v594, 7
      %v598 = vshrl.u32 %v501, 16
      %v600 = vrot.slane %v598, 7
      %v601 = vshll.u32 %v501, 16
      %v603 = vor.u32 %v600, %v601
      %v604 = vsel %vm520, %v596, %v603
      %v606 = vshrl.u32 %v502, 16
      %v608 = vrot.slane %v606, 7
      %v610 = vshrl.u32 %v503, 16
      %v612 = vrot.slane %v610, 7
      %v613 = vshll.u32 %v503, 16
      %v615 = vor.u32 %v612, %v613
      %v616 = vsel %vm520, %v608, %v615
      %v618 = vshrl.u32 %v504, 16
      %v620 = vrot.slane %v618, 7
      %v622 = vshrl.u32 %v505, 16
      %v624 = vrot.slane %v622, 7
      %v625 = vshll.u32 %v505, 16
      %v627 = vor.u32 %v624, %v625
      %v628 = vsel %vm520, %v620, %v627
      %v630 = vshrl.u32 %v506, 16
      %v632 = vrot.slane %v630, 7
      %v634 = vshrl.u32 %v507, 16
      %v636 = vrot.slane %v634, 7
      %v637 = vshll.u32 %v507, 16
      %v639 = vor.u32 %v636, %v637
      %v640 = vsel %vm520, %v632, %v639
      %v642 = vshrl.u32 %v508, 16
      %v644 = vrot.slane %v642, 7
      %v646 = vshrl.u32 %v509, 16
      %v648 = vrot.slane %v646, 7
      %v649 = vshll.u32 %v509, 16
      %v651 = vor.u32 %v648, %v649
      %v652 = vsel %vm520, %v644, %v651
      %v654 = vshrl.u32 %v510, 16
      %v656 = vrot.slane %v654, 7
      %v658 = vshrl.u32 %v511, 16
      %v660 = vrot.slane %v658, 7
      %v661 = vshll.u32 %v511, 16
      %v663 = vor.u32 %v660, %v661
      %v664 = vsel %vm520, %v656, %v663
      %v666 = vshrl.u32 %v512, 16
      %v668 = vrot.slane %v666, 7
      %v670 = vshrl.u32 %v513, 16
      %v672 = vrot.slane %v670, 7
      %v673 = vshll.u32 %v513, 16
      %v675 = vor.u32 %v672, %v673
      %v676 = vsel %vm520, %v668, %v675
      %v678 = vshrl.u32 %v514, 16
      %v680 = vrot.slane %v678, 7
      %v682 = vshrl.u32 %v515, 16
      %v684 = vrot.slane %v682, 7
      %v685 = vshll.u32 %v515, 16
      %v687 = vor.u32 %v684, %v685
      %v688 = vsel %vm520, %v680, %v687
      %v690 = vshrl.u32 %v516, 16
      %v692 = vrot.slane %v690, 7
      %v694 = vshrl.u32 %v517, 16
      %v696 = vrot.slane %v694, 7
      %v697 = vshll.u32 %v517, 16
      %v699 = vor.u32 %v696, %v697
      %v700 = vsel %vm520, %v692, %v699
      %v702 = vshrl.u32 %v518, 16
      %v704 = vrot.slane %v702, 7
      %v706 = vshrl.u32 %v519, 16
      %v708 = vrot.slane %v706, 7
      %v709 = vshll.u32 %v519, 16
      %v711 = vor.u32 %v708, %v709
      %v712 = vsel %vm520, %v704, %v711
      %v729 = vld [vmem:[%s3] sm:$0xf]
      %v730 = vld [vmem:[%s3 + $0x4] sm:$0xf]
      %v731 = vld [vmem:[%s3 + $0x8] sm:$0xf]
      %v732 = vld [vmem:[%s3 + $0xc] sm:$0xf]
      %v733 = vld [vmem:[%s3 + $0x10] sm:$0xf]
      %v734 = vld [vmem:[%s3 + $0x14] sm:$0xf]
      %v735 = vld [vmem:[%s3 + $0x18] sm:$0xf]
      %v736 = vld [vmem:[%s3 + $0x1c] sm:$0xf]
      %v737 = vld [vmem:[%s3 + $0x20] sm:$0xf]
      %v738 = vld [vmem:[%s3 + $0x24] sm:$0xf]
      %v739 = vld [vmem:[%s3 + $0x28] sm:$0xf]
      %v740 = vld [vmem:[%s3 + $0x2c] sm:$0xf]
      %v741 = vld [vmem:[%s3 + $0x30] sm:$0xf]
      %v742 = vld [vmem:[%s3 + $0x34] sm:$0xf]
      %v743 = vld [vmem:[%s3 + $0x38] sm:$0xf]
      %v744 = vld [vmem:[%s3 + $0x3c] sm:$0xf]
      %v745 = vld [vmem:[%s3 + $0x40] sm:$0xf]
      %v746 = vld [vmem:[%s3 + $0x44] sm:$0xf]
      %v747 = vld [vmem:[%s3 + $0x48] sm:$0xf]
      %v748 = vld [vmem:[%s3 + $0x4c] sm:$0xf]
      %v749 = vld [vmem:[%s3 + $0x50] sm:$0xf]
      %v750 = vld [vmem:[%s3 + $0x54] sm:$0xf]
      %v751 = vld [vmem:[%s3 + $0x58] sm:$0xf]
      %v752 = vld [vmem:[%s3 + $0x5c] sm:$0xf]
      %v753 = vld [vmem:[%s3 + $0x60] sm:$0xf]
      %v754 = vld [vmem:[%s3 + $0x64] sm:$0xf]
      %v755 = vld [vmem:[%s3 + $0x68] sm:$0xf]
      %v756 = vld [vmem:[%s3 + $0x6c] sm:$0xf]
      %v757 = vld [vmem:[%s3 + $0x70] sm:$0xf]
      %v758 = vld [vmem:[%s3 + $0x74] sm:$0xf]
      %v759 = vld [vmem:[%s3 + $0x78] sm:$0xf]
      %v760 = vld [vmem:[%s3 + $0x7c] sm:$0xf]
      %v777 = vunpack.c.l.b16 %v745
      %v778 = vunpack.c.l.b16 %v746
      %v779 = vunpack.c.l.b16 %v747
      %v780 = vunpack.c.l.b16 %v748
      %v781 = vunpack.c.l.b16 %v749
      %v782 = vunpack.c.l.b16 %v750
      %v783 = vunpack.c.l.b16 %v751
      %v784 = vunpack.c.l.b16 %v752
      %v785 = vunpack.c.l.b16 %v753
      %v786 = vunpack.c.l.b16 %v754
      %v787 = vunpack.c.l.b16 %v755
      %v788 = vunpack.c.l.b16 %v756
      %v789 = vunpack.c.l.b16 %v757
      %v790 = vunpack.c.l.b16 %v758
      %v791 = vunpack.c.l.b16 %v759
      %v792 = vunpack.c.l.b16 %v760
      %v793 = vpack.c.b16 %v778, %v777
      %v794 = vpack.c.b16 %v780, %v779
      %v795 = vpack.c.b16 %v782, %v781
      %v796 = vpack.c.b16 %v784, %v783
      %v797 = vpack.c.b16 %v786, %v785
      %v798 = vpack.c.b16 %v788, %v787
      %v799 = vpack.c.b16 %v790, %v789
      %v800 = vpack.c.b16 %v792, %v791
      %809 = vmatprep.subr.bf16.mxu0 0
      %810 = vmatpush1.bf16.msra.mxu0 %v793
      %811 = vmatprep.subr.bf16.mxu0 0
      %812 = vmatpush1.bf16.msra.mxu0 %v794
      %813 = vmatprep.subr.bf16.mxu0 0
      %814 = vmatpush1.bf16.msra.mxu0 %v795
      %815 = vmatprep.subr.bf16.mxu0 0
      %816 = vmatpush1.bf16.msra.mxu0 %v796
      %817 = vmatprep.subr.bf16.mxu0 0
      %818 = vmatpush1.bf16.msra.mxu0 %v797
      %819 = vmatprep.subr.bf16.mxu0 0
      %820 = vmatpush1.bf16.msra.mxu0 %v798
      %821 = vmatprep.subr.bf16.mxu0 0
      %822 = vmatpush1.bf16.msra.mxu0 %v799
      %823 = vmatprep.subr.bf16.mxu0 0
      %824 = vmatpush1.bf16.msra.mxu0 %v800
      %825 = vmatprep.subr.bf16.mxu0 0
      %826 = vmatpush1.bf16.msra.mxu0 0
      %827 = vmatprep.subr.bf16.mxu0 0
      %828 = vmatpush1.bf16.msra.mxu0 0
      %829 = vmatprep.subr.bf16.mxu0 0
      %830 = vmatpush1.bf16.msra.mxu0 0
      %831 = vmatprep.subr.bf16.mxu0 0
      %832 = vmatpush1.bf16.msra.mxu0 0
      %833 = vmatprep.subr.bf16.mxu0 0
      %834 = vmatpush1.bf16.msra.mxu0 0
      %835 = vmatprep.subr.bf16.mxu0 0
      %836 = vmatpush1.bf16.msra.mxu0 0
      %837 = vmatprep.subr.bf16.mxu0 0
      %838 = vmatpush1.bf16.msra.mxu0 0
      %839 = vmatprep.subr.bf16.mxu0 0
      %840 = vmatpush1.bf16.msra.mxu0 0
      %841 = vmatprep.mubr.bf16.mxu0 0
      %842 = vmatmul.mubr.bf16.gmra.mrb[0].mxu0 %v489
      %v843 = vpop.f32.mrb[0].mxu0
      %v844 = vadd.f32 0.0, %v843
      %v845 = vpop.f32.mrb[0].mxu0
      %v846 = vpop.f32.mrb[0].mxu0
      %v847 = vadd.f32 0.0, %v846
      %v848 = vpop.f32.mrb[0].mxu0
      %849 = vmatprep.mubr.bf16.mxu0 0
      %850 = vmatmul.mubr.bf16.gmra.mrb[0].mxu0 %v491
      %v851 = vpop.f32.mrb[0].mxu0
      %v852 = vadd.f32 0.0, %v851
      %v853 = vpop.f32.mrb[0].mxu0
      %v854 = vpop.f32.mrb[0].mxu0
      %v855 = vadd.f32 0.0, %v854
      %v856 = vpop.f32.mrb[0].mxu0
      %857 = vmatprep.mubr.bf16.mxu0 0
      %858 = vmatmul.mubr.bf16.gmra.mrb[0].mxu0 %v493
      %v859 = vpop.f32.mrb[0].mxu0
      %v860 = vadd.f32 0.0, %v859
      %v861 = vpop.f32.mrb[0].mxu0
      %v862 = vpop.f32.mrb[0].mxu0
      %v863 = vadd.f32 0.0, %v862
      %v864 = vpop.f32.mrb[0].mxu0
      %865 = vmatprep.mubr.bf16.mxu0 0
      %866 = vmatmul.mubr.bf16.gmra.mrb[0].mxu0 %v495
      %v867 = vpop.f32.mrb[0].mxu0
      %v868 = vadd.f32 0.0, %v867
      %v869 = vpop.f32.mrb[0].mxu0
      %v870 = vpop.f32.mrb[0].mxu0
      %v871 = vadd.f32 0.0, %v870
      %v872 = vpop.f32.mrb[0].mxu0
      %873 = vmatprep.mubr.bf16.mxu0 0
      %874 = vmatmul.mubr.bf16.gmra.mrb[0].mxu0 %v497
      %v875 = vpop.f32.mrb[0].mxu0
      %v876 = vadd.f32 0.0, %v875
      %v877 = vpop.f32.mrb[0].mxu0
      %v878 = vpop.f32.mrb[0].mxu0
      %v879 = vadd.f32 0.0, %v878
      %v880 = vpop.f32.mrb[0].mxu0
      %881 = vmatprep.mubr.bf16.mxu0 0
      %882 = vmatmul.mubr.bf16.gmra.mrb[0].mxu0 %v499
      %v883 = vpop.f32.mrb[0].mxu0
      %v884 = vadd.f32 0.0, %v883
      %v885 = vpop.f32.mrb[0].mxu0
      %v886 = vpop.f32.mrb[0].mxu0
      %v887 = vadd.f32 0.0, %v886
      %v888 = vpop.f32.mrb[0].mxu0
      %889 = vmatprep.mubr.bf16.mxu0 0
      %890 = vmatmul.mubr.bf16.gmra.mrb[0].mxu0 %v501
      %v891 = vpop.f32.mrb[0].mxu0
      %v892 = vadd.f32 0.0, %v891
      %v893 = vpop.f32.mrb[0].mxu0
      %v894 = vpop.f32.mrb[0].mxu0
      %v895 = vadd.f32 0.0, %v894
      %v896 = vpop.f32.mrb[0].mxu0
      %897 = vmatprep.mubr.bf16.mxu0 0
      %898 = vmatmul.mubr.bf16.gmra.mrb[0].mxu0 %v503
      %v899 = vpop.f32.mrb[0].mxu0
      %v900 = vadd.f32 0.0, %v899
      %v901 = vpop.f32.mrb[0].mxu0
      %v902 = vpop.f32.mrb[0].mxu0
      %v903 = vadd.f32 0.0, %v902
      %v904 = vpop.f32.mrb[0].mxu0
      %905 = vmatprep.mubr.bf16.mxu0 0
      %906 = vmatmul.mubr.bf16.gmra.mrb[0].mxu0 %v505
      %v907 = vpop.f32.mrb[0].mxu0
      %v908 = vadd.f32 0.0, %v907
      %v909 = vpop.f32.mrb[0].mxu0
      %v910 = vpop.f32.mrb[0].mxu0
      %v911 = vadd.f32 0.0, %v910
      %v912 = vpop.f32.mrb[0].mxu0
      %913 = vmatprep.mubr.bf16.mxu0 0
      %914 = vmatmul.mubr.bf16.gmra.mrb[0].mxu0 %v507
      %v915 = vpop.f32.mrb[0].mxu0
      %v916 = vadd.f32 0.0, %v915
      %v917 = vpop.f32.mrb[0].mxu0
      %v918 = vpop.f32.mrb[0].mxu0
      %v919 = vadd.f32 0.0, %v918
      %v920 = vpop.f32.mrb[0].mxu0
      %921 = vmatprep.mubr.bf16.mxu0 0
      %922 = vmatmul.mubr.bf16.gmra.mrb[0].mxu0 %v509
      %v923 = vpop.f32.mrb[0].mxu0
      %v924 = vadd.f32 0.0, %v923
      %v925 = vpop.f32.mrb[0].mxu0
      %v926 = vpop.f32.mrb[0].mxu0
      %v927 = vadd.f32 0.0, %v926
      %v928 = vpop.f32.mrb[0].mxu0
      %929 = vmatprep.mubr.bf16.mxu0 0
      %930 = vmatmul.mubr.bf16.gmra.mrb[0].mxu0 %v511
      %v931 = vpop.f32.mrb[0].mxu0
      %v932 = vadd.f32 0.0, %v931
      %v933 = vpop.f32.mrb[0].mxu0
      %v934 = vpop.f32.mrb[0].mxu0
      %v935 = vadd.f32 0.0, %v934
      %v936 = vpop.f32.mrb[0].mxu0
      %937 = vmatprep.mubr.bf16.mxu0 0
      %938 = vmatmul.mubr.bf16.gmra.mrb[0].mxu0 %v513
      %v939 = vpop.f32.mrb[0].mxu0
      %v940 = vadd.f32 0.0, %v939
      %v941 = vpop.f32.mrb[0].mxu0
      %v942 = vpop.f32.mrb[0].mxu0
      %v943 = vadd.f32 0.0, %v942
      %v944 = vpop.f32.mrb[0].mxu0
      %945 = vmatprep.mubr.bf16.mxu0 0
      %946 = vmatmul.mubr.bf16.gmra.mrb[0].mxu0 %v515
      %v947 = vpop.f32.mrb[0].mxu0
      %v948 = vadd.f32 0.0, %v947
      %v949 = vpop.f32.mrb[0].mxu0
      %v950 = vpop.f32.mrb[0].mxu0
      %v951 = vadd.f32 0.0, %v950
      %v952 = vpop.f32.mrb[0].mxu0
      %953 = vmatprep.mubr.bf16.mxu0 0
      %954 = vmatmul.mubr.bf16.gmra.mrb[0].mxu0 %v517
      %v955 = vpop.f32.mrb[0].mxu0
      %v956 = vadd.f32 0.0, %v955
      %v957 = vpop.f32.mrb[0].mxu0
      %v958 = vpop.f32.mrb[0].mxu0
      %v959 = vadd.f32 0.0, %v958
      %v960 = vpop.f32.mrb[0].mxu0
      %961 = vmatprep.mubr.bf16.mxu0 0
      %962 = vmatmul.mubr.bf16.gmra.mrb[0].mxu0 %v519
      %v963 = vpop.f32.mrb[0].mxu0
      %v964 = vadd.f32 0.0, %v963
      %v965 = vpop.f32.mrb[0].mxu0
      %v966 = vpop.f32.mrb[0].mxu0
      %v967 = vadd.f32 0.0, %v966
      %v968 = vpop.f32.mrb[0].mxu0
      %969 = vdwg.mxu0
      %v986 = vunpack.c.l.b16 %v729
      %v987 = vunpack.c.l.b16 %v730
      %v988 = vunpack.c.l.b16 %v731
      %v989 = vunpack.c.l.b16 %v732
      %v990 = vunpack.c.l.b16 %v733
      %v991 = vunpack.c.l.b16 %v734
      %v992 = vunpack.c.l.b16 %v735
      %v993 = vunpack.c.l.b16 %v736
      %v994 = vunpack.c.l.b16 %v737
      %v995 = vunpack.c.l.b16 %v738
      %v996 = vunpack.c.l.b16 %v739
      %v997 = vunpack.c.l.b16 %v740
      %v998 = vunpack.c.l.b16 %v741
      %v999 = vunpack.c.l.b16 %v742
      %v1000 = vunpack.c.l.b16 %v743
      %v1001 = vunpack.c.l.b16 %v744
      %v1002 = vpack.c.b16 %v987, %v986
      %v1003 = vpack.c.b16 %v989, %v988
      %v1004 = vpack.c.b16 %v991, %v990
      %v1005 = vpack.c.b16 %v993, %v992
      %v1006 = vpack.c.b16 %v995, %v994
      %v1007 = vpack.c.b16 %v997, %v996
      %v1008 = vpack.c.b16 %v999, %v998
      %v1009 = vpack.c.b16 %v1001, %v1000
      %1018 = vmatprep.subr.bf16.mxu0 0
      %1019 = vmatpush1.bf16.msra.mxu0 %v1002
      %1020 = vmatprep.subr.bf16.mxu0 0
      %1021 = vmatpush1.bf16.msra.mxu0 %v1003
      %1022 = vmatprep.subr.bf16.mxu0 0
      %1023 = vmatpush1.bf16.msra.mxu0 %v1004
      %1024 = vmatprep.subr.bf16.mxu0 0
      %1025 = vmatpush1.bf16.msra.mxu0 %v1005
      %1026 = vmatprep.subr.bf16.mxu0 0
      %1027 = vmatpush1.bf16.msra.mxu0 %v1006
      %1028 = vmatprep.subr.bf16.mxu0 0
      %1029 = vmatpush1.bf16.msra.mxu0 %v1007
      %1030 = vmatprep.subr.bf16.mxu0 0
      %1031 = vmatpush1.bf16.msra.mxu0 %v1008
      %1032 = vmatprep.subr.bf16.mxu0 0
      %1033 = vmatpush1.bf16.msra.mxu0 %v1009
      %1034 = vmatprep.subr.bf16.mxu0 0
      %1035 = vmatpush1.bf16.msra.mxu0 0
      %1036 = vmatprep.subr.bf16.mxu0 0
      %1037 = vmatpush1.bf16.msra.mxu0 0
      %1038 = vmatprep.subr.bf16.mxu0 0
      %1039 = vmatpush1.bf16.msra.mxu0 0
      %1040 = vmatprep.subr.bf16.mxu0 0
      %1041 = vmatpush1.bf16.msra.mxu0 0
      %1042 = vmatprep.subr.bf16.mxu0 0
      %1043 = vmatpush1.bf16.msra.mxu0 0
      %1044 = vmatprep.subr.bf16.mxu0 0
      %1045 = vmatpush1.bf16.msra.mxu0 0
      %1046 = vmatprep.subr.bf16.mxu0 0
      %1047 = vmatpush1.bf16.msra.mxu0 0
      %1048 = vmatprep.subr.bf16.mxu0 0
      %1049 = vmatpush1.bf16.msra.mxu0 0
      %1050 = vmatprep.mubr.bf16.mxu0 0
      %1051 = vmatmul.mubr.bf16.gmra.mrb[0].mxu0 %v532
      %v1052 = vpop.f32.mrb[0].mxu0
      %v1053 = vadd.f32 %v844, %v1052
      %v1054 = vpop.f32.mrb[0].mxu0
      %v1055 = vpop.f32.mrb[0].mxu0
      %v1056 = vadd.f32 %v847, %v1055
      %v1057 = vpop.f32.mrb[0].mxu0
      %1058 = vmatprep.mubr.bf16.mxu0 0
      %1059 = vmatmul.mubr.bf16.gmra.mrb[0].mxu0 %v544
      %v1060 = vpop.f32.mrb[0].mxu0
      %v1061 = vadd.f32 %v852, %v1060
      %v1062 = vpop.f32.mrb[0].mxu0
      %v1063 = vpop.f32.mrb[0].mxu0
      %v1064 = vadd.f32 %v855, %v1063
      %v1065 = vpop.f32.mrb[0].mxu0
      %1066 = vmatprep.mubr.bf16.mxu0 0
      %1067 = vmatmul.mubr.bf16.gmra.mrb[0].mxu0 %v556
      %v1068 = vpop.f32.mrb[0].mxu0
      %v1069 = vadd.f32 %v860, %v1068
      %v1070 = vpop.f32.mrb[0].mxu0
      %v1071 = vpop.f32.mrb[0].mxu0
      %v1072 = vadd.f32 %v863, %v1071
      %v1073 = vpop.f32.mrb[0].mxu0
      %1074 = vmatprep.mubr.bf16.mxu0 0
      %1075 = vmatmul.mubr.bf16.gmra.mrb[0].mxu0 %v568
      %v1076 = vpop.f32.mrb[0].mxu0
      %v1077 = vadd.f32 %v868, %v1076
      %v1078 = vpop.f32.mrb[0].mxu0
      %v1079 = vpop.f32.mrb[0].mxu0
      %v1080 = vadd.f32 %v871, %v1079
      %v1081 = vpop.f32.mrb[0].mxu0
      %1082 = vmatprep.mubr.bf16.mxu0 0
      %1083 = vmatmul.mubr.bf16.gmra.mrb[0].mxu0 %v580
      %v1084 = vpop.f32.mrb[0].mxu0
      %v1085 = vadd.f32 %v876, %v1084
      %v1086 = vpop.f32.mrb[0].mxu0
      %v1087 = vpop.f32.mrb[0].mxu0
      %v1088 = vadd.f32 %v879, %v1087
      %v1089 = vpop.f32.mrb[0].mxu0
      %1090 = vmatprep.mubr.bf16.mxu0 0
      %1091 = vmatmul.mubr.bf16.gmra.mrb[0].mxu0 %v592
      %v1092 = vpop.f32.mrb[0].mxu0
      %v1093 = vadd.f32 %v884, %v1092
      %v1094 = vpop.f32.mrb[0].mxu0
      %v1095 = vpop.f32.mrb[0].mxu0
      %v1096 = vadd.f32 %v887, %v1095
      %v1097 = vpop.f32.mrb[0].mxu0
      %1098 = vmatprep.mubr.bf16.mxu0 0
      %1099 = vmatmul.mubr.bf16.gmra.mrb[0].mxu0 %v604
      %v1100 = vpop.f32.mrb[0].mxu0
      %v1101 = vadd.f32 %v892, %v1100
      %v1102 = vpop.f32.mrb[0].mxu0
      %v1103 = vpop.f32.mrb[0].mxu0
      %v1104 = vadd.f32 %v895, %v1103
      %v1105 = vpop.f32.mrb[0].mxu0
      %1106 = vmatprep.mubr.bf16.mxu0 0
      %1107 = vmatmul.mubr.bf16.gmra.mrb[0].mxu0 %v616
      %v1108 = vpop.f32.mrb[0].mxu0
      %v1109 = vadd.f32 %v900, %v1108
      %v1110 = vpop.f32.mrb[0].mxu0
      %v1111 = vpop.f32.mrb[0].mxu0
      %v1112 = vadd.f32 %v903, %v1111
      %v1113 = vpop.f32.mrb[0].mxu0
      %1114 = vmatprep.mubr.bf16.mxu0 0
      %1115 = vmatmul.mubr.bf16.gmra.mrb[0].mxu0 %v628
      %v1116 = vpop.f32.mrb[0].mxu0
      %v1117 = vadd.f32 %v908, %v1116
      %v1118 = vpop.f32.mrb[0].mxu0
      %v1119 = vpop.f32.mrb[0].mxu0
      %v1120 = vadd.f32 %v911, %v1119
      %v1121 = vpop.f32.mrb[0].mxu0
      %1122 = vmatprep.mubr.bf16.mxu0 0
      %1123 = vmatmul.mubr.bf16.gmra.mrb[0].mxu0 %v640
      %v1124 = vpop.f32.mrb[0].mxu0
      %v1125 = vadd.f32 %v916, %v1124
      %v1126 = vpop.f32.mrb[0].mxu0
      %v1127 = vpop.f32.mrb[0].mxu0
      %v1128 = vadd.f32 %v919, %v1127
      %v1129 = vpop.f32.mrb[0].mxu0
      %1130 = vmatprep.mubr.bf16.mxu0 0
      %1131 = vmatmul.mubr.bf16.gmra.mrb[0].mxu0 %v652
      %v1132 = vpop.f32.mrb[0].mxu0
      %v1133 = vadd.f32 %v924, %v1132
      %v1134 = vpop.f32.mrb[0].mxu0
      %v1135 = vpop.f32.mrb[0].mxu0
      %v1136 = vadd.f32 %v927, %v1135
      %v1137 = vpop.f32.mrb[0].mxu0
      %1138 = vmatprep.mubr.bf16.mxu0 0
      %1139 = vmatmul.mubr.bf16.gmra.mrb[0].mxu0 %v664
      %v1140 = vpop.f32.mrb[0].mxu0
      %v1141 = vadd.f32 %v932, %v1140
      %v1142 = vpop.f32.mrb[0].mxu0
      %v1143 = vpop.f32.mrb[0].mxu0
      %v1144 = vadd.f32 %v935, %v1143
      %v1145 = vpop.f32.mrb[0].mxu0
      %1146 = vmatprep.mubr.bf16.mxu0 0
      %1147 = vmatmul.mubr.bf16.gmra.mrb[0].mxu0 %v676
      %v1148 = vpop.f32.mrb[0].mxu0
      %v1149 = vadd.f32 %v940, %v1148
      %v1150 = vpop.f32.mrb[0].mxu0
      %v1151 = vpop.f32.mrb[0].mxu0
      %v1152 = vadd.f32 %v943, %v1151
      %v1153 = vpop.f32.mrb[0].mxu0
      %1154 = vmatprep.mubr.bf16.mxu0 0
      %1155 = vmatmul.mubr.bf16.gmra.mrb[0].mxu0 %v688
      %v1156 = vpop.f32.mrb[0].mxu0
      %v1157 = vadd.f32 %v948, %v1156
      %v1158 = vpop.f32.mrb[0].mxu0
      %v1159 = vpop.f32.mrb[0].mxu0
      %v1160 = vadd.f32 %v951, %v1159
      %v1161 = vpop.f32.mrb[0].mxu0
      %1162 = vmatprep.mubr.bf16.mxu0 0
      %1163 = vmatmul.mubr.bf16.gmra.mrb[0].mxu0 %v700
      %v1164 = vpop.f32.mrb[0].mxu0
      %v1165 = vadd.f32 %v956, %v1164
      %v1166 = vpop.f32.mrb[0].mxu0
      %v1167 = vpop.f32.mrb[0].mxu0
      %v1168 = vadd.f32 %v959, %v1167
      %v1169 = vpop.f32.mrb[0].mxu0
      %1170 = vmatprep.mubr.bf16.mxu0 0
      %1171 = vmatmul.mubr.bf16.gmra.mrb[0].mxu0 %v712
      %v1172 = vpop.f32.mrb[0].mxu0
      %v1173 = vadd.f32 %v964, %v1172
      %v1174 = vpop.f32.mrb[0].mxu0
      %v1175 = vpop.f32.mrb[0].mxu0
      %v1176 = vadd.f32 %v967, %v1175
      %v1177 = vpop.f32.mrb[0].mxu0
      %1178 = vdwg.mxu0
      %v1179 = vld [vmem:[#allocation2 + $0x8] sm:$0xff]
      %v1180 = vld [vmem:[#allocation2 + $0x10] sm:$0x1]
      %v1181 = vld [vmem:[#allocation2 + $0x20] sm:$0xff]
      %v1182 = vld [vmem:[#allocation2 + $0x28] sm:$0x1]
      %v1183 = vld [vmem:[#allocation2 + $0x38] sm:$0xff]
      %v1184 = vld [vmem:[#allocation2 + $0x40] sm:$0x1]
      %v1185 = vld [vmem:[#allocation2 + $0x50] sm:$0xff]
      %v1186 = vld [vmem:[#allocation2 + $0x58] sm:$0x1]
      %v1187 = vld [vmem:[#allocation2 + $0x68] sm:$0xff]
      %v1188 = vld [vmem:[#allocation2 + $0x70] sm:$0x1]
      %v1189 = vld [vmem:[#allocation2 + $0x80] sm:$0xff]
      %v1190 = vld [vmem:[#allocation2 + $0x88] sm:$0x1]
      %v1191 = vld [vmem:[#allocation2 + $0x98] sm:$0xff]
      %v1192 = vld [vmem:[#allocation2 + $0xa0] sm:$0x1]
      %v1193 = vld [vmem:[#allocation2 + $0xb0] sm:$0xff]
      %v1194 = vld [vmem:[#allocation2 + $0xb8] sm:$0x1]
      %v1195 = vld [vmem:[#allocation2 + $0xc8] sm:$0xff]
      %v1196 = vld [vmem:[#allocation2 + $0xd0] sm:$0x1]
      %v1197 = vld [vmem:[#allocation2 + $0xe0] sm:$0xff]
      %v1198 = vld [vmem:[#allocation2 + $0xe8] sm:$0x1]
      %v1199 = vld [vmem:[#allocation2 + $0xf8] sm:$0xff]
      %v1200 = vld [vmem:[#allocation2 + $0x100] sm:$0x1]
      %v1201 = vld [vmem:[#allocation2 + $0x110] sm:$0xff]
      %v1202 = vld [vmem:[#allocation2 + $0x118] sm:$0x1]
      %v1203 = vld [vmem:[#allocation2 + $0x128] sm:$0xff]
      %v1204 = vld [vmem:[#allocation2 + $0x130] sm:$0x1]
      %v1205 = vld [vmem:[#allocation2 + $0x140] sm:$0xff]
      %v1206 = vld [vmem:[#allocation2 + $0x148] sm:$0x1]
      %v1207 = vld [vmem:[#allocation2 + $0x158] sm:$0xff]
      %v1208 = vld [vmem:[#allocation2 + $0x160] sm:$0x1]
      %v1209 = vld [vmem:[#allocation2 + $0x170] sm:$0xff]
      %v1210 = vld [vmem:[#allocation2 + $0x178] sm:$0x1]
      %vm1211 = vsmask.f32 7424
      %v1213 = vshrl.u32 %v1179, 16
      %v1215 = vshll.u32 %v1179, 16
      %v1217 = vrot.slane %v1215, 1
      %v1218 = vor.u32 %v1213, %v1217
      %v1220 = vshll.u32 %v1180, 16
      %v1222 = vrot.slane %v1220, 1
      %v1223 = vsel %vm1211, %v1218, %v1222
      %v1225 = vshrl.u32 %v1181, 16
      %v1227 = vshll.u32 %v1181, 16
      %v1229 = vrot.slane %v1227, 1
      %v1230 = vor.u32 %v1225, %v1229
      %v1232 = vshll.u32 %v1182, 16
      %v1234 = vrot.slane %v1232, 1
      %v1235 = vsel %vm1211, %v1230, %v1234
      %v1237 = vshrl.u32 %v1183, 16
      %v1239 = vshll.u32 %v1183, 16
      %v1241 = vrot.slane %v1239, 1
      %v1242 = vor.u32 %v1237, %v1241
      %v1244 = vshll.u32 %v1184, 16
      %v1246 = vrot.slane %v1244, 1
      %v1247 = vsel %vm1211, %v1242, %v1246
      %v1249 = vshrl.u32 %v1185, 16
      %v1251 = vshll.u32 %v1185, 16
      %v1253 = vrot.slane %v1251, 1
      %v1254 = vor.u32 %v1249, %v1253
      %v1256 = vshll.u32 %v1186, 16
      %v1258 = vrot.slane %v1256, 1
      %v1259 = vsel %vm1211, %v1254, %v1258
      %v1261 = vshrl.u32 %v1187, 16
      %v1263 = vshll.u32 %v1187, 16
      %v1265 = vrot.slane %v1263, 1
      %v1266 = vor.u32 %v1261, %v1265
      %v1268 = vshll.u32 %v1188, 16
      %v1270 = vrot.slane %v1268, 1
      %v1271 = vsel %vm1211, %v1266, %v1270
      %v1273 = vshrl.u32 %v1189, 16
      %v1275 = vshll.u32 %v1189, 16
      %v1277 = vrot.slane %v1275, 1
      %v1278 = vor.u32 %v1273, %v1277
      %v1280 = vshll.u32 %v1190, 16
      %v1282 = vrot.slane %v1280, 1
      %v1283 = vsel %vm1211, %v1278, %v1282
      %v1285 = vshrl.u32 %v1191, 16
      %v1287 = vshll.u32 %v1191, 16
      %v1289 = vrot.slane %v1287, 1
      %v1290 = vor.u32 %v1285, %v1289
      %v1292 = vshll.u32 %v1192, 16
      %v1294 = vrot.slane %v1292, 1
      %v1295 = vsel %vm1211, %v1290, %v1294
      %v1297 = vshrl.u32 %v1193, 16
      %v1299 = vshll.u32 %v1193, 16
      %v1301 = vrot.slane %v1299, 1
      %v1302 = vor.u32 %v1297, %v1301
      %v1304 = vshll.u32 %v1194, 16
      %v1306 = vrot.slane %v1304, 1
      %v1307 = vsel %vm1211, %v1302, %v1306
      %v1309 = vshrl.u32 %v1195, 16
      %v1311 = vshll.u32 %v1195, 16
      %v1313 = vrot.slane %v1311, 1
      %v1314 = vor.u32 %v1309, %v1313
      %v1316 = vshll.u32 %v1196, 16
      %v1318 = vrot.slane %v1316, 1
      %v1319 = vsel %vm1211, %v1314, %v1318
      %v1321 = vshrl.u32 %v1197, 16
      %v1323 = vshll.u32 %v1197, 16
      %v1325 = vrot.slane %v1323, 1
      %v1326 = vor.u32 %v1321, %v1325
      %v1328 = vshll.u32 %v1198, 16
      %v1330 = vrot.slane %v1328, 1
      %v1331 = vsel %vm1211, %v1326, %v1330
      %v1333 = vshrl.u32 %v1199, 16
      %v1335 = vshll.u32 %v1199, 16
      %v1337 = vrot.slane %v1335, 1
      %v1338 = vor.u32 %v1333, %v1337
      %v1340 = vshll.u32 %v1200, 16
      %v1342 = vrot.slane %v1340, 1
      %v1343 = vsel %vm1211, %v1338, %v1342
      %v1345 = vshrl.u32 %v1201, 16
      %v1347 = vshll.u32 %v1201, 16
      %v1349 = vrot.slane %v1347, 1
      %v1350 = vor.u32 %v1345, %v1349
      %v1352 = vshll.u32 %v1202, 16
      %v1354 = vrot.slane %v1352, 1
      %v1355 = vsel %vm1211, %v1350, %v1354
      %v1357 = vshrl.u32 %v1203, 16
      %v1359 = vshll.u32 %v1203, 16
      %v1361 = vrot.slane %v1359, 1
      %v1362 = vor.u32 %v1357, %v1361
      %v1364 = vshll.u32 %v1204, 16
      %v1366 = vrot.slane %v1364, 1
      %v1367 = vsel %vm1211, %v1362, %v1366
      %v1369 = vshrl.u32 %v1205, 16
      %v1371 = vshll.u32 %v1205, 16
      %v1373 = vrot.slane %v1371, 1
      %v1374 = vor.u32 %v1369, %v1373
      %v1376 = vshll.u32 %v1206, 16
      %v1378 = vrot.slane %v1376, 1
      %v1379 = vsel %vm1211, %v1374, %v1378
      %v1381 = vshrl.u32 %v1207, 16
      %v1383 = vshll.u32 %v1207, 16
      %v1385 = vrot.slane %v1383, 1
      %v1386 = vor.u32 %v1381, %v1385
      %v1388 = vshll.u32 %v1208, 16
      %v1390 = vrot.slane %v1388, 1
      %v1391 = vsel %vm1211, %v1386, %v1390
      %v1393 = vshrl.u32 %v1209, 16
      %v1395 = vshll.u32 %v1209, 16
      %v1397 = vrot.slane %v1395, 1
      %v1398 = vor.u32 %v1393, %v1397
      %v1400 = vshll.u32 %v1210, 16
      %v1402 = vrot.slane %v1400, 1
      %v1403 = vsel %vm1211, %v1398, %v1402
      %v1420 = vld [vmem:[%s3 + $0x80] sm:$0xf]
      %v1421 = vld [vmem:[%s3 + $0x84] sm:$0xf]
      %v1422 = vld [vmem:[%s3 + $0x88] sm:$0xf]
      %v1423 = vld [vmem:[%s3 + $0x8c] sm:$0xf]
      %v1424 = vld [vmem:[%s3 + $0x90] sm:$0xf]
      %v1425 = vld [vmem:[%s3 + $0x94] sm:$0xf]
      %v1426 = vld [vmem:[%s3 + $0x98] sm:$0xf]
      %v1427 = vld [vmem:[%s3 + $0x9c] sm:$0xf]
      %v1428 = vld [vmem:[%s3 + $0xa0] sm:$0xf]
      %v1429 = vld [vmem:[%s3 + $0xa4] sm:$0xf]
      %v1430 = vld [vmem:[%s3 + $0xa8] sm:$0xf]
      %v1431 = vld [vmem:[%s3 + $0xac] sm:$0xf]
      %v1432 = vld [vmem:[%s3 + $0xb0] sm:$0xf]
      %v1433 = vld [vmem:[%s3 + $0xb4] sm:$0xf]
      %v1434 = vld [vmem:[%s3 + $0xb8] sm:$0xf]
      %v1435 = vld [vmem:[%s3 + $0xbc] sm:$0xf]
      %v1452 = vunpack.c.l.b16 %v1420
      %v1453 = vunpack.c.l.b16 %v1421
      %v1454 = vunpack.c.l.b16 %v1422
      %v1455 = vunpack.c.l.b16 %v1423
      %v1456 = vunpack.c.l.b16 %v1424
      %v1457 = vunpack.c.l.b16 %v1425
      %v1458 = vunpack.c.l.b16 %v1426
      %v1459 = vunpack.c.l.b16 %v1427
      %v1460 = vunpack.c.l.b16 %v1428
      %v1461 = vunpack.c.l.b16 %v1429
      %v1462 = vunpack.c.l.b16 %v1430
      %v1463 = vunpack.c.l.b16 %v1431
      %v1464 = vunpack.c.l.b16 %v1432
      %v1465 = vunpack.c.l.b16 %v1433
      %v1466 = vunpack.c.l.b16 %v1434
      %v1467 = vunpack.c.l.b16 %v1435
      %v1468 = vpack.c.b16 %v1453, %v1452
      %v1469 = vpack.c.b16 %v1455, %v1454
      %v1470 = vpack.c.b16 %v1457, %v1456
      %v1471 = vpack.c.b16 %v1459, %v1458
      %v1472 = vpack.c.b16 %v1461, %v1460
      %v1473 = vpack.c.b16 %v1463, %v1462
      %v1474 = vpack.c.b16 %v1465, %v1464
      %v1475 = vpack.c.b16 %v1467, %v1466
      %1484 = vmatprep.subr.bf16.mxu0 0
      %1485 = vmatpush1.bf16.msra.mxu0 %v1468
      %1486 = vmatprep.subr.bf16.mxu0 0
      %1487 = vmatpush1.bf16.msra.mxu0 %v1469
      %1488 = vmatprep.subr.bf16.mxu0 0
      %1489 = vmatpush1.bf16.msra.mxu0 %v1470
      %1490 = vmatprep.subr.bf16.mxu0 0
      %1491 = vmatpush1.bf16.msra.mxu0 %v1471
      %1492 = vmatprep.subr.bf16.mxu0 0
      %1493 = vmatpush1.bf16.msra.mxu0 %v1472
      %1494 = vmatprep.subr.bf16.mxu0 0
      %1495 = vmatpush1.bf16.msra.mxu0 %v1473
      %1496 = vmatprep.subr.bf16.mxu0 0
      %1497 = vmatpush1.bf16.msra.mxu0 %v1474
      %1498 = vmatprep.subr.bf16.mxu0 0
      %1499 = vmatpush1.bf16.msra.mxu0 %v1475
      %1500 = vmatprep.subr.bf16.mxu0 0
      %1501 = vmatpush1.bf16.msra.mxu0 0
      %1502 = vmatprep.subr.bf16.mxu0 0
      %1503 = vmatpush1.bf16.msra.mxu0 0
      %1504 = vmatprep.subr.bf16.mxu0 0
      %1505 = vmatpush1.bf16.msra.mxu0 0
      %1506 = vmatprep.subr.bf16.mxu0 0
      %1507 = vmatpush1.bf16.msra.mxu0 0
      %1508 = vmatprep.subr.bf16.mxu0 0
      %1509 = vmatpush1.bf16.msra.mxu0 0
      %1510 = vmatprep.subr.bf16.mxu0 0
      %1511 = vmatpush1.bf16.msra.mxu0 0
      %1512 = vmatprep.subr.bf16.mxu0 0
      %1513 = vmatpush1.bf16.msra.mxu0 0
      %1514 = vmatprep.subr.bf16.mxu0 0
      %1515 = vmatpush1.bf16.msra.mxu0 0
      %1516 = vmatprep.mubr.bf16.mxu0 0
      %1517 = vmatmul.mubr.bf16.gmra.mrb[0].mxu0 %v1223
      %v1518 = vpop.f32.mrb[0].mxu0
      %v1519 = vadd.f32 0.0, %v1518
      %v1520 = vpop.f32.mrb[0].mxu0
      %v1521 = vpop.f32.mrb[0].mxu0
      %v1522 = vadd.f32 0.0, %v1521
      %v1523 = vpop.f32.mrb[0].mxu0
      %1524 = vmatprep.mubr.bf16.mxu0 0
      %1525 = vmatmul.mubr.bf16.gmra.mrb[0].mxu0 %v1235
      %v1526 = vpop.f32.mrb[0].mxu0
      %v1527 = vadd.f32 0.0, %v1526
      %v1528 = vpop.f32.mrb[0].mxu0
      %v1529 = vpop.f32.mrb[0].mxu0
      %v1530 = vadd.f32 0.0, %v1529
      %v1531 = vpop.f32.mrb[0].mxu0
      %1532 = vmatprep.mubr.bf16.mxu0 0
      %1533 = vmatmul.mubr.bf16.gmra.mrb[0].mxu0 %v1247
      %v1534 = vpop.f32.mrb[0].mxu0
      %v1535 = vadd.f32 0.0, %v1534
      %v1536 = vpop.f32.mrb[0].mxu0
      %v1537 = vpop.f32.mrb[0].mxu0
      %v1538 = vadd.f32 0.0, %v1537
      %v1539 = vpop.f32.mrb[0].mxu0
      %1540 = vmatprep.mubr.bf16.mxu0 0
      %1541 = vmatmul.mubr.bf16.gmra.mrb[0].mxu0 %v1259
      %v1542 = vpop.f32.mrb[0].mxu0
      %v1543 = vadd.f32 0.0, %v1542
      %v1544 = vpop.f32.mrb[0].mxu0
      %v1545 = vpop.f32.mrb[0].mxu0
      %v1546 = vadd.f32 0.0, %v1545
      %v1547 = vpop.f32.mrb[0].mxu0
      %1548 = vmatprep.mubr.bf16.mxu0 0
      %1549 = vmatmul.mubr.bf16.gmra.mrb[0].mxu0 %v1271
      %v1550 = vpop.f32.mrb[0].mxu0
      %v1551 = vadd.f32 0.0, %v1550
      %v1552 = vpop.f32.mrb[0].mxu0
      %v1553 = vpop.f32.mrb[0].mxu0
      %v1554 = vadd.f32 0.0, %v1553
      %v1555 = vpop.f32.mrb[0].mxu0
      %1556 = vmatprep.mubr.bf16.mxu0 0
      %1557 = vmatmul.mubr.bf16.gmra.mrb[0].mxu0 %v1283
      %v1558 = vpop.f32.mrb[0].mxu0
      %v1559 = vadd.f32 0.0, %v1558
      %v1560 = vpop.f32.mrb[0].mxu0
      %v1561 = vpop.f32.mrb[0].mxu0
      %v1562 = vadd.f32 0.0, %v1561
      %v1563 = vpop.f32.mrb[0].mxu0
      %1564 = vmatprep.mubr.bf16.mxu0 0
      %1565 = vmatmul.mubr.bf16.gmra.mrb[0].mxu0 %v1295
      %v1566 = vpop.f32.mrb[0].mxu0
      %v1567 = vadd.f32 0.0, %v1566
      %v1568 = vpop.f32.mrb[0].mxu0
      %v1569 = vpop.f32.mrb[0].mxu0
      %v1570 = vadd.f32 0.0, %v1569
      %v1571 = vpop.f32.mrb[0].mxu0
      %1572 = vmatprep.mubr.bf16.mxu0 0
      %1573 = vmatmul.mubr.bf16.gmra.mrb[0].mxu0 %v1307
      %v1574 = vpop.f32.mrb[0].mxu0
      %v1575 = vadd.f32 0.0, %v1574
      %v1576 = vpop.f32.mrb[0].mxu0
      %v1577 = vpop.f32.mrb[0].mxu0
      %v1578 = vadd.f32 0.0, %v1577
      %v1579 = vpop.f32.mrb[0].mxu0
      %1580 = vmatprep.mubr.bf16.mxu0 0
      %1581 = vmatmul.mubr.bf16.gmra.mrb[0].mxu0 %v1319
      %v1582 = vpop.f32.mrb[0].mxu0
      %v1583 = vadd.f32 0.0, %v1582
      %v1584 = vpop.f32.mrb[0].mxu0
      %v1585 = vpop.f32.mrb[0].mxu0
      %v1586 = vadd.f32 0.0, %v1585
      %v1587 = vpop.f32.mrb[0].mxu0
      %1588 = vmatprep.mubr.bf16.mxu0 0
      %1589 = vmatmul.mubr.bf16.gmra.mrb[0].mxu0 %v1331
      %v1590 = vpop.f32.mrb[0].mxu0
      %v1591 = vadd.f32 0.0, %v1590
      %v1592 = vpop.f32.mrb[0].mxu0
      %v1593 = vpop.f32.mrb[0].mxu0
      %v1594 = vadd.f32 0.0, %v1593
      %v1595 = vpop.f32.mrb[0].mxu0
      %1596 = vmatprep.mubr.bf16.mxu0 0
      %1597 = vmatmul.mubr.bf16.gmra.mrb[0].mxu0 %v1343
      %v1598 = vpop.f32.mrb[0].mxu0
      %v1599 = vadd.f32 0.0, %v1598
      %v1600 = vpop.f32.mrb[0].mxu0
      %v1601 = vpop.f32.mrb[0].mxu0
      %v1602 = vadd.f32 0.0, %v1601
      %v1603 = vpop.f32.mrb[0].mxu0
      %1604 = vmatprep.mubr.bf16.mxu0 0
      %1605 = vmatmul.mubr.bf16.gmra.mrb[0].mxu0 %v1355
      %v1606 = vpop.f32.mrb[0].mxu0
      %v1607 = vadd.f32 0.0, %v1606
      %v1608 = vpop.f32.mrb[0].mxu0
      %v1609 = vpop.f32.mrb[0].mxu0
      %v1610 = vadd.f32 0.0, %v1609
      %v1611 = vpop.f32.mrb[0].mxu0
      %1612 = vmatprep.mubr.bf16.mxu0 0
      %1613 = vmatmul.mubr.bf16.gmra.mrb[0].mxu0 %v1367
      %v1614 = vpop.f32.mrb[0].mxu0
      %v1615 = vadd.f32 0.0, %v1614
      %v1616 = vpop.f32.mrb[0].mxu0
      %v1617 = vpop.f32.mrb[0].mxu0
      %v1618 = vadd.f32 0.0, %v1617
      %v1619 = vpop.f32.mrb[0].mxu0
      %1620 = vmatprep.mubr.bf16.mxu0 0
      %1621 = vmatmul.mubr.bf16.gmra.mrb[0].mxu0 %v1379
      %v1622 = vpop.f32.mrb[0].mxu0
      %v1623 = vadd.f32 0.0, %v1622
      %v1624 = vpop.f32.mrb[0].mxu0
      %v1625 = vpop.f32.mrb[0].mxu0
      %v1626 = vadd.f32 0.0, %v1625
      %v1627 = vpop.f32.mrb[0].mxu0
      %1628 = vmatprep.mubr.bf16.mxu0 0
      %1629 = vmatmul.mubr.bf16.gmra.mrb[0].mxu0 %v1391
      %v1630 = vpop.f32.mrb[0].mxu0
      %v1631 = vadd.f32 0.0, %v1630
      %v1632 = vpop.f32.mrb[0].mxu0
      %v1633 = vpop.f32.mrb[0].mxu0
      %v1634 = vadd.f32 0.0, %v1633
      %v1635 = vpop.f32.mrb[0].mxu0
      %1636 = vmatprep.mubr.bf16.mxu0 0
      %1637 = vmatmul.mubr.bf16.gmra.mrb[0].mxu0 %v1403
      %v1638 = vpop.f32.mrb[0].mxu0
      %v1639 = vadd.f32 0.0, %v1638
      %v1640 = vpop.f32.mrb[0].mxu0
      %v1641 = vpop.f32.mrb[0].mxu0
      %v1642 = vadd.f32 0.0, %v1641
      %v1643 = vpop.f32.mrb[0].mxu0
      %1644 = vdwg.mxu0
      %v1645 = vadd.f32 %v1053, %v1519
      %v1646 = vadd.f32 %v1056, %v1522
      %v1647 = vadd.f32 %v1061, %v1527
      %v1648 = vadd.f32 %v1064, %v1530
      %v1649 = vadd.f32 %v1069, %v1535
      %v1650 = vadd.f32 %v1072, %v1538
      %v1651 = vadd.f32 %v1077, %v1543
      %v1652 = vadd.f32 %v1080, %v1546
      %v1653 = vadd.f32 %v1085, %v1551
      %v1654 = vadd.f32 %v1088, %v1554
      %v1655 = vadd.f32 %v1093, %v1559
      %v1656 = vadd.f32 %v1096, %v1562
      %v1657 = vadd.f32 %v1101, %v1567
      %v1658 = vadd.f32 %v1104, %v1570
      %v1659 = vadd.f32 %v1109, %v1575
      %v1660 = vadd.f32 %v1112, %v1578
      %v1661 = vadd.f32 %v1117, %v1583
      %v1662 = vadd.f32 %v1120, %v1586
      %v1663 = vadd.f32 %v1125, %v1591
      %v1664 = vadd.f32 %v1128, %v1594
      %v1665 = vadd.f32 %v1133, %v1599
      %v1666 = vadd.f32 %v1136, %v1602
      %v1667 = vadd.f32 %v1141, %v1607
      %v1668 = vadd.f32 %v1144, %v1610
      %v1669 = vadd.f32 %v1149, %v1615
      %v1670 = vadd.f32 %v1152, %v1618
      %v1671 = vadd.f32 %v1157, %v1623
      %v1672 = vadd.f32 %v1160, %v1626
      %v1673 = vadd.f32 %v1165, %v1631
      %v1674 = vadd.f32 %v1168, %v1634
      %v1675 = vadd.f32 %v1173, %v1639
      %v1676 = vadd.f32 %v1176, %v1642
      %v1677 = vld [vmem:[%s471] sm:$0x80]
      %v1678 = vld [vmem:[%s471 + $0x8] sm:$0xff]
      %v1679 = vld [vmem:[%s471 + $0x18] sm:$0x80]
      %v1680 = vld [vmem:[%s471 + $0x20] sm:$0xff]
      %v1681 = vld [vmem:[%s471 + $0x30] sm:$0x80]
      %v1682 = vld [vmem:[%s471 + $0x38] sm:$0xff]
      %v1683 = vld [vmem:[%s471 + $0x48] sm:$0x80]
      %v1684 = vld [vmem:[%s471 + $0x50] sm:$0xff]
      %v1685 = vld [vmem:[%s471 + $0x60] sm:$0x80]
      %v1686 = vld [vmem:[%s471 + $0x68] sm:$0xff]
      %v1687 = vld [vmem:[%s471 + $0x78] sm:$0x80]
      %v1688 = vld [vmem:[%s471 + $0x80] sm:$0xff]
      %v1689 = vld [vmem:[%s471 + $0x90] sm:$0x80]
      %v1690 = vld [vmem:[%s471 + $0x98] sm:$0xff]
      %v1691 = vld [vmem:[%s471 + $0xa8] sm:$0x80]
      %v1692 = vld [vmem:[%s471 + $0xb0] sm:$0xff]
      %v1693 = vld [vmem:[%s471 + $0xc0] sm:$0x80]
      %v1694 = vld [vmem:[%s471 + $0xc8] sm:$0xff]
      %v1695 = vld [vmem:[%s471 + $0xd8] sm:$0x80]
      %v1696 = vld [vmem:[%s471 + $0xe0] sm:$0xff]
      %v1697 = vld [vmem:[%s471 + $0xf0] sm:$0x80]
      %v1698 = vld [vmem:[%s471 + $0xf8] sm:$0xff]
      %v1699 = vld [vmem:[%s471 + $0x108] sm:$0x80]
      %v1700 = vld [vmem:[%s471 + $0x110] sm:$0xff]
      %v1701 = vld [vmem:[%s471 + $0x120] sm:$0x80]
      %v1702 = vld [vmem:[%s471 + $0x128] sm:$0xff]
      %v1703 = vld [vmem:[%s471 + $0x138] sm:$0x80]
      %v1704 = vld [vmem:[%s471 + $0x140] sm:$0xff]
      %v1705 = vld [vmem:[%s471 + $0x150] sm:$0x80]
      %v1706 = vld [vmem:[%s471 + $0x158] sm:$0xff]
      %v1707 = vld [vmem:[%s471 + $0x168] sm:$0x80]
      %v1708 = vld [vmem:[%s471 + $0x170] sm:$0xff]
      %v1710 = vshrl.u32 %v1677, 16
      %v1712 = vrot.slane %v1710, 7
      %v1714 = vshrl.u32 %v1678, 16
      %v1716 = vrot.slane %v1714, 7
      %v1717 = vshll.u32 %v1678, 16
      %v1719 = vor.u32 %v1716, %v1717
      %v1720 = vsel %vm520, %v1712, %v1719
      %v1722 = vshrl.u32 %v1679, 16
      %v1724 = vrot.slane %v1722, 7
      %v1726 = vshrl.u32 %v1680, 16
      %v1728 = vrot.slane %v1726, 7
      %v1729 = vshll.u32 %v1680, 16
      %v1731 = vor.u32 %v1728, %v1729
      %v1732 = vsel %vm520, %v1724, %v1731
      %v1734 = vshrl.u32 %v1681, 16
      %v1736 = vrot.slane %v1734, 7
      %v1738 = vshrl.u32 %v1682, 16
      %v1740 = vrot.slane %v1738, 7
      %v1741 = vshll.u32 %v1682, 16
      %v1743 = vor.u32 %v1740, %v1741
      %v1744 = vsel %vm520, %v1736, %v1743
      %v1746 = vshrl.u32 %v1683, 16
      %v1748 = vrot.slane %v1746, 7
      %v1750 = vshrl.u32 %v1684, 16
      %v1752 = vrot.slane %v1750, 7
      %v1753 = vshll.u32 %v1684, 16
      %v1755 = vor.u32 %v1752, %v1753
      %v1756 = vsel %vm520, %v1748, %v1755
      %v1758 = vshrl.u32 %v1685, 16
      %v1760 = vrot.slane %v1758, 7
      %v1762 = vshrl.u32 %v1686, 16
      %v1764 = vrot.slane %v1762, 7
      %v1765 = vshll.u32 %v1686, 16
      %v1767 = vor.u32 %v1764, %v1765
      %v1768 = vsel %vm520, %v1760, %v1767
      %v1770 = vshrl.u32 %v1687, 16
      %v1772 = vrot.slane %v1770, 7
      %v1774 = vshrl.u32 %v1688, 16
      %v1776 = vrot.slane %v1774, 7
      %v1777 = vshll.u32 %v1688, 16
      %v1779 = vor.u32 %v1776, %v1777
      %v1780 = vsel %vm520, %v1772, %v1779
      %v1782 = vshrl.u32 %v1689, 16
      %v1784 = vrot.slane %v1782, 7
      %v1786 = vshrl.u32 %v1690, 16
      %v1788 = vrot.slane %v1786, 7
      %v1789 = vshll.u32 %v1690, 16
      %v1791 = vor.u32 %v1788, %v1789
      %v1792 = vsel %vm520, %v1784, %v1791
      %v1794 = vshrl.u32 %v1691, 16
      %v1796 = vrot.slane %v1794, 7
      %v1798 = vshrl.u32 %v1692, 16
      %v1800 = vrot.slane %v1798, 7
      %v1801 = vshll.u32 %v1692, 16
      %v1803 = vor.u32 %v1800, %v1801
      %v1804 = vsel %vm520, %v1796, %v1803
      %v1806 = vshrl.u32 %v1693, 16
      %v1808 = vrot.slane %v1806, 7
      %v1810 = vshrl.u32 %v1694, 16
      %v1812 = vrot.slane %v1810, 7
      %v1813 = vshll.u32 %v1694, 16
      %v1815 = vor.u32 %v1812, %v1813
      %v1816 = vsel %vm520, %v1808, %v1815
      %v1818 = vshrl.u32 %v1695, 16
      %v1820 = vrot.slane %v1818, 7
      %v1822 = vshrl.u32 %v1696, 16
      %v1824 = vrot.slane %v1822, 7
      %v1825 = vshll.u32 %v1696, 16
      %v1827 = vor.u32 %v1824, %v1825
      %v1828 = vsel %vm520, %v1820, %v1827
      %v1830 = vshrl.u32 %v1697, 16
      %v1832 = vrot.slane %v1830, 7
      %v1834 = vshrl.u32 %v1698, 16
      %v1836 = vrot.slane %v1834, 7
      %v1837 = vshll.u32 %v1698, 16
      %v1839 = vor.u32 %v1836, %v1837
      %v1840 = vsel %vm520, %v1832, %v1839
      %v1842 = vshrl.u32 %v1699, 16
      %v1844 = vrot.slane %v1842, 7
      %v1846 = vshrl.u32 %v1700, 16
      %v1848 = vrot.slane %v1846, 7
      %v1849 = vshll.u32 %v1700, 16
      %v1851 = vor.u32 %v1848, %v1849
      %v1852 = vsel %vm520, %v1844, %v1851
      %v1854 = vshrl.u32 %v1701, 16
      %v1856 = vrot.slane %v1854, 7
      %v1858 = vshrl.u32 %v1702, 16
      %v1860 = vrot.slane %v1858, 7
      %v1861 = vshll.u32 %v1702, 16
      %v1863 = vor.u32 %v1860, %v1861
      %v1864 = vsel %vm520, %v1856, %v1863
      %v1866 = vshrl.u32 %v1703, 16
      %v1868 = vrot.slane %v1866, 7
      %v1870 = vshrl.u32 %v1704, 16
      %v1872 = vrot.slane %v1870, 7
      %v1873 = vshll.u32 %v1704, 16
      %v1875 = vor.u32 %v1872, %v1873
      %v1876 = vsel %vm520, %v1868, %v1875
      %v1878 = vshrl.u32 %v1705, 16
      %v1880 = vrot.slane %v1878, 7
      %v1882 = vshrl.u32 %v1706, 16
      %v1884 = vrot.slane %v1882, 7
      %v1885 = vshll.u32 %v1706, 16
      %v1887 = vor.u32 %v1884, %v1885
      %v1888 = vsel %vm520, %v1880, %v1887
      %v1890 = vshrl.u32 %v1707, 16
      %v1892 = vrot.slane %v1890, 7
      %v1894 = vshrl.u32 %v1708, 16
      %v1896 = vrot.slane %v1894, 7
      %v1897 = vshll.u32 %v1708, 16
      %v1899 = vor.u32 %v1896, %v1897
      %v1900 = vsel %vm520, %v1892, %v1899
      %v1917 = vld [vmem:[%s3 + $0xc0] sm:$0xf]
      %v1918 = vld [vmem:[%s3 + $0xc4] sm:$0xf]
      %v1919 = vld [vmem:[%s3 + $0xc8] sm:$0xf]
      %v1920 = vld [vmem:[%s3 + $0xcc] sm:$0xf]
      %v1921 = vld [vmem:[%s3 + $0xd0] sm:$0xf]
      %v1922 = vld [vmem:[%s3 + $0xd4] sm:$0xf]
      %v1923 = vld [vmem:[%s3 + $0xd8] sm:$0xf]
      %v1924 = vld [vmem:[%s3 + $0xdc] sm:$0xf]
      %v1925 = vld [vmem:[%s3 + $0xe0] sm:$0xf]
      %v1926 = vld [vmem:[%s3 + $0xe4] sm:$0xf]
      %v1927 = vld [vmem:[%s3 + $0xe8] sm:$0xf]
      %v1928 = vld [vmem:[%s3 + $0xec] sm:$0xf]
      %v1929 = vld [vmem:[%s3 + $0xf0] sm:$0xf]
      %v1930 = vld [vmem:[%s3 + $0xf4] sm:$0xf]
      %v1931 = vld [vmem:[%s3 + $0xf8] sm:$0xf]
      %v1932 = vld [vmem:[%s3 + $0xfc] sm:$0xf]
      %v1949 = vunpack.c.l.b16 %v1917
      %v1950 = vunpack.c.l.b16 %v1918
      %v1951 = vunpack.c.l.b16 %v1919
      %v1952 = vunpack.c.l.b16 %v1920
      %v1953 = vunpack.c.l.b16 %v1921
      %v1954 = vunpack.c.l.b16 %v1922
      %v1955 = vunpack.c.l.b16 %v1923
      %v1956 = vunpack.c.l.b16 %v1924
      %v1957 = vunpack.c.l.b16 %v1925
      %v1958 = vunpack.c.l.b16 %v1926
      %v1959 = vunpack.c.l.b16 %v1927
      %v1960 = vunpack.c.l.b16 %v1928
      %v1961 = vunpack.c.l.b16 %v1929
      %v1962 = vunpack.c.l.b16 %v1930
      %v1963 = vunpack.c.l.b16 %v1931
      %v1964 = vunpack.c.l.b16 %v1932
      %v1965 = vpack.c.b16 %v1950, %v1949
      %v1966 = vpack.c.b16 %v1952, %v1951
      %v1967 = vpack.c.b16 %v1954, %v1953
      %v1968 = vpack.c.b16 %v1956, %v1955
      %v1969 = vpack.c.b16 %v1958, %v1957
      %v1970 = vpack.c.b16 %v1960, %v1959
      %v1971 = vpack.c.b16 %v1962, %v1961
      %v1972 = vpack.c.b16 %v1964, %v1963
      %1981 = vmatprep.subr.bf16.mxu0 0
      %1982 = vmatpush1.bf16.msra.mxu0 %v1965
      %1983 = vmatprep.subr.bf16.mxu0 0
      %1984 = vmatpush1.bf16.msra.mxu0 %v1966
      %1985 = vmatprep.subr.bf16.mxu0 0
      %1986 = vmatpush1.bf16.msra.mxu0 %v1967
      %1987 = vmatprep.subr.bf16.mxu0 0
      %1988 = vmatpush1.bf16.msra.mxu0 %v1968
      %1989 = vmatprep.subr.bf16.mxu0 0
      %1990 = vmatpush1.bf16.msra.mxu0 %v1969
      %1991 = vmatprep.subr.bf16.mxu0 0
      %1992 = vmatpush1.bf16.msra.mxu0 %v1970
      %1993 = vmatprep.subr.bf16.mxu0 0
      %1994 = vmatpush1.bf16.msra.mxu0 %v1971
      %1995 = vmatprep.subr.bf16.mxu0 0
      %1996 = vmatpush1.bf16.msra.mxu0 %v1972
      %1997 = vmatprep.subr.bf16.mxu0 0
      %1998 = vmatpush1.bf16.msra.mxu0 0
      %1999 = vmatprep.subr.bf16.mxu0 0
      %2000 = vmatpush1.bf16.msra.mxu0 0
      %2001 = vmatprep.subr.bf16.mxu0 0
      %2002 = vmatpush1.bf16.msra.mxu0 0
      %2003 = vmatprep.subr.bf16.mxu0 0
      %2004 = vmatpush1.bf16.msra.mxu0 0
      %2005 = vmatprep.subr.bf16.mxu0 0
      %2006 = vmatpush1.bf16.msra.mxu0 0
      %2007 = vmatprep.subr.bf16.mxu0 0
      %2008 = vmatpush1.bf16.msra.mxu0 0
      %2009 = vmatprep.subr.bf16.mxu0 0
      %2010 = vmatpush1.bf16.msra.mxu0 0
      %2011 = vmatprep.subr.bf16.mxu0 0
      %2012 = vmatpush1.bf16.msra.mxu0 0
      %2013 = vmatprep.mubr.bf16.mxu0 0
      %2014 = vmatmul.mubr.bf16.gmra.mrb[0].mxu0 %v1720
      %v2015 = vpop.f32.mrb[0].mxu0
      %v2016 = vadd.f32 0.0, %v2015
      %v2017 = vpop.f32.mrb[0].mxu0
      %v2018 = vpop.f32.mrb[0].mxu0
      %v2019 = vadd.f32 0.0, %v2018
      %v2020 = vpop.f32.mrb[0].mxu0
      %2021 = vmatprep.mubr.bf16.mxu0 0
      %2022 = vmatmul.mubr.bf16.gmra.mrb[0].mxu0 %v1732
      %v2023 = vpop.f32.mrb[0].mxu0
      %v2024 = vadd.f32 0.0, %v2023
      %v2025 = vpop.f32.mrb[0].mxu0
      %v2026 = vpop.f32.mrb[0].mxu0
      %v2027 = vadd.f32 0.0, %v2026
      %v2028 = vpop.f32.mrb[0].mxu0
      %2029 = vmatprep.mubr.bf16.mxu0 0
      %2030 = vmatmul.mubr.bf16.gmra.mrb[0].mxu0 %v1744
      %v2031 = vpop.f32.mrb[0].mxu0
      %v2032 = vadd.f32 0.0, %v2031
      %v2033 = vpop.f32.mrb[0].mxu0
      %v2034 = vpop.f32.mrb[0].mxu0
      %v2035 = vadd.f32 0.0, %v2034
      %v2036 = vpop.f32.mrb[0].mxu0
      %2037 = vmatprep.mubr.bf16.mxu0 0
      %2038 = vmatmul.mubr.bf16.gmra.mrb[0].mxu0 %v1756
      %v2039 = vpop.f32.mrb[0].mxu0
      %v2040 = vadd.f32 0.0, %v2039
      %v2041 = vpop.f32.mrb[0].mxu0
      %v2042 = vpop.f32.mrb[0].mxu0
      %v2043 = vadd.f32 0.0, %v2042
      %v2044 = vpop.f32.mrb[0].mxu0
      %2045 = vmatprep.mubr.bf16.mxu0 0
      %2046 = vmatmul.mubr.bf16.gmra.mrb[0].mxu0 %v1768
      %v2047 = vpop.f32.mrb[0].mxu0
      %v2048 = vadd.f32 0.0, %v2047
      %v2049 = vpop.f32.mrb[0].mxu0
      %v2050 = vpop.f32.mrb[0].mxu0
      %v2051 = vadd.f32 0.0, %v2050
      %v2052 = vpop.f32.mrb[0].mxu0
      %2053 = vmatprep.mubr.bf16.mxu0 0
      %2054 = vmatmul.mubr.bf16.gmra.mrb[0].mxu0 %v1780
      %v2055 = vpop.f32.mrb[0].mxu0
      %v2056 = vadd.f32 0.0, %v2055
      %v2057 = vpop.f32.mrb[0].mxu0
      %v2058 = vpop.f32.mrb[0].mxu0
      %v2059 = vadd.f32 0.0, %v2058
      %v2060 = vpop.f32.mrb[0].mxu0
      %2061 = vmatprep.mubr.bf16.mxu0 0
      %2062 = vmatmul.mubr.bf16.gmra.mrb[0].mxu0 %v1792
      %v2063 = vpop.f32.mrb[0].mxu0
      %v2064 = vadd.f32 0.0, %v2063
      %v2065 = vpop.f32.mrb[0].mxu0
      %v2066 = vpop.f32.mrb[0].mxu0
      %v2067 = vadd.f32 0.0, %v2066
      %v2068 = vpop.f32.mrb[0].mxu0
      %2069 = vmatprep.mubr.bf16.mxu0 0
      %2070 = vmatmul.mubr.bf16.gmra.mrb[0].mxu0 %v1804
      %v2071 = vpop.f32.mrb[0].mxu0
      %v2072 = vadd.f32 0.0, %v2071
      %v2073 = vpop.f32.mrb[0].mxu0
      %v2074 = vpop.f32.mrb[0].mxu0
      %v2075 = vadd.f32 0.0, %v2074
      %v2076 = vpop.f32.mrb[0].mxu0
      %2077 = vmatprep.mubr.bf16.mxu0 0
      %2078 = vmatmul.mubr.bf16.gmra.mrb[0].mxu0 %v1816
      %v2079 = vpop.f32.mrb[0].mxu0
      %v2080 = vadd.f32 0.0, %v2079
      %v2081 = vpop.f32.mrb[0].mxu0
      %v2082 = vpop.f32.mrb[0].mxu0
      %v2083 = vadd.f32 0.0, %v2082
      %v2084 = vpop.f32.mrb[0].mxu0
      %2085 = vmatprep.mubr.bf16.mxu0 0
      %2086 = vmatmul.mubr.bf16.gmra.mrb[0].mxu0 %v1828
      %v2087 = vpop.f32.mrb[0].mxu0
      %v2088 = vadd.f32 0.0, %v2087
      %v2089 = vpop.f32.mrb[0].mxu0
      %v2090 = vpop.f32.mrb[0].mxu0
      %v2091 = vadd.f32 0.0, %v2090
      %v2092 = vpop.f32.mrb[0].mxu0
      %2093 = vmatprep.mubr.bf16.mxu0 0
      %2094 = vmatmul.mubr.bf16.gmra.mrb[0].mxu0 %v1840
      %v2095 = vpop.f32.mrb[0].mxu0
      %v2096 = vadd.f32 0.0, %v2095
      %v2097 = vpop.f32.mrb[0].mxu0
      %v2098 = vpop.f32.mrb[0].mxu0
      %v2099 = vadd.f32 0.0, %v2098
      %v2100 = vpop.f32.mrb[0].mxu0
      %2101 = vmatprep.mubr.bf16.mxu0 0
      %2102 = vmatmul.mubr.bf16.gmra.mrb[0].mxu0 %v1852
      %v2103 = vpop.f32.mrb[0].mxu0
      %v2104 = vadd.f32 0.0, %v2103
      %v2105 = vpop.f32.mrb[0].mxu0
      %v2106 = vpop.f32.mrb[0].mxu0
      %v2107 = vadd.f32 0.0, %v2106
      %v2108 = vpop.f32.mrb[0].mxu0
      %2109 = vmatprep.mubr.bf16.mxu0 0
      %2110 = vmatmul.mubr.bf16.gmra.mrb[0].mxu0 %v1864
      %v2111 = vpop.f32.mrb[0].mxu0
      %v2112 = vadd.f32 0.0, %v2111
      %v2113 = vpop.f32.mrb[0].mxu0
      %v2114 = vpop.f32.mrb[0].mxu0
      %v2115 = vadd.f32 0.0, %v2114
      %v2116 = vpop.f32.mrb[0].mxu0
      %2117 = vmatprep.mubr.bf16.mxu0 0
      %2118 = vmatmul.mubr.bf16.gmra.mrb[0].mxu0 %v1876
      %v2119 = vpop.f32.mrb[0].mxu0
      %v2120 = vadd.f32 0.0, %v2119
      %v2121 = vpop.f32.mrb[0].mxu0
      %v2122 = vpop.f32.mrb[0].mxu0
      %v2123 = vadd.f32 0.0, %v2122
      %v2124 = vpop.f32.mrb[0].mxu0
      %2125 = vmatprep.mubr.bf16.mxu0 0
      %2126 = vmatmul.mubr.bf16.gmra.mrb[0].mxu0 %v1888
      %v2127 = vpop.f32.mrb[0].mxu0
      %v2128 = vadd.f32 0.0, %v2127
      %v2129 = vpop.f32.mrb[0].mxu0
      %v2130 = vpop.f32.mrb[0].mxu0
      %v2131 = vadd.f32 0.0, %v2130
      %v2132 = vpop.f32.mrb[0].mxu0
      %2133 = vmatprep.mubr.bf16.mxu0 0
      %2134 = vmatmul.mubr.bf16.gmra.mrb[0].mxu0 %v1900
      %v2135 = vpop.f32.mrb[0].mxu0
      %v2136 = vadd.f32 0.0, %v2135
      %v2137 = vpop.f32.mrb[0].mxu0
      %v2138 = vpop.f32.mrb[0].mxu0
      %v2139 = vadd.f32 0.0, %v2138
      %v2140 = vpop.f32.mrb[0].mxu0
      %2141 = vdwg.mxu0
      %v2142 = vadd.f32 %v1645, %v2016
      %v2143 = vadd.f32 %v1646, %v2019
      %v2144 = vadd.f32 %v1647, %v2024
      %v2145 = vadd.f32 %v1648, %v2027
      %v2146 = vadd.f32 %v1649, %v2032
      %v2147 = vadd.f32 %v1650, %v2035
      %v2148 = vadd.f32 %v1651, %v2040
      %v2149 = vadd.f32 %v1652, %v2043
      %v2150 = vadd.f32 %v1653, %v2048
      %v2151 = vadd.f32 %v1654, %v2051
      %v2152 = vadd.f32 %v1655, %v2056
      %v2153 = vadd.f32 %v1656, %v2059
      %v2154 = vadd.f32 %v1657, %v2064
      %v2155 = vadd.f32 %v1658, %v2067
      %v2156 = vadd.f32 %v1659, %v2072
      %v2157 = vadd.f32 %v1660, %v2075
      %v2158 = vadd.f32 %v1661, %v2080
      %v2159 = vadd.f32 %v1662, %v2083
      %v2160 = vadd.f32 %v1663, %v2088
      %v2161 = vadd.f32 %v1664, %v2091
      %v2162 = vadd.f32 %v1665, %v2096
      %v2163 = vadd.f32 %v1666, %v2099
      %v2164 = vadd.f32 %v1667, %v2104
      %v2165 = vadd.f32 %v1668, %v2107
      %v2166 = vadd.f32 %v1669, %v2112
      %v2167 = vadd.f32 %v1670, %v2115
      %v2168 = vadd.f32 %v1671, %v2120
      %v2169 = vadd.f32 %v1672, %v2123
      %v2170 = vadd.f32 %v1673, %v2128
      %v2171 = vadd.f32 %v1674, %v2131
      %v2172 = vadd.f32 %v1675, %v2136
      %v2173 = vadd.f32 %v1676, %v2139
      %v2174 = vld [vmem:[%s3 + $0x100] sm:$0xf]
      %v2175 = vld [vmem:[%s3 + $0x104] sm:$0xf]
      %v2176 = vld [vmem:[%s3 + $0x108] sm:$0xf]
      %v2177 = vld [vmem:[%s3 + $0x10c] sm:$0xf]
      %v2178 = vld [vmem:[%s3 + $0x110] sm:$0xf]
      %v2179 = vld [vmem:[%s3 + $0x114] sm:$0xf]
      %v2180 = vld [vmem:[%s3 + $0x118] sm:$0xf]
      %v2181 = vld [vmem:[%s3 + $0x11c] sm:$0xf]
      %v2182 = vld [vmem:[%s3 + $0x120] sm:$0xf]
      %v2183 = vld [vmem:[%s3 + $0x124] sm:$0xf]
      %v2184 = vld [vmem:[%s3 + $0x128] sm:$0xf]
      %v2185 = vld [vmem:[%s3 + $0x12c] sm:$0xf]
      %v2186 = vld [vmem:[%s3 + $0x130] sm:$0xf]
      %v2187 = vld [vmem:[%s3 + $0x134] sm:$0xf]
      %v2188 = vld [vmem:[%s3 + $0x138] sm:$0xf]
      %v2189 = vld [vmem:[%s3 + $0x13c] sm:$0xf]
      %v2206 = vunpack.c.l.b16 %v2174
      %v2207 = vunpack.c.l.b16 %v2175
      %v2208 = vunpack.c.l.b16 %v2176
      %v2209 = vunpack.c.l.b16 %v2177
      %v2210 = vunpack.c.l.b16 %v2178
      %v2211 = vunpack.c.l.b16 %v2179
      %v2212 = vunpack.c.l.b16 %v2180
      %v2213 = vunpack.c.l.b16 %v2181
      %v2214 = vunpack.c.l.b16 %v2182
      %v2215 = vunpack.c.l.b16 %v2183
      %v2216 = vunpack.c.l.b16 %v2184
      %v2217 = vunpack.c.l.b16 %v2185
      %v2218 = vunpack.c.l.b16 %v2186
      %v2219 = vunpack.c.l.b16 %v2187
      %v2220 = vunpack.c.l.b16 %v2188
      %v2221 = vunpack.c.l.b16 %v2189
      %v2222 = vpack.c.b16 %v2207, %v2206
      %v2223 = vpack.c.b16 %v2209, %v2208
      %v2224 = vpack.c.b16 %v2211, %v2210
      %v2225 = vpack.c.b16 %v2213, %v2212
      %v2226 = vpack.c.b16 %v2215, %v2214
      %v2227 = vpack.c.b16 %v2217, %v2216
      %v2228 = vpack.c.b16 %v2219, %v2218
      %v2229 = vpack.c.b16 %v2221, %v2220
      %2238 = vmatprep.subr.bf16.mxu0 0
      %2239 = vmatpush1.bf16.msra.mxu0 %v2222
      %2240 = vmatprep.subr.bf16.mxu0 0
      %2241 = vmatpush1.bf16.msra.mxu0 %v2223
      %2242 = vmatprep.subr.bf16.mxu0 0
      %2243 = vmatpush1.bf16.msra.mxu0 %v2224
      %2244 = vmatprep.subr.bf16.mxu0 0
      %2245 = vmatpush1.bf16.msra.mxu0 %v2225
      %2246 = vmatprep.subr.bf16.mxu0 0
      %2247 = vmatpush1.bf16.msra.mxu0 %v2226
      %2248 = vmatprep.subr.bf16.mxu0 0
      %2249 = vmatpush1.bf16.msra.mxu0 %v2227
      %2250 = vmatprep.subr.bf16.mxu0 0
      %2251 = vmatpush1.bf16.msra.mxu0 %v2228
      %2252 = vmatprep.subr.bf16.mxu0 0
      %2253 = vmatpush1.bf16.msra.mxu0 %v2229
      %2254 = vmatprep.subr.bf16.mxu0 0
      %2255 = vmatpush1.bf16.msra.mxu0 0
      %2256 = vmatprep.subr.bf16.mxu0 0
      %2257 = vmatpush1.bf16.msra.mxu0 0
      %2258 = vmatprep.subr.bf16.mxu0 0
      %2259 = vmatpush1.bf16.msra.mxu0 0
      %2260 = vmatprep.subr.bf16.mxu0 0
      %2261 = vmatpush1.bf16.msra.mxu0 0
      %2262 = vmatprep.subr.bf16.mxu0 0
      %2263 = vmatpush1.bf16.msra.mxu0 0
      %2264 = vmatprep.subr.bf16.mxu0 0
      %2265 = vmatpush1.bf16.msra.mxu0 0
      %2266 = vmatprep.subr.bf16.mxu0 0
      %2267 = vmatpush1.bf16.msra.mxu0 0
      %2268 = vmatprep.subr.bf16.mxu0 0
      %2269 = vmatpush1.bf16.msra.mxu0 0
      %2270 = vmatprep.mubr.bf16.mxu0 0
      %2271 = vmatmul.mubr.bf16.gmra.mrb[0].mxu0 %v1678
      %v2272 = vpop.f32.mrb[0].mxu0
      %v2273 = vadd.f32 0.0, %v2272
      %v2274 = vpop.f32.mrb[0].mxu0
      %v2275 = vpop.f32.mrb[0].mxu0
      %v2276 = vadd.f32 0.0, %v2275
      %v2277 = vpop.f32.mrb[0].mxu0
      %2278 = vmatprep.mubr.bf16.mxu0 0
      %2279 = vmatmul.mubr.bf16.gmra.mrb[0].mxu0 %v1680
      %v2280 = vpop.f32.mrb[0].mxu0
      %v2281 = vadd.f32 0.0, %v2280
      %v2282 = vpop.f32.mrb[0].mxu0
      %v2283 = vpop.f32.mrb[0].mxu0
      %v2284 = vadd.f32 0.0, %v2283
      %v2285 = vpop.f32.mrb[0].mxu0
      %2286 = vmatprep.mubr.bf16.mxu0 0
      %2287 = vmatmul.mubr.bf16.gmra.mrb[0].mxu0 %v1682
      %v2288 = vpop.f32.mrb[0].mxu0
      %v2289 = vadd.f32 0.0, %v2288
      %v2290 = vpop.f32.mrb[0].mxu0
      %v2291 = vpop.f32.mrb[0].mxu0
      %v2292 = vadd.f32 0.0, %v2291
      %v2293 = vpop.f32.mrb[0].mxu0
      %2294 = vmatprep.mubr.bf16.mxu0 0
      %2295 = vmatmul.mubr.bf16.gmra.mrb[0].mxu0 %v1684
      %v2296 = vpop.f32.mrb[0].mxu0
      %v2297 = vadd.f32 0.0, %v2296
      %v2298 = vpop.f32.mrb[0].mxu0
      %v2299 = vpop.f32.mrb[0].mxu0
      %v2300 = vadd.f32 0.0, %v2299
      %v2301 = vpop.f32.mrb[0].mxu0
      %2302 = vmatprep.mubr.bf16.mxu0 0
      %2303 = vmatmul.mubr.bf16.gmra.mrb[0].mxu0 %v1686
      %v2304 = vpop.f32.mrb[0].mxu0
      %v2305 = vadd.f32 0.0, %v2304
      %v2306 = vpop.f32.mrb[0].mxu0
      %v2307 = vpop.f32.mrb[0].mxu0
      %v2308 = vadd.f32 0.0, %v2307
      %v2309 = vpop.f32.mrb[0].mxu0
      %2310 = vmatprep.mubr.bf16.mxu0 0
      %2311 = vmatmul.mubr.bf16.gmra.mrb[0].mxu0 %v1688
      %v2312 = vpop.f32.mrb[0].mxu0
      %v2313 = vadd.f32 0.0, %v2312
      %v2314 = vpop.f32.mrb[0].mxu0
      %v2315 = vpop.f32.mrb[0].mxu0
      %v2316 = vadd.f32 0.0, %v2315
      %v2317 = vpop.f32.mrb[0].mxu0
      %2318 = vmatprep.mubr.bf16.mxu0 0
      %2319 = vmatmul.mubr.bf16.gmra.mrb[0].mxu0 %v1690
      %v2320 = vpop.f32.mrb[0].mxu0
      %v2321 = vadd.f32 0.0, %v2320
      %v2322 = vpop.f32.mrb[0].mxu0
      %v2323 = vpop.f32.mrb[0].mxu0
      %v2324 = vadd.f32 0.0, %v2323
      %v2325 = vpop.f32.mrb[0].mxu0
      %2326 = vmatprep.mubr.bf16.mxu0 0
      %2327 = vmatmul.mubr.bf16.gmra.mrb[0].mxu0 %v1692
      %v2328 = vpop.f32.mrb[0].mxu0
      %v2329 = vadd.f32 0.0, %v2328
      %v2330 = vpop.f32.mrb[0].mxu0
      %v2331 = vpop.f32.mrb[0].mxu0
      %v2332 = vadd.f32 0.0, %v2331
      %v2333 = vpop.f32.mrb[0].mxu0
      %2334 = vmatprep.mubr.bf16.mxu0 0
      %2335 = vmatmul.mubr.bf16.gmra.mrb[0].mxu0 %v1694
      %v2336 = vpop.f32.mrb[0].mxu0
      %v2337 = vadd.f32 0.0, %v2336
      %v2338 = vpop.f32.mrb[0].mxu0
      %v2339 = vpop.f32.mrb[0].mxu0
      %v2340 = vadd.f32 0.0, %v2339
      %v2341 = vpop.f32.mrb[0].mxu0
      %2342 = vmatprep.mubr.bf16.mxu0 0
      %2343 = vmatmul.mubr.bf16.gmra.mrb[0].mxu0 %v1696
      %v2344 = vpop.f32.mrb[0].mxu0
      %v2345 = vadd.f32 0.0, %v2344
      %v2346 = vpop.f32.mrb[0].mxu0
      %v2347 = vpop.f32.mrb[0].mxu0
      %v2348 = vadd.f32 0.0, %v2347
      %v2349 = vpop.f32.mrb[0].mxu0
      %2350 = vmatprep.mubr.bf16.mxu0 0
      %2351 = vmatmul.mubr.bf16.gmra.mrb[0].mxu0 %v1698
      %v2352 = vpop.f32.mrb[0].mxu0
      %v2353 = vadd.f32 0.0, %v2352
      %v2354 = vpop.f32.mrb[0].mxu0
      %v2355 = vpop.f32.mrb[0].mxu0
      %v2356 = vadd.f32 0.0, %v2355
      %v2357 = vpop.f32.mrb[0].mxu0
      %2358 = vmatprep.mubr.bf16.mxu0 0
      %2359 = vmatmul.mubr.bf16.gmra.mrb[0].mxu0 %v1700
      %v2360 = vpop.f32.mrb[0].mxu0
      %v2361 = vadd.f32 0.0, %v2360
      %v2362 = vpop.f32.mrb[0].mxu0
      %v2363 = vpop.f32.mrb[0].mxu0
      %v2364 = vadd.f32 0.0, %v2363
      %v2365 = vpop.f32.mrb[0].mxu0
      %2366 = vmatprep.mubr.bf16.mxu0 0
      %2367 = vmatmul.mubr.bf16.gmra.mrb[0].mxu0 %v1702
      %v2368 = vpop.f32.mrb[0].mxu0
      %v2369 = vadd.f32 0.0, %v2368
      %v2370 = vpop.f32.mrb[0].mxu0
      %v2371 = vpop.f32.mrb[0].mxu0
      %v2372 = vadd.f32 0.0, %v2371
      %v2373 = vpop.f32.mrb[0].mxu0
      %2374 = vmatprep.mubr.bf16.mxu0 0
      %2375 = vmatmul.mubr.bf16.gmra.mrb[0].mxu0 %v1704
      %v2376 = vpop.f32.mrb[0].mxu0
      %v2377 = vadd.f32 0.0, %v2376
      %v2378 = vpop.f32.mrb[0].mxu0
      %v2379 = vpop.f32.mrb[0].mxu0
      %v2380 = vadd.f32 0.0, %v2379
      %v2381 = vpop.f32.mrb[0].mxu0
      %2382 = vmatprep.mubr.bf16.mxu0 0
      %2383 = vmatmul.mubr.bf16.gmra.mrb[0].mxu0 %v1706
      %v2384 = vpop.f32.mrb[0].mxu0
      %v2385 = vadd.f32 0.0, %v2384
      %v2386 = vpop.f32.mrb[0].mxu0
      %v2387 = vpop.f32.mrb[0].mxu0
      %v2388 = vadd.f32 0.0, %v2387
      %v2389 = vpop.f32.mrb[0].mxu0
      %2390 = vmatprep.mubr.bf16.mxu0 0
      %2391 = vmatmul.mubr.bf16.gmra.mrb[0].mxu0 %v1708
      %v2392 = vpop.f32.mrb[0].mxu0
      %v2393 = vadd.f32 0.0, %v2392
      %v2394 = vpop.f32.mrb[0].mxu0
      %v2395 = vpop.f32.mrb[0].mxu0
      %v2396 = vadd.f32 0.0, %v2395
      %v2397 = vpop.f32.mrb[0].mxu0
      %2398 = vdwg.mxu0
      %v2399 = vadd.f32 %v2142, %v2273
      %v2400 = vadd.f32 %v2143, %v2276
      %v2401 = vadd.f32 %v2144, %v2281
      %v2402 = vadd.f32 %v2145, %v2284
      %v2403 = vadd.f32 %v2146, %v2289
      %v2404 = vadd.f32 %v2147, %v2292
      %v2405 = vadd.f32 %v2148, %v2297
      %v2406 = vadd.f32 %v2149, %v2300
      %v2407 = vadd.f32 %v2150, %v2305
      %v2408 = vadd.f32 %v2151, %v2308
      %v2409 = vadd.f32 %v2152, %v2313
      %v2410 = vadd.f32 %v2153, %v2316
      %v2411 = vadd.f32 %v2154, %v2321
      %v2412 = vadd.f32 %v2155, %v2324
      %v2413 = vadd.f32 %v2156, %v2329
      %v2414 = vadd.f32 %v2157, %v2332
      %v2415 = vadd.f32 %v2158, %v2337
      %v2416 = vadd.f32 %v2159, %v2340
      %v2417 = vadd.f32 %v2160, %v2345
      %v2418 = vadd.f32 %v2161, %v2348
      %v2419 = vadd.f32 %v2162, %v2353
      %v2420 = vadd.f32 %v2163, %v2356
      %v2421 = vadd.f32 %v2164, %v2361
      %v2422 = vadd.f32 %v2165, %v2364
      %v2423 = vadd.f32 %v2166, %v2369
      %v2424 = vadd.f32 %v2167, %v2372
      %v2425 = vadd.f32 %v2168, %v2377
      %v2426 = vadd.f32 %v2169, %v2380
      %v2427 = vadd.f32 %v2170, %v2385
      %v2428 = vadd.f32 %v2171, %v2388
      %v2429 = vadd.f32 %v2172, %v2393
      %v2430 = vadd.f32 %v2173, %v2396
      %v2431 = vld [vmem:[%s471 + $0x8] sm:$0xff]
      %v2432 = vld [vmem:[%s471 + $0x10] sm:$0x1]
      %v2433 = vld [vmem:[%s471 + $0x20] sm:$0xff]
      %v2434 = vld [vmem:[%s471 + $0x28] sm:$0x1]
      %v2435 = vld [vmem:[%s471 + $0x38] sm:$0xff]
      %v2436 = vld [vmem:[%s471 + $0x40] sm:$0x1]
      %v2437 = vld [vmem:[%s471 + $0x50] sm:$0xff]
      %v2438 = vld [vmem:[%s471 + $0x58] sm:$0x1]
      %v2439 = vld [vmem:[%s471 + $0x68] sm:$0xff]
      %v2440 = vld [vmem:[%s471 + $0x70] sm:$0x1]
      %v2441 = vld [vmem:[%s471 + $0x80] sm:$0xff]
      %v2442 = vld [vmem:[%s471 + $0x88] sm:$0x1]
      %v2443 = vld [vmem:[%s471 + $0x98] sm:$0xff]
      %v2444 = vld [vmem:[%s471 + $0xa0] sm:$0x1]
      %v2445 = vld [vmem:[%s471 + $0xb0] sm:$0xff]
      %v2446 = vld [vmem:[%s471 + $0xb8] sm:$0x1]
      %v2447 = vld [vmem:[%s471 + $0xc8] sm:$0xff]
      %v2448 = vld [vmem:[%s471 + $0xd0] sm:$0x1]
      %v2449 = vld [vmem:[%s471 + $0xe0] sm:$0xff]
      %v2450 = vld [vmem:[%s471 + $0xe8] sm:$0x1]
      %v2451 = vld [vmem:[%s471 + $0xf8] sm:$0xff]
      %v2452 = vld [vmem:[%s471 + $0x100] sm:$0x1]
      %v2453 = vld [vmem:[%s471 + $0x110] sm:$0xff]
      %v2454 = vld [vmem:[%s471 + $0x118] sm:$0x1]
      %v2455 = vld [vmem:[%s471 + $0x128] sm:$0xff]
      %v2456 = vld [vmem:[%s471 + $0x130] sm:$0x1]
      %v2457 = vld [vmem:[%s471 + $0x140] sm:$0xff]
      %v2458 = vld [vmem:[%s471 + $0x148] sm:$0x1]
      %v2459 = vld [vmem:[%s471 + $0x158] sm:$0xff]
      %v2460 = vld [vmem:[%s471 + $0x160] sm:$0x1]
      %v2461 = vld [vmem:[%s471 + $0x170] sm:$0xff]
      %v2462 = vld [vmem:[%s471 + $0x178] sm:$0x1]
      %v2464 = vshrl.u32 %v2431, 16
      %v2466 = vshll.u32 %v2431, 16
      %v2468 = vrot.slane %v2466, 1
      %v2469 = vor.u32 %v2464, %v2468
      %v2471 = vshll.u32 %v2432, 16
      %v2473 = vrot.slane %v2471, 1
      %v2474 = vsel %vm1211, %v2469, %v2473
      %v2476 = vshrl.u32 %v2433, 16
      %v2478 = vshll.u32 %v2433, 16
      %v2480 = vrot.slane %v2478, 1
      %v2481 = vor.u32 %v2476, %v2480
      %v2483 = vshll.u32 %v2434, 16
      %v2485 = vrot.slane %v2483, 1
      %v2486 = vsel %vm1211, %v2481, %v2485
      %v2488 = vshrl.u32 %v2435, 16
      %v2490 = vshll.u32 %v2435, 16
      %v2492 = vrot.slane %v2490, 1
      %v2493 = vor.u32 %v2488, %v2492
      %v2495 = vshll.u32 %v2436, 16
      %v2497 = vrot.slane %v2495, 1
      %v2498 = vsel %vm1211, %v2493, %v2497
      %v2500 = vshrl.u32 %v2437, 16
      %v2502 = vshll.u32 %v2437, 16
      %v2504 = vrot.slane %v2502, 1
      %v2505 = vor.u32 %v2500, %v2504
      %v2507 = vshll.u32 %v2438, 16
      %v2509 = vrot.slane %v2507, 1
      %v2510 = vsel %vm1211, %v2505, %v2509
      %v2512 = vshrl.u32 %v2439, 16
      %v2514 = vshll.u32 %v2439, 16
      %v2516 = vrot.slane %v2514, 1
      %v2517 = vor.u32 %v2512, %v2516
      %v2519 = vshll.u32 %v2440, 16
      %v2521 = vrot.slane %v2519, 1
      %v2522 = vsel %vm1211, %v2517, %v2521
      %v2524 = vshrl.u32 %v2441, 16
      %v2526 = vshll.u32 %v2441, 16
      %v2528 = vrot.slane %v2526, 1
      %v2529 = vor.u32 %v2524, %v2528
      %v2531 = vshll.u32 %v2442, 16
      %v2533 = vrot.slane %v2531, 1
      %v2534 = vsel %vm1211, %v2529, %v2533
      %v2536 = vshrl.u32 %v2443, 16
      %v2538 = vshll.u32 %v2443, 16
      %v2540 = vrot.slane %v2538, 1
      %v2541 = vor.u32 %v2536, %v2540
      %v2543 = vshll.u32 %v2444, 16
      %v2545 = vrot.slane %v2543, 1
      %v2546 = vsel %vm1211, %v2541, %v2545
      %v2548 = vshrl.u32 %v2445, 16
      %v2550 = vshll.u32 %v2445, 16
      %v2552 = vrot.slane %v2550, 1
      %v2553 = vor.u32 %v2548, %v2552
      %v2555 = vshll.u32 %v2446, 16
      %v2557 = vrot.slane %v2555, 1
      %v2558 = vsel %vm1211, %v2553, %v2557
      %v2560 = vshrl.u32 %v2447, 16
      %v2562 = vshll.u32 %v2447, 16
      %v2564 = vrot.slane %v2562, 1
      %v2565 = vor.u32 %v2560, %v2564
      %v2567 = vshll.u32 %v2448, 16
      %v2569 = vrot.slane %v2567, 1
      %v2570 = vsel %vm1211, %v2565, %v2569
      %v2572 = vshrl.u32 %v2449, 16
      %v2574 = vshll.u32 %v2449, 16
      %v2576 = vrot.slane %v2574, 1
      %v2577 = vor.u32 %v2572, %v2576
      %v2579 = vshll.u32 %v2450, 16
      %v2581 = vrot.slane %v2579, 1
      %v2582 = vsel %vm1211, %v2577, %v2581
      %v2584 = vshrl.u32 %v2451, 16
      %v2586 = vshll.u32 %v2451, 16
      %v2588 = vrot.slane %v2586, 1
      %v2589 = vor.u32 %v2584, %v2588
      %v2591 = vshll.u32 %v2452, 16
      %v2593 = vrot.slane %v2591, 1
      %v2594 = vsel %vm1211, %v2589, %v2593
      %v2596 = vshrl.u32 %v2453, 16
      %v2598 = vshll.u32 %v2453, 16
      %v2600 = vrot.slane %v2598, 1
      %v2601 = vor.u32 %v2596, %v2600
      %v2603 = vshll.u32 %v2454, 16
      %v2605 = vrot.slane %v2603, 1
      %v2606 = vsel %vm1211, %v2601, %v2605
      %v2608 = vshrl.u32 %v2455, 16
      %v2610 = vshll.u32 %v2455, 16
      %v2612 = vrot.slane %v2610, 1
      %v2613 = vor.u32 %v2608, %v2612
      %v2615 = vshll.u32 %v2456, 16
      %v2617 = vrot.slane %v2615, 1
      %v2618 = vsel %vm1211, %v2613, %v2617
      %v2620 = vshrl.u32 %v2457, 16
      %v2622 = vshll.u32 %v2457, 16
      %v2624 = vrot.slane %v2622, 1
      %v2625 = vor.u32 %v2620, %v2624
      %v2627 = vshll.u32 %v2458, 16
      %v2629 = vrot.slane %v2627, 1
      %v2630 = vsel %vm1211, %v2625, %v2629
      %v2632 = vshrl.u32 %v2459, 16
      %v2634 = vshll.u32 %v2459, 16
      %v2636 = vrot.slane %v2634, 1
      %v2637 = vor.u32 %v2632, %v2636
      %v2639 = vshll.u32 %v2460, 16
      %v2641 = vrot.slane %v2639, 1
      %v2642 = vsel %vm1211, %v2637, %v2641
      %v2644 = vshrl.u32 %v2461, 16
      %v2646 = vshll.u32 %v2461, 16
      %v2648 = vrot.slane %v2646, 1
      %v2649 = vor.u32 %v2644, %v2648
      %v2651 = vshll.u32 %v2462, 16
      %v2653 = vrot.slane %v2651, 1
      %v2654 = vsel %vm1211, %v2649, %v2653
      %v2671 = vld [vmem:[%s3 + $0x140] sm:$0xf]
      %v2672 = vld [vmem:[%s3 + $0x144] sm:$0xf]
      %v2673 = vld [vmem:[%s3 + $0x148] sm:$0xf]
      %v2674 = vld [vmem:[%s3 + $0x14c] sm:$0xf]
      %v2675 = vld [vmem:[%s3 + $0x150] sm:$0xf]
      %v2676 = vld [vmem:[%s3 + $0x154] sm:$0xf]
      %v2677 = vld [vmem:[%s3 + $0x158] sm:$0xf]
      %v2678 = vld [vmem:[%s3 + $0x15c] sm:$0xf]
      %v2679 = vld [vmem:[%s3 + $0x160] sm:$0xf]
      %v2680 = vld [vmem:[%s3 + $0x164] sm:$0xf]
      %v2681 = vld [vmem:[%s3 + $0x168] sm:$0xf]
      %v2682 = vld [vmem:[%s3 + $0x16c] sm:$0xf]
      %v2683 = vld [vmem:[%s3 + $0x170] sm:$0xf]
      %v2684 = vld [vmem:[%s3 + $0x174] sm:$0xf]
      %v2685 = vld [vmem:[%s3 + $0x178] sm:$0xf]
      %v2686 = vld [vmem:[%s3 + $0x17c] sm:$0xf]
      %v2703 = vunpack.c.l.b16 %v2671
      %v2704 = vunpack.c.l.b16 %v2672
      %v2705 = vunpack.c.l.b16 %v2673
      %v2706 = vunpack.c.l.b16 %v2674
      %v2707 = vunpack.c.l.b16 %v2675
      %v2708 = vunpack.c.l.b16 %v2676
      %v2709 = vunpack.c.l.b16 %v2677
      %v2710 = vunpack.c.l.b16 %v2678
      %v2711 = vunpack.c.l.b16 %v2679
      %v2712 = vunpack.c.l.b16 %v2680
      %v2713 = vunpack.c.l.b16 %v2681
      %v2714 = vunpack.c.l.b16 %v2682
      %v2715 = vunpack.c.l.b16 %v2683
      %v2716 = vunpack.c.l.b16 %v2684
      %v2717 = vunpack.c.l.b16 %v2685
      %v2718 = vunpack.c.l.b16 %v2686
      %v2719 = vpack.c.b16 %v2704, %v2703
      %v2720 = vpack.c.b16 %v2706, %v2705
      %v2721 = vpack.c.b16 %v2708, %v2707
      %v2722 = vpack.c.b16 %v2710, %v2709
      %v2723 = vpack.c.b16 %v2712, %v2711
      %v2724 = vpack.c.b16 %v2714, %v2713
      %v2725 = vpack.c.b16 %v2716, %v2715
      %v2726 = vpack.c.b16 %v2718, %v2717
      %2735 = vmatprep.subr.bf16.mxu0 0
      %2736 = vmatpush1.bf16.msra.mxu0 %v2719
      %2737 = vmatprep.subr.bf16.mxu0 0
      %2738 = vmatpush1.bf16.msra.mxu0 %v2720
      %2739 = vmatprep.subr.bf16.mxu0 0
      %2740 = vmatpush1.bf16.msra.mxu0 %v2721
      %2741 = vmatprep.subr.bf16.mxu0 0
      %2742 = vmatpush1.bf16.msra.mxu0 %v2722
      %2743 = vmatprep.subr.bf16.mxu0 0
      %2744 = vmatpush1.bf16.msra.mxu0 %v2723
      %2745 = vmatprep.subr.bf16.mxu0 0
      %2746 = vmatpush1.bf16.msra.mxu0 %v2724
      %2747 = vmatprep.subr.bf16.mxu0 0
      %2748 = vmatpush1.bf16.msra.mxu0 %v2725
      %2749 = vmatprep.subr.bf16.mxu0 0
      %2750 = vmatpush1.bf16.msra.mxu0 %v2726
      %2751 = vmatprep.subr.bf16.mxu0 0
      %2752 = vmatpush1.bf16.msra.mxu0 0
      %2753 = vmatprep.subr.bf16.mxu0 0
      %2754 = vmatpush1.bf16.msra.mxu0 0
      %2755 = vmatprep.subr.bf16.mxu0 0
      %2756 = vmatpush1.bf16.msra.mxu0 0
      %2757 = vmatprep.subr.bf16.mxu0 0
      %2758 = vmatpush1.bf16.msra.mxu0 0
      %2759 = vmatprep.subr.bf16.mxu0 0
      %2760 = vmatpush1.bf16.msra.mxu0 0
      %2761 = vmatprep.subr.bf16.mxu0 0
      %2762 = vmatpush1.bf16.msra.mxu0 0
      %2763 = vmatprep.subr.bf16.mxu0 0
      %2764 = vmatpush1.bf16.msra.mxu0 0
      %2765 = vmatprep.subr.bf16.mxu0 0
      %2766 = vmatpush1.bf16.msra.mxu0 0
      %2767 = vmatprep.mubr.bf16.mxu0 0
      %2768 = vmatmul.mubr.bf16.gmra.mrb[0].mxu0 %v2474
      %v2769 = vpop.f32.mrb[0].mxu0
      %v2770 = vadd.f32 0.0, %v2769
      %v2771 = vpop.f32.mrb[0].mxu0
      %v2772 = vpop.f32.mrb[0].mxu0
      %v2773 = vadd.f32 0.0, %v2772
      %v2774 = vpop.f32.mrb[0].mxu0
      %2775 = vmatprep.mubr.bf16.mxu0 0
      %2776 = vmatmul.mubr.bf16.gmra.mrb[0].mxu0 %v2486
      %v2777 = vpop.f32.mrb[0].mxu0
      %v2778 = vadd.f32 0.0, %v2777
      %v2779 = vpop.f32.mrb[0].mxu0
      %v2780 = vpop.f32.mrb[0].mxu0
      %v2781 = vadd.f32 0.0, %v2780
      %v2782 = vpop.f32.mrb[0].mxu0
      %2783 = vmatprep.mubr.bf16.mxu0 0
      %2784 = vmatmul.mubr.bf16.gmra.mrb[0].mxu0 %v2498
      %v2785 = vpop.f32.mrb[0].mxu0
      %v2786 = vadd.f32 0.0, %v2785
      %v2787 = vpop.f32.mrb[0].mxu0
      %v2788 = vpop.f32.mrb[0].mxu0
      %v2789 = vadd.f32 0.0, %v2788
      %v2790 = vpop.f32.mrb[0].mxu0
      %2791 = vmatprep.mubr.bf16.mxu0 0
      %2792 = vmatmul.mubr.bf16.gmra.mrb[0].mxu0 %v2510
      %v2793 = vpop.f32.mrb[0].mxu0
      %v2794 = vadd.f32 0.0, %v2793
      %v2795 = vpop.f32.mrb[0].mxu0
      %v2796 = vpop.f32.mrb[0].mxu0
      %v2797 = vadd.f32 0.0, %v2796
      %v2798 = vpop.f32.mrb[0].mxu0
      %2799 = vmatprep.mubr.bf16.mxu0 0
      %2800 = vmatmul.mubr.bf16.gmra.mrb[0].mxu0 %v2522
      %v2801 = vpop.f32.mrb[0].mxu0
      %v2802 = vadd.f32 0.0, %v2801
      %v2803 = vpop.f32.mrb[0].mxu0
      %v2804 = vpop.f32.mrb[0].mxu0
      %v2805 = vadd.f32 0.0, %v2804
      %v2806 = vpop.f32.mrb[0].mxu0
      %2807 = vmatprep.mubr.bf16.mxu0 0
      %2808 = vmatmul.mubr.bf16.gmra.mrb[0].mxu0 %v2534
      %v2809 = vpop.f32.mrb[0].mxu0
      %v2810 = vadd.f32 0.0, %v2809
      %v2811 = vpop.f32.mrb[0].mxu0
      %v2812 = vpop.f32.mrb[0].mxu0
      %v2813 = vadd.f32 0.0, %v2812
      %v2814 = vpop.f32.mrb[0].mxu0
      %2815 = vmatprep.mubr.bf16.mxu0 0
      %2816 = vmatmul.mubr.bf16.gmra.mrb[0].mxu0 %v2546
      %v2817 = vpop.f32.mrb[0].mxu0
      %v2818 = vadd.f32 0.0, %v2817
      %v2819 = vpop.f32.mrb[0].mxu0
      %v2820 = vpop.f32.mrb[0].mxu0
      %v2821 = vadd.f32 0.0, %v2820
      %v2822 = vpop.f32.mrb[0].mxu0
      %2823 = vmatprep.mubr.bf16.mxu0 0
      %2824 = vmatmul.mubr.bf16.gmra.mrb[0].mxu0 %v2558
      %v2825 = vpop.f32.mrb[0].mxu0
      %v2826 = vadd.f32 0.0, %v2825
      %v2827 = vpop.f32.mrb[0].mxu0
      %v2828 = vpop.f32.mrb[0].mxu0
      %v2829 = vadd.f32 0.0, %v2828
      %v2830 = vpop.f32.mrb[0].mxu0
      %2831 = vmatprep.mubr.bf16.mxu0 0
      %2832 = vmatmul.mubr.bf16.gmra.mrb[0].mxu0 %v2570
      %v2833 = vpop.f32.mrb[0].mxu0
      %v2834 = vadd.f32 0.0, %v2833
      %v2835 = vpop.f32.mrb[0].mxu0
      %v2836 = vpop.f32.mrb[0].mxu0
      %v2837 = vadd.f32 0.0, %v2836
      %v2838 = vpop.f32.mrb[0].mxu0
      %2839 = vmatprep.mubr.bf16.mxu0 0
      %2840 = vmatmul.mubr.bf16.gmra.mrb[0].mxu0 %v2582
      %v2841 = vpop.f32.mrb[0].mxu0
      %v2842 = vadd.f32 0.0, %v2841
      %v2843 = vpop.f32.mrb[0].mxu0
      %v2844 = vpop.f32.mrb[0].mxu0
      %v2845 = vadd.f32 0.0, %v2844
      %v2846 = vpop.f32.mrb[0].mxu0
      %2847 = vmatprep.mubr.bf16.mxu0 0
      %2848 = vmatmul.mubr.bf16.gmra.mrb[0].mxu0 %v2594
      %v2849 = vpop.f32.mrb[0].mxu0
      %v2850 = vadd.f32 0.0, %v2849
      %v2851 = vpop.f32.mrb[0].mxu0
      %v2852 = vpop.f32.mrb[0].mxu0
      %v2853 = vadd.f32 0.0, %v2852
      %v2854 = vpop.f32.mrb[0].mxu0
      %2855 = vmatprep.mubr.bf16.mxu0 0
      %2856 = vmatmul.mubr.bf16.gmra.mrb[0].mxu0 %v2606
      %v2857 = vpop.f32.mrb[0].mxu0
      %v2858 = vadd.f32 0.0, %v2857
      %v2859 = vpop.f32.mrb[0].mxu0
      %v2860 = vpop.f32.mrb[0].mxu0
      %v2861 = vadd.f32 0.0, %v2860
      %v2862 = vpop.f32.mrb[0].mxu0
      %2863 = vmatprep.mubr.bf16.mxu0 0
      %2864 = vmatmul.mubr.bf16.gmra.mrb[0].mxu0 %v2618
      %v2865 = vpop.f32.mrb[0].mxu0
      %v2866 = vadd.f32 0.0, %v2865
      %v2867 = vpop.f32.mrb[0].mxu0
      %v2868 = vpop.f32.mrb[0].mxu0
      %v2869 = vadd.f32 0.0, %v2868
      %v2870 = vpop.f32.mrb[0].mxu0
      %2871 = vmatprep.mubr.bf16.mxu0 0
      %2872 = vmatmul.mubr.bf16.gmra.mrb[0].mxu0 %v2630
      %v2873 = vpop.f32.mrb[0].mxu0
      %v2874 = vadd.f32 0.0, %v2873
      %v2875 = vpop.f32.mrb[0].mxu0
      %v2876 = vpop.f32.mrb[0].mxu0
      %v2877 = vadd.f32 0.0, %v2876
      %v2878 = vpop.f32.mrb[0].mxu0
      %2879 = vmatprep.mubr.bf16.mxu0 0
      %2880 = vmatmul.mubr.bf16.gmra.mrb[0].mxu0 %v2642
      %v2881 = vpop.f32.mrb[0].mxu0
      %v2882 = vadd.f32 0.0, %v2881
      %v2883 = vpop.f32.mrb[0].mxu0
      %v2884 = vpop.f32.mrb[0].mxu0
      %v2885 = vadd.f32 0.0, %v2884
      %v2886 = vpop.f32.mrb[0].mxu0
      %2887 = vmatprep.mubr.bf16.mxu0 0
      %2888 = vmatmul.mubr.bf16.gmra.mrb[0].mxu0 %v2654
      %v2889 = vpop.f32.mrb[0].mxu0
      %v2890 = vadd.f32 0.0, %v2889
      %v2891 = vpop.f32.mrb[0].mxu0
      %v2892 = vpop.f32.mrb[0].mxu0
      %v2893 = vadd.f32 0.0, %v2892
      %v2894 = vpop.f32.mrb[0].mxu0
      %2895 = vdwg.mxu0
      %v2896 = vadd.f32 %v2399, %v2770
      %v2897 = vadd.f32 %v2400, %v2773
      %v2898 = vadd.f32 %v2401, %v2778
      %v2899 = vadd.f32 %v2402, %v2781
      %v2900 = vadd.f32 %v2403, %v2786
      %v2901 = vadd.f32 %v2404, %v2789
      %v2902 = vadd.f32 %v2405, %v2794
      %v2903 = vadd.f32 %v2406, %v2797
      %v2904 = vadd.f32 %v2407, %v2802
      %v2905 = vadd.f32 %v2408, %v2805
      %v2906 = vadd.f32 %v2409, %v2810
      %v2907 = vadd.f32 %v2410, %v2813
      %v2908 = vadd.f32 %v2411, %v2818
      %v2909 = vadd.f32 %v2412, %v2821
      %v2910 = vadd.f32 %v2413, %v2826
      %v2911 = vadd.f32 %v2414, %v2829
      %v2912 = vadd.f32 %v2415, %v2834
      %v2913 = vadd.f32 %v2416, %v2837
      %v2914 = vadd.f32 %v2417, %v2842
      %v2915 = vadd.f32 %v2418, %v2845
      %v2916 = vadd.f32 %v2419, %v2850
      %v2917 = vadd.f32 %v2420, %v2853
      %v2918 = vadd.f32 %v2421, %v2858
      %v2919 = vadd.f32 %v2422, %v2861
      %v2920 = vadd.f32 %v2423, %v2866
      %v2921 = vadd.f32 %v2424, %v2869
      %v2922 = vadd.f32 %v2425, %v2874
      %v2923 = vadd.f32 %v2426, %v2877
      %v2924 = vadd.f32 %v2427, %v2882
      %v2925 = vadd.f32 %v2428, %v2885
      %v2926 = vadd.f32 %v2429, %v2890
      %v2927 = vadd.f32 %v2430, %v2893
      %s2928 = scalar_lea.vmem [#allocation2], 48
      %v2929 = vld [vmem:[%s2928] sm:$0x80]
      %v2930 = vld [vmem:[%s2928 + $0x8] sm:$0xff]
      %v2931 = vld [vmem:[%s2928 + $0x18] sm:$0x80]
      %v2932 = vld [vmem:[%s2928 + $0x20] sm:$0xff]
      %v2933 = vld [vmem:[%s2928 + $0x30] sm:$0x80]
      %v2934 = vld [vmem:[%s2928 + $0x38] sm:$0xff]
      %v2935 = vld [vmem:[%s2928 + $0x48] sm:$0x80]
      %v2936 = vld [vmem:[%s2928 + $0x50] sm:$0xff]
      %v2937 = vld [vmem:[%s2928 + $0x60] sm:$0x80]
      %v2938 = vld [vmem:[%s2928 + $0x68] sm:$0xff]
      %v2939 = vld [vmem:[%s2928 + $0x78] sm:$0x80]
      %v2940 = vld [vmem:[%s2928 + $0x80] sm:$0xff]
      %v2941 = vld [vmem:[%s2928 + $0x90] sm:$0x80]
      %v2942 = vld [vmem:[%s2928 + $0x98] sm:$0xff]
      %v2943 = vld [vmem:[%s2928 + $0xa8] sm:$0x80]
      %v2944 = vld [vmem:[%s2928 + $0xb0] sm:$0xff]
      %v2945 = vld [vmem:[%s2928 + $0xc0] sm:$0x80]
      %v2946 = vld [vmem:[%s2928 + $0xc8] sm:$0xff]
      %v2947 = vld [vmem:[%s2928 + $0xd8] sm:$0x80]
      %v2948 = vld [vmem:[%s2928 + $0xe0] sm:$0xff]
      %v2949 = vld [vmem:[%s2928 + $0xf0] sm:$0x80]
      %v2950 = vld [vmem:[%s2928 + $0xf8] sm:$0xff]
      %v2951 = vld [vmem:[%s2928 + $0x108] sm:$0x80]
      %v2952 = vld [vmem:[%s2928 + $0x110] sm:$0xff]
      %v2953 = vld [vmem:[%s2928 + $0x120] sm:$0x80]
      %v2954 = vld [vmem:[%s2928 + $0x128] sm:$0xff]
      %v2955 = vld [vmem:[%s2928 + $0x138] sm:$0x80]
      %v2956 = vld [vmem:[%s2928 + $0x140] sm:$0xff]
      %v2957 = vld [vmem:[%s2928 + $0x150] sm:$0x80]
      %v2958 = vld [vmem:[%s2928 + $0x158] sm:$0xff]
      %v2959 = vld [vmem:[%s2928 + $0x168] sm:$0x80]
      %v2960 = vld [vmem:[%s2928 + $0x170] sm:$0xff]
      %v2962 = vshrl.u32 %v2929, 16
      %v2964 = vrot.slane %v2962, 7
      %v2966 = vshrl.u32 %v2930, 16
      %v2968 = vrot.slane %v2966, 7
      %v2969 = vshll.u32 %v2930, 16
      %v2971 = vor.u32 %v2968, %v2969
      %v2972 = vsel %vm520, %v2964, %v2971
      %v2974 = vshrl.u32 %v2931, 16
      %v2976 = vrot.slane %v2974, 7
      %v2978 = vshrl.u32 %v2932, 16
      %v2980 = vrot.slane %v2978, 7
      %v2981 = vshll.u32 %v2932, 16
      %v2983 = vor.u32 %v2980, %v2981
      %v2984 = vsel %vm520, %v2976, %v2983
      %v2986 = vshrl.u32 %v2933, 16
      %v2988 = vrot.slane %v2986, 7
      %v2990 = vshrl.u32 %v2934, 16
      %v2992 = vrot.slane %v2990, 7
      %v2993 = vshll.u32 %v2934, 16
      %v2995 = vor.u32 %v2992, %v2993
      %v2996 = vsel %vm520, %v2988, %v2995
      %v2998 = vshrl.u32 %v2935, 16
      %v3000 = vrot.slane %v2998, 7
      %v3002 = vshrl.u32 %v2936, 16
      %v3004 = vrot.slane %v3002, 7
      %v3005 = vshll.u32 %v2936, 16
      %v3007 = vor.u32 %v3004, %v3005
      %v3008 = vsel %vm520, %v3000, %v3007
      %v3010 = vshrl.u32 %v2937, 16
      %v3012 = vrot.slane %v3010, 7
      %v3014 = vshrl.u32 %v2938, 16
      %v3016 = vrot.slane %v3014, 7
      %v3017 = vshll.u32 %v2938, 16
      %v3019 = vor.u32 %v3016, %v3017
      %v3020 = vsel %vm520, %v3012, %v3019
      %v3022 = vshrl.u32 %v2939, 16
      %v3024 = vrot.slane %v3022, 7
      %v3026 = vshrl.u32 %v2940, 16
      %v3028 = vrot.slane %v3026, 7
      %v3029 = vshll.u32 %v2940, 16
      %v3031 = vor.u32 %v3028, %v3029
      %v3032 = vsel %vm520, %v3024, %v3031
      %v3034 = vshrl.u32 %v2941, 16
      %v3036 = vrot.slane %v3034, 7
      %v3038 = vshrl.u32 %v2942, 16
      %v3040 = vrot.slane %v3038, 7
      %v3041 = vshll.u32 %v2942, 16
      %v3043 = vor.u32 %v3040, %v3041
      %v3044 = vsel %vm520, %v3036, %v3043
      %v3046 = vshrl.u32 %v2943, 16
      %v3048 = vrot.slane %v3046, 7
      %v3050 = vshrl.u32 %v2944, 16
      %v3052 = vrot.slane %v3050, 7
      %v3053 = vshll.u32 %v2944, 16
      %v3055 = vor.u32 %v3052, %v3053
      %v3056 = vsel %vm520, %v3048, %v3055
      %v3058 = vshrl.u32 %v2945, 16
      %v3060 = vrot.slane %v3058, 7
      %v3062 = vshrl.u32 %v2946, 16
      %v3064 = vrot.slane %v3062, 7
      %v3065 = vshll.u32 %v2946, 16
      %v3067 = vor.u32 %v3064, %v3065
      %v3068 = vsel %vm520, %v3060, %v3067
      %v3070 = vshrl.u32 %v2947, 16
      %v3072 = vrot.slane %v3070, 7
      %v3074 = vshrl.u32 %v2948, 16
      %v3076 = vrot.slane %v3074, 7
      %v3077 = vshll.u32 %v2948, 16
      %v3079 = vor.u32 %v3076, %v3077
      %v3080 = vsel %vm520, %v3072, %v3079
      %v3082 = vshrl.u32 %v2949, 16
      %v3084 = vrot.slane %v3082, 7
      %v3086 = vshrl.u32 %v2950, 16
      %v3088 = vrot.slane %v3086, 7
      %v3089 = vshll.u32 %v2950, 16
      %v3091 = vor.u32 %v3088, %v3089
      %v3092 = vsel %vm520, %v3084, %v3091
      %v3094 = vshrl.u32 %v2951, 16
      %v3096 = vrot.slane %v3094, 7
      %v3098 = vshrl.u32 %v2952, 16
      %v3100 = vrot.slane %v3098, 7
      %v3101 = vshll.u32 %v2952, 16
      %v3103 = vor.u32 %v3100, %v3101
      %v3104 = vsel %vm520, %v3096, %v3103
      %v3106 = vshrl.u32 %v2953, 16
      %v3108 = vrot.slane %v3106, 7
      %v3110 = vshrl.u32 %v2954, 16
      %v3112 = vrot.slane %v3110, 7
      %v3113 = vshll.u32 %v2954, 16
      %v3115 = vor.u32 %v3112, %v3113
      %v3116 = vsel %vm520, %v3108, %v3115
      %v3118 = vshrl.u32 %v2955, 16
      %v3120 = vrot.slane %v3118, 7
      %v3122 = vshrl.u32 %v2956, 16
      %v3124 = vrot.slane %v3122, 7
      %v3125 = vshll.u32 %v2956, 16
      %v3127 = vor.u32 %v3124, %v3125
      %v3128 = vsel %vm520, %v3120, %v3127
      %v3130 = vshrl.u32 %v2957, 16
      %v3132 = vrot.slane %v3130, 7
      %v3134 = vshrl.u32 %v2958, 16
      %v3136 = vrot.slane %v3134, 7
      %v3137 = vshll.u32 %v2958, 16
      %v3139 = vor.u32 %v3136, %v3137
      %v3140 = vsel %vm520, %v3132, %v3139
      %v3142 = vshrl.u32 %v2959, 16
      %v3144 = vrot.slane %v3142, 7
      %v3146 = vshrl.u32 %v2960, 16
      %v3148 = vrot.slane %v3146, 7
      %v3149 = vshll.u32 %v2960, 16
      %v3151 = vor.u32 %v3148, %v3149
      %v3152 = vsel %vm520, %v3144, %v3151
      %v3169 = vld [vmem:[%s3 + $0x180] sm:$0xf]
      %v3170 = vld [vmem:[%s3 + $0x184] sm:$0xf]
      %v3171 = vld [vmem:[%s3 + $0x188] sm:$0xf]
      %v3172 = vld [vmem:[%s3 + $0x18c] sm:$0xf]
      %v3173 = vld [vmem:[%s3 + $0x190] sm:$0xf]
      %v3174 = vld [vmem:[%s3 + $0x194] sm:$0xf]
      %v3175 = vld [vmem:[%s3 + $0x198] sm:$0xf]
      %v3176 = vld [vmem:[%s3 + $0x19c] sm:$0xf]
      %v3177 = vld [vmem:[%s3 + $0x1a0] sm:$0xf]
      %v3178 = vld [vmem:[%s3 + $0x1a4] sm:$0xf]
      %v3179 = vld [vmem:[%s3 + $0x1a8] sm:$0xf]
      %v3180 = vld [vmem:[%s3 + $0x1ac] sm:$0xf]
      %v3181 = vld [vmem:[%s3 + $0x1b0] sm:$0xf]
      %v3182 = vld [vmem:[%s3 + $0x1b4] sm:$0xf]
      %v3183 = vld [vmem:[%s3 + $0x1b8] sm:$0xf]
      %v3184 = vld [vmem:[%s3 + $0x1bc] sm:$0xf]
      %v3201 = vunpack.c.l.b16 %v3169
      %v3202 = vunpack.c.l.b16 %v3170
      %v3203 = vunpack.c.l.b16 %v3171
      %v3204 = vunpack.c.l.b16 %v3172
      %v3205 = vunpack.c.l.b16 %v3173
      %v3206 = vunpack.c.l.b16 %v3174
      %v3207 = vunpack.c.l.b16 %v3175
      %v3208 = vunpack.c.l.b16 %v3176
      %v3209 = vunpack.c.l.b16 %v3177
      %v3210 = vunpack.c.l.b16 %v3178
      %v3211 = vunpack.c.l.b16 %v3179
      %v3212 = vunpack.c.l.b16 %v3180
      %v3213 = vunpack.c.l.b16 %v3181
      %v3214 = vunpack.c.l.b16 %v3182
      %v3215 = vunpack.c.l.b16 %v3183
      %v3216 = vunpack.c.l.b16 %v3184
      %v3217 = vpack.c.b16 %v3202, %v3201
      %v3218 = vpack.c.b16 %v3204, %v3203
      %v3219 = vpack.c.b16 %v3206, %v3205
      %v3220 = vpack.c.b16 %v3208, %v3207
      %v3221 = vpack.c.b16 %v3210, %v3209
      %v3222 = vpack.c.b16 %v3212, %v3211
      %v3223 = vpack.c.b16 %v3214, %v3213
      %v3224 = vpack.c.b16 %v3216, %v3215
      %3233 = vmatprep.subr.bf16.mxu0 0
      %3234 = vmatpush1.bf16.msra.mxu0 %v3217
      %3235 = vmatprep.subr.bf16.mxu0 0
      %3236 = vmatpush1.bf16.msra.mxu0 %v3218
      %3237 = vmatprep.subr.bf16.mxu0 0
      %3238 = vmatpush1.bf16.msra.mxu0 %v3219
      %3239 = vmatprep.subr.bf16.mxu0 0
      %3240 = vmatpush1.bf16.msra.mxu0 %v3220
      %3241 = vmatprep.subr.bf16.mxu0 0
      %3242 = vmatpush1.bf16.msra.mxu0 %v3221
      %3243 = vmatprep.subr.bf16.mxu0 0
      %3244 = vmatpush1.bf16.msra.mxu0 %v3222
      %3245 = vmatprep.subr.bf16.mxu0 0
      %3246 = vmatpush1.bf16.msra.mxu0 %v3223
      %3247 = vmatprep.subr.bf16.mxu0 0
      %3248 = vmatpush1.bf16.msra.mxu0 %v3224
      %3249 = vmatprep.subr.bf16.mxu0 0
      %3250 = vmatpush1.bf16.msra.mxu0 0
      %3251 = vmatprep.subr.bf16.mxu0 0
      %3252 = vmatpush1.bf16.msra.mxu0 0
      %3253 = vmatprep.subr.bf16.mxu0 0
      %3254 = vmatpush1.bf16.msra.mxu0 0
      %3255 = vmatprep.subr.bf16.mxu0 0
      %3256 = vmatpush1.bf16.msra.mxu0 0
      %3257 = vmatprep.subr.bf16.mxu0 0
      %3258 = vmatpush1.bf16.msra.mxu0 0
      %3259 = vmatprep.subr.bf16.mxu0 0
      %3260 = vmatpush1.bf16.msra.mxu0 0
      %3261 = vmatprep.subr.bf16.mxu0 0
      %3262 = vmatpush1.bf16.msra.mxu0 0
      %3263 = vmatprep.subr.bf16.mxu0 0
      %3264 = vmatpush1.bf16.msra.mxu0 0
      %3265 = vmatprep.mubr.bf16.mxu0 0
      %3266 = vmatmul.mubr.bf16.gmra.mrb[0].mxu0 %v2972
      %v3267 = vpop.f32.mrb[0].mxu0
      %v3268 = vadd.f32 0.0, %v3267
      %v3269 = vpop.f32.mrb[0].mxu0
      %v3270 = vpop.f32.mrb[0].mxu0
      %v3271 = vadd.f32 0.0, %v3270
      %v3272 = vpop.f32.mrb[0].mxu0
      %3273 = vmatprep.mubr.bf16.mxu0 0
      %3274 = vmatmul.mubr.bf16.gmra.mrb[0].mxu0 %v2984
      %v3275 = vpop.f32.mrb[0].mxu0
      %v3276 = vadd.f32 0.0, %v3275
      %v3277 = vpop.f32.mrb[0].mxu0
      %v3278 = vpop.f32.mrb[0].mxu0
      %v3279 = vadd.f32 0.0, %v3278
      %v3280 = vpop.f32.mrb[0].mxu0
      %3281 = vmatprep.mubr.bf16.mxu0 0
      %3282 = vmatmul.mubr.bf16.gmra.mrb[0].mxu0 %v2996
      %v3283 = vpop.f32.mrb[0].mxu0
      %v3284 = vadd.f32 0.0, %v3283
      %v3285 = vpop.f32.mrb[0].mxu0
      %v3286 = vpop.f32.mrb[0].mxu0
      %v3287 = vadd.f32 0.0, %v3286
      %v3288 = vpop.f32.mrb[0].mxu0
      %3289 = vmatprep.mubr.bf16.mxu0 0
      %3290 = vmatmul.mubr.bf16.gmra.mrb[0].mxu0 %v3008
      %v3291 = vpop.f32.mrb[0].mxu0
      %v3292 = vadd.f32 0.0, %v3291
      %v3293 = vpop.f32.mrb[0].mxu0
      %v3294 = vpop.f32.mrb[0].mxu0
      %v3295 = vadd.f32 0.0, %v3294
      %v3296 = vpop.f32.mrb[0].mxu0
      %3297 = vmatprep.mubr.bf16.mxu0 0
      %3298 = vmatmul.mubr.bf16.gmra.mrb[0].mxu0 %v3020
      %v3299 = vpop.f32.mrb[0].mxu0
      %v3300 = vadd.f32 0.0, %v3299
      %v3301 = vpop.f32.mrb[0].mxu0
      %v3302 = vpop.f32.mrb[0].mxu0
      %v3303 = vadd.f32 0.0, %v3302
      %v3304 = vpop.f32.mrb[0].mxu0
      %3305 = vmatprep.mubr.bf16.mxu0 0
      %3306 = vmatmul.mubr.bf16.gmra.mrb[0].mxu0 %v3032
      %v3307 = vpop.f32.mrb[0].mxu0
      %v3308 = vadd.f32 0.0, %v3307
      %v3309 = vpop.f32.mrb[0].mxu0
      %v3310 = vpop.f32.mrb[0].mxu0
      %v3311 = vadd.f32 0.0, %v3310
      %v3312 = vpop.f32.mrb[0].mxu0
      %3313 = vmatprep.mubr.bf16.mxu0 0
      %3314 = vmatmul.mubr.bf16.gmra.mrb[0].mxu0 %v3044
      %v3315 = vpop.f32.mrb[0].mxu0
      %v3316 = vadd.f32 0.0, %v3315
      %v3317 = vpop.f32.mrb[0].mxu0
      %v3318 = vpop.f32.mrb[0].mxu0
      %v3319 = vadd.f32 0.0, %v3318
      %v3320 = vpop.f32.mrb[0].mxu0
      %3321 = vmatprep.mubr.bf16.mxu0 0
      %3322 = vmatmul.mubr.bf16.gmra.mrb[0].mxu0 %v3056
      %v3323 = vpop.f32.mrb[0].mxu0
      %v3324 = vadd.f32 0.0, %v3323
      %v3325 = vpop.f32.mrb[0].mxu0
      %v3326 = vpop.f32.mrb[0].mxu0
      %v3327 = vadd.f32 0.0, %v3326
      %v3328 = vpop.f32.mrb[0].mxu0
      %3329 = vmatprep.mubr.bf16.mxu0 0
      %3330 = vmatmul.mubr.bf16.gmra.mrb[0].mxu0 %v3068
      %v3331 = vpop.f32.mrb[0].mxu0
      %v3332 = vadd.f32 0.0, %v3331
      %v3333 = vpop.f32.mrb[0].mxu0
      %v3334 = vpop.f32.mrb[0].mxu0
      %v3335 = vadd.f32 0.0, %v3334
      %v3336 = vpop.f32.mrb[0].mxu0
      %3337 = vmatprep.mubr.bf16.mxu0 0
      %3338 = vmatmul.mubr.bf16.gmra.mrb[0].mxu0 %v3080
      %v3339 = vpop.f32.mrb[0].mxu0
      %v3340 = vadd.f32 0.0, %v3339
      %v3341 = vpop.f32.mrb[0].mxu0
      %v3342 = vpop.f32.mrb[0].mxu0
      %v3343 = vadd.f32 0.0, %v3342
      %v3344 = vpop.f32.mrb[0].mxu0
      %3345 = vmatprep.mubr.bf16.mxu0 0
      %3346 = vmatmul.mubr.bf16.gmra.mrb[0].mxu0 %v3092
      %v3347 = vpop.f32.mrb[0].mxu0
      %v3348 = vadd.f32 0.0, %v3347
      %v3349 = vpop.f32.mrb[0].mxu0
      %v3350 = vpop.f32.mrb[0].mxu0
      %v3351 = vadd.f32 0.0, %v3350
      %v3352 = vpop.f32.mrb[0].mxu0
      %3353 = vmatprep.mubr.bf16.mxu0 0
      %3354 = vmatmul.mubr.bf16.gmra.mrb[0].mxu0 %v3104
      %v3355 = vpop.f32.mrb[0].mxu0
      %v3356 = vadd.f32 0.0, %v3355
      %v3357 = vpop.f32.mrb[0].mxu0
      %v3358 = vpop.f32.mrb[0].mxu0
      %v3359 = vadd.f32 0.0, %v3358
      %v3360 = vpop.f32.mrb[0].mxu0
      %3361 = vmatprep.mubr.bf16.mxu0 0
      %3362 = vmatmul.mubr.bf16.gmra.mrb[0].mxu0 %v3116
      %v3363 = vpop.f32.mrb[0].mxu0
      %v3364 = vadd.f32 0.0, %v3363
      %v3365 = vpop.f32.mrb[0].mxu0
      %v3366 = vpop.f32.mrb[0].mxu0
      %v3367 = vadd.f32 0.0, %v3366
      %v3368 = vpop.f32.mrb[0].mxu0
      %3369 = vmatprep.mubr.bf16.mxu0 0
      %3370 = vmatmul.mubr.bf16.gmra.mrb[0].mxu0 %v3128
      %v3371 = vpop.f32.mrb[0].mxu0
      %v3372 = vadd.f32 0.0, %v3371
      %v3373 = vpop.f32.mrb[0].mxu0
      %v3374 = vpop.f32.mrb[0].mxu0
      %v3375 = vadd.f32 0.0, %v3374
      %v3376 = vpop.f32.mrb[0].mxu0
      %3377 = vmatprep.mubr.bf16.mxu0 0
      %3378 = vmatmul.mubr.bf16.gmra.mrb[0].mxu0 %v3140
      %v3379 = vpop.f32.mrb[0].mxu0
      %v3380 = vadd.f32 0.0, %v3379
      %v3381 = vpop.f32.mrb[0].mxu0
      %v3382 = vpop.f32.mrb[0].mxu0
      %v3383 = vadd.f32 0.0, %v3382
      %v3384 = vpop.f32.mrb[0].mxu0
      %3385 = vmatprep.mubr.bf16.mxu0 0
      %3386 = vmatmul.mubr.bf16.gmra.mrb[0].mxu0 %v3152
      %v3387 = vpop.f32.mrb[0].mxu0
      %v3388 = vadd.f32 0.0, %v3387
      %v3389 = vpop.f32.mrb[0].mxu0
      %v3390 = vpop.f32.mrb[0].mxu0
      %v3391 = vadd.f32 0.0, %v3390
      %v3392 = vpop.f32.mrb[0].mxu0
      %3393 = vdwg.mxu0
      %v3394 = vadd.f32 %v2896, %v3268
      %v3395 = vadd.f32 %v2897, %v3271
      %v3396 = vadd.f32 %v2898, %v3276
      %v3397 = vadd.f32 %v2899, %v3279
      %v3398 = vadd.f32 %v2900, %v3284
      %v3399 = vadd.f32 %v2901, %v3287
      %v3400 = vadd.f32 %v2902, %v3292
      %v3401 = vadd.f32 %v2903, %v3295
      %v3402 = vadd.f32 %v2904, %v3300
      %v3403 = vadd.f32 %v2905, %v3303
      %v3404 = vadd.f32 %v2906, %v3308
      %v3405 = vadd.f32 %v2907, %v3311
      %v3406 = vadd.f32 %v2908, %v3316
      %v3407 = vadd.f32 %v2909, %v3319
      %v3408 = vadd.f32 %v2910, %v3324
      %v3409 = vadd.f32 %v2911, %v3327
      %v3410 = vadd.f32 %v2912, %v3332
      %v3411 = vadd.f32 %v2913, %v3335
      %v3412 = vadd.f32 %v2914, %v3340
      %v3413 = vadd.f32 %v2915, %v3343
      %v3414 = vadd.f32 %v2916, %v3348
      %v3415 = vadd.f32 %v2917, %v3351
      %v3416 = vadd.f32 %v2918, %v3356
      %v3417 = vadd.f32 %v2919, %v3359
      %v3418 = vadd.f32 %v2920, %v3364
      %v3419 = vadd.f32 %v2921, %v3367
      %v3420 = vadd.f32 %v2922, %v3372
      %v3421 = vadd.f32 %v2923, %v3375
      %v3422 = vadd.f32 %v2924, %v3380
      %v3423 = vadd.f32 %v2925, %v3383
      %v3424 = vadd.f32 %v2926, %v3388
      %v3425 = vadd.f32 %v2927, %v3391
      %v3426 = vld [vmem:[%s3 + $0x1c0] sm:$0xf]
      %v3427 = vld [vmem:[%s3 + $0x1c4] sm:$0xf]
      %v3428 = vld [vmem:[%s3 + $0x1c8] sm:$0xf]
      %v3429 = vld [vmem:[%s3 + $0x1cc] sm:$0xf]
      %v3430 = vld [vmem:[%s3 + $0x1d0] sm:$0xf]
      %v3431 = vld [vmem:[%s3 + $0x1d4] sm:$0xf]
      %v3432 = vld [vmem:[%s3 + $0x1d8] sm:$0xf]
      %v3433 = vld [vmem:[%s3 + $0x1dc] sm:$0xf]
      %v3434 = vld [vmem:[%s3 + $0x1e0] sm:$0xf]
      %v3435 = vld [vmem:[%s3 + $0x1e4] sm:$0xf]
      %v3436 = vld [vmem:[%s3 + $0x1e8] sm:$0xf]
      %v3437 = vld [vmem:[%s3 + $0x1ec] sm:$0xf]
      %v3438 = vld [vmem:[%s3 + $0x1f0] sm:$0xf]
      %v3439 = vld [vmem:[%s3 + $0x1f4] sm:$0xf]
      %v3440 = vld [vmem:[%s3 + $0x1f8] sm:$0xf]
      %v3441 = vld [vmem:[%s3 + $0x1fc] sm:$0xf]
      %v3458 = vunpack.c.l.b16 %v3426
      %v3459 = vunpack.c.l.b16 %v3427
      %v3460 = vunpack.c.l.b16 %v3428
      %v3461 = vunpack.c.l.b16 %v3429
      %v3462 = vunpack.c.l.b16 %v3430
      %v3463 = vunpack.c.l.b16 %v3431
      %v3464 = vunpack.c.l.b16 %v3432
      %v3465 = vunpack.c.l.b16 %v3433
      %v3466 = vunpack.c.l.b16 %v3434
      %v3467 = vunpack.c.l.b16 %v3435
      %v3468 = vunpack.c.l.b16 %v3436
      %v3469 = vunpack.c.l.b16 %v3437
      %v3470 = vunpack.c.l.b16 %v3438
      %v3471 = vunpack.c.l.b16 %v3439
      %v3472 = vunpack.c.l.b16 %v3440
      %v3473 = vunpack.c.l.b16 %v3441
      %v3474 = vpack.c.b16 %v3459, %v3458
      %v3475 = vpack.c.b16 %v3461, %v3460
      %v3476 = vpack.c.b16 %v3463, %v3462
      %v3477 = vpack.c.b16 %v3465, %v3464
      %v3478 = vpack.c.b16 %v3467, %v3466
      %v3479 = vpack.c.b16 %v3469, %v3468
      %v3480 = vpack.c.b16 %v3471, %v3470
      %v3481 = vpack.c.b16 %v3473, %v3472
      %3490 = vmatprep.subr.bf16.mxu0 0
      %3491 = vmatpush1.bf16.msra.mxu0 %v3474
      %3492 = vmatprep.subr.bf16.mxu0 0
      %3493 = vmatpush1.bf16.msra.mxu0 %v3475
      %3494 = vmatprep.subr.bf16.mxu0 0
      %3495 = vmatpush1.bf16.msra.mxu0 %v3476
      %3496 = vmatprep.subr.bf16.mxu0 0
      %3497 = vmatpush1.bf16.msra.mxu0 %v3477
      %3498 = vmatprep.subr.bf16.mxu0 0
      %3499 = vmatpush1.bf16.msra.mxu0 %v3478
      %3500 = vmatprep.subr.bf16.mxu0 0
      %3501 = vmatpush1.bf16.msra.mxu0 %v3479
      %3502 = vmatprep.subr.bf16.mxu0 0
      %3503 = vmatpush1.bf16.msra.mxu0 %v3480
      %3504 = vmatprep.subr.bf16.mxu0 0
      %3505 = vmatpush1.bf16.msra.mxu0 %v3481
      %3506 = vmatprep.subr.bf16.mxu0 0
      %3507 = vmatpush1.bf16.msra.mxu0 0
      %3508 = vmatprep.subr.bf16.mxu0 0
      %3509 = vmatpush1.bf16.msra.mxu0 0
      %3510 = vmatprep.subr.bf16.mxu0 0
      %3511 = vmatpush1.bf16.msra.mxu0 0
      %3512 = vmatprep.subr.bf16.mxu0 0
      %3513 = vmatpush1.bf16.msra.mxu0 0
      %3514 = vmatprep.subr.bf16.mxu0 0
      %3515 = vmatpush1.bf16.msra.mxu0 0
      %3516 = vmatprep.subr.bf16.mxu0 0
      %3517 = vmatpush1.bf16.msra.mxu0 0
      %3518 = vmatprep.subr.bf16.mxu0 0
      %3519 = vmatpush1.bf16.msra.mxu0 0
      %3520 = vmatprep.subr.bf16.mxu0 0
      %3521 = vmatpush1.bf16.msra.mxu0 0
      %3522 = vmatprep.mubr.bf16.mxu0 0
      %3523 = vmatmul.mubr.bf16.gmra.mrb[0].mxu0 %v2930
      %v3524 = vpop.f32.mrb[0].mxu0
      %v3525 = vadd.f32 0.0, %v3524
      %v3526 = vpop.f32.mrb[0].mxu0
      %v3527 = vpop.f32.mrb[0].mxu0
      %v3528 = vadd.f32 0.0, %v3527
      %v3529 = vpop.f32.mrb[0].mxu0
      %3530 = vmatprep.mubr.bf16.mxu0 0
      %3531 = vmatmul.mubr.bf16.gmra.mrb[0].mxu0 %v2932
      %v3532 = vpop.f32.mrb[0].mxu0
      %v3533 = vadd.f32 0.0, %v3532
      %v3534 = vpop.f32.mrb[0].mxu0
      %v3535 = vpop.f32.mrb[0].mxu0
      %v3536 = vadd.f32 0.0, %v3535
      %v3537 = vpop.f32.mrb[0].mxu0
      %3538 = vmatprep.mubr.bf16.mxu0 0
      %3539 = vmatmul.mubr.bf16.gmra.mrb[0].mxu0 %v2934
      %v3540 = vpop.f32.mrb[0].mxu0
      %v3541 = vadd.f32 0.0, %v3540
      %v3542 = vpop.f32.mrb[0].mxu0
      %v3543 = vpop.f32.mrb[0].mxu0
      %v3544 = vadd.f32 0.0, %v3543
      %v3545 = vpop.f32.mrb[0].mxu0
      %3546 = vmatprep.mubr.bf16.mxu0 0
      %3547 = vmatmul.mubr.bf16.gmra.mrb[0].mxu0 %v2936
      %v3548 = vpop.f32.mrb[0].mxu0
      %v3549 = vadd.f32 0.0, %v3548
      %v3550 = vpop.f32.mrb[0].mxu0
      %v3551 = vpop.f32.mrb[0].mxu0
      %v3552 = vadd.f32 0.0, %v3551
      %v3553 = vpop.f32.mrb[0].mxu0
      %3554 = vmatprep.mubr.bf16.mxu0 0
      %3555 = vmatmul.mubr.bf16.gmra.mrb[0].mxu0 %v2938
      %v3556 = vpop.f32.mrb[0].mxu0
      %v3557 = vadd.f32 0.0, %v3556
      %v3558 = vpop.f32.mrb[0].mxu0
      %v3559 = vpop.f32.mrb[0].mxu0
      %v3560 = vadd.f32 0.0, %v3559
      %v3561 = vpop.f32.mrb[0].mxu0
      %3562 = vmatprep.mubr.bf16.mxu0 0
      %3563 = vmatmul.mubr.bf16.gmra.mrb[0].mxu0 %v2940
      %v3564 = vpop.f32.mrb[0].mxu0
      %v3565 = vadd.f32 0.0, %v3564
      %v3566 = vpop.f32.mrb[0].mxu0
      %v3567 = vpop.f32.mrb[0].mxu0
      %v3568 = vadd.f32 0.0, %v3567
      %v3569 = vpop.f32.mrb[0].mxu0
      %3570 = vmatprep.mubr.bf16.mxu0 0
      %3571 = vmatmul.mubr.bf16.gmra.mrb[0].mxu0 %v2942
      %v3572 = vpop.f32.mrb[0].mxu0
      %v3573 = vadd.f32 0.0, %v3572
      %v3574 = vpop.f32.mrb[0].mxu0
      %v3575 = vpop.f32.mrb[0].mxu0
      %v3576 = vadd.f32 0.0, %v3575
      %v3577 = vpop.f32.mrb[0].mxu0
      %3578 = vmatprep.mubr.bf16.mxu0 0
      %3579 = vmatmul.mubr.bf16.gmra.mrb[0].mxu0 %v2944
      %v3580 = vpop.f32.mrb[0].mxu0
      %v3581 = vadd.f32 0.0, %v3580
      %v3582 = vpop.f32.mrb[0].mxu0
      %v3583 = vpop.f32.mrb[0].mxu0
      %v3584 = vadd.f32 0.0, %v3583
      %v3585 = vpop.f32.mrb[0].mxu0
      %3586 = vmatprep.mubr.bf16.mxu0 0
      %3587 = vmatmul.mubr.bf16.gmra.mrb[0].mxu0 %v2946
      %v3588 = vpop.f32.mrb[0].mxu0
      %v3589 = vadd.f32 0.0, %v3588
      %v3590 = vpop.f32.mrb[0].mxu0
      %v3591 = vpop.f32.mrb[0].mxu0
      %v3592 = vadd.f32 0.0, %v3591
      %v3593 = vpop.f32.mrb[0].mxu0
      %3594 = vmatprep.mubr.bf16.mxu0 0
      %3595 = vmatmul.mubr.bf16.gmra.mrb[0].mxu0 %v2948
      %v3596 = vpop.f32.mrb[0].mxu0
      %v3597 = vadd.f32 0.0, %v3596
      %v3598 = vpop.f32.mrb[0].mxu0
      %v3599 = vpop.f32.mrb[0].mxu0
      %v3600 = vadd.f32 0.0, %v3599
      %v3601 = vpop.f32.mrb[0].mxu0
      %3602 = vmatprep.mubr.bf16.mxu0 0
      %3603 = vmatmul.mubr.bf16.gmra.mrb[0].mxu0 %v2950
      %v3604 = vpop.f32.mrb[0].mxu0
      %v3605 = vadd.f32 0.0, %v3604
      %v3606 = vpop.f32.mrb[0].mxu0
      %v3607 = vpop.f32.mrb[0].mxu0
      %v3608 = vadd.f32 0.0, %v3607
      %v3609 = vpop.f32.mrb[0].mxu0
      %3610 = vmatprep.mubr.bf16.mxu0 0
      %3611 = vmatmul.mubr.bf16.gmra.mrb[0].mxu0 %v2952
      %v3612 = vpop.f32.mrb[0].mxu0
      %v3613 = vadd.f32 0.0, %v3612
      %v3614 = vpop.f32.mrb[0].mxu0
      %v3615 = vpop.f32.mrb[0].mxu0
      %v3616 = vadd.f32 0.0, %v3615
      %v3617 = vpop.f32.mrb[0].mxu0
      %3618 = vmatprep.mubr.bf16.mxu0 0
      %3619 = vmatmul.mubr.bf16.gmra.mrb[0].mxu0 %v2954
      %v3620 = vpop.f32.mrb[0].mxu0
      %v3621 = vadd.f32 0.0, %v3620
      %v3622 = vpop.f32.mrb[0].mxu0
      %v3623 = vpop.f32.mrb[0].mxu0
      %v3624 = vadd.f32 0.0, %v3623
      %v3625 = vpop.f32.mrb[0].mxu0
      %3626 = vmatprep.mubr.bf16.mxu0 0
      %3627 = vmatmul.mubr.bf16.gmra.mrb[0].mxu0 %v2956
      %v3628 = vpop.f32.mrb[0].mxu0
      %v3629 = vadd.f32 0.0, %v3628
      %v3630 = vpop.f32.mrb[0].mxu0
      %v3631 = vpop.f32.mrb[0].mxu0
      %v3632 = vadd.f32 0.0, %v3631
      %v3633 = vpop.f32.mrb[0].mxu0
      %3634 = vmatprep.mubr.bf16.mxu0 0
      %3635 = vmatmul.mubr.bf16.gmra.mrb[0].mxu0 %v2958
      %v3636 = vpop.f32.mrb[0].mxu0
      %v3637 = vadd.f32 0.0, %v3636
      %v3638 = vpop.f32.mrb[0].mxu0
      %v3639 = vpop.f32.mrb[0].mxu0
      %v3640 = vadd.f32 0.0, %v3639
      %v3641 = vpop.f32.mrb[0].mxu0
      %3642 = vmatprep.mubr.bf16.mxu0 0
      %3643 = vmatmul.mubr.bf16.gmra.mrb[0].mxu0 %v2960
      %v3644 = vpop.f32.mrb[0].mxu0
      %v3645 = vadd.f32 0.0, %v3644
      %v3646 = vpop.f32.mrb[0].mxu0
      %v3647 = vpop.f32.mrb[0].mxu0
      %v3648 = vadd.f32 0.0, %v3647
      %v3649 = vpop.f32.mrb[0].mxu0
      %3650 = vdwg.mxu0
      %v3651 = vadd.f32 %v3394, %v3525
      %v3652 = vadd.f32 %v3395, %v3528
      %v3653 = vadd.f32 %v3396, %v3533
      %v3654 = vadd.f32 %v3397, %v3536
      %v3655 = vadd.f32 %v3398, %v3541
      %v3656 = vadd.f32 %v3399, %v3544
      %v3657 = vadd.f32 %v3400, %v3549
      %v3658 = vadd.f32 %v3401, %v3552
      %v3659 = vadd.f32 %v3402, %v3557
      %v3660 = vadd.f32 %v3403, %v3560
      %v3661 = vadd.f32 %v3404, %v3565
      %v3662 = vadd.f32 %v3405, %v3568
      %v3663 = vadd.f32 %v3406, %v3573
      %v3664 = vadd.f32 %v3407, %v3576
      %v3665 = vadd.f32 %v3408, %v3581
      %v3666 = vadd.f32 %v3409, %v3584
      %v3667 = vadd.f32 %v3410, %v3589
      %v3668 = vadd.f32 %v3411, %v3592
      %v3669 = vadd.f32 %v3412, %v3597
      %v3670 = vadd.f32 %v3413, %v3600
      %v3671 = vadd.f32 %v3414, %v3605
      %v3672 = vadd.f32 %v3415, %v3608
      %v3673 = vadd.f32 %v3416, %v3613
      %v3674 = vadd.f32 %v3417, %v3616
      %v3675 = vadd.f32 %v3418, %v3621
      %v3676 = vadd.f32 %v3419, %v3624
      %v3677 = vadd.f32 %v3420, %v3629
      %v3678 = vadd.f32 %v3421, %v3632
      %v3679 = vadd.f32 %v3422, %v3637
      %v3680 = vadd.f32 %v3423, %v3640
      %v3681 = vadd.f32 %v3424, %v3645
      %v3682 = vadd.f32 %v3425, %v3648
      %v3683 = vld [vmem:[%s2928 + $0x8] sm:$0xff]
      %v3684 = vld [vmem:[%s2928 + $0x10] sm:$0x1]
      %v3685 = vld [vmem:[%s2928 + $0x20] sm:$0xff]
      %v3686 = vld [vmem:[%s2928 + $0x28] sm:$0x1]
      %v3687 = vld [vmem:[%s2928 + $0x38] sm:$0xff]
      %v3688 = vld [vmem:[%s2928 + $0x40] sm:$0x1]
      %v3689 = vld [vmem:[%s2928 + $0x50] sm:$0xff]
      %v3690 = vld [vmem:[%s2928 + $0x58] sm:$0x1]
      %v3691 = vld [vmem:[%s2928 + $0x68] sm:$0xff]
      %v3692 = vld [vmem:[%s2928 + $0x70] sm:$0x1]
      %v3693 = vld [vmem:[%s2928 + $0x80] sm:$0xff]
      %v3694 = vld [vmem:[%s2928 + $0x88] sm:$0x1]
      %v3695 = vld [vmem:[%s2928 + $0x98] sm:$0xff]
      %v3696 = vld [vmem:[%s2928 + $0xa0] sm:$0x1]
      %v3697 = vld [vmem:[%s2928 + $0xb0] sm:$0xff]
      %v3698 = vld [vmem:[%s2928 + $0xb8] sm:$0x1]
      %v3699 = vld [vmem:[%s2928 + $0xc8] sm:$0xff]
      %v3700 = vld [vmem:[%s2928 + $0xd0] sm:$0x1]
      %v3701 = vld [vmem:[%s2928 + $0xe0] sm:$0xff]
      %v3702 = vld [vmem:[%s2928 + $0xe8] sm:$0x1]
      %v3703 = vld [vmem:[%s2928 + $0xf8] sm:$0xff]
      %v3704 = vld [vmem:[%s2928 + $0x100] sm:$0x1]
      %v3705 = vld [vmem:[%s2928 + $0x110] sm:$0xff]
      %v3706 = vld [vmem:[%s2928 + $0x118] sm:$0x1]
      %v3707 = vld [vmem:[%s2928 + $0x128] sm:$0xff]
      %v3708 = vld [vmem:[%s2928 + $0x130] sm:$0x1]
      %v3709 = vld [vmem:[%s2928 + $0x140] sm:$0xff]
      %v3710 = vld [vmem:[%s2928 + $0x148] sm:$0x1]
      %v3711 = vld [vmem:[%s2928 + $0x158] sm:$0xff]
      %v3712 = vld [vmem:[%s2928 + $0x160] sm:$0x1]
      %v3713 = vld [vmem:[%s2928 + $0x170] sm:$0xff]
      %v3714 = vld [vmem:[%s2928 + $0x178] sm:$0x1]
      %v3716 = vshrl.u32 %v3683, 16
      %v3718 = vshll.u32 %v3683, 16
      %v3720 = vrot.slane %v3718, 1
      %v3721 = vor.u32 %v3716, %v3720
      %v3723 = vshll.u32 %v3684, 16
      %v3725 = vrot.slane %v3723, 1
      %v3726 = vsel %vm1211, %v3721, %v3725
      %v3728 = vshrl.u32 %v3685, 16
      %v3730 = vshll.u32 %v3685, 16
      %v3732 = vrot.slane %v3730, 1
      %v3733 = vor.u32 %v3728, %v3732
      %v3735 = vshll.u32 %v3686, 16
      %v3737 = vrot.slane %v3735, 1
      %v3738 = vsel %vm1211, %v3733, %v3737
      %v3740 = vshrl.u32 %v3687, 16
      %v3742 = vshll.u32 %v3687, 16
      %v3744 = vrot.slane %v3742, 1
      %v3745 = vor.u32 %v3740, %v3744
      %v3747 = vshll.u32 %v3688, 16
      %v3749 = vrot.slane %v3747, 1
      %v3750 = vsel %vm1211, %v3745, %v3749
      %v3752 = vshrl.u32 %v3689, 16
      %v3754 = vshll.u32 %v3689, 16
      %v3756 = vrot.slane %v3754, 1
      %v3757 = vor.u32 %v3752, %v3756
      %v3759 = vshll.u32 %v3690, 16
      %v3761 = vrot.slane %v3759, 1
      %v3762 = vsel %vm1211, %v3757, %v3761
      %v3764 = vshrl.u32 %v3691, 16
      %v3766 = vshll.u32 %v3691, 16
      %v3768 = vrot.slane %v3766, 1
      %v3769 = vor.u32 %v3764, %v3768
      %v3771 = vshll.u32 %v3692, 16
      %v3773 = vrot.slane %v3771, 1
      %v3774 = vsel %vm1211, %v3769, %v3773
      %v3776 = vshrl.u32 %v3693, 16
      %v3778 = vshll.u32 %v3693, 16
      %v3780 = vrot.slane %v3778, 1
      %v3781 = vor.u32 %v3776, %v3780
      %v3783 = vshll.u32 %v3694, 16
      %v3785 = vrot.slane %v3783, 1
      %v3786 = vsel %vm1211, %v3781, %v3785
      %v3788 = vshrl.u32 %v3695, 16
      %v3790 = vshll.u32 %v3695, 16
      %v3792 = vrot.slane %v3790, 1
      %v3793 = vor.u32 %v3788, %v3792
      %v3795 = vshll.u32 %v3696, 16
      %v3797 = vrot.slane %v3795, 1
      %v3798 = vsel %vm1211, %v3793, %v3797
      %v3800 = vshrl.u32 %v3697, 16
      %v3802 = vshll.u32 %v3697, 16
      %v3804 = vrot.slane %v3802, 1
      %v3805 = vor.u32 %v3800, %v3804
      %v3807 = vshll.u32 %v3698, 16
      %v3809 = vrot.slane %v3807, 1
      %v3810 = vsel %vm1211, %v3805, %v3809
      %v3812 = vshrl.u32 %v3699, 16
      %v3814 = vshll.u32 %v3699, 16
      %v3816 = vrot.slane %v3814, 1
      %v3817 = vor.u32 %v3812, %v3816
      %v3819 = vshll.u32 %v3700, 16
      %v3821 = vrot.slane %v3819, 1
      %v3822 = vsel %vm1211, %v3817, %v3821
      %v3824 = vshrl.u32 %v3701, 16
      %v3826 = vshll.u32 %v3701, 16
      %v3828 = vrot.slane %v3826, 1
      %v3829 = vor.u32 %v3824, %v3828
      %v3831 = vshll.u32 %v3702, 16
      %v3833 = vrot.slane %v3831, 1
      %v3834 = vsel %vm1211, %v3829, %v3833
      %v3836 = vshrl.u32 %v3703, 16
      %v3838 = vshll.u32 %v3703, 16
      %v3840 = vrot.slane %v3838, 1
      %v3841 = vor.u32 %v3836, %v3840
      %v3843 = vshll.u32 %v3704, 16
      %v3845 = vrot.slane %v3843, 1
      %v3846 = vsel %vm1211, %v3841, %v3845
      %v3848 = vshrl.u32 %v3705, 16
      %v3850 = vshll.u32 %v3705, 16
      %v3852 = vrot.slane %v3850, 1
      %v3853 = vor.u32 %v3848, %v3852
      %v3855 = vshll.u32 %v3706, 16
      %v3857 = vrot.slane %v3855, 1
      %v3858 = vsel %vm1211, %v3853, %v3857
      %v3860 = vshrl.u32 %v3707, 16
      %v3862 = vshll.u32 %v3707, 16
      %v3864 = vrot.slane %v3862, 1
      %v3865 = vor.u32 %v3860, %v3864
      %v3867 = vshll.u32 %v3708, 16
      %v3869 = vrot.slane %v3867, 1
      %v3870 = vsel %vm1211, %v3865, %v3869
      %v3872 = vshrl.u32 %v3709, 16
      %v3874 = vshll.u32 %v3709, 16
      %v3876 = vrot.slane %v3874, 1
      %v3877 = vor.u32 %v3872, %v3876
      %v3879 = vshll.u32 %v3710, 16
      %v3881 = vrot.slane %v3879, 1
      %v3882 = vsel %vm1211, %v3877, %v3881
      %v3884 = vshrl.u32 %v3711, 16
      %v3886 = vshll.u32 %v3711, 16
      %v3888 = vrot.slane %v3886, 1
      %v3889 = vor.u32 %v3884, %v3888
      %v3891 = vshll.u32 %v3712, 16
      %v3893 = vrot.slane %v3891, 1
      %v3894 = vsel %vm1211, %v3889, %v3893
      %v3896 = vshrl.u32 %v3713, 16
      %v3898 = vshll.u32 %v3713, 16
      %v3900 = vrot.slane %v3898, 1
      %v3901 = vor.u32 %v3896, %v3900
      %v3903 = vshll.u32 %v3714, 16
      %v3905 = vrot.slane %v3903, 1
      %v3906 = vsel %vm1211, %v3901, %v3905
      %v3923 = vld [vmem:[%s3 + $0x200] sm:$0xf]
      %v3924 = vld [vmem:[%s3 + $0x204] sm:$0xf]
      %v3925 = vld [vmem:[%s3 + $0x208] sm:$0xf]
      %v3926 = vld [vmem:[%s3 + $0x20c] sm:$0xf]
      %v3927 = vld [vmem:[%s3 + $0x210] sm:$0xf]
      %v3928 = vld [vmem:[%s3 + $0x214] sm:$0xf]
      %v3929 = vld [vmem:[%s3 + $0x218] sm:$0xf]
      %v3930 = vld [vmem:[%s3 + $0x21c] sm:$0xf]
      %v3931 = vld [vmem:[%s3 + $0x220] sm:$0xf]
      %v3932 = vld [vmem:[%s3 + $0x224] sm:$0xf]
      %v3933 = vld [vmem:[%s3 + $0x228] sm:$0xf]
      %v3934 = vld [vmem:[%s3 + $0x22c] sm:$0xf]
      %v3935 = vld [vmem:[%s3 + $0x230] sm:$0xf]
      %v3936 = vld [vmem:[%s3 + $0x234] sm:$0xf]
      %v3937 = vld [vmem:[%s3 + $0x238] sm:$0xf]
      %v3938 = vld [vmem:[%s3 + $0x23c] sm:$0xf]
      %v3955 = vunpack.c.l.b16 %v3923
      %v3956 = vunpack.c.l.b16 %v3924
      %v3957 = vunpack.c.l.b16 %v3925
      %v3958 = vunpack.c.l.b16 %v3926
      %v3959 = vunpack.c.l.b16 %v3927
      %v3960 = vunpack.c.l.b16 %v3928
      %v3961 = vunpack.c.l.b16 %v3929
      %v3962 = vunpack.c.l.b16 %v3930
      %v3963 = vunpack.c.l.b16 %v3931
      %v3964 = vunpack.c.l.b16 %v3932
      %v3965 = vunpack.c.l.b16 %v3933
      %v3966 = vunpack.c.l.b16 %v3934
      %v3967 = vunpack.c.l.b16 %v3935
      %v3968 = vunpack.c.l.b16 %v3936
      %v3969 = vunpack.c.l.b16 %v3937
      %v3970 = vunpack.c.l.b16 %v3938
      %v3971 = vpack.c.b16 %v3956, %v3955
      %v3972 = vpack.c.b16 %v3958, %v3957
      %v3973 = vpack.c.b16 %v3960, %v3959
      %v3974 = vpack.c.b16 %v3962, %v3961
      %v3975 = vpack.c.b16 %v3964, %v3963
      %v3976 = vpack.c.b16 %v3966, %v3965
      %v3977 = vpack.c.b16 %v3968, %v3967
      %v3978 = vpack.c.b16 %v3970, %v3969
      %3987 = vmatprep.subr.bf16.mxu0 0
      %3988 = vmatpush1.bf16.msra.mxu0 %v3971
      %3989 = vmatprep.subr.bf16.mxu0 0
      %3990 = vmatpush1.bf16.msra.mxu0 %v3972
      %3991 = vmatprep.subr.bf16.mxu0 0
      %3992 = vmatpush1.bf16.msra.mxu0 %v3973
      %3993 = vmatprep.subr.bf16.mxu0 0
      %3994 = vmatpush1.bf16.msra.mxu0 %v3974
      %3995 = vmatprep.subr.bf16.mxu0 0
      %3996 = vmatpush1.bf16.msra.mxu0 %v3975
      %3997 = vmatprep.subr.bf16.mxu0 0
      %3998 = vmatpush1.bf16.msra.mxu0 %v3976
      %3999 = vmatprep.subr.bf16.mxu0 0
      %4000 = vmatpush1.bf16.msra.mxu0 %v3977
      %4001 = vmatprep.subr.bf16.mxu0 0
      %4002 = vmatpush1.bf16.msra.mxu0 %v3978
      %4003 = vmatprep.subr.bf16.mxu0 0
      %4004 = vmatpush1.bf16.msra.mxu0 0
      %4005 = vmatprep.subr.bf16.mxu0 0
      %4006 = vmatpush1.bf16.msra.mxu0 0
      %4007 = vmatprep.subr.bf16.mxu0 0
      %4008 = vmatpush1.bf16.msra.mxu0 0
      %4009 = vmatprep.subr.bf16.mxu0 0
      %4010 = vmatpush1.bf16.msra.mxu0 0
      %4011 = vmatprep.subr.bf16.mxu0 0
      %4012 = vmatpush1.bf16.msra.mxu0 0
      %4013 = vmatprep.subr.bf16.mxu0 0
      %4014 = vmatpush1.bf16.msra.mxu0 0
      %4015 = vmatprep.subr.bf16.mxu0 0
      %4016 = vmatpush1.bf16.msra.mxu0 0
      %4017 = vmatprep.subr.bf16.mxu0 0
      %4018 = vmatpush1.bf16.msra.mxu0 0
      %4019 = vmatprep.mubr.bf16.mxu0 0
      %4020 = vmatmul.mubr.bf16.gmra.mrb[0].mxu0 %v3726
      %v4021 = vpop.f32.mrb[0].mxu0
      %v4022 = vadd.f32 0.0, %v4021
      %v4023 = vpop.f32.mrb[0].mxu0
      %v4024 = vpop.f32.mrb[0].mxu0
      %v4025 = vadd.f32 0.0, %v4024
      %v4026 = vpop.f32.mrb[0].mxu0
      %4027 = vmatprep.mubr.bf16.mxu0 0
      %4028 = vmatmul.mubr.bf16.gmra.mrb[0].mxu0 %v3738
      %v4029 = vpop.f32.mrb[0].mxu0
      %v4030 = vadd.f32 0.0, %v4029
      %v4031 = vpop.f32.mrb[0].mxu0
      %v4032 = vpop.f32.mrb[0].mxu0
      %v4033 = vadd.f32 0.0, %v4032
      %v4034 = vpop.f32.mrb[0].mxu0
      %4035 = vmatprep.mubr.bf16.mxu0 0
      %4036 = vmatmul.mubr.bf16.gmra.mrb[0].mxu0 %v3750
      %v4037 = vpop.f32.mrb[0].mxu0
      %v4038 = vadd.f32 0.0, %v4037
      %v4039 = vpop.f32.mrb[0].mxu0
      %v4040 = vpop.f32.mrb[0].mxu0
      %v4041 = vadd.f32 0.0, %v4040
      %v4042 = vpop.f32.mrb[0].mxu0
      %4043 = vmatprep.mubr.bf16.mxu0 0
      %4044 = vmatmul.mubr.bf16.gmra.mrb[0].mxu0 %v3762
      %v4045 = vpop.f32.mrb[0].mxu0
      %v4046 = vadd.f32 0.0, %v4045
      %v4047 = vpop.f32.mrb[0].mxu0
      %v4048 = vpop.f32.mrb[0].mxu0
      %v4049 = vadd.f32 0.0, %v4048
      %v4050 = vpop.f32.mrb[0].mxu0
      %4051 = vmatprep.mubr.bf16.mxu0 0
      %4052 = vmatmul.mubr.bf16.gmra.mrb[0].mxu0 %v3774
      %v4053 = vpop.f32.mrb[0].mxu0
      %v4054 = vadd.f32 0.0, %v4053
      %v4055 = vpop.f32.mrb[0].mxu0
      %v4056 = vpop.f32.mrb[0].mxu0
      %v4057 = vadd.f32 0.0, %v4056
      %v4058 = vpop.f32.mrb[0].mxu0
      %4059 = vmatprep.mubr.bf16.mxu0 0
      %4060 = vmatmul.mubr.bf16.gmra.mrb[0].mxu0 %v3786
      %v4061 = vpop.f32.mrb[0].mxu0
      %v4062 = vadd.f32 0.0, %v4061
      %v4063 = vpop.f32.mrb[0].mxu0
      %v4064 = vpop.f32.mrb[0].mxu0
      %v4065 = vadd.f32 0.0, %v4064
      %v4066 = vpop.f32.mrb[0].mxu0
      %4067 = vmatprep.mubr.bf16.mxu0 0
      %4068 = vmatmul.mubr.bf16.gmra.mrb[0].mxu0 %v3798
      %v4069 = vpop.f32.mrb[0].mxu0
      %v4070 = vadd.f32 0.0, %v4069
      %v4071 = vpop.f32.mrb[0].mxu0
      %v4072 = vpop.f32.mrb[0].mxu0
      %v4073 = vadd.f32 0.0, %v4072
      %v4074 = vpop.f32.mrb[0].mxu0
      %4075 = vmatprep.mubr.bf16.mxu0 0
      %4076 = vmatmul.mubr.bf16.gmra.mrb[0].mxu0 %v3810
      %v4077 = vpop.f32.mrb[0].mxu0
      %v4078 = vadd.f32 0.0, %v4077
      %v4079 = vpop.f32.mrb[0].mxu0
      %v4080 = vpop.f32.mrb[0].mxu0
      %v4081 = vadd.f32 0.0, %v4080
      %v4082 = vpop.f32.mrb[0].mxu0
      %4083 = vmatprep.mubr.bf16.mxu0 0
      %4084 = vmatmul.mubr.bf16.gmra.mrb[0].mxu0 %v3822
      %v4085 = vpop.f32.mrb[0].mxu0
      %v4086 = vadd.f32 0.0, %v4085
      %v4087 = vpop.f32.mrb[0].mxu0
      %v4088 = vpop.f32.mrb[0].mxu0
      %v4089 = vadd.f32 0.0, %v4088
      %v4090 = vpop.f32.mrb[0].mxu0
      %4091 = vmatprep.mubr.bf16.mxu0 0
      %4092 = vmatmul.mubr.bf16.gmra.mrb[0].mxu0 %v3834
      %v4093 = vpop.f32.mrb[0].mxu0
      %v4094 = vadd.f32 0.0, %v4093
      %v4095 = vpop.f32.mrb[0].mxu0
      %v4096 = vpop.f32.mrb[0].mxu0
      %v4097 = vadd.f32 0.0, %v4096
      %v4098 = vpop.f32.mrb[0].mxu0
      %4099 = vmatprep.mubr.bf16.mxu0 0
      %4100 = vmatmul.mubr.bf16.gmra.mrb[0].mxu0 %v3846
      %v4101 = vpop.f32.mrb[0].mxu0
      %v4102 = vadd.f32 0.0, %v4101
      %v4103 = vpop.f32.mrb[0].mxu0
      %v4104 = vpop.f32.mrb[0].mxu0
      %v4105 = vadd.f32 0.0, %v4104
      %v4106 = vpop.f32.mrb[0].mxu0
      %4107 = vmatprep.mubr.bf16.mxu0 0
      %4108 = vmatmul.mubr.bf16.gmra.mrb[0].mxu0 %v3858
      %v4109 = vpop.f32.mrb[0].mxu0
      %v4110 = vadd.f32 0.0, %v4109
      %v4111 = vpop.f32.mrb[0].mxu0
      %v4112 = vpop.f32.mrb[0].mxu0
      %v4113 = vadd.f32 0.0, %v4112
      %v4114 = vpop.f32.mrb[0].mxu0
      %4115 = vmatprep.mubr.bf16.mxu0 0
      %4116 = vmatmul.mubr.bf16.gmra.mrb[0].mxu0 %v3870
      %v4117 = vpop.f32.mrb[0].mxu0
      %v4118 = vadd.f32 0.0, %v4117
      %v4119 = vpop.f32.mrb[0].mxu0
      %v4120 = vpop.f32.mrb[0].mxu0
      %v4121 = vadd.f32 0.0, %v4120
      %v4122 = vpop.f32.mrb[0].mxu0
      %4123 = vmatprep.mubr.bf16.mxu0 0
      %4124 = vmatmul.mubr.bf16.gmra.mrb[0].mxu0 %v3882
      %v4125 = vpop.f32.mrb[0].mxu0
      %v4126 = vadd.f32 0.0, %v4125
      %v4127 = vpop.f32.mrb[0].mxu0
      %v4128 = vpop.f32.mrb[0].mxu0
      %v4129 = vadd.f32 0.0, %v4128
      %v4130 = vpop.f32.mrb[0].mxu0
      %4131 = vmatprep.mubr.bf16.mxu0 0
      %4132 = vmatmul.mubr.bf16.gmra.mrb[0].mxu0 %v3894
      %v4133 = vpop.f32.mrb[0].mxu0
      %v4134 = vadd.f32 0.0, %v4133
      %v4135 = vpop.f32.mrb[0].mxu0
      %v4136 = vpop.f32.mrb[0].mxu0
      %v4137 = vadd.f32 0.0, %v4136
      %v4138 = vpop.f32.mrb[0].mxu0
      %4139 = vmatprep.mubr.bf16.mxu0 0
      %4140 = vmatmul.mubr.bf16.gmra.mrb[0].mxu0 %v3906
      %v4141 = vpop.f32.mrb[0].mxu0
      %v4142 = vadd.f32 0.0, %v4141
      %v4143 = vpop.f32.mrb[0].mxu0
      %v4144 = vpop.f32.mrb[0].mxu0
      %v4145 = vadd.f32 0.0, %v4144
      %v4146 = vpop.f32.mrb[0].mxu0
      %4147 = vdwg.mxu0
      %v4148 = vadd.f32 %v3651, %v4022
      %v4149 = vadd.f32 %v3652, %v4025
      %v4150 = vadd.f32 %v3653, %v4030
      %v4151 = vadd.f32 %v3654, %v4033
      %v4152 = vadd.f32 %v3655, %v4038
      %v4153 = vadd.f32 %v3656, %v4041
      %v4154 = vadd.f32 %v3657, %v4046
      %v4155 = vadd.f32 %v3658, %v4049
      %v4156 = vadd.f32 %v3659, %v4054
      %v4157 = vadd.f32 %v3660, %v4057
      %v4158 = vadd.f32 %v3661, %v4062
      %v4159 = vadd.f32 %v3662, %v4065
      %v4160 = vadd.f32 %v3663, %v4070
      %v4161 = vadd.f32 %v3664, %v4073
      %v4162 = vadd.f32 %v3665, %v4078
      %v4163 = vadd.f32 %v3666, %v4081
      %v4164 = vadd.f32 %v3667, %v4086
      %v4165 = vadd.f32 %v3668, %v4089
      %v4166 = vadd.f32 %v3669, %v4094
      %v4167 = vadd.f32 %v3670, %v4097
      %v4168 = vadd.f32 %v3671, %v4102
      %v4169 = vadd.f32 %v3672, %v4105
      %v4170 = vadd.f32 %v3673, %v4110
      %v4171 = vadd.f32 %v3674, %v4113
      %v4172 = vadd.f32 %v3675, %v4118
      %v4173 = vadd.f32 %v3676, %v4121
      %v4174 = vadd.f32 %v3677, %v4126
      %v4175 = vadd.f32 %v3678, %v4129
      %v4176 = vadd.f32 %v3679, %v4134
      %v4177 = vadd.f32 %v3680, %v4137
      %v4178 = vadd.f32 %v3681, %v4142
      %v4179 = vadd.f32 %v3682, %v4145
      %v4180 = vadd.f32 %v4148, %v4149
      %v4181 = vadd.f32 %v4180, %v4150
      %v4182 = vadd.f32 %v4181, %v4151
      %v4183 = vadd.f32 %v4182, %v4152
      %v4184 = vadd.f32 %v4183, %v4153
      %v4185 = vadd.f32 %v4184, %v4154
      %v4186 = vadd.f32 %v4185, %v4155
      %v4187 = vadd.f32 %v4186, %v4156
      %v4188 = vadd.f32 %v4187, %v4157
      %v4189 = vadd.f32 %v4188, %v4158
      %v4190 = vadd.f32 %v4189, %v4159
      %v4191 = vadd.f32 %v4190, %v4160
      %v4192 = vadd.f32 %v4191, %v4161
      %v4193 = vadd.f32 %v4192, %v4162
      %v4194 = vadd.f32 %v4193, %v4163
      %v4195 = vadd.f32 %v4194, %v4164
      %v4196 = vadd.f32 %v4195, %v4165
      %v4197 = vadd.f32 %v4196, %v4166
      %v4198 = vadd.f32 %v4197, %v4167
      %v4199 = vadd.f32 %v4198, %v4168
      %v4200 = vadd.f32 %v4199, %v4169
      %v4201 = vadd.f32 %v4200, %v4170
      %v4202 = vadd.f32 %v4201, %v4171
      %v4203 = vadd.f32 %v4202, %v4172
      %v4204 = vadd.f32 %v4203, %v4173
      %v4205 = vadd.f32 %v4204, %v4174
      %v4206 = vadd.f32 %v4205, %v4175
      %v4207 = vadd.f32 %v4206, %v4176
      %v4208 = vadd.f32 %v4207, %v4177
      %v4209 = vadd.f32 %v4208, %v4178
      %v4210 = vadd.f32 %v4209, %v4179
      %v4211 = vrot.slane %v4210, 4
      %v4212 = vadd.f32 %v4210, %v4211
      %v4213 = vrot.slane %v4212, 2
      %v4214 = vadd.f32 %v4212, %v4213
      %v4215 = vrot.slane %v4214, 1
      %v4216 = vadd.f32 %v4214, %v4215
      %4217 = vst [vmem:[%s265] sm:$0x1] %v4216
      %v4218 = vmul.f32 %v4148, %v4148
      %v4219 = vmul.f32 %v4149, %v4149
      %v4220 = vmul.f32 %v4150, %v4150
      %v4221 = vmul.f32 %v4151, %v4151
      %v4222 = vmul.f32 %v4152, %v4152
      %v4223 = vmul.f32 %v4153, %v4153
      %v4224 = vmul.f32 %v4154, %v4154
      %v4225 = vmul.f32 %v4155, %v4155
      %v4226 = vmul.f32 %v4156, %v4156
      %v4227 = vmul.f32 %v4157, %v4157
      %v4228 = vmul.f32 %v4158, %v4158
      %v4229 = vmul.f32 %v4159, %v4159
      %v4230 = vmul.f32 %v4160, %v4160
      %v4231 = vmul.f32 %v4161, %v4161
      %v4232 = vmul.f32 %v4162, %v4162
      %v4233 = vmul.f32 %v4163, %v4163
      %v4234 = vmul.f32 %v4164, %v4164
      %v4235 = vmul.f32 %v4165, %v4165
      %v4236 = vmul.f32 %v4166, %v4166
      %v4237 = vmul.f32 %v4167, %v4167
      %v4238 = vmul.f32 %v4168, %v4168
      %v4239 = vmul.f32 %v4169, %v4169
      %v4240 = vmul.f32 %v4170, %v4170
      %v4241 = vmul.f32 %v4171, %v4171
      %v4242 = vmul.f32 %v4172, %v4172
      %v4243 = vmul.f32 %v4173, %v4173
      %v4244 = vmul.f32 %v4174, %v4174
      %v4245 = vmul.f32 %v4175, %v4175
      %v4246 = vmul.f32 %v4176, %v4176
      %v4247 = vmul.f32 %v4177, %v4177
      %v4248 = vmul.f32 %v4178, %v4178
      %v4249 = vmul.f32 %v4179, %v4179
      %v4250 = vadd.f32 %v4218, %v4219
      %v4251 = vadd.f32 %v4250, %v4220
      %v4252 = vadd.f32 %v4251, %v4221
      %v4253 = vadd.f32 %v4252, %v4222
      %v4254 = vadd.f32 %v4253, %v4223
      %v4255 = vadd.f32 %v4254, %v4224
      %v4256 = vadd.f32 %v4255, %v4225
      %v4257 = vadd.f32 %v4256, %v4226
      %v4258 = vadd.f32 %v4257, %v4227
      %v4259 = vadd.f32 %v4258, %v4228
      %v4260 = vadd.f32 %v4259, %v4229
      %v4261 = vadd.f32 %v4260, %v4230
      %v4262 = vadd.f32 %v4261, %v4231
      %v4263 = vadd.f32 %v4262, %v4232
      %v4264 = vadd.f32 %v4263, %v4233
      %v4265 = vadd.f32 %v4264, %v4234
      %v4266 = vadd.f32 %v4265, %v4235
      %v4267 = vadd.f32 %v4266, %v4236
      %v4268 = vadd.f32 %v4267, %v4237
      %v4269 = vadd.f32 %v4268, %v4238
      %v4270 = vadd.f32 %v4269, %v4239
      %v4271 = vadd.f32 %v4270, %v4240
      %v4272 = vadd.f32 %v4271, %v4241
      %v4273 = vadd.f32 %v4272, %v4242
      %v4274 = vadd.f32 %v4273, %v4243
      %v4275 = vadd.f32 %v4274, %v4244
      %v4276 = vadd.f32 %v4275, %v4245
      %v4277 = vadd.f32 %v4276, %v4246
      %v4278 = vadd.f32 %v4277, %v4247
      %v4279 = vadd.f32 %v4278, %v4248
      %v4280 = vadd.f32 %v4279, %v4249
      %v4281 = vrot.slane %v4280, 4
      %v4282 = vadd.f32 %v4280, %v4281
      %v4283 = vrot.slane %v4282, 2
      %v4284 = vadd.f32 %v4282, %v4283
      %v4285 = vrot.slane %v4284, 1
      %v4286 = vadd.f32 %v4284, %v4285
      %4287 = vst [vmem:[%s268] sm:$0x1] %v4286
      %4288 = vst [vmem:[%s262] sm:$0xff] %v4148
      %4289 = vst [vmem:[%s262 + $0x8] sm:$0xff] %v4149
      %4290 = vst [vmem:[%s262 + $0x10] sm:$0xff] %v4150
      %4291 = vst [vmem:[%s262 + $0x18] sm:$0xff] %v4151
      %4292 = vst [vmem:[%s262 + $0x20] sm:$0xff] %v4152
      %4293 = vst [vmem:[%s262 + $0x28] sm:$0xff] %v4153
      %4294 = vst [vmem:[%s262 + $0x30] sm:$0xff] %v4154
      %4295 = vst [vmem:[%s262 + $0x38] sm:$0xff] %v4155
      %4296 = vst [vmem:[%s262 + $0x40] sm:$0xff] %v4156
      %4297 = vst [vmem:[%s262 + $0x48] sm:$0xff] %v4157
      %4298 = vst [vmem:[%s262 + $0x50] sm:$0xff] %v4158
      %4299 = vst [vmem:[%s262 + $0x58] sm:$0xff] %v4159
      %4300 = vst [vmem:[%s262 + $0x60] sm:$0xff] %v4160
      %4301 = vst [vmem:[%s262 + $0x68] sm:$0xff] %v4161
      %4302 = vst [vmem:[%s262 + $0x70] sm:$0xff] %v4162
      %4303 = vst [vmem:[%s262 + $0x78] sm:$0xff] %v4163
      %4304 = vst [vmem:[%s262 + $0x80] sm:$0xff] %v4164
      %4305 = vst [vmem:[%s262 + $0x88] sm:$0xff] %v4165
      %4306 = vst [vmem:[%s262 + $0x90] sm:$0xff] %v4166
      %4307 = vst [vmem:[%s262 + $0x98] sm:$0xff] %v4167
      %4308 = vst [vmem:[%s262 + $0xa0] sm:$0xff] %v4168
      %4309 = vst [vmem:[%s262 + $0xa8] sm:$0xff] %v4169
      %4310 = vst [vmem:[%s262 + $0xb0] sm:$0xff] %v4170
      %4311 = vst [vmem:[%s262 + $0xb8] sm:$0xff] %v4171
      %4312 = vst [vmem:[%s262 + $0xc0] sm:$0xff] %v4172
      %4313 = vst [vmem:[%s262 + $0xc8] sm:$0xff] %v4173
      %4314 = vst [vmem:[%s262 + $0xd0] sm:$0xff] %v4174
      %4315 = vst [vmem:[%s262 + $0xd8] sm:$0xff] %v4175
      %4316 = vst [vmem:[%s262 + $0xe0] sm:$0xff] %v4176
      %4317 = vst [vmem:[%s262 + $0xe8] sm:$0xff] %v4177
      %4318 = vst [vmem:[%s262 + $0xf0] sm:$0xff] %v4178
      %4319 = vst [vmem:[%s262 + $0xf8] sm:$0xff] %v4179
      %p4320 = scmp.lt.s32.totalorder %s18, 1
      %s4321 = scalar_select %p4320, %s18, 1
      %s4322 = smul.addr %s4321, 32
      %s4323 = smul.addr %s4322, 8
      %s4324 = scalar_lea.vmem %s4, %s4323
      %p4325 = scmp.lt.s32.totalorder %s18, 1
      %s4326 = scalar_select %p4325, %s18, 1
      %s4327 = scalar_lea.vmem %s5, %s4326
      %p4328 = scmp.lt.s32.totalorder %s18, 1
      %s4329 = scalar_select %p4328, %s18, 1
      %s4330 = scalar_lea.vmem %s6, %s4329
      // Predicated region
      $region37: #{basic_block_forward.4} parent=35 // pred_check
        %p4331 = pneg %p125
      $region38: #{basic_block_forward.4} parent=35 // pred_check_branch
        %4333 = sbr.rel (%p4331) target = $region40
      $region39: #{basic_block_forward.4} parent=35 // pred_region
        _
      $region40: #{basic_block_forward.4} parent=35 // pred_fallthru
        _
      // Predicated region
      $region41: #{basic_block_forward.4} parent=35 // pred_check
        %p4334 = pneg %p151
      $region42: #{basic_block_forward.4} parent=35 // pred_check_branch
        %4336 = sbr.rel (%p4334) target = $region44
      $region43: #{basic_block_forward.4} parent=35 // pred_region
        _
      $region44: #{basic_block_forward.4} parent=35 // pred_fallthru
        _
      // Predicated region
      $region45: #{basic_block_forward.4} parent=35 // pred_check
        %p4337 = pneg %p177
      $region46: #{basic_block_forward.4} parent=35 // pred_check_branch
        %4339 = sbr.rel (%p4337) target = $region48
      $region47: #{basic_block_forward.4} parent=35 // pred_region
        _
      $region48: #{basic_block_forward.4} parent=35 // pred_fallthru
        _
    $region36: #{basic_block_forward.4} parent=5 // pred_fallthru
      _
    %p4340 = scmp.le.s32.totalorder 2, %s13
    // Predicated region
    $region49: #{basic_block_forward.4} parent=5 // pred_check
      %p4341 = pneg %p4340
    $region50: #{basic_block_forward.4} parent=5 // pred_check_branch
      %4343 = sbr.rel (%p4341) target = $region52
    $region51: #{basic_block_forward.4} parent=5 // pred_region
      %s4344 = ssub.s32 %s13, 2
      // Predicated region
      $region53: #{basic_block_forward.4} parent=51 // pred_check
        %p4345 = pneg %p131
      $region54: #{basic_block_forward.4} parent=51 // pred_check_branch
        %4347 = sbr.rel (%p4345) target = $region56
      $region55: #{basic_block_forward.4} parent=51 // pred_region
        %p4348 = scmp.lt.s32.totalorder %s19, 1
        %s4349 = scalar_select %p4348, %s19, 1
        %s4350 = smul.addr %s4349, 32
        %s4351 = smul.addr %s4350, 8
        %s4352 = scalar_lea.vmem %s4, %s4351
      $region56: #{basic_block_forward.4} parent=51 // pred_fallthru
        _
      // Predicated region
      $region57: #{basic_block_forward.4} parent=51 // pred_check
        %p4353 = pneg %p157
      $region58: #{basic_block_forward.4} parent=51 // pred_check_branch
        %4355 = sbr.rel (%p4353) target = $region60
      $region59: #{basic_block_forward.4} parent=51 // pred_region
        %p4356 = scmp.lt.s32.totalorder %s19, 1
        %s4357 = scalar_select %p4356, %s19, 1
        %s4358 = scalar_lea.vmem %s5, %s4357
      $region60: #{basic_block_forward.4} parent=51 // pred_fallthru
        _
      // Predicated region
      $region61: #{basic_block_forward.4} parent=51 // pred_check
        %p4359 = pneg %p183
      $region62: #{basic_block_forward.4} parent=51 // pred_check_branch
        %4361 = sbr.rel (%p4359) target = $region64
      $region63: #{basic_block_forward.4} parent=51 // pred_region
        %p4362 = scmp.lt.s32.totalorder %s19, 1
        %s4363 = scalar_select %p4362, %s19, 1
        %s4364 = scalar_lea.vmem %s6, %s4363
      $region64: #{basic_block_forward.4} parent=51 // pred_fallthru
        _
    $region52: #{basic_block_forward.4} parent=5 // pred_fallthru
      _
  $region6: #{basic_block_forward.4} parent=0 // loop_footer
    %s17 = sadd.s32 1, %s13
  $region7: #{basic_block_forward.4} parent=0 // loop_footer_branch
    %12 = sbr.rel target = $region3
  $region8: #{basic_block_forward.4} parent=0 // loop_exit
    _

// kernel: basic_block_forward.3
$region0: #{basic_block_forward.3}
  #allocation0 [shape = 'u32[]', space=smem, size = 0x4, offset = 0x4, fixed_abs, tag = 'smem constant byte address 0x4 - core index']
  #allocation1 [shape = 'u32[144,128]{1,0:T(1,128)}', space=vmem, size = 0x12000, scoped, tag = 'internal scratch']
  %s0 = inlined_call_operand.vmem [shape: bf16[2,18,18,128], index: 0, kind: input, shape index: {}]
  %s1 = inlined_call_operand.vmem [shape: bf16[1152,128], index: 1, kind: input, shape index: {}]
  %s2 = inlined_call_operand.vmem [shape: f32[2,16,16,128], index: 2, kind: output, shape index: {0}]
  %s3 = inlined_call_operand.vmem [shape: f32[2,1,128], index: 3, kind: output, shape index: {1}]
  %s4 = inlined_call_operand.vmem [shape: f32[2,1,128], index: 4, kind: output, shape index: {2}]
  %5 = xla_tuple %s2, %s3, %s4
  %s6 = sld [smem:[#allocation0]]
  $region57: #{basic_block_forward.3} parent=0
    _
  %s8 = ssub.s32 1, %s6
  %s9 = scalar_select 0, %s8, %s6
  loop: start=0, step=1, limit=4
  $region2: #{basic_block_forward.3} parent=0 // loop_pre_header
    _
  $region3: #{basic_block_forward.3} parent=0 // loop_header
    %s11 = sphi 0, %s15
    %p12 = scmp.ge.s32.totalorder %s11, 4
    %s21 = sphi 0, %s23
    %s24 = sphi 0, %s21
    %s25 = sphi 0, %s24
    %s41 = sphi 0, %s25
    %s45 = sphi 0, %s45
    %s47 = sphi 0, %s45
    %s48 = sphi 0, %s47
    %s62 = sphi 0, %s48
    %s68 = sphi 0, %s70
    %s71 = sphi 0, %s68
    %s72 = sphi 0, %s71
    %s88 = sphi 0, %s72
    %s94 = sphi 0, %s96
    %s97 = sphi 0, %s94
    %s98 = sphi 0, %s97
    %s114 = sphi 0, %s98
    %s120 = sphi 0, %s122
    %s123 = sphi 0, %s120
    %s124 = sphi 0, %s123
    %s140 = sphi 0, %s124
  $region4: #{basic_block_forward.3} parent=0 // loop_header_branch
    %14 = sbr.rel (%p12) target = $region8
  $region5: #{basic_block_forward.3} parent=0 // loop_body
    %s16 = ssub.s32 %s11, 1
    %s17 = ssub.s32 %s11, 2
    %s18 = sadd.s32 %s11, 1
    %s19 = ssub.s32 %s11, %s18
    %p20 = scmp.eq.s32.totalorder %s19, 0
    %s22 = sadd.s32 %s21, 1
    %s23 = scalar_select %p20, %s21, %s22
    %p26 = pneg %p20
    %p27 = scmp.eq.s32.totalorder %s11, 1
    %p28 = por %p26, %p27
    %p29 = scmp.ne.s32.totalorder %s21, %s24
    %p30 = scmp.eq.s32.totalorder %s11, 0
    %p31 = por %p29, %p30
    %p32 = scmp.ne.s32.totalorder %s21, %s24
    %p33 = scmp.eq.s32.totalorder %s16, 1
    %p34 = por %p32, %p33
    %p35 = scmp.ne.s32.totalorder %s24, %s25
    %p36 = scmp.eq.s32.totalorder %s16, 0
    %p37 = por %p35, %p36
    %p38 = scmp.ne.s32.totalorder %s24, %s25
    %p39 = scmp.eq.s32.totalorder %s17, 1
    %p40 = por %p38, %p39
    %p42 = scmp.ne.s32.totalorder %s25, %s41
    %p43 = scmp.eq.s32.totalorder %s17, 0
    %p44 = por %p42, %p43
    %s46 = sadd.s32 %s45, 1
    %p49 = scmp.eq.s32.totalorder %s11, 1
    %p50 = scmp.ne.s32.totalorder %s45, %s47
    %p51 = scmp.eq.s32.totalorder %s11, 0
    %p52 = por %p50, %p51
    %p53 = scmp.ne.s32.totalorder %s45, %s47
    %p54 = scmp.eq.s32.totalorder %s16, 1
    %p55 = por %p53, %p54
    %p56 = scmp.ne.s32.totalorder %s47, %s48
    %p57 = scmp.eq.s32.totalorder %s16, 0
    %p58 = por %p56, %p57
    %p59 = scmp.ne.s32.totalorder %s47, %s48
    %p60 = scmp.eq.s32.totalorder %s17, 1
    %p61 = por %p59, %p60
    %p63 = scmp.ne.s32.totalorder %s48, %s62
    %p64 = scmp.eq.s32.totalorder %s17, 0
    %p65 = por %p63, %p64
    %s66 = ssub.s32 %s11, %s18
    %p67 = scmp.eq.s32.totalorder %s66, 0
    %s69 = sadd.s32 %s68, 1
    %s70 = scalar_select %p67, %s68, %s69
    %p73 = pneg %p67
    %p74 = scmp.eq.s32.totalorder %s11, 1
    %p75 = por %p73, %p74
    %p76 = scmp.ne.s32.totalorder %s68, %s71
    %p77 = scmp.eq.s32.totalorder %s11, 0
    %p78 = por %p76, %p77
    %p79 = scmp.ne.s32.totalorder %s68, %s71
    %p80 = scmp.eq.s32.totalorder %s16, 1
    %p81 = por %p79, %p80
    %p82 = scmp.ne.s32.totalorder %s71, %s72
    %p83 = scmp.eq.s32.totalorder %s16, 0
    %p84 = por %p82, %p83
    %p85 = scmp.ne.s32.totalorder %s71, %s72
    %p86 = scmp.eq.s32.totalorder %s17, 1
    %p87 = por %p85, %p86
    %p89 = scmp.ne.s32.totalorder %s72, %s88
    %p90 = scmp.eq.s32.totalorder %s17, 0
    %p91 = por %p89, %p90
    %s92 = ssub.s32 %s11, %s18
    %p93 = scmp.eq.s32.totalorder %s92, 0
    %s95 = sadd.s32 %s94, 1
    %s96 = scalar_select %p93, %s94, %s95
    %p99 = pneg %p93
    %p100 = scmp.eq.s32.totalorder %s11, 1
    %p101 = por %p99, %p100
    %p102 = scmp.ne.s32.totalorder %s94, %s97
    %p103 = scmp.eq.s32.totalorder %s11, 0
    %p104 = por %p102, %p103
    %p105 = scmp.ne.s32.totalorder %s94, %s97
    %p106 = scmp.eq.s32.totalorder %s16, 1
    %p107 = por %p105, %p106
    %p108 = scmp.ne.s32.totalorder %s97, %s98
    %p109 = scmp.eq.s32.totalorder %s16, 0
    %p110 = por %p108, %p109
    %p111 = scmp.ne.s32.totalorder %s97, %s98
    %p112 = scmp.eq.s32.totalorder %s17, 1
    %p113 = por %p111, %p112
    %p115 = scmp.ne.s32.totalorder %s98, %s114
    %p116 = scmp.eq.s32.totalorder %s17, 0
    %p117 = por %p115, %p116
    %s118 = ssub.s32 %s11, %s18
    %p119 = scmp.eq.s32.totalorder %s118, 0
    %s121 = sadd.s32 %s120, 1
    %s122 = scalar_select %p119, %s120, %s121
    %p125 = pneg %p119
    %p126 = scmp.eq.s32.totalorder %s11, 1
    %p127 = por %p125, %p126
    %p128 = scmp.ne.s32.totalorder %s120, %s123
    %p129 = scmp.eq.s32.totalorder %s11, 0
    %p130 = por %p128, %p129
    %p131 = scmp.ne.s32.totalorder %s120, %s123
    %p132 = scmp.eq.s32.totalorder %s16, 1
    %p133 = por %p131, %p132
    %p134 = scmp.ne.s32.totalorder %s123, %s124
    %p135 = scmp.eq.s32.totalorder %s16, 0
    %p136 = por %p134, %p135
    %p137 = scmp.ne.s32.totalorder %s123, %s124
    %p138 = scmp.eq.s32.totalorder %s17, 1
    %p139 = por %p137, %p138
    %p141 = scmp.ne.s32.totalorder %s124, %s140
    %p142 = scmp.eq.s32.totalorder %s17, 0
    %p143 = por %p141, %p142
    %p144 = scmp.le.s32.totalorder 1, %s11
    %p145 = scmp.lt.s32.totalorder %s11, 3
    %p146 = pnand %p144, %p145
    %p147 = pneg %p146
    // Predicated region
    $region9: #{basic_block_forward.3} parent=5 // pred_check
      _
    $region10: #{basic_block_forward.3} parent=5 // pred_check_branch
      %149 = sbr.rel (%p146) target = $region12
    $region11: #{basic_block_forward.3} parent=5 // pred_region
      %s150 = ssub.s32 %s11, 1
      // Predicated region
      $region13: #{basic_block_forward.3} parent=11 // pred_check
        %p151 = pneg %p58
      $region14: #{basic_block_forward.3} parent=11 // pred_check_branch
        %153 = sbr.rel (%p151) target = $region16
      $region15: #{basic_block_forward.3} parent=11 // pred_region
        _
      $region16: #{basic_block_forward.3} parent=11 // pred_fallthru
        _
    $region12: #{basic_block_forward.3} parent=5 // pred_fallthru
      _
    %p154 = scmp.lt.s32.totalorder %s11, 2
    // Predicated region
    $region17: #{basic_block_forward.3} parent=5 // pred_check
      %p155 = pneg %p154
    $region18: #{basic_block_forward.3} parent=5 // pred_check_branch
      %157 = sbr.rel (%p155) target = $region20
    $region19: #{basic_block_forward.3} parent=5 // pred_region
      // Predicated region
      $region21: #{basic_block_forward.3} parent=19 // pred_check
        %p158 = pneg %p31
      $region22: #{basic_block_forward.3} parent=19 // pred_check_branch
        %160 = sbr.rel (%p158) target = $region24
      $region23: #{basic_block_forward.3} parent=19 // pred_region
        %p161 = scmp.lt.s32.totalorder %s11, 1
        %s162 = scalar_select %p161, %s11, 1
        %s163 = smul.addr %s162, 54
        %s164 = smul.addr %s163, 4
        %s165 = scalar_lea.vmem %s0, %s164
      $region24: #{basic_block_forward.3} parent=19 // pred_fallthru
        _
    $region20: #{basic_block_forward.3} parent=5 // pred_fallthru
      _
    %p166 = scmp.le.s32.totalorder 1, %s11
    %p167 = scmp.lt.s32.totalorder %s11, 3
    %p168 = pnand %p166, %p167
    %p169 = pneg %p168
    // Predicated region
    $region25: #{basic_block_forward.3} parent=5 // pred_check
      _
    $region26: #{basic_block_forward.3} parent=5 // pred_check_branch
      %171 = sbr.rel (%p168) target = $region28
    $region27: #{basic_block_forward.3} parent=5 // pred_region
      %s172 = ssub.s32 %s11, 1
      %p173 = scmp.lt.s32.totalorder %s16, 1
      %s174 = scalar_select %p173, %s16, 1
      %s175 = smul.addr %s174, 54
      %s176 = smul.addr %s175, 4
      %s177 = scalar_lea.vmem %s0, %s176
      %p178 = pneg %p37
      %p179 = pneg %p34
      %p180 = pneg %p58
      %p181 = pneg %p55
      %p182 = pneg %p84
      %p183 = pneg %p81
      %p184 = scmp.lt.s32.totalorder %s16, 1
      %s185 = scalar_select %p184, %s16, 1
      %s186 = smul.addr %s185, 32
      %s187 = smul.addr %s186, 8
      %s188 = scalar_lea.vmem %s2, %s187
      %p189 = pneg %p110
      %p190 = pneg %p107
      %p191 = scmp.lt.s32.totalorder %s16, 1
      %s192 = scalar_select %p191, %s16, 1
      %s193 = scalar_lea.vmem %s3, %s192
      %p194 = pneg %p136
      %p195 = pneg %p133
      %p196 = scmp.lt.s32.totalorder %s16, 1
      %s197 = scalar_select %p196, %s16, 1
      %s198 = scalar_lea.vmem %s4, %s197
      %p199 = scmp.lt.s32.totalorder %s16, 1
      %s200 = scalar_select %p199, %s16, 1
      %s201 = smul.addr %s200, 54
      %s202 = smul.addr %s201, 4
      %s203 = scalar_lea.vmem %s0, %s202
      %p204 = scmp.lt.s32.totalorder %s16, 1
      %s205 = scalar_select %p204, %s16, 1
      %s206 = smul.addr %s205, 32
      %s207 = smul.addr %s206, 8
      %s208 = scalar_lea.vmem %s2, %s207
      %p209 = scmp.lt.s32.totalorder %s16, 1
      %s210 = scalar_select %p209, %s16, 1
      %s211 = scalar_lea.vmem %s3, %s210
      %p212 = scmp.lt.s32.totalorder %s16, 1
      %s213 = scalar_select %p212, %s16, 1
      %s214 = scalar_lea.vmem %s4, %s213
      %v216 = vld [vmem:[%s203] sm:$0xf]
      %v217 = vld [vmem:[%s203 + $0x4] sm:$0xf]
      %v218 = vld [vmem:[%s203 + $0xc] sm:$0xf]
      %v219 = vld [vmem:[%s203 + $0x10] sm:$0xf]
      %v220 = vld [vmem:[%s203 + $0x18] sm:$0xf]
      %v221 = vld [vmem:[%s203 + $0x1c] sm:$0xf]
      %v222 = vld [vmem:[%s203 + $0x24] sm:$0xf]
      %v223 = vld [vmem:[%s203 + $0x28] sm:$0xf]
      %v224 = vld [vmem:[%s203 + $0x30] sm:$0xf]
      %v225 = vld [vmem:[%s203 + $0x34] sm:$0xf]
      %v226 = vld [vmem:[%s203 + $0x3c] sm:$0xf]
      %v227 = vld [vmem:[%s203 + $0x40] sm:$0xf]
      %v228 = vld [vmem:[%s203 + $0x48] sm:$0xf]
      %v229 = vld [vmem:[%s203 + $0x4c] sm:$0xf]
      %v230 = vld [vmem:[%s203 + $0x54] sm:$0xf]
      %v231 = vld [vmem:[%s203 + $0x58] sm:$0xf]
      %v232 = vld [vmem:[%s203 + $0x60] sm:$0xf]
      %v233 = vld [vmem:[%s203 + $0x64] sm:$0xf]
      %v234 = vld [vmem:[%s203 + $0x6c] sm:$0xf]
      %v235 = vld [vmem:[%s203 + $0x70] sm:$0xf]
      %v236 = vld [vmem:[%s203 + $0x78] sm:$0xf]
      %v237 = vld [vmem:[%s203 + $0x7c] sm:$0xf]
      %v238 = vld [vmem:[%s203 + $0x84] sm:$0xf]
      %v239 = vld [vmem:[%s203 + $0x88] sm:$0xf]
      %v240 = vld [vmem:[%s203 + $0x90] sm:$0xf]
      %v241 = vld [vmem:[%s203 + $0x94] sm:$0xf]
      %v242 = vld [vmem:[%s203 + $0x9c] sm:$0xf]
      %v243 = vld [vmem:[%s203 + $0xa0] sm:$0xf]
      %v244 = vld [vmem:[%s203 + $0xa8] sm:$0xf]
      %v245 = vld [vmem:[%s203 + $0xac] sm:$0xf]
      %v246 = vld [vmem:[%s203 + $0xb4] sm:$0xf]
      %v247 = vld [vmem:[%s203 + $0xb8] sm:$0xf]
      %v248 = vld [vmem:[%s1] sm:$0xf]
      %v249 = vld [vmem:[%s1 + $0x4] sm:$0xf]
      %v250 = vld [vmem:[%s1 + $0x8] sm:$0xf]
      %v251 = vld [vmem:[%s1 + $0xc] sm:$0xf]
      %v252 = vld [vmem:[%s1 + $0x10] sm:$0xf]
      %v253 = vld [vmem:[%s1 + $0x14] sm:$0xf]
      %v254 = vld [vmem:[%s1 + $0x18] sm:$0xf]
      %v255 = vld [vmem:[%s1 + $0x1c] sm:$0xf]
      %v256 = vld [vmem:[%s1 + $0x20] sm:$0xf]
      %v257 = vld [vmem:[%s1 + $0x24] sm:$0xf]
      %v258 = vld [vmem:[%s1 + $0x28] sm:$0xf]
      %v259 = vld [vmem:[%s1 + $0x2c] sm:$0xf]
      %v260 = vld [vmem:[%s1 + $0x30] sm:$0xf]
      %v261 = vld [vmem:[%s1 + $0x34] sm:$0xf]
      %v262 = vld [vmem:[%s1 + $0x38] sm:$0xf]
      %v263 = vld [vmem:[%s1 + $0x3c] sm:$0xf]
      %v264 = vld [vmem:[%s203 + $0x8] sm:$0x1]
      %v265 = vld [vmem:[%s203 + $0x14] sm:$0x1]
      %v266 = vld [vmem:[%s203 + $0x20] sm:$0x1]
      %v267 = vld [vmem:[%s203 + $0x2c] sm:$0x1]
      %v268 = vld [vmem:[%s203 + $0x38] sm:$0x1]
      %v269 = vld [vmem:[%s203 + $0x44] sm:$0x1]
      %v270 = vld [vmem:[%s203 + $0x50] sm:$0x1]
      %v271 = vld [vmem:[%s203 + $0x5c] sm:$0x1]
      %v272 = vld [vmem:[%s203 + $0x68] sm:$0x1]
      %v273 = vld [vmem:[%s203 + $0x74] sm:$0x1]
      %v274 = vld [vmem:[%s203 + $0x80] sm:$0x1]
      %v275 = vld [vmem:[%s203 + $0x8c] sm:$0x1]
      %v276 = vld [vmem:[%s203 + $0x98] sm:$0x1]
      %v277 = vld [vmem:[%s203 + $0xa4] sm:$0x1]
      %v278 = vld [vmem:[%s203 + $0xb0] sm:$0x1]
      %v279 = vld [vmem:[%s203 + $0xbc] sm:$0x1]
      %vm280 = vsmask.f32 3328
      %vm281 = vsmask.f32 7440
      %vm282 = vmor %vm280, %vm281
      %v284 = vshrl.u32 %v216, 16
      %v286 = vrot.slane %v284, 4
      %v287 = vshll.u32 %v216, 16
      %v289 = vrot.slane %v287, 5
      %v290 = vor.u32 %v286, %v289
      %v291 = vrot.slane %v290, 4
      %v293 = vshll.u32 %v217, 16
      %v295 = vrot.slane %v293, 5
      %v296 = vsel %vm282, %v291, %v295
      %v297 = vshrl.u32 %v217, 16
      %v299 = vrot.slane %v297, 4
      %v300 = vor.u32 %v299, %v295
      %v301 = vrot.slane %v300, 4
      %v303 = vshll.u32 %v264, 16
      %v305 = vrot.slane %v303, 5
      %v306 = vsel %vm282, %v301, %v305
      %v308 = vshrl.u32 %v218, 16
      %v310 = vrot.slane %v308, 4
      %v311 = vshll.u32 %v218, 16
      %v313 = vrot.slane %v311, 5
      %v314 = vor.u32 %v310, %v313
      %v315 = vrot.slane %v314, 4
      %v317 = vshll.u32 %v219, 16
      %v319 = vrot.slane %v317, 5
      %v320 = vsel %vm282, %v315, %v319
      %v321 = vshrl.u32 %v219, 16
      %v323 = vrot.slane %v321, 4
      %v324 = vor.u32 %v323, %v319
      %v325 = vrot.slane %v324, 4
      %v327 = vshll.u32 %v265, 16
      %v329 = vrot.slane %v327, 5
      %v330 = vsel %vm282, %v325, %v329
      %v332 = vshrl.u32 %v220, 16
      %v334 = vrot.slane %v332, 4
      %v335 = vshll.u32 %v220, 16
      %v337 = vrot.slane %v335, 5
      %v338 = vor.u32 %v334, %v337
      %v339 = vrot.slane %v338, 4
      %v341 = vshll.u32 %v221, 16
      %v343 = vrot.slane %v341, 5
      %v344 = vsel %vm282, %v339, %v343
      %v345 = vshrl.u32 %v221, 16
      %v347 = vrot.slane %v345, 4
      %v348 = vor.u32 %v347, %v343
      %v349 = vrot.slane %v348, 4
      %v351 = vshll.u32 %v266, 16
      %v353 = vrot.slane %v351, 5
      %v354 = vsel %vm282, %v349, %v353
      %v356 = vshrl.u32 %v222, 16
      %v358 = vrot.slane %v356, 4
      %v359 = vshll.u32 %v222, 16
      %v361 = vrot.slane %v359, 5
      %v362 = vor.u32 %v358, %v361
      %v363 = vrot.slane %v362, 4
      %v365 = vshll.u32 %v223, 16
      %v367 = vrot.slane %v365, 5
      %v368 = vsel %vm282, %v363, %v367
      %v369 = vshrl.u32 %v223, 16
      %v371 = vrot.slane %v369, 4
      %v372 = vor.u32 %v371, %v367
      %v373 = vrot.slane %v372, 4
      %v375 = vshll.u32 %v267, 16
      %v377 = vrot.slane %v375, 5
      %v378 = vsel %vm282, %v373, %v377
      %v380 = vshrl.u32 %v224, 16
      %v382 = vrot.slane %v380, 4
      %v383 = vshll.u32 %v224, 16
      %v385 = vrot.slane %v383, 5
      %v386 = vor.u32 %v382, %v385
      %v387 = vrot.slane %v386, 4
      %v389 = vshll.u32 %v225, 16
      %v391 = vrot.slane %v389, 5
      %v392 = vsel %vm282, %v387, %v391
      %v393 = vshrl.u32 %v225, 16
      %v395 = vrot.slane %v393, 4
      %v396 = vor.u32 %v395, %v391
      %v397 = vrot.slane %v396, 4
      %v399 = vshll.u32 %v268, 16
      %v401 = vrot.slane %v399, 5
      %v402 = vsel %vm282, %v397, %v401
      %v404 = vshrl.u32 %v226, 16
      %v406 = vrot.slane %v404, 4
      %v407 = vshll.u32 %v226, 16
      %v409 = vrot.slane %v407, 5
      %v410 = vor.u32 %v406, %v409
      %v411 = vrot.slane %v410, 4
      %v413 = vshll.u32 %v227, 16
      %v415 = vrot.slane %v413, 5
      %v416 = vsel %vm282, %v411, %v415
      %v417 = vshrl.u32 %v227, 16
      %v419 = vrot.slane %v417, 4
      %v420 = vor.u32 %v419, %v415
      %v421 = vrot.slane %v420, 4
      %v423 = vshll.u32 %v269, 16
      %v425 = vrot.slane %v423, 5
      %v426 = vsel %vm282, %v421, %v425
      %v428 = vshrl.u32 %v228, 16
      %v430 = vrot.slane %v428, 4
      %v431 = vshll.u32 %v228, 16
      %v433 = vrot.slane %v431, 5
      %v434 = vor.u32 %v430, %v433
      %v435 = vrot.slane %v434, 4
      %v437 = vshll.u32 %v229, 16
      %v439 = vrot.slane %v437, 5
      %v440 = vsel %vm282, %v435, %v439
      %v441 = vshrl.u32 %v229, 16
      %v443 = vrot.slane %v441, 4
      %v444 = vor.u32 %v443, %v439
      %v445 = vrot.slane %v444, 4
      %v447 = vshll.u32 %v270, 16
      %v449 = vrot.slane %v447, 5
      %v450 = vsel %vm282, %v445, %v449
      %v452 = vshrl.u32 %v230, 16
      %v454 = vrot.slane %v452, 4
      %v455 = vshll.u32 %v230, 16
      %v457 = vrot.slane %v455, 5
      %v458 = vor.u32 %v454, %v457
      %v459 = vrot.slane %v458, 4
      %v461 = vshll.u32 %v231, 16
      %v463 = vrot.slane %v461, 5
      %v464 = vsel %vm282, %v459, %v463
      %v465 = vshrl.u32 %v231, 16
      %v467 = vrot.slane %v465, 4
      %v468 = vor.u32 %v467, %v463
      %v469 = vrot.slane %v468, 4
      %v471 = vshll.u32 %v271, 16
      %v473 = vrot.slane %v471, 5
      %v474 = vsel %vm282, %v469, %v473
      %v476 = vshrl.u32 %v232, 16
      %v478 = vrot.slane %v476, 4
      %v479 = vshll.u32 %v232, 16
      %v481 = vrot.slane %v479, 5
      %v482 = vor.u32 %v478, %v481
      %v483 = vrot.slane %v482, 4
      %v485 = vshll.u32 %v233, 16
      %v487 = vrot.slane %v485, 5
      %v488 = vsel %vm282, %v483, %v487
      %v489 = vshrl.u32 %v233, 16
      %v491 = vrot.slane %v489, 4
      %v492 = vor.u32 %v491, %v487
      %v493 = vrot.slane %v492, 4
      %v495 = vshll.u32 %v272, 16
      %v497 = vrot.slane %v495, 5
      %v498 = vsel %vm282, %v493, %v497
      %v500 = vshrl.u32 %v234, 16
      %v502 = vrot.slane %v500, 4
      %v503 = vshll.u32 %v234, 16
      %v505 = vrot.slane %v503, 5
      %v506 = vor.u32 %v502, %v505
      %v507 = vrot.slane %v506, 4
      %v509 = vshll.u32 %v235, 16
      %v511 = vrot.slane %v509, 5
      %v512 = vsel %vm282, %v507, %v511
      %v513 = vshrl.u32 %v235, 16
      %v515 = vrot.slane %v513, 4
      %v516 = vor.u32 %v515, %v511
      %v517 = vrot.slane %v516, 4
      %v519 = vshll.u32 %v273, 16
      %v521 = vrot.slane %v519, 5
      %v522 = vsel %vm282, %v517, %v521
      %v524 = vshrl.u32 %v236, 16
      %v526 = vrot.slane %v524, 4
      %v527 = vshll.u32 %v236, 16
      %v529 = vrot.slane %v527, 5
      %v530 = vor.u32 %v526, %v529
      %v531 = vrot.slane %v530, 4
      %v533 = vshll.u32 %v237, 16
      %v535 = vrot.slane %v533, 5
      %v536 = vsel %vm282, %v531, %v535
      %v537 = vshrl.u32 %v237, 16
      %v539 = vrot.slane %v537, 4
      %v540 = vor.u32 %v539, %v535
      %v541 = vrot.slane %v540, 4
      %v543 = vshll.u32 %v274, 16
      %v545 = vrot.slane %v543, 5
      %v546 = vsel %vm282, %v541, %v545
      %v548 = vshrl.u32 %v238, 16
      %v550 = vrot.slane %v548, 4
      %v551 = vshll.u32 %v238, 16
      %v553 = vrot.slane %v551, 5
      %v554 = vor.u32 %v550, %v553
      %v555 = vrot.slane %v554, 4
      %v557 = vshll.u32 %v239, 16
      %v559 = vrot.slane %v557, 5
      %v560 = vsel %vm282, %v555, %v559
      %v561 = vshrl.u32 %v239, 16
      %v563 = vrot.slane %v561, 4
      %v564 = vor.u32 %v563, %v559
      %v565 = vrot.slane %v564, 4
      %v567 = vshll.u32 %v275, 16
      %v569 = vrot.slane %v567, 5
      %v570 = vsel %vm282, %v565, %v569
      %v572 = vshrl.u32 %v240, 16
      %v574 = vrot.slane %v572, 4
      %v575 = vshll.u32 %v240, 16
      %v577 = vrot.slane %v575, 5
      %v578 = vor.u32 %v574, %v577
      %v579 = vrot.slane %v578, 4
      %v581 = vshll.u32 %v241, 16
      %v583 = vrot.slane %v581, 5
      %v584 = vsel %vm282, %v579, %v583
      %v585 = vshrl.u32 %v241, 16
      %v587 = vrot.slane %v585, 4
      %v588 = vor.u32 %v587, %v583
      %v589 = vrot.slane %v588, 4
      %v591 = vshll.u32 %v276, 16
      %v593 = vrot.slane %v591, 5
      %v594 = vsel %vm282, %v589, %v593
      %v596 = vshrl.u32 %v242, 16
      %v598 = vrot.slane %v596, 4
      %v599 = vshll.u32 %v242, 16
      %v601 = vrot.slane %v599, 5
      %v602 = vor.u32 %v598, %v601
      %v603 = vrot.slane %v602, 4
      %v605 = vshll.u32 %v243, 16
      %v607 = vrot.slane %v605, 5
      %v608 = vsel %vm282, %v603, %v607
      %v609 = vshrl.u32 %v243, 16
      %v611 = vrot.slane %v609, 4
      %v612 = vor.u32 %v611, %v607
      %v613 = vrot.slane %v612, 4
      %v615 = vshll.u32 %v277, 16
      %v617 = vrot.slane %v615, 5
      %v618 = vsel %vm282, %v613, %v617
      %v620 = vshrl.u32 %v244, 16
      %v622 = vrot.slane %v620, 4
      %v623 = vshll.u32 %v244, 16
      %v625 = vrot.slane %v623, 5
      %v626 = vor.u32 %v622, %v625
      %v627 = vrot.slane %v626, 4
      %v629 = vshll.u32 %v245, 16
      %v631 = vrot.slane %v629, 5
      %v632 = vsel %vm282, %v627, %v631
      %v633 = vshrl.u32 %v245, 16
      %v635 = vrot.slane %v633, 4
      %v636 = vor.u32 %v635, %v631
      %v637 = vrot.slane %v636, 4
      %v639 = vshll.u32 %v278, 16
      %v641 = vrot.slane %v639, 5
      %v642 = vsel %vm282, %v637, %v641
      %v644 = vshrl.u32 %v246, 16
      %v646 = vrot.slane %v644, 4
      %v647 = vshll.u32 %v246, 16
      %v649 = vrot.slane %v647, 5
      %v650 = vor.u32 %v646, %v649
      %v651 = vrot.slane %v650, 4
      %v653 = vshll.u32 %v247, 16
      %v655 = vrot.slane %v653, 5
      %v656 = vsel %vm282, %v651, %v655
      %v657 = vshrl.u32 %v247, 16
      %v659 = vrot.slane %v657, 4
      %v660 = vor.u32 %v659, %v655
      %v661 = vrot.slane %v660, 4
      %v663 = vshll.u32 %v279, 16
      %v665 = vrot.slane %v663, 5
      %v666 = vsel %vm282, %v661, %v665
      %v667 = vld [vmem:[%s1 + $0x40] sm:$0xf]
      %v668 = vld [vmem:[%s1 + $0x44] sm:$0xf]
      %v669 = vld [vmem:[%s1 + $0x48] sm:$0xf]
      %v670 = vld [vmem:[%s1 + $0x4c] sm:$0xf]
      %v671 = vld [vmem:[%s1 + $0x50] sm:$0xf]
      %v672 = vld [vmem:[%s1 + $0x54] sm:$0xf]
      %v673 = vld [vmem:[%s1 + $0x58] sm:$0xf]
      %v674 = vld [vmem:[%s1 + $0x5c] sm:$0xf]
      %v675 = vld [vmem:[%s1 + $0x60] sm:$0xf]
      %v676 = vld [vmem:[%s1 + $0x64] sm:$0xf]
      %v677 = vld [vmem:[%s1 + $0x68] sm:$0xf]
      %v678 = vld [vmem:[%s1 + $0x6c] sm:$0xf]
      %v679 = vld [vmem:[%s1 + $0x70] sm:$0xf]
      %v680 = vld [vmem:[%s1 + $0x74] sm:$0xf]
      %v681 = vld [vmem:[%s1 + $0x78] sm:$0xf]
      %v682 = vld [vmem:[%s1 + $0x7c] sm:$0xf]
      %v683 = vunpack.c.l.b16 %v296
      %v684 = vunpack.c.l.b16 %v306
      %v685 = vunpack.c.l.b16 %v320
      %v686 = vunpack.c.l.b16 %v330
      %v687 = vunpack.c.l.b16 %v344
      %v688 = vunpack.c.l.b16 %v354
      %v689 = vunpack.c.l.b16 %v368
      %v690 = vunpack.c.l.b16 %v378
      %v691 = vunpack.c.l.b16 %v392
      %v692 = vunpack.c.l.b16 %v402
      %v693 = vunpack.c.l.b16 %v416
      %v694 = vunpack.c.l.b16 %v426
      %v695 = vunpack.c.l.b16 %v440
      %v696 = vunpack.c.l.b16 %v450
      %v697 = vunpack.c.l.b16 %v464
      %v698 = vunpack.c.l.b16 %v474
      %v699 = vunpack.c.l.b16 %v488
      %v700 = vunpack.c.l.b16 %v498
      %v701 = vunpack.c.l.b16 %v512
      %v702 = vunpack.c.l.b16 %v522
      %v703 = vunpack.c.l.b16 %v536
      %v704 = vunpack.c.l.b16 %v546
      %v705 = vunpack.c.l.b16 %v560
      %v706 = vunpack.c.l.b16 %v570
      %v707 = vunpack.c.l.b16 %v584
      %v708 = vunpack.c.l.b16 %v594
      %v709 = vunpack.c.l.b16 %v608
      %v710 = vunpack.c.l.b16 %v618
      %v711 = vunpack.c.l.b16 %v632
      %v712 = vunpack.c.l.b16 %v642
      %v713 = vunpack.c.l.b16 %v656
      %v714 = vunpack.c.l.b16 %v666
      %v715 = vpack.c.b16 %v684, %v683
      %v716 = vpack.c.b16 %v686, %v685
      %v717 = vpack.c.b16 %v688, %v687
      %v718 = vpack.c.b16 %v690, %v689
      %v719 = vpack.c.b16 %v692, %v691
      %v720 = vpack.c.b16 %v694, %v693
      %v721 = vpack.c.b16 %v696, %v695
      %v722 = vpack.c.b16 %v698, %v697
      %v723 = vpack.c.b16 %v700, %v699
      %v724 = vpack.c.b16 %v702, %v701
      %v725 = vpack.c.b16 %v704, %v703
      %v726 = vpack.c.b16 %v706, %v705
      %v727 = vpack.c.b16 %v708, %v707
      %v728 = vpack.c.b16 %v710, %v709
      %v729 = vpack.c.b16 %v712, %v711
      %v730 = vpack.c.b16 %v714, %v713
      %v763 = vunpack.c.l.b16 %v667
      %v764 = vunpack.c.l.b16 %v668
      %v765 = vunpack.c.l.b16 %v669
      %v766 = vunpack.c.l.b16 %v670
      %v767 = vunpack.c.l.b16 %v671
      %v768 = vunpack.c.l.b16 %v672
      %v769 = vunpack.c.l.b16 %v673
      %v770 = vunpack.c.l.b16 %v674
      %v771 = vunpack.c.l.b16 %v675
      %v772 = vunpack.c.l.b16 %v676
      %v773 = vunpack.c.l.b16 %v677
      %v774 = vunpack.c.l.b16 %v678
      %v775 = vunpack.c.l.b16 %v679
      %v776 = vunpack.c.l.b16 %v680
      %v777 = vunpack.c.l.b16 %v681
      %v778 = vunpack.c.l.b16 %v682
      %v779 = vpack.c.b16 %v764, %v763
      %v780 = vpack.c.b16 %v766, %v765
      %v781 = vpack.c.b16 %v768, %v767
      %v782 = vpack.c.b16 %v770, %v769
      %v783 = vpack.c.b16 %v772, %v771
      %v784 = vpack.c.b16 %v774, %v773
      %v785 = vpack.c.b16 %v776, %v775
      %v786 = vpack.c.b16 %v778, %v777
      %795 = vmatprep.subr.bf16.mxu0 0
      %796 = vmatpush1.bf16.msra.mxu0 %v779
      %797 = vmatprep.subr.bf16.mxu0 0
      %798 = vmatpush1.bf16.msra.mxu0 %v780
      %799 = vmatprep.subr.bf16.mxu0 0
      %800 = vmatpush1.bf16.msra.mxu0 %v781
      %801 = vmatprep.subr.bf16.mxu0 0
      %802 = vmatpush1.bf16.msra.mxu0 %v782
      %803 = vmatprep.subr.bf16.mxu0 0
      %804 = vmatpush1.bf16.msra.mxu0 %v783
      %805 = vmatprep.subr.bf16.mxu0 0
      %806 = vmatpush1.bf16.msra.mxu0 %v784
      %807 = vmatprep.subr.bf16.mxu0 0
      %808 = vmatpush1.bf16.msra.mxu0 %v785
      %809 = vmatprep.subr.bf16.mxu0 0
      %810 = vmatpush1.bf16.msra.mxu0 %v786
      %811 = vmatprep.subr.bf16.mxu0 0
      %812 = vmatpush1.bf16.msra.mxu0 0
      %813 = vmatprep.subr.bf16.mxu0 0
      %814 = vmatpush1.bf16.msra.mxu0 0
      %815 = vmatprep.subr.bf16.mxu0 0
      %816 = vmatpush1.bf16.msra.mxu0 0
      %817 = vmatprep.subr.bf16.mxu0 0
      %818 = vmatpush1.bf16.msra.mxu0 0
      %819 = vmatprep.subr.bf16.mxu0 0
      %820 = vmatpush1.bf16.msra.mxu0 0
      %821 = vmatprep.subr.bf16.mxu0 0
      %822 = vmatpush1.bf16.msra.mxu0 0
      %823 = vmatprep.subr.bf16.mxu0 0
      %824 = vmatpush1.bf16.msra.mxu0 0
      %825 = vmatprep.subr.bf16.mxu0 0
      %826 = vmatpush1.bf16.msra.mxu0 0
      %827 = vmatprep.mubr.bf16.mxu0 0
      %828 = vmatmul.mubr.bf16.gmra.mrb[0].mxu0 %v715
      %v829 = vpop.f32.mrb[0].mxu0
      %v830 = vadd.f32 0.0, %v829
      %v831 = vpop.f32.mrb[0].mxu0
      %v832 = vpop.f32.mrb[0].mxu0
      %v833 = vadd.f32 0.0, %v832
      %v834 = vpop.f32.mrb[0].mxu0
      %835 = vmatprep.mubr.bf16.mxu0 0
      %836 = vmatmul.mubr.bf16.gmra.mrb[0].mxu0 %v716
      %v837 = vpop.f32.mrb[0].mxu0
      %v838 = vadd.f32 0.0, %v837
      %v839 = vpop.f32.mrb[0].mxu0
      %v840 = vpop.f32.mrb[0].mxu0
      %v841 = vadd.f32 0.0, %v840
      %v842 = vpop.f32.mrb[0].mxu0
      %843 = vmatprep.mubr.bf16.mxu0 0
      %844 = vmatmul.mubr.bf16.gmra.mrb[0].mxu0 %v717
      %v845 = vpop.f32.mrb[0].mxu0
      %v846 = vadd.f32 0.0, %v845
      %v847 = vpop.f32.mrb[0].mxu0
      %v848 = vpop.f32.mrb[0].mxu0
      %v849 = vadd.f32 0.0, %v848
      %v850 = vpop.f32.mrb[0].mxu0
      %851 = vmatprep.mubr.bf16.mxu0 0
      %852 = vmatmul.mubr.bf16.gmra.mrb[0].mxu0 %v718
      %v853 = vpop.f32.mrb[0].mxu0
      %v854 = vadd.f32 0.0, %v853
      %v855 = vpop.f32.mrb[0].mxu0
      %v856 = vpop.f32.mrb[0].mxu0
      %v857 = vadd.f32 0.0, %v856
      %v858 = vpop.f32.mrb[0].mxu0
      %859 = vmatprep.mubr.bf16.mxu0 0
      %860 = vmatmul.mubr.bf16.gmra.mrb[0].mxu0 %v719
      %v861 = vpop.f32.mrb[0].mxu0
      %v862 = vadd.f32 0.0, %v861
      %v863 = vpop.f32.mrb[0].mxu0
      %v864 = vpop.f32.mrb[0].mxu0
      %v865 = vadd.f32 0.0, %v864
      %v866 = vpop.f32.mrb[0].mxu0
      %867 = vmatprep.mubr.bf16.mxu0 0
      %868 = vmatmul.mubr.bf16.gmra.mrb[0].mxu0 %v720
      %v869 = vpop.f32.mrb[0].mxu0
      %v870 = vadd.f32 0.0, %v869
      %v871 = vpop.f32.mrb[0].mxu0
      %v872 = vpop.f32.mrb[0].mxu0
      %v873 = vadd.f32 0.0, %v872
      %v874 = vpop.f32.mrb[0].mxu0
      %875 = vmatprep.mubr.bf16.mxu0 0
      %876 = vmatmul.mubr.bf16.gmra.mrb[0].mxu0 %v721
      %v877 = vpop.f32.mrb[0].mxu0
      %v878 = vadd.f32 0.0, %v877
      %v879 = vpop.f32.mrb[0].mxu0
      %v880 = vpop.f32.mrb[0].mxu0
      %v881 = vadd.f32 0.0, %v880
      %v882 = vpop.f32.mrb[0].mxu0
      %883 = vmatprep.mubr.bf16.mxu0 0
      %884 = vmatmul.mubr.bf16.gmra.mrb[0].mxu0 %v722
      %v885 = vpop.f32.mrb[0].mxu0
      %v886 = vadd.f32 0.0, %v885
      %v887 = vpop.f32.mrb[0].mxu0
      %v888 = vpop.f32.mrb[0].mxu0
      %v889 = vadd.f32 0.0, %v888
      %v890 = vpop.f32.mrb[0].mxu0
      %891 = vmatprep.mubr.bf16.mxu0 0
      %892 = vmatmul.mubr.bf16.gmra.mrb[0].mxu0 %v723
      %v893 = vpop.f32.mrb[0].mxu0
      %v894 = vadd.f32 0.0, %v893
      %v895 = vpop.f32.mrb[0].mxu0
      %v896 = vpop.f32.mrb[0].mxu0
      %v897 = vadd.f32 0.0, %v896
      %v898 = vpop.f32.mrb[0].mxu0
      %899 = vmatprep.mubr.bf16.mxu0 0
      %900 = vmatmul.mubr.bf16.gmra.mrb[0].mxu0 %v724
      %v901 = vpop.f32.mrb[0].mxu0
      %v902 = vadd.f32 0.0, %v901
      %v903 = vpop.f32.mrb[0].mxu0
      %v904 = vpop.f32.mrb[0].mxu0
      %v905 = vadd.f32 0.0, %v904
      %v906 = vpop.f32.mrb[0].mxu0
      %907 = vmatprep.mubr.bf16.mxu0 0
      %908 = vmatmul.mubr.bf16.gmra.mrb[0].mxu0 %v725
      %v909 = vpop.f32.mrb[0].mxu0
      %v910 = vadd.f32 0.0, %v909
      %v911 = vpop.f32.mrb[0].mxu0
      %v912 = vpop.f32.mrb[0].mxu0
      %v913 = vadd.f32 0.0, %v912
      %v914 = vpop.f32.mrb[0].mxu0
      %915 = vmatprep.mubr.bf16.mxu0 0
      %916 = vmatmul.mubr.bf16.gmra.mrb[0].mxu0 %v726
      %v917 = vpop.f32.mrb[0].mxu0
      %v918 = vadd.f32 0.0, %v917
      %v919 = vpop.f32.mrb[0].mxu0
      %v920 = vpop.f32.mrb[0].mxu0
      %v921 = vadd.f32 0.0, %v920
      %v922 = vpop.f32.mrb[0].mxu0
      %923 = vmatprep.mubr.bf16.mxu0 0
      %924 = vmatmul.mubr.bf16.gmra.mrb[0].mxu0 %v727
      %v925 = vpop.f32.mrb[0].mxu0
      %v926 = vadd.f32 0.0, %v925
      %v927 = vpop.f32.mrb[0].mxu0
      %v928 = vpop.f32.mrb[0].mxu0
      %v929 = vadd.f32 0.0, %v928
      %v930 = vpop.f32.mrb[0].mxu0
      %931 = vmatprep.mubr.bf16.mxu0 0
      %932 = vmatmul.mubr.bf16.gmra.mrb[0].mxu0 %v728
      %v933 = vpop.f32.mrb[0].mxu0
      %v934 = vadd.f32 0.0, %v933
      %v935 = vpop.f32.mrb[0].mxu0
      %v936 = vpop.f32.mrb[0].mxu0
      %v937 = vadd.f32 0.0, %v936
      %v938 = vpop.f32.mrb[0].mxu0
      %939 = vmatprep.mubr.bf16.mxu0 0
      %940 = vmatmul.mubr.bf16.gmra.mrb[0].mxu0 %v729
      %v941 = vpop.f32.mrb[0].mxu0
      %v942 = vadd.f32 0.0, %v941
      %v943 = vpop.f32.mrb[0].mxu0
      %v944 = vpop.f32.mrb[0].mxu0
      %v945 = vadd.f32 0.0, %v944
      %v946 = vpop.f32.mrb[0].mxu0
      %947 = vmatprep.mubr.bf16.mxu0 0
      %948 = vmatmul.mubr.bf16.gmra.mrb[0].mxu0 %v730
      %v949 = vpop.f32.mrb[0].mxu0
      %v950 = vadd.f32 0.0, %v949
      %v951 = vpop.f32.mrb[0].mxu0
      %v952 = vpop.f32.mrb[0].mxu0
      %v953 = vadd.f32 0.0, %v952
      %v954 = vpop.f32.mrb[0].mxu0
      %955 = vdwg.mxu0
      %v988 = vunpack.c.l.b16 %v216
      %v989 = vunpack.c.l.b16 %v217
      %v990 = vunpack.c.l.b16 %v218
      %v991 = vunpack.c.l.b16 %v219
      %v992 = vunpack.c.l.b16 %v220
      %v993 = vunpack.c.l.b16 %v221
      %v994 = vunpack.c.l.b16 %v222
      %v995 = vunpack.c.l.b16 %v223
      %v996 = vunpack.c.l.b16 %v224
      %v997 = vunpack.c.l.b16 %v225
      %v998 = vunpack.c.l.b16 %v226
      %v999 = vunpack.c.l.b16 %v227
      %v1000 = vunpack.c.l.b16 %v228
      %v1001 = vunpack.c.l.b16 %v229
      %v1002 = vunpack.c.l.b16 %v230
      %v1003 = vunpack.c.l.b16 %v231
      %v1004 = vunpack.c.l.b16 %v232
      %v1005 = vunpack.c.l.b16 %v233
      %v1006 = vunpack.c.l.b16 %v234
      %v1007 = vunpack.c.l.b16 %v235
      %v1008 = vunpack.c.l.b16 %v236
      %v1009 = vunpack.c.l.b16 %v237
      %v1010 = vunpack.c.l.b16 %v238
      %v1011 = vunpack.c.l.b16 %v239
      %v1012 = vunpack.c.l.b16 %v240
      %v1013 = vunpack.c.l.b16 %v241
      %v1014 = vunpack.c.l.b16 %v242
      %v1015 = vunpack.c.l.b16 %v243
      %v1016 = vunpack.c.l.b16 %v244
      %v1017 = vunpack.c.l.b16 %v245
      %v1018 = vunpack.c.l.b16 %v246
      %v1019 = vunpack.c.l.b16 %v247
      %v1020 = vpack.c.b16 %v989, %v988
      %v1021 = vpack.c.b16 %v991, %v990
      %v1022 = vpack.c.b16 %v993, %v992
      %v1023 = vpack.c.b16 %v995, %v994
      %v1024 = vpack.c.b16 %v997, %v996
      %v1025 = vpack.c.b16 %v999, %v998
      %v1026 = vpack.c.b16 %v1001, %v1000
      %v1027 = vpack.c.b16 %v1003, %v1002
      %v1028 = vpack.c.b16 %v1005, %v1004
      %v1029 = vpack.c.b16 %v1007, %v1006
      %v1030 = vpack.c.b16 %v1009, %v1008
      %v1031 = vpack.c.b16 %v1011, %v1010
      %v1032 = vpack.c.b16 %v1013, %v1012
      %v1033 = vpack.c.b16 %v1015, %v1014
      %v1034 = vpack.c.b16 %v1017, %v1016
      %v1035 = vpack.c.b16 %v1019, %v1018
      %v1068 = vunpack.c.l.b16 %v248
      %v1069 = vunpack.c.l.b16 %v249
      %v1070 = vunpack.c.l.b16 %v250
      %v1071 = vunpack.c.l.b16 %v251
      %v1072 = vunpack.c.l.b16 %v252
      %v1073 = vunpack.c.l.b16 %v253
      %v1074 = vunpack.c.l.b16 %v254
      %v1075 = vunpack.c.l.b16 %v255
      %v1076 = vunpack.c.l.b16 %v256
      %v1077 = vunpack.c.l.b16 %v257
      %v1078 = vunpack.c.l.b16 %v258
      %v1079 = vunpack.c.l.b16 %v259
      %v1080 = vunpack.c.l.b16 %v260
      %v1081 = vunpack.c.l.b16 %v261
      %v1082 = vunpack.c.l.b16 %v262
      %v1083 = vunpack.c.l.b16 %v263
      %v1084 = vpack.c.b16 %v1069, %v1068
      %v1085 = vpack.c.b16 %v1071, %v1070
      %v1086 = vpack.c.b16 %v1073, %v1072
      %v1087 = vpack.c.b16 %v1075, %v1074
      %v1088 = vpack.c.b16 %v1077, %v1076
      %v1089 = vpack.c.b16 %v1079, %v1078
      %v1090 = vpack.c.b16 %v1081, %v1080
      %v1091 = vpack.c.b16 %v1083, %v1082
      %1100 = vmatprep.subr.bf16.mxu0 0
      %1101 = vmatpush1.bf16.msra.mxu0 %v1084
      %1102 = vmatprep.subr.bf16.mxu0 0
      %1103 = vmatpush1.bf16.msra.mxu0 %v1085
      %1104 = vmatprep.subr.bf16.mxu0 0
      %1105 = vmatpush1.bf16.msra.mxu0 %v1086
      %1106 = vmatprep.subr.bf16.mxu0 0
      %1107 = vmatpush1.bf16.msra.mxu0 %v1087
      %1108 = vmatprep.subr.bf16.mxu0 0
      %1109 = vmatpush1.bf16.msra.mxu0 %v1088
      %1110 = vmatprep.subr.bf16.mxu0 0
      %1111 = vmatpush1.bf16.msra.mxu0 %v1089
      %1112 = vmatprep.subr.bf16.mxu0 0
      %1113 = vmatpush1.bf16.msra.mxu0 %v1090
      %1114 = vmatprep.subr.bf16.mxu0 0
      %1115 = vmatpush1.bf16.msra.mxu0 %v1091
      %1116 = vmatprep.subr.bf16.mxu0 0
      %1117 = vmatpush1.bf16.msra.mxu0 0
      %1118 = vmatprep.subr.bf16.mxu0 0
      %1119 = vmatpush1.bf16.msra.mxu0 0
      %1120 = vmatprep.subr.bf16.mxu0 0
      %1121 = vmatpush1.bf16.msra.mxu0 0
      %1122 = vmatprep.subr.bf16.mxu0 0
      %1123 = vmatpush1.bf16.msra.mxu0 0
      %1124 = vmatprep.subr.bf16.mxu0 0
      %1125 = vmatpush1.bf16.msra.mxu0 0
      %1126 = vmatprep.subr.bf16.mxu0 0
      %1127 = vmatpush1.bf16.msra.mxu0 0
      %1128 = vmatprep.subr.bf16.mxu0 0
      %1129 = vmatpush1.bf16.msra.mxu0 0
      %1130 = vmatprep.subr.bf16.mxu0 0
      %1131 = vmatpush1.bf16.msra.mxu0 0
      %1132 = vmatprep.mubr.bf16.mxu0 0
      %1133 = vmatmul.mubr.bf16.gmra.mrb[0].mxu0 %v1020
      %v1134 = vpop.f32.mrb[0].mxu0
      %v1135 = vadd.f32 %v830, %v1134
      %v1136 = vpop.f32.mrb[0].mxu0
      %v1137 = vpop.f32.mrb[0].mxu0
      %v1138 = vadd.f32 %v833, %v1137
      %v1139 = vpop.f32.mrb[0].mxu0
      %1140 = vmatprep.mubr.bf16.mxu0 0
      %1141 = vmatmul.mubr.bf16.gmra.mrb[0].mxu0 %v1021
      %v1142 = vpop.f32.mrb[0].mxu0
      %v1143 = vadd.f32 %v838, %v1142
      %v1144 = vpop.f32.mrb[0].mxu0
      %v1145 = vpop.f32.mrb[0].mxu0
      %v1146 = vadd.f32 %v841, %v1145
      %v1147 = vpop.f32.mrb[0].mxu0
      %1148 = vmatprep.mubr.bf16.mxu0 0
      %1149 = vmatmul.mubr.bf16.gmra.mrb[0].mxu0 %v1022
      %v1150 = vpop.f32.mrb[0].mxu0
      %v1151 = vadd.f32 %v846, %v1150
      %v1152 = vpop.f32.mrb[0].mxu0
      %v1153 = vpop.f32.mrb[0].mxu0
      %v1154 = vadd.f32 %v849, %v1153
      %v1155 = vpop.f32.mrb[0].mxu0
      %1156 = vmatprep.mubr.bf16.mxu0 0
      %1157 = vmatmul.mubr.bf16.gmra.mrb[0].mxu0 %v1023
      %v1158 = vpop.f32.mrb[0].mxu0
      %v1159 = vadd.f32 %v854, %v1158
      %v1160 = vpop.f32.mrb[0].mxu0
      %v1161 = vpop.f32.mrb[0].mxu0
      %v1162 = vadd.f32 %v857, %v1161
      %v1163 = vpop.f32.mrb[0].mxu0
      %1164 = vmatprep.mubr.bf16.mxu0 0
      %1165 = vmatmul.mubr.bf16.gmra.mrb[0].mxu0 %v1024
      %v1166 = vpop.f32.mrb[0].mxu0
      %v1167 = vadd.f32 %v862, %v1166
      %v1168 = vpop.f32.mrb[0].mxu0
      %v1169 = vpop.f32.mrb[0].mxu0
      %v1170 = vadd.f32 %v865, %v1169
      %v1171 = vpop.f32.mrb[0].mxu0
      %1172 = vmatprep.mubr.bf16.mxu0 0
      %1173 = vmatmul.mubr.bf16.gmra.mrb[0].mxu0 %v1025
      %v1174 = vpop.f32.mrb[0].mxu0
      %v1175 = vadd.f32 %v870, %v1174
      %v1176 = vpop.f32.mrb[0].mxu0
      %v1177 = vpop.f32.mrb[0].mxu0
      %v1178 = vadd.f32 %v873, %v1177
      %v1179 = vpop.f32.mrb[0].mxu0
      %1180 = vmatprep.mubr.bf16.mxu0 0
      %1181 = vmatmul.mubr.bf16.gmra.mrb[0].mxu0 %v1026
      %v1182 = vpop.f32.mrb[0].mxu0
      %v1183 = vadd.f32 %v878, %v1182
      %v1184 = vpop.f32.mrb[0].mxu0
      %v1185 = vpop.f32.mrb[0].mxu0
      %v1186 = vadd.f32 %v881, %v1185
      %v1187 = vpop.f32.mrb[0].mxu0
      %1188 = vmatprep.mubr.bf16.mxu0 0
      %1189 = vmatmul.mubr.bf16.gmra.mrb[0].mxu0 %v1027
      %v1190 = vpop.f32.mrb[0].mxu0
      %v1191 = vadd.f32 %v886, %v1190
      %v1192 = vpop.f32.mrb[0].mxu0
      %v1193 = vpop.f32.mrb[0].mxu0
      %v1194 = vadd.f32 %v889, %v1193
      %v1195 = vpop.f32.mrb[0].mxu0
      %1196 = vmatprep.mubr.bf16.mxu0 0
      %1197 = vmatmul.mubr.bf16.gmra.mrb[0].mxu0 %v1028
      %v1198 = vpop.f32.mrb[0].mxu0
      %v1199 = vadd.f32 %v894, %v1198
      %v1200 = vpop.f32.mrb[0].mxu0
      %v1201 = vpop.f32.mrb[0].mxu0
      %v1202 = vadd.f32 %v897, %v1201
      %v1203 = vpop.f32.mrb[0].mxu0
      %1204 = vmatprep.mubr.bf16.mxu0 0
      %1205 = vmatmul.mubr.bf16.gmra.mrb[0].mxu0 %v1029
      %v1206 = vpop.f32.mrb[0].mxu0
      %v1207 = vadd.f32 %v902, %v1206
      %v1208 = vpop.f32.mrb[0].mxu0
      %v1209 = vpop.f32.mrb[0].mxu0
      %v1210 = vadd.f32 %v905, %v1209
      %v1211 = vpop.f32.mrb[0].mxu0
      %1212 = vmatprep.mubr.bf16.mxu0 0
      %1213 = vmatmul.mubr.bf16.gmra.mrb[0].mxu0 %v1030
      %v1214 = vpop.f32.mrb[0].mxu0
      %v1215 = vadd.f32 %v910, %v1214
      %v1216 = vpop.f32.mrb[0].mxu0
      %v1217 = vpop.f32.mrb[0].mxu0
      %v1218 = vadd.f32 %v913, %v1217
      %v1219 = vpop.f32.mrb[0].mxu0
      %1220 = vmatprep.mubr.bf16.mxu0 0
      %1221 = vmatmul.mubr.bf16.gmra.mrb[0].mxu0 %v1031
      %v1222 = vpop.f32.mrb[0].mxu0
      %v1223 = vadd.f32 %v918, %v1222
      %v1224 = vpop.f32.mrb[0].mxu0
      %v1225 = vpop.f32.mrb[0].mxu0
      %v1226 = vadd.f32 %v921, %v1225
      %v1227 = vpop.f32.mrb[0].mxu0
      %1228 = vmatprep.mubr.bf16.mxu0 0
      %1229 = vmatmul.mubr.bf16.gmra.mrb[0].mxu0 %v1032
      %v1230 = vpop.f32.mrb[0].mxu0
      %v1231 = vadd.f32 %v926, %v1230
      %v1232 = vpop.f32.mrb[0].mxu0
      %v1233 = vpop.f32.mrb[0].mxu0
      %v1234 = vadd.f32 %v929, %v1233
      %v1235 = vpop.f32.mrb[0].mxu0
      %1236 = vmatprep.mubr.bf16.mxu0 0
      %1237 = vmatmul.mubr.bf16.gmra.mrb[0].mxu0 %v1033
      %v1238 = vpop.f32.mrb[0].mxu0
      %v1239 = vadd.f32 %v934, %v1238
      %v1240 = vpop.f32.mrb[0].mxu0
      %v1241 = vpop.f32.mrb[0].mxu0
      %v1242 = vadd.f32 %v937, %v1241
      %v1243 = vpop.f32.mrb[0].mxu0
      %1244 = vmatprep.mubr.bf16.mxu0 0
      %1245 = vmatmul.mubr.bf16.gmra.mrb[0].mxu0 %v1034
      %v1246 = vpop.f32.mrb[0].mxu0
      %v1247 = vadd.f32 %v942, %v1246
      %v1248 = vpop.f32.mrb[0].mxu0
      %v1249 = vpop.f32.mrb[0].mxu0
      %v1250 = vadd.f32 %v945, %v1249
      %v1251 = vpop.f32.mrb[0].mxu0
      %1252 = vmatprep.mubr.bf16.mxu0 0
      %1253 = vmatmul.mubr.bf16.gmra.mrb[0].mxu0 %v1035
      %v1254 = vpop.f32.mrb[0].mxu0
      %v1255 = vadd.f32 %v950, %v1254
      %v1256 = vpop.f32.mrb[0].mxu0
      %v1257 = vpop.f32.mrb[0].mxu0
      %v1258 = vadd.f32 %v953, %v1257
      %v1259 = vpop.f32.mrb[0].mxu0
      %1260 = vdwg.mxu0
      %v1261 = vld [vmem:[%s203] sm:$0xe]
      %v1262 = vld [vmem:[%s203 + $0xc] sm:$0xe]
      %v1263 = vld [vmem:[%s203 + $0x18] sm:$0xe]
      %v1264 = vld [vmem:[%s203 + $0x24] sm:$0xe]
      %v1265 = vld [vmem:[%s203 + $0x30] sm:$0xe]
      %v1266 = vld [vmem:[%s203 + $0x3c] sm:$0xe]
      %v1267 = vld [vmem:[%s203 + $0x48] sm:$0xe]
      %v1268 = vld [vmem:[%s203 + $0x54] sm:$0xe]
      %v1269 = vld [vmem:[%s203 + $0x60] sm:$0xe]
      %v1270 = vld [vmem:[%s203 + $0x6c] sm:$0xe]
      %v1271 = vld [vmem:[%s203 + $0x78] sm:$0xe]
      %v1272 = vld [vmem:[%s203 + $0x84] sm:$0xe]
      %v1273 = vld [vmem:[%s203 + $0x90] sm:$0xe]
      %v1274 = vld [vmem:[%s203 + $0x9c] sm:$0xe]
      %v1275 = vld [vmem:[%s203 + $0xa8] sm:$0xe]
      %v1276 = vld [vmem:[%s203 + $0xb4] sm:$0xe]
      %vm1309 = vcmask 1042432
      %vm1310 = vcmask 1046532
      %vm1311 = vmor %vm1309, %vm1310
      %v1312 = vrot.slane %v1261, 5
      %v1313 = vrot.slane %v1312, 4
      %v1314 = vrot.slane %v217, 5
      %v1315 = vsel %vm1311, %v1313, %v1314
      %v1316 = vrot.slane %v1314, 4
      %v1317 = vrot.slane %v264, 5
      %v1318 = vsel %vm1311, %v1316, %v1317
      %v1319 = vrot.slane %v1262, 5
      %v1320 = vrot.slane %v1319, 4
      %v1321 = vrot.slane %v219, 5
      %v1322 = vsel %vm1311, %v1320, %v1321
      %v1323 = vrot.slane %v1321, 4
      %v1324 = vrot.slane %v265, 5
      %v1325 = vsel %vm1311, %v1323, %v1324
      %v1326 = vrot.slane %v1263, 5
      %v1327 = vrot.slane %v1326, 4
      %v1328 = vrot.slane %v221, 5
      %v1329 = vsel %vm1311, %v1327, %v1328
      %v1330 = vrot.slane %v1328, 4
      %v1331 = vrot.slane %v266, 5
      %v1332 = vsel %vm1311, %v1330, %v1331
      %v1333 = vrot.slane %v1264, 5
      %v1334 = vrot.slane %v1333, 4
      %v1335 = vrot.slane %v223, 5
      %v1336 = vsel %vm1311, %v1334, %v1335
      %v1337 = vrot.slane %v1335, 4
      %v1338 = vrot.slane %v267, 5
      %v1339 = vsel %vm1311, %v1337, %v1338
      %v1340 = vrot.slane %v1265, 5
      %v1341 = vrot.slane %v1340, 4
      %v1342 = vrot.slane %v225, 5
      %v1343 = vsel %vm1311, %v1341, %v1342
      %v1344 = vrot.slane %v1342, 4
      %v1345 = vrot.slane %v268, 5
      %v1346 = vsel %vm1311, %v1344, %v1345
      %v1347 = vrot.slane %v1266, 5
      %v1348 = vrot.slane %v1347, 4
      %v1349 = vrot.slane %v227, 5
      %v1350 = vsel %vm1311, %v1348, %v1349
      %v1351 = vrot.slane %v1349, 4
      %v1352 = vrot.slane %v269, 5
      %v1353 = vsel %vm1311, %v1351, %v1352
      %v1354 = vrot.slane %v1267, 5
      %v1355 = vrot.slane %v1354, 4
      %v1356 = vrot.slane %v229, 5
      %v1357 = vsel %vm1311, %v1355, %v1356
      %v1358 = vrot.slane %v1356, 4
      %v1359 = vrot.slane %v270, 5
      %v1360 = vsel %vm1311, %v1358, %v1359
      %v1361 = vrot.slane %v1268, 5
      %v1362 = vrot.slane %v1361, 4
      %v1363 = vrot.slane %v231, 5
      %v1364 = vsel %vm1311, %v1362, %v1363
      %v1365 = vrot.slane %v1363, 4
      %v1366 = vrot.slane %v271, 5
      %v1367 = vsel %vm1311, %v1365, %v1366
      %v1368 = vrot.slane %v1269, 5
      %v1369 = vrot.slane %v1368, 4
      %v1370 = vrot.slane %v233, 5
      %v1371 = vsel %vm1311, %v1369, %v1370
      %v1372 = vrot.slane %v1370, 4
      %v1373 = vrot.slane %v272, 5
      %v1374 = vsel %vm1311, %v1372, %v1373
      %v1375 = vrot.slane %v1270, 5
      %v1376 = vrot.slane %v1375, 4
      %v1377 = vrot.slane %v235, 5
      %v1378 = vsel %vm1311, %v1376, %v1377
      %v1379 = vrot.slane %v1377, 4
      %v1380 = vrot.slane %v273, 5
      %v1381 = vsel %vm1311, %v1379, %v1380
      %v1382 = vrot.slane %v1271, 5
      %v1383 = vrot.slane %v1382, 4
      %v1384 = vrot.slane %v237, 5
      %v1385 = vsel %vm1311, %v1383, %v1384
      %v1386 = vrot.slane %v1384, 4
      %v1387 = vrot.slane %v274, 5
      %v1388 = vsel %vm1311, %v1386, %v1387
      %v1389 = vrot.slane %v1272, 5
      %v1390 = vrot.slane %v1389, 4
      %v1391 = vrot.slane %v239, 5
      %v1392 = vsel %vm1311, %v1390, %v1391
      %v1393 = vrot.slane %v1391, 4
      %v1394 = vrot.slane %v275, 5
      %v1395 = vsel %vm1311, %v1393, %v1394
      %v1396 = vrot.slane %v1273, 5
      %v1397 = vrot.slane %v1396, 4
      %v1398 = vrot.slane %v241, 5
      %v1399 = vsel %vm1311, %v1397, %v1398
      %v1400 = vrot.slane %v1398, 4
      %v1401 = vrot.slane %v276, 5
      %v1402 = vsel %vm1311, %v1400, %v1401
      %v1403 = vrot.slane %v1274, 5
      %v1404 = vrot.slane %v1403, 4
      %v1405 = vrot.slane %v243, 5
      %v1406 = vsel %vm1311, %v1404, %v1405
      %v1407 = vrot.slane %v1405, 4
      %v1408 = vrot.slane %v277, 5
      %v1409 = vsel %vm1311, %v1407, %v1408
      %v1410 = vrot.slane %v1275, 5
      %v1411 = vrot.slane %v1410, 4
      %v1412 = vrot.slane %v245, 5
      %v1413 = vsel %vm1311, %v1411, %v1412
      %v1414 = vrot.slane %v1412, 4
      %v1415 = vrot.slane %v278, 5
      %v1416 = vsel %vm1311, %v1414, %v1415
      %v1417 = vrot.slane %v1276, 5
      %v1418 = vrot.slane %v1417, 4
      %v1419 = vrot.slane %v247, 5
      %v1420 = vsel %vm1311, %v1418, %v1419
      %v1421 = vrot.slane %v1419, 4
      %v1422 = vrot.slane %v279, 5
      %v1423 = vsel %vm1311, %v1421, %v1422
      %v1424 = vld [vmem:[%s1 + $0x80] sm:$0xf]
      %v1425 = vld [vmem:[%s1 + $0x84] sm:$0xf]
      %v1426 = vld [vmem:[%s1 + $0x88] sm:$0xf]
      %v1427 = vld [vmem:[%s1 + $0x8c] sm:$0xf]
      %v1428 = vld [vmem:[%s1 + $0x90] sm:$0xf]
      %v1429 = vld [vmem:[%s1 + $0x94] sm:$0xf]
      %v1430 = vld [vmem:[%s1 + $0x98] sm:$0xf]
      %v1431 = vld [vmem:[%s1 + $0x9c] sm:$0xf]
      %v1432 = vld [vmem:[%s1 + $0xa0] sm:$0xf]
      %v1433 = vld [vmem:[%s1 + $0xa4] sm:$0xf]
      %v1434 = vld [vmem:[%s1 + $0xa8] sm:$0xf]
      %v1435 = vld [vmem:[%s1 + $0xac] sm:$0xf]
      %v1436 = vld [vmem:[%s1 + $0xb0] sm:$0xf]
      %v1437 = vld [vmem:[%s1 + $0xb4] sm:$0xf]
      %v1438 = vld [vmem:[%s1 + $0xb8] sm:$0xf]
      %v1439 = vld [vmem:[%s1 + $0xbc] sm:$0xf]
      %v1440 = vunpack.c.l.b16 %v1315
      %v1441 = vunpack.c.l.b16 %v1318
      %v1442 = vunpack.c.l.b16 %v1322
      %v1443 = vunpack.c.l.b16 %v1325
      %v1444 = vunpack.c.l.b16 %v1329
      %v1445 = vunpack.c.l.b16 %v1332
      %v1446 = vunpack.c.l.b16 %v1336
      %v1447 = vunpack.c.l.b16 %v1339
      %v1448 = vunpack.c.l.b16 %v1343
      %v1449 = vunpack.c.l.b16 %v1346
      %v1450 = vunpack.c.l.b16 %v1350
      %v1451 = vunpack.c.l.b16 %v1353
      %v1452 = vunpack.c.l.b16 %v1357
      %v1453 = vunpack.c.l.b16 %v1360
      %v1454 = vunpack.c.l.b16 %v1364
      %v1455 = vunpack.c.l.b16 %v1367
      %v1456 = vunpack.c.l.b16 %v1371
      %v1457 = vunpack.c.l.b16 %v1374
      %v1458 = vunpack.c.l.b16 %v1378
      %v1459 = vunpack.c.l.b16 %v1381
      %v1460 = vunpack.c.l.b16 %v1385
      %v1461 = vunpack.c.l.b16 %v1388
      %v1462 = vunpack.c.l.b16 %v1392
      %v1463 = vunpack.c.l.b16 %v1395
      %v1464 = vunpack.c.l.b16 %v1399
      %v1465 = vunpack.c.l.b16 %v1402
      %v1466 = vunpack.c.l.b16 %v1406
      %v1467 = vunpack.c.l.b16 %v1409
      %v1468 = vunpack.c.l.b16 %v1413
      %v1469 = vunpack.c.l.b16 %v1416
      %v1470 = vunpack.c.l.b16 %v1420
      %v1471 = vunpack.c.l.b16 %v1423
      %v1472 = vpack.c.b16 %v1441, %v1440
      %v1473 = vpack.c.b16 %v1443, %v1442
      %v1474 = vpack.c.b16 %v1445, %v1444
      %v1475 = vpack.c.b16 %v1447, %v1446
      %v1476 = vpack.c.b16 %v1449, %v1448
      %v1477 = vpack.c.b16 %v1451, %v1450
      %v1478 = vpack.c.b16 %v1453, %v1452
      %v1479 = vpack.c.b16 %v1455, %v1454
      %v1480 = vpack.c.b16 %v1457, %v1456
      %v1481 = vpack.c.b16 %v1459, %v1458
      %v1482 = vpack.c.b16 %v1461, %v1460
      %v1483 = vpack.c.b16 %v1463, %v1462
      %v1484 = vpack.c.b16 %v1465, %v1464
      %v1485 = vpack.c.b16 %v1467, %v1466
      %v1486 = vpack.c.b16 %v1469, %v1468
      %v1487 = vpack.c.b16 %v1471, %v1470
      %v1520 = vunpack.c.l.b16 %v1424
      %v1521 = vunpack.c.l.b16 %v1425
      %v1522 = vunpack.c.l.b16 %v1426
      %v1523 = vunpack.c.l.b16 %v1427
      %v1524 = vunpack.c.l.b16 %v1428
      %v1525 = vunpack.c.l.b16 %v1429
      %v1526 = vunpack.c.l.b16 %v1430
      %v1527 = vunpack.c.l.b16 %v1431
      %v1528 = vunpack.c.l.b16 %v1432
      %v1529 = vunpack.c.l.b16 %v1433
      %v1530 = vunpack.c.l.b16 %v1434
      %v1531 = vunpack.c.l.b16 %v1435
      %v1532 = vunpack.c.l.b16 %v1436
      %v1533 = vunpack.c.l.b16 %v1437
      %v1534 = vunpack.c.l.b16 %v1438
      %v1535 = vunpack.c.l.b16 %v1439
      %v1536 = vpack.c.b16 %v1521, %v1520
      %v1537 = vpack.c.b16 %v1523, %v1522
      %v1538 = vpack.c.b16 %v1525, %v1524
      %v1539 = vpack.c.b16 %v1527, %v1526
      %v1540 = vpack.c.b16 %v1529, %v1528
      %v1541 = vpack.c.b16 %v1531, %v1530
      %v1542 = vpack.c.b16 %v1533, %v1532
      %v1543 = vpack.c.b16 %v1535, %v1534
      %1552 = vmatprep.subr.bf16.mxu0 0
      %1553 = vmatpush1.bf16.msra.mxu0 %v1536
      %1554 = vmatprep.subr.bf16.mxu0 0
      %1555 = vmatpush1.bf16.msra.mxu0 %v1537
      %1556 = vmatprep.subr.bf16.mxu0 0
      %1557 = vmatpush1.bf16.msra.mxu0 %v1538
      %1558 = vmatprep.subr.bf16.mxu0 0
      %1559 = vmatpush1.bf16.msra.mxu0 %v1539
      %1560 = vmatprep.subr.bf16.mxu0 0
      %1561 = vmatpush1.bf16.msra.mxu0 %v1540
      %1562 = vmatprep.subr.bf16.mxu0 0
      %1563 = vmatpush1.bf16.msra.mxu0 %v1541
      %1564 = vmatprep.subr.bf16.mxu0 0
      %1565 = vmatpush1.bf16.msra.mxu0 %v1542
      %1566 = vmatprep.subr.bf16.mxu0 0
      %1567 = vmatpush1.bf16.msra.mxu0 %v1543
      %1568 = vmatprep.subr.bf16.mxu0 0
      %1569 = vmatpush1.bf16.msra.mxu0 0
      %1570 = vmatprep.subr.bf16.mxu0 0
      %1571 = vmatpush1.bf16.msra.mxu0 0
      %1572 = vmatprep.subr.bf16.mxu0 0
      %1573 = vmatpush1.bf16.msra.mxu0 0
      %1574 = vmatprep.subr.bf16.mxu0 0
      %1575 = vmatpush1.bf16.msra.mxu0 0
      %1576 = vmatprep.subr.bf16.mxu0 0
      %1577 = vmatpush1.bf16.msra.mxu0 0
      %1578 = vmatprep.subr.bf16.mxu0 0
      %1579 = vmatpush1.bf16.msra.mxu0 0
      %1580 = vmatprep.subr.bf16.mxu0 0
      %1581 = vmatpush1.bf16.msra.mxu0 0
      %1582 = vmatprep.subr.bf16.mxu0 0
      %1583 = vmatpush1.bf16.msra.mxu0 0
      %1584 = vmatprep.mubr.bf16.mxu0 0
      %1585 = vmatmul.mubr.bf16.gmra.mrb[0].mxu0 %v1472
      %v1586 = vpop.f32.mrb[0].mxu0
      %v1587 = vadd.f32 0.0, %v1586
      %v1588 = vpop.f32.mrb[0].mxu0
      %v1589 = vpop.f32.mrb[0].mxu0
      %v1590 = vadd.f32 0.0, %v1589
      %v1591 = vpop.f32.mrb[0].mxu0
      %1592 = vmatprep.mubr.bf16.mxu0 0
      %1593 = vmatmul.mubr.bf16.gmra.mrb[0].mxu0 %v1473
      %v1594 = vpop.f32.mrb[0].mxu0
      %v1595 = vadd.f32 0.0, %v1594
      %v1596 = vpop.f32.mrb[0].mxu0
      %v1597 = vpop.f32.mrb[0].mxu0
      %v1598 = vadd.f32 0.0, %v1597
      %v1599 = vpop.f32.mrb[0].mxu0
      %1600 = vmatprep.mubr.bf16.mxu0 0
      %1601 = vmatmul.mubr.bf16.gmra.mrb[0].mxu0 %v1474
      %v1602 = vpop.f32.mrb[0].mxu0
      %v1603 = vadd.f32 0.0, %v1602
      %v1604 = vpop.f32.mrb[0].mxu0
      %v1605 = vpop.f32.mrb[0].mxu0
      %v1606 = vadd.f32 0.0, %v1605
      %v1607 = vpop.f32.mrb[0].mxu0
      %1608 = vmatprep.mubr.bf16.mxu0 0
      %1609 = vmatmul.mubr.bf16.gmra.mrb[0].mxu0 %v1475
      %v1610 = vpop.f32.mrb[0].mxu0
      %v1611 = vadd.f32 0.0, %v1610
      %v1612 = vpop.f32.mrb[0].mxu0
      %v1613 = vpop.f32.mrb[0].mxu0
      %v1614 = vadd.f32 0.0, %v1613
      %v1615 = vpop.f32.mrb[0].mxu0
      %1616 = vmatprep.mubr.bf16.mxu0 0
      %1617 = vmatmul.mubr.bf16.gmra.mrb[0].mxu0 %v1476
      %v1618 = vpop.f32.mrb[0].mxu0
      %v1619 = vadd.f32 0.0, %v1618
      %v1620 = vpop.f32.mrb[0].mxu0
      %v1621 = vpop.f32.mrb[0].mxu0
      %v1622 = vadd.f32 0.0, %v1621
      %v1623 = vpop.f32.mrb[0].mxu0
      %1624 = vmatprep.mubr.bf16.mxu0 0
      %1625 = vmatmul.mubr.bf16.gmra.mrb[0].mxu0 %v1477
      %v1626 = vpop.f32.mrb[0].mxu0
      %v1627 = vadd.f32 0.0, %v1626
      %v1628 = vpop.f32.mrb[0].mxu0
      %v1629 = vpop.f32.mrb[0].mxu0
      %v1630 = vadd.f32 0.0, %v1629
      %v1631 = vpop.f32.mrb[0].mxu0
      %1632 = vmatprep.mubr.bf16.mxu0 0
      %1633 = vmatmul.mubr.bf16.gmra.mrb[0].mxu0 %v1478
      %v1634 = vpop.f32.mrb[0].mxu0
      %v1635 = vadd.f32 0.0, %v1634
      %v1636 = vpop.f32.mrb[0].mxu0
      %v1637 = vpop.f32.mrb[0].mxu0
      %v1638 = vadd.f32 0.0, %v1637
      %v1639 = vpop.f32.mrb[0].mxu0
      %1640 = vmatprep.mubr.bf16.mxu0 0
      %1641 = vmatmul.mubr.bf16.gmra.mrb[0].mxu0 %v1479
      %v1642 = vpop.f32.mrb[0].mxu0
      %v1643 = vadd.f32 0.0, %v1642
      %v1644 = vpop.f32.mrb[0].mxu0
      %v1645 = vpop.f32.mrb[0].mxu0
      %v1646 = vadd.f32 0.0, %v1645
      %v1647 = vpop.f32.mrb[0].mxu0
      %1648 = vmatprep.mubr.bf16.mxu0 0
      %1649 = vmatmul.mubr.bf16.gmra.mrb[0].mxu0 %v1480
      %v1650 = vpop.f32.mrb[0].mxu0
      %v1651 = vadd.f32 0.0, %v1650
      %v1652 = vpop.f32.mrb[0].mxu0
      %v1653 = vpop.f32.mrb[0].mxu0
      %v1654 = vadd.f32 0.0, %v1653
      %v1655 = vpop.f32.mrb[0].mxu0
      %1656 = vmatprep.mubr.bf16.mxu0 0
      %1657 = vmatmul.mubr.bf16.gmra.mrb[0].mxu0 %v1481
      %v1658 = vpop.f32.mrb[0].mxu0
      %v1659 = vadd.f32 0.0, %v1658
      %v1660 = vpop.f32.mrb[0].mxu0
      %v1661 = vpop.f32.mrb[0].mxu0
      %v1662 = vadd.f32 0.0, %v1661
      %v1663 = vpop.f32.mrb[0].mxu0
      %1664 = vmatprep.mubr.bf16.mxu0 0
      %1665 = vmatmul.mubr.bf16.gmra.mrb[0].mxu0 %v1482
      %v1666 = vpop.f32.mrb[0].mxu0
      %v1667 = vadd.f32 0.0, %v1666
      %v1668 = vpop.f32.mrb[0].mxu0
      %v1669 = vpop.f32.mrb[0].mxu0
      %v1670 = vadd.f32 0.0, %v1669
      %v1671 = vpop.f32.mrb[0].mxu0
      %1672 = vmatprep.mubr.bf16.mxu0 0
      %1673 = vmatmul.mubr.bf16.gmra.mrb[0].mxu0 %v1483
      %v1674 = vpop.f32.mrb[0].mxu0
      %v1675 = vadd.f32 0.0, %v1674
      %v1676 = vpop.f32.mrb[0].mxu0
      %v1677 = vpop.f32.mrb[0].mxu0
      %v1678 = vadd.f32 0.0, %v1677
      %v1679 = vpop.f32.mrb[0].mxu0
      %1680 = vmatprep.mubr.bf16.mxu0 0
      %1681 = vmatmul.mubr.bf16.gmra.mrb[0].mxu0 %v1484
      %v1682 = vpop.f32.mrb[0].mxu0
      %v1683 = vadd.f32 0.0, %v1682
      %v1684 = vpop.f32.mrb[0].mxu0
      %v1685 = vpop.f32.mrb[0].mxu0
      %v1686 = vadd.f32 0.0, %v1685
      %v1687 = vpop.f32.mrb[0].mxu0
      %1688 = vmatprep.mubr.bf16.mxu0 0
      %1689 = vmatmul.mubr.bf16.gmra.mrb[0].mxu0 %v1485
      %v1690 = vpop.f32.mrb[0].mxu0
      %v1691 = vadd.f32 0.0, %v1690
      %v1692 = vpop.f32.mrb[0].mxu0
      %v1693 = vpop.f32.mrb[0].mxu0
      %v1694 = vadd.f32 0.0, %v1693
      %v1695 = vpop.f32.mrb[0].mxu0
      %1696 = vmatprep.mubr.bf16.mxu0 0
      %1697 = vmatmul.mubr.bf16.gmra.mrb[0].mxu0 %v1486
      %v1698 = vpop.f32.mrb[0].mxu0
      %v1699 = vadd.f32 0.0, %v1698
      %v1700 = vpop.f32.mrb[0].mxu0
      %v1701 = vpop.f32.mrb[0].mxu0
      %v1702 = vadd.f32 0.0, %v1701
      %v1703 = vpop.f32.mrb[0].mxu0
      %1704 = vmatprep.mubr.bf16.mxu0 0
      %1705 = vmatmul.mubr.bf16.gmra.mrb[0].mxu0 %v1487
      %v1706 = vpop.f32.mrb[0].mxu0
      %v1707 = vadd.f32 0.0, %v1706
      %v1708 = vpop.f32.mrb[0].mxu0
      %v1709 = vpop.f32.mrb[0].mxu0
      %v1710 = vadd.f32 0.0, %v1709
      %v1711 = vpop.f32.mrb[0].mxu0
      %1712 = vdwg.mxu0
      %v1713 = vadd.f32 %v1135, %v1587
      %v1714 = vadd.f32 %v1138, %v1590
      %v1715 = vadd.f32 %v1143, %v1595
      %v1716 = vadd.f32 %v1146, %v1598
      %v1717 = vadd.f32 %v1151, %v1603
      %v1718 = vadd.f32 %v1154, %v1606
      %v1719 = vadd.f32 %v1159, %v1611
      %v1720 = vadd.f32 %v1162, %v1614
      %v1721 = vadd.f32 %v1167, %v1619
      %v1722 = vadd.f32 %v1170, %v1622
      %v1723 = vadd.f32 %v1175, %v1627
      %v1724 = vadd.f32 %v1178, %v1630
      %v1725 = vadd.f32 %v1183, %v1635
      %v1726 = vadd.f32 %v1186, %v1638
      %v1727 = vadd.f32 %v1191, %v1643
      %v1728 = vadd.f32 %v1194, %v1646
      %v1729 = vadd.f32 %v1199, %v1651
      %v1730 = vadd.f32 %v1202, %v1654
      %v1731 = vadd.f32 %v1207, %v1659
      %v1732 = vadd.f32 %v1210, %v1662
      %v1733 = vadd.f32 %v1215, %v1667
      %v1734 = vadd.f32 %v1218, %v1670
      %v1735 = vadd.f32 %v1223, %v1675
      %v1736 = vadd.f32 %v1226, %v1678
      %v1737 = vadd.f32 %v1231, %v1683
      %v1738 = vadd.f32 %v1234, %v1686
      %v1739 = vadd.f32 %v1239, %v1691
      %v1740 = vadd.f32 %v1242, %v1694
      %v1741 = vadd.f32 %v1247, %v1699
      %v1742 = vadd.f32 %v1250, %v1702
      %v1743 = vadd.f32 %v1255, %v1707
      %v1744 = vadd.f32 %v1258, %v1710
      %s1745 = scalar_lea.vmem %s203, 12
      %v1746 = vld [vmem:[%s1745] sm:$0xf]
      %v1747 = vld [vmem:[%s1745 + $0x4] sm:$0xf]
      %v1748 = vld [vmem:[%s1745 + $0xc] sm:$0xf]
      %v1749 = vld [vmem:[%s1745 + $0x10] sm:$0xf]
      %v1750 = vld [vmem:[%s1745 + $0x18] sm:$0xf]
      %v1751 = vld [vmem:[%s1745 + $0x1c] sm:$0xf]
      %v1752 = vld [vmem:[%s1745 + $0x24] sm:$0xf]
      %v1753 = vld [vmem:[%s1745 + $0x28] sm:$0xf]
      %v1754 = vld [vmem:[%s1745 + $0x30] sm:$0xf]
      %v1755 = vld [vmem:[%s1745 + $0x34] sm:$0xf]
      %v1756 = vld [vmem:[%s1745 + $0x3c] sm:$0xf]
      %v1757 = vld [vmem:[%s1745 + $0x40] sm:$0xf]
      %v1758 = vld [vmem:[%s1745 + $0x48] sm:$0xf]
      %v1759 = vld [vmem:[%s1745 + $0x4c] sm:$0xf]
      %v1760 = vld [vmem:[%s1745 + $0x54] sm:$0xf]
      %v1761 = vld [vmem:[%s1745 + $0x58] sm:$0xf]
      %v1762 = vld [vmem:[%s1745 + $0x60] sm:$0xf]
      %v1763 = vld [vmem:[%s1745 + $0x64] sm:$0xf]
      %v1764 = vld [vmem:[%s1745 + $0x6c] sm:$0xf]
      %v1765 = vld [vmem:[%s1745 + $0x70] sm:$0xf]
      %v1766 = vld [vmem:[%s1745 + $0x78] sm:$0xf]
      %v1767 = vld [vmem:[%s1745 + $0x7c] sm:$0xf]
      %v1768 = vld [vmem:[%s1745 + $0x84] sm:$0xf]
      %v1769 = vld [vmem:[%s1745 + $0x88] sm:$0xf]
      %v1770 = vld [vmem:[%s1745 + $0x90] sm:$0xf]
      %v1771 = vld [vmem:[%s1745 + $0x94] sm:$0xf]
      %v1772 = vld [vmem:[%s1745 + $0x9c] sm:$0xf]
      %v1773 = vld [vmem:[%s1745 + $0xa0] sm:$0xf]
      %v1774 = vld [vmem:[%s1745 + $0xa8] sm:$0xf]
      %v1775 = vld [vmem:[%s1745 + $0xac] sm:$0xf]
      %v1776 = vld [vmem:[%s1745 + $0xb4] sm:$0xf]
      %v1777 = vld [vmem:[%s1745 + $0xb8] sm:$0xf]
      %v1778 = vld [vmem:[%s1 + $0xc0] sm:$0xf]
      %v1779 = vld [vmem:[%s1 + $0xc4] sm:$0xf]
      %v1780 = vld [vmem:[%s1 + $0xc8] sm:$0xf]
      %v1781 = vld [vmem:[%s1 + $0xcc] sm:$0xf]
      %v1782 = vld [vmem:[%s1 + $0xd0] sm:$0xf]
      %v1783 = vld [vmem:[%s1 + $0xd4] sm:$0xf]
      %v1784 = vld [vmem:[%s1 + $0xd8] sm:$0xf]
      %v1785 = vld [vmem:[%s1 + $0xdc] sm:$0xf]
      %v1786 = vld [vmem:[%s1 + $0xe0] sm:$0xf]
      %v1787 = vld [vmem:[%s1 + $0xe4] sm:$0xf]
      %v1788 = vld [vmem:[%s1 + $0xe8] sm:$0xf]
      %v1789 = vld [vmem:[%s1 + $0xec] sm:$0xf]
      %v1790 = vld [vmem:[%s1 + $0xf0] sm:$0xf]
      %v1791 = vld [vmem:[%s1 + $0xf4] sm:$0xf]
      %v1792 = vld [vmem:[%s1 + $0xf8] sm:$0xf]
      %v1793 = vld [vmem:[%s1 + $0xfc] sm:$0xf]
      %v1826 = vunpack.c.l.b16 %v1746
      %v1827 = vunpack.c.l.b16 %v1747
      %v1828 = vunpack.c.l.b16 %v1748
      %v1829 = vunpack.c.l.b16 %v1749
      %v1830 = vunpack.c.l.b16 %v1750
      %v1831 = vunpack.c.l.b16 %v1751
      %v1832 = vunpack.c.l.b16 %v1752
      %v1833 = vunpack.c.l.b16 %v1753
      %v1834 = vunpack.c.l.b16 %v1754
      %v1835 = vunpack.c.l.b16 %v1755
      %v1836 = vunpack.c.l.b16 %v1756
      %v1837 = vunpack.c.l.b16 %v1757
      %v1838 = vunpack.c.l.b16 %v1758
      %v1839 = vunpack.c.l.b16 %v1759
      %v1840 = vunpack.c.l.b16 %v1760
      %v1841 = vunpack.c.l.b16 %v1761
      %v1842 = vunpack.c.l.b16 %v1762
      %v1843 = vunpack.c.l.b16 %v1763
      %v1844 = vunpack.c.l.b16 %v1764
      %v1845 = vunpack.c.l.b16 %v1765
      %v1846 = vunpack.c.l.b16 %v1766
      %v1847 = vunpack.c.l.b16 %v1767
      %v1848 = vunpack.c.l.b16 %v1768
      %v1849 = vunpack.c.l.b16 %v1769
      %v1850 = vunpack.c.l.b16 %v1770
      %v1851 = vunpack.c.l.b16 %v1771
      %v1852 = vunpack.c.l.b16 %v1772
      %v1853 = vunpack.c.l.b16 %v1773
      %v1854 = vunpack.c.l.b16 %v1774
      %v1855 = vunpack.c.l.b16 %v1775
      %v1856 = vunpack.c.l.b16 %v1776
      %v1857 = vunpack.c.l.b16 %v1777
      %v1858 = vpack.c.b16 %v1827, %v1826
      %v1859 = vpack.c.b16 %v1829, %v1828
      %v1860 = vpack.c.b16 %v1831, %v1830
      %v1861 = vpack.c.b16 %v1833, %v1832
      %v1862 = vpack.c.b16 %v1835, %v1834
      %v1863 = vpack.c.b16 %v1837, %v1836
      %v1864 = vpack.c.b16 %v1839, %v1838
      %v1865 = vpack.c.b16 %v1841, %v1840
      %v1866 = vpack.c.b16 %v1843, %v1842
      %v1867 = vpack.c.b16 %v1845, %v1844
      %v1868 = vpack.c.b16 %v1847, %v1846
      %v1869 = vpack.c.b16 %v1849, %v1848
      %v1870 = vpack.c.b16 %v1851, %v1850
      %v1871 = vpack.c.b16 %v1853, %v1852
      %v1872 = vpack.c.b16 %v1855, %v1854
      %v1873 = vpack.c.b16 %v1857, %v1856
      %v1906 = vunpack.c.l.b16 %v1778
      %v1907 = vunpack.c.l.b16 %v1779
      %v1908 = vunpack.c.l.b16 %v1780
      %v1909 = vunpack.c.l.b16 %v1781
      %v1910 = vunpack.c.l.b16 %v1782
      %v1911 = vunpack.c.l.b16 %v1783
      %v1912 = vunpack.c.l.b16 %v1784
      %v1913 = vunpack.c.l.b16 %v1785
      %v1914 = vunpack.c.l.b16 %v1786
      %v1915 = vunpack.c.l.b16 %v1787
      %v1916 = vunpack.c.l.b16 %v1788
      %v1917 = vunpack.c.l.b16 %v1789
      %v1918 = vunpack.c.l.b16 %v1790
      %v1919 = vunpack.c.l.b16 %v1791
      %v1920 = vunpack.c.l.b16 %v1792
      %v1921 = vunpack.c.l.b16 %v1793
      %v1922 = vpack.c.b16 %v1907, %v1906
      %v1923 = vpack.c.b16 %v1909, %v1908
      %v1924 = vpack.c.b16 %v1911, %v1910
      %v1925 = vpack.c.b16 %v1913, %v1912
      %v1926 = vpack.c.b16 %v1915, %v1914
      %v1927 = vpack.c.b16 %v1917, %v1916
      %v1928 = vpack.c.b16 %v1919, %v1918
      %v1929 = vpack.c.b16 %v1921, %v1920
      %1938 = vmatprep.subr.bf16.mxu0 0
      %1939 = vmatpush1.bf16.msra.mxu0 %v1922
      %1940 = vmatprep.subr.bf16.mxu0 0
      %1941 = vmatpush1.bf16.msra.mxu0 %v1923
      %1942 = vmatprep.subr.bf16.mxu0 0
      %1943 = vmatpush1.bf16.msra.mxu0 %v1924
      %1944 = vmatprep.subr.bf16.mxu0 0
      %1945 = vmatpush1.bf16.msra.mxu0 %v1925
      %1946 = vmatprep.subr.bf16.mxu0 0
      %1947 = vmatpush1.bf16.msra.mxu0 %v1926
      %1948 = vmatprep.subr.bf16.mxu0 0
      %1949 = vmatpush1.bf16.msra.mxu0 %v1927
      %1950 = vmatprep.subr.bf16.mxu0 0
      %1951 = vmatpush1.bf16.msra.mxu0 %v1928
      %1952 = vmatprep.subr.bf16.mxu0 0
      %1953 = vmatpush1.bf16.msra.mxu0 %v1929
      %1954 = vmatprep.subr.bf16.mxu0 0
      %1955 = vmatpush1.bf16.msra.mxu0 0
      %1956 = vmatprep.subr.bf16.mxu0 0
      %1957 = vmatpush1.bf16.msra.mxu0 0
      %1958 = vmatprep.subr.bf16.mxu0 0
      %1959 = vmatpush1.bf16.msra.mxu0 0
      %1960 = vmatprep.subr.bf16.mxu0 0
      %1961 = vmatpush1.bf16.msra.mxu0 0
      %1962 = vmatprep.subr.bf16.mxu0 0
      %1963 = vmatpush1.bf16.msra.mxu0 0
      %1964 = vmatprep.subr.bf16.mxu0 0
      %1965 = vmatpush1.bf16.msra.mxu0 0
      %1966 = vmatprep.subr.bf16.mxu0 0
      %1967 = vmatpush1.bf16.msra.mxu0 0
      %1968 = vmatprep.subr.bf16.mxu0 0
      %1969 = vmatpush1.bf16.msra.mxu0 0
      %1970 = vmatprep.mubr.bf16.mxu0 0
      %1971 = vmatmul.mubr.bf16.gmra.mrb[0].mxu0 %v1858
      %v1972 = vpop.f32.mrb[0].mxu0
      %v1973 = vadd.f32 0.0, %v1972
      %v1974 = vpop.f32.mrb[0].mxu0
      %v1975 = vpop.f32.mrb[0].mxu0
      %v1976 = vadd.f32 0.0, %v1975
      %v1977 = vpop.f32.mrb[0].mxu0
      %1978 = vmatprep.mubr.bf16.mxu0 0
      %1979 = vmatmul.mubr.bf16.gmra.mrb[0].mxu0 %v1859
      %v1980 = vpop.f32.mrb[0].mxu0
      %v1981 = vadd.f32 0.0, %v1980
      %v1982 = vpop.f32.mrb[0].mxu0
      %v1983 = vpop.f32.mrb[0].mxu0
      %v1984 = vadd.f32 0.0, %v1983
      %v1985 = vpop.f32.mrb[0].mxu0
      %1986 = vmatprep.mubr.bf16.mxu0 0
      %1987 = vmatmul.mubr.bf16.gmra.mrb[0].mxu0 %v1860
      %v1988 = vpop.f32.mrb[0].mxu0
      %v1989 = vadd.f32 0.0, %v1988
      %v1990 = vpop.f32.mrb[0].mxu0
      %v1991 = vpop.f32.mrb[0].mxu0
      %v1992 = vadd.f32 0.0, %v1991
      %v1993 = vpop.f32.mrb[0].mxu0
      %1994 = vmatprep.mubr.bf16.mxu0 0
      %1995 = vmatmul.mubr.bf16.gmra.mrb[0].mxu0 %v1861
      %v1996 = vpop.f32.mrb[0].mxu0
      %v1997 = vadd.f32 0.0, %v1996
      %v1998 = vpop.f32.mrb[0].mxu0
      %v1999 = vpop.f32.mrb[0].mxu0
      %v2000 = vadd.f32 0.0, %v1999
      %v2001 = vpop.f32.mrb[0].mxu0
      %2002 = vmatprep.mubr.bf16.mxu0 0
      %2003 = vmatmul.mubr.bf16.gmra.mrb[0].mxu0 %v1862
      %v2004 = vpop.f32.mrb[0].mxu0
      %v2005 = vadd.f32 0.0, %v2004
      %v2006 = vpop.f32.mrb[0].mxu0
      %v2007 = vpop.f32.mrb[0].mxu0
      %v2008 = vadd.f32 0.0, %v2007
      %v2009 = vpop.f32.mrb[0].mxu0
      %2010 = vmatprep.mubr.bf16.mxu0 0
      %2011 = vmatmul.mubr.bf16.gmra.mrb[0].mxu0 %v1863
      %v2012 = vpop.f32.mrb[0].mxu0
      %v2013 = vadd.f32 0.0, %v2012
      %v2014 = vpop.f32.mrb[0].mxu0
      %v2015 = vpop.f32.mrb[0].mxu0
      %v2016 = vadd.f32 0.0, %v2015
      %v2017 = vpop.f32.mrb[0].mxu0
      %2018 = vmatprep.mubr.bf16.mxu0 0
      %2019 = vmatmul.mubr.bf16.gmra.mrb[0].mxu0 %v1864
      %v2020 = vpop.f32.mrb[0].mxu0
      %v2021 = vadd.f32 0.0, %v2020
      %v2022 = vpop.f32.mrb[0].mxu0
      %v2023 = vpop.f32.mrb[0].mxu0
      %v2024 = vadd.f32 0.0, %v2023
      %v2025 = vpop.f32.mrb[0].mxu0
      %2026 = vmatprep.mubr.bf16.mxu0 0
      %2027 = vmatmul.mubr.bf16.gmra.mrb[0].mxu0 %v1865
      %v2028 = vpop.f32.mrb[0].mxu0
      %v2029 = vadd.f32 0.0, %v2028
      %v2030 = vpop.f32.mrb[0].mxu0
      %v2031 = vpop.f32.mrb[0].mxu0
      %v2032 = vadd.f32 0.0, %v2031
      %v2033 = vpop.f32.mrb[0].mxu0
      %2034 = vmatprep.mubr.bf16.mxu0 0
      %2035 = vmatmul.mubr.bf16.gmra.mrb[0].mxu0 %v1866
      %v2036 = vpop.f32.mrb[0].mxu0
      %v2037 = vadd.f32 0.0, %v2036
      %v2038 = vpop.f32.mrb[0].mxu0
      %v2039 = vpop.f32.mrb[0].mxu0
      %v2040 = vadd.f32 0.0, %v2039
      %v2041 = vpop.f32.mrb[0].mxu0
      %2042 = vmatprep.mubr.bf16.mxu0 0
      %2043 = vmatmul.mubr.bf16.gmra.mrb[0].mxu0 %v1867
      %v2044 = vpop.f32.mrb[0].mxu0
      %v2045 = vadd.f32 0.0, %v2044
      %v2046 = vpop.f32.mrb[0].mxu0
      %v2047 = vpop.f32.mrb[0].mxu0
      %v2048 = vadd.f32 0.0, %v2047
      %v2049 = vpop.f32.mrb[0].mxu0
      %2050 = vmatprep.mubr.bf16.mxu0 0
      %2051 = vmatmul.mubr.bf16.gmra.mrb[0].mxu0 %v1868
      %v2052 = vpop.f32.mrb[0].mxu0
      %v2053 = vadd.f32 0.0, %v2052
      %v2054 = vpop.f32.mrb[0].mxu0
      %v2055 = vpop.f32.mrb[0].mxu0
      %v2056 = vadd.f32 0.0, %v2055
      %v2057 = vpop.f32.mrb[0].mxu0
      %2058 = vmatprep.mubr.bf16.mxu0 0
      %2059 = vmatmul.mubr.bf16.gmra.mrb[0].mxu0 %v1869
      %v2060 = vpop.f32.mrb[0].mxu0
      %v2061 = vadd.f32 0.0, %v2060
      %v2062 = vpop.f32.mrb[0].mxu0
      %v2063 = vpop.f32.mrb[0].mxu0
      %v2064 = vadd.f32 0.0, %v2063
      %v2065 = vpop.f32.mrb[0].mxu0
      %2066 = vmatprep.mubr.bf16.mxu0 0
      %2067 = vmatmul.mubr.bf16.gmra.mrb[0].mxu0 %v1870
      %v2068 = vpop.f32.mrb[0].mxu0
      %v2069 = vadd.f32 0.0, %v2068
      %v2070 = vpop.f32.mrb[0].mxu0
      %v2071 = vpop.f32.mrb[0].mxu0
      %v2072 = vadd.f32 0.0, %v2071
      %v2073 = vpop.f32.mrb[0].mxu0
      %2074 = vmatprep.mubr.bf16.mxu0 0
      %2075 = vmatmul.mubr.bf16.gmra.mrb[0].mxu0 %v1871
      %v2076 = vpop.f32.mrb[0].mxu0
      %v2077 = vadd.f32 0.0, %v2076
      %v2078 = vpop.f32.mrb[0].mxu0
      %v2079 = vpop.f32.mrb[0].mxu0
      %v2080 = vadd.f32 0.0, %v2079
      %v2081 = vpop.f32.mrb[0].mxu0
      %2082 = vmatprep.mubr.bf16.mxu0 0
      %2083 = vmatmul.mubr.bf16.gmra.mrb[0].mxu0 %v1872
      %v2084 = vpop.f32.mrb[0].mxu0
      %v2085 = vadd.f32 0.0, %v2084
      %v2086 = vpop.f32.mrb[0].mxu0
      %v2087 = vpop.f32.mrb[0].mxu0
      %v2088 = vadd.f32 0.0, %v2087
      %v2089 = vpop.f32.mrb[0].mxu0
      %2090 = vmatprep.mubr.bf16.mxu0 0
      %2091 = vmatmul.mubr.bf16.gmra.mrb[0].mxu0 %v1873
      %v2092 = vpop.f32.mrb[0].mxu0
      %v2093 = vadd.f32 0.0, %v2092
      %v2094 = vpop.f32.mrb[0].mxu0
      %v2095 = vpop.f32.mrb[0].mxu0
      %v2096 = vadd.f32 0.0, %v2095
      %v2097 = vpop.f32.mrb[0].mxu0
      %2098 = vdwg.mxu0
      %v2099 = vadd.f32 %v1713, %v1973
      %v2100 = vadd.f32 %v1714, %v1976
      %v2101 = vadd.f32 %v1715, %v1981
      %v2102 = vadd.f32 %v1716, %v1984
      %v2103 = vadd.f32 %v1717, %v1989
      %v2104 = vadd.f32 %v1718, %v1992
      %v2105 = vadd.f32 %v1719, %v1997
      %v2106 = vadd.f32 %v1720, %v2000
      %v2107 = vadd.f32 %v1721, %v2005
      %v2108 = vadd.f32 %v1722, %v2008
      %v2109 = vadd.f32 %v1723, %v2013
      %v2110 = vadd.f32 %v1724, %v2016
      %v2111 = vadd.f32 %v1725, %v2021
      %v2112 = vadd.f32 %v1726, %v2024
      %v2113 = vadd.f32 %v1727, %v2029
      %v2114 = vadd.f32 %v1728, %v2032
      %v2115 = vadd.f32 %v1729, %v2037
      %v2116 = vadd.f32 %v1730, %v2040
      %v2117 = vadd.f32 %v1731, %v2045
      %v2118 = vadd.f32 %v1732, %v2048
      %v2119 = vadd.f32 %v1733, %v2053
      %v2120 = vadd.f32 %v1734, %v2056
      %v2121 = vadd.f32 %v1735, %v2061
      %v2122 = vadd.f32 %v1736, %v2064
      %v2123 = vadd.f32 %v1737, %v2069
      %v2124 = vadd.f32 %v1738, %v2072
      %v2125 = vadd.f32 %v1739, %v2077
      %v2126 = vadd.f32 %v1740, %v2080
      %v2127 = vadd.f32 %v1741, %v2085
      %v2128 = vadd.f32 %v1742, %v2088
      %v2129 = vadd.f32 %v1743, %v2093
      %v2130 = vadd.f32 %v1744, %v2096
      %v2131 = vld [vmem:[%s1745] sm:$0xf]
      %v2132 = vld [vmem:[%s1745 + $0x4] sm:$0xf]
      %v2133 = vld [vmem:[%s1745 + $0x8] sm:$0x1]
      %v2134 = vld [vmem:[%s1745 + $0xc] sm:$0xf]
      %v2135 = vld [vmem:[%s1745 + $0x10] sm:$0xf]
      %v2136 = vld [vmem:[%s1745 + $0x14] sm:$0x1]
      %v2137 = vld [vmem:[%s1745 + $0x18] sm:$0xf]
      %v2138 = vld [vmem:[%s1745 + $0x1c] sm:$0xf]
      %v2139 = vld [vmem:[%s1745 + $0x20] sm:$0x1]
      %v2140 = vld [vmem:[%s1745 + $0x24] sm:$0xf]
      %v2141 = vld [vmem:[%s1745 + $0x28] sm:$0xf]
      %v2142 = vld [vmem:[%s1745 + $0x2c] sm:$0x1]
      %v2143 = vld [vmem:[%s1745 + $0x30] sm:$0xf]
      %v2144 = vld [vmem:[%s1745 + $0x34] sm:$0xf]
      %v2145 = vld [vmem:[%s1745 + $0x38] sm:$0x1]
      %v2146 = vld [vmem:[%s1745 + $0x3c] sm:$0xf]
      %v2147 = vld [vmem:[%s1745 + $0x40] sm:$0xf]
      %v2148 = vld [vmem:[%s1745 + $0x44] sm:$0x1]
      %v2149 = vld [vmem:[%s1745 + $0x48] sm:$0xf]
      %v2150 = vld [vmem:[%s1745 + $0x4c] sm:$0xf]
      %v2151 = vld [vmem:[%s1745 + $0x50] sm:$0x1]
      %v2152 = vld [vmem:[%s1745 + $0x54] sm:$0xf]
      %v2153 = vld [vmem:[%s1745 + $0x58] sm:$0xf]
      %v2154 = vld [vmem:[%s1745 + $0x5c] sm:$0x1]
      %v2155 = vld [vmem:[%s1745 + $0x60] sm:$0xf]
      %v2156 = vld [vmem:[%s1745 + $0x64] sm:$0xf]
      %v2157 = vld [vmem:[%s1745 + $0x68] sm:$0x1]
      %v2158 = vld [vmem:[%s1745 + $0x6c] sm:$0xf]
      %v2159 = vld [vmem:[%s1745 + $0x70] sm:$0xf]
      %v2160 = vld [vmem:[%s1745 + $0x74] sm:$0x1]
      %v2161 = vld [vmem:[%s1745 + $0x78] sm:$0xf]
      %v2162 = vld [vmem:[%s1745 + $0x7c] sm:$0xf]
      %v2163 = vld [vmem:[%s1745 + $0x80] sm:$0x1]
      %v2164 = vld [vmem:[%s1745 + $0x84] sm:$0xf]
      %v2165 = vld [vmem:[%s1745 + $0x88] sm:$0xf]
      %v2166 = vld [vmem:[%s1745 + $0x8c] sm:$0x1]
      %v2167 = vld [vmem:[%s1745 + $0x90] sm:$0xf]
      %v2168 = vld [vmem:[%s1745 + $0x94] sm:$0xf]
      %v2169 = vld [vmem:[%s1745 + $0x98] sm:$0x1]
      %v2170 = vld [vmem:[%s1745 + $0x9c] sm:$0xf]
      %v2171 = vld [vmem:[%s1745 + $0xa0] sm:$0xf]
      %v2172 = vld [vmem:[%s1745 + $0xa4] sm:$0x1]
      %v2173 = vld [vmem:[%s1745 + $0xa8] sm:$0xf]
      %v2174 = vld [vmem:[%s1745 + $0xac] sm:$0xf]
      %v2175 = vld [vmem:[%s1745 + $0xb0] sm:$0x1]
      %v2176 = vld [vmem:[%s1745 + $0xb4] sm:$0xf]
      %v2177 = vld [vmem:[%s1745 + $0xb8] sm:$0xf]
      %v2178 = vld [vmem:[%s1745 + $0xbc] sm:$0x1]
      %v2180 = vshrl.u32 %v2131, 16
      %v2182 = vrot.slane %v2180, 4
      %v2183 = vshll.u32 %v2131, 16
      %v2185 = vrot.slane %v2183, 5
      %v2186 = vor.u32 %v2182, %v2185
      %v2187 = vrot.slane %v2186, 4
      %v2189 = vshll.u32 %v2132, 16
      %v2191 = vrot.slane %v2189, 5
      %v2192 = vsel %vm282, %v2187, %v2191
      %v2193 = vshrl.u32 %v2132, 16
      %v2195 = vrot.slane %v2193, 4
      %v2196 = vor.u32 %v2195, %v2191
      %v2197 = vrot.slane %v2196, 4
      %v2199 = vshll.u32 %v2133, 16
      %v2201 = vrot.slane %v2199, 5
      %v2202 = vsel %vm282, %v2197, %v2201
      %v2204 = vshrl.u32 %v2134, 16
      %v2206 = vrot.slane %v2204, 4
      %v2207 = vshll.u32 %v2134, 16
      %v2209 = vrot.slane %v2207, 5
      %v2210 = vor.u32 %v2206, %v2209
      %v2211 = vrot.slane %v2210, 4
      %v2213 = vshll.u32 %v2135, 16
      %v2215 = vrot.slane %v2213, 5
      %v2216 = vsel %vm282, %v2211, %v2215
      %v2217 = vshrl.u32 %v2135, 16
      %v2219 = vrot.slane %v2217, 4
      %v2220 = vor.u32 %v2219, %v2215
      %v2221 = vrot.slane %v2220, 4
      %v2223 = vshll.u32 %v2136, 16
      %v2225 = vrot.slane %v2223, 5
      %v2226 = vsel %vm282, %v2221, %v2225
      %v2228 = vshrl.u32 %v2137, 16
      %v2230 = vrot.slane %v2228, 4
      %v2231 = vshll.u32 %v2137, 16
      %v2233 = vrot.slane %v2231, 5
      %v2234 = vor.u32 %v2230, %v2233
      %v2235 = vrot.slane %v2234, 4
      %v2237 = vshll.u32 %v2138, 16
      %v2239 = vrot.slane %v2237, 5
      %v2240 = vsel %vm282, %v2235, %v2239
      %v2241 = vshrl.u32 %v2138, 16
      %v2243 = vrot.slane %v2241, 4
      %v2244 = vor.u32 %v2243, %v2239
      %v2245 = vrot.slane %v2244, 4
      %v2247 = vshll.u32 %v2139, 16
      %v2249 = vrot.slane %v2247, 5
      %v2250 = vsel %vm282, %v2245, %v2249
      %v2252 = vshrl.u32 %v2140, 16
      %v2254 = vrot.slane %v2252, 4
      %v2255 = vshll.u32 %v2140, 16
      %v2257 = vrot.slane %v2255, 5
      %v2258 = vor.u32 %v2254, %v2257
      %v2259 = vrot.slane %v2258, 4
      %v2261 = vshll.u32 %v2141, 16
      %v2263 = vrot.slane %v2261, 5
      %v2264 = vsel %vm282, %v2259, %v2263
      %v2265 = vshrl.u32 %v2141, 16
      %v2267 = vrot.slane %v2265, 4
      %v2268 = vor.u32 %v2267, %v2263
      %v2269 = vrot.slane %v2268, 4
      %v2271 = vshll.u32 %v2142, 16
      %v2273 = vrot.slane %v2271, 5
      %v2274 = vsel %vm282, %v2269, %v2273
      %v2276 = vshrl.u32 %v2143, 16
      %v2278 = vrot.slane %v2276, 4
      %v2279 = vshll.u32 %v2143, 16
      %v2281 = vrot.slane %v2279, 5
      %v2282 = vor.u32 %v2278, %v2281
      %v2283 = vrot.slane %v2282, 4
      %v2285 = vshll.u32 %v2144, 16
      %v2287 = vrot.slane %v2285, 5
      %v2288 = vsel %vm282, %v2283, %v2287
      %v2289 = vshrl.u32 %v2144, 16
      %v2291 = vrot.slane %v2289, 4
      %v2292 = vor.u32 %v2291, %v2287
      %v2293 = vrot.slane %v2292, 4
      %v2295 = vshll.u32 %v2145, 16
      %v2297 = vrot.slane %v2295, 5
      %v2298 = vsel %vm282, %v2293, %v2297
      %v2300 = vshrl.u32 %v2146, 16
      %v2302 = vrot.slane %v2300, 4
      %v2303 = vshll.u32 %v2146, 16
      %v2305 = vrot.slane %v2303, 5
      %v2306 = vor.u32 %v2302, %v2305
      %v2307 = vrot.slane %v2306, 4
      %v2309 = vshll.u32 %v2147, 16
      %v2311 = vrot.slane %v2309, 5
      %v2312 = vsel %vm282, %v2307, %v2311
      %v2313 = vshrl.u32 %v2147, 16
      %v2315 = vrot.slane %v2313, 4
      %v2316 = vor.u32 %v2315, %v2311
      %v2317 = vrot.slane %v2316, 4
      %v2319 = vshll.u32 %v2148, 16
      %v2321 = vrot.slane %v2319, 5
      %v2322 = vsel %vm282, %v2317, %v2321
      %v2324 = vshrl.u32 %v2149, 16
      %v2326 = vrot.slane %v2324, 4
      %v2327 = vshll.u32 %v2149, 16
      %v2329 = vrot.slane %v2327, 5
      %v2330 = vor.u32 %v2326, %v2329
      %v2331 = vrot.slane %v2330, 4
      %v2333 = vshll.u32 %v2150, 16
      %v2335 = vrot.slane %v2333, 5
      %v2336 = vsel %vm282, %v2331, %v2335
      %v2337 = vshrl.u32 %v2150, 16
      %v2339 = vrot.slane %v2337, 4
      %v2340 = vor.u32 %v2339, %v2335
      %v2341 = vrot.slane %v2340, 4
      %v2343 = vshll.u32 %v2151, 16
      %v2345 = vrot.slane %v2343, 5
      %v2346 = vsel %vm282, %v2341, %v2345
      %v2348 = vshrl.u32 %v2152, 16
      %v2350 = vrot.slane %v2348, 4
      %v2351 = vshll.u32 %v2152, 16
      %v2353 = vrot.slane %v2351, 5
      %v2354 = vor.u32 %v2350, %v2353
      %v2355 = vrot.slane %v2354, 4
      %v2357 = vshll.u32 %v2153, 16
      %v2359 = vrot.slane %v2357, 5
      %v2360 = vsel %vm282, %v2355, %v2359
      %v2361 = vshrl.u32 %v2153, 16
      %v2363 = vrot.slane %v2361, 4
      %v2364 = vor.u32 %v2363, %v2359
      %v2365 = vrot.slane %v2364, 4
      %v2367 = vshll.u32 %v2154, 16
      %v2369 = vrot.slane %v2367, 5
      %v2370 = vsel %vm282, %v2365, %v2369
      %v2372 = vshrl.u32 %v2155, 16
      %v2374 = vrot.slane %v2372, 4
      %v2375 = vshll.u32 %v2155, 16
      %v2377 = vrot.slane %v2375, 5
      %v2378 = vor.u32 %v2374, %v2377
      %v2379 = vrot.slane %v2378, 4
      %v2381 = vshll.u32 %v2156, 16
      %v2383 = vrot.slane %v2381, 5
      %v2384 = vsel %vm282, %v2379, %v2383
      %v2385 = vshrl.u32 %v2156, 16
      %v2387 = vrot.slane %v2385, 4
      %v2388 = vor.u32 %v2387, %v2383
      %v2389 = vrot.slane %v2388, 4
      %v2391 = vshll.u32 %v2157, 16
      %v2393 = vrot.slane %v2391, 5
      %v2394 = vsel %vm282, %v2389, %v2393
      %v2396 = vshrl.u32 %v2158, 16
      %v2398 = vrot.slane %v2396, 4
      %v2399 = vshll.u32 %v2158, 16
      %v2401 = vrot.slane %v2399, 5
      %v2402 = vor.u32 %v2398, %v2401
      %v2403 = vrot.slane %v2402, 4
      %v2405 = vshll.u32 %v2159, 16
      %v2407 = vrot.slane %v2405, 5
      %v2408 = vsel %vm282, %v2403, %v2407
      %v2409 = vshrl.u32 %v2159, 16
      %v2411 = vrot.slane %v2409, 4
      %v2412 = vor.u32 %v2411, %v2407
      %v2413 = vrot.slane %v2412, 4
      %v2415 = vshll.u32 %v2160, 16
      %v2417 = vrot.slane %v2415, 5
      %v2418 = vsel %vm282, %v2413, %v2417
      %v2420 = vshrl.u32 %v2161, 16
      %v2422 = vrot.slane %v2420, 4
      %v2423 = vshll.u32 %v2161, 16
      %v2425 = vrot.slane %v2423, 5
      %v2426 = vor.u32 %v2422, %v2425
      %v2427 = vrot.slane %v2426, 4
      %v2429 = vshll.u32 %v2162, 16
      %v2431 = vrot.slane %v2429, 5
      %v2432 = vsel %vm282, %v2427, %v2431
      %v2433 = vshrl.u32 %v2162, 16
      %v2435 = vrot.slane %v2433, 4
      %v2436 = vor.u32 %v2435, %v2431
      %v2437 = vrot.slane %v2436, 4
      %v2439 = vshll.u32 %v2163, 16
      %v2441 = vrot.slane %v2439, 5
      %v2442 = vsel %vm282, %v2437, %v2441
      %v2444 = vshrl.u32 %v2164, 16
      %v2446 = vrot.slane %v2444, 4
      %v2447 = vshll.u32 %v2164, 16
      %v2449 = vrot.slane %v2447, 5
      %v2450 = vor.u32 %v2446, %v2449
      %v2451 = vrot.slane %v2450, 4
      %v2453 = vshll.u32 %v2165, 16
      %v2455 = vrot.slane %v2453, 5
      %v2456 = vsel %vm282, %v2451, %v2455
      %v2457 = vshrl.u32 %v2165, 16
      %v2459 = vrot.slane %v2457, 4
      %v2460 = vor.u32 %v2459, %v2455
      %v2461 = vrot.slane %v2460, 4
      %v2463 = vshll.u32 %v2166, 16
      %v2465 = vrot.slane %v2463, 5
      %v2466 = vsel %vm282, %v2461, %v2465
      %v2468 = vshrl.u32 %v2167, 16
      %v2470 = vrot.slane %v2468, 4
      %v2471 = vshll.u32 %v2167, 16
      %v2473 = vrot.slane %v2471, 5
      %v2474 = vor.u32 %v2470, %v2473
      %v2475 = vrot.slane %v2474, 4
      %v2477 = vshll.u32 %v2168, 16
      %v2479 = vrot.slane %v2477, 5
      %v2480 = vsel %vm282, %v2475, %v2479
      %v2481 = vshrl.u32 %v2168, 16
      %v2483 = vrot.slane %v2481, 4
      %v2484 = vor.u32 %v2483, %v2479
      %v2485 = vrot.slane %v2484, 4
      %v2487 = vshll.u32 %v2169, 16
      %v2489 = vrot.slane %v2487, 5
      %v2490 = vsel %vm282, %v2485, %v2489
      %v2492 = vshrl.u32 %v2170, 16
      %v2494 = vrot.slane %v2492, 4
      %v2495 = vshll.u32 %v2170, 16
      %v2497 = vrot.slane %v2495, 5
      %v2498 = vor.u32 %v2494, %v2497
      %v2499 = vrot.slane %v2498, 4
      %v2501 = vshll.u32 %v2171, 16
      %v2503 = vrot.slane %v2501, 5
      %v2504 = vsel %vm282, %v2499, %v2503
      %v2505 = vshrl.u32 %v2171, 16
      %v2507 = vrot.slane %v2505, 4
      %v2508 = vor.u32 %v2507, %v2503
      %v2509 = vrot.slane %v2508, 4
      %v2511 = vshll.u32 %v2172, 16
      %v2513 = vrot.slane %v2511, 5
      %v2514 = vsel %vm282, %v2509, %v2513
      %v2516 = vshrl.u32 %v2173, 16
      %v2518 = vrot.slane %v2516, 4
      %v2519 = vshll.u32 %v2173, 16
      %v2521 = vrot.slane %v2519, 5
      %v2522 = vor.u32 %v2518, %v2521
      %v2523 = vrot.slane %v2522, 4
      %v2525 = vshll.u32 %v2174, 16
      %v2527 = vrot.slane %v2525, 5
      %v2528 = vsel %vm282, %v2523, %v2527
      %v2529 = vshrl.u32 %v2174, 16
      %v2531 = vrot.slane %v2529, 4
      %v2532 = vor.u32 %v2531, %v2527
      %v2533 = vrot.slane %v2532, 4
      %v2535 = vshll.u32 %v2175, 16
      %v2537 = vrot.slane %v2535, 5
      %v2538 = vsel %vm282, %v2533, %v2537
      %v2540 = vshrl.u32 %v2176, 16
      %v2542 = vrot.slane %v2540, 4
      %v2543 = vshll.u32 %v2176, 16
      %v2545 = vrot.slane %v2543, 5
      %v2546 = vor.u32 %v2542, %v2545
      %v2547 = vrot.slane %v2546, 4
      %v2549 = vshll.u32 %v2177, 16
      %v2551 = vrot.slane %v2549, 5
      %v2552 = vsel %vm282, %v2547, %v2551
      %v2553 = vshrl.u32 %v2177, 16
      %v2555 = vrot.slane %v2553, 4
      %v2556 = vor.u32 %v2555, %v2551
      %v2557 = vrot.slane %v2556, 4
      %v2559 = vshll.u32 %v2178, 16
      %v2561 = vrot.slane %v2559, 5
      %v2562 = vsel %vm282, %v2557, %v2561
      %v2563 = vld [vmem:[%s1 + $0x100] sm:$0xf]
      %v2564 = vld [vmem:[%s1 + $0x104] sm:$0xf]
      %v2565 = vld [vmem:[%s1 + $0x108] sm:$0xf]
      %v2566 = vld [vmem:[%s1 + $0x10c] sm:$0xf]
      %v2567 = vld [vmem:[%s1 + $0x110] sm:$0xf]
      %v2568 = vld [vmem:[%s1 + $0x114] sm:$0xf]
      %v2569 = vld [vmem:[%s1 + $0x118] sm:$0xf]
      %v2570 = vld [vmem:[%s1 + $0x11c] sm:$0xf]
      %v2571 = vld [vmem:[%s1 + $0x120] sm:$0xf]
      %v2572 = vld [vmem:[%s1 + $0x124] sm:$0xf]
      %v2573 = vld [vmem:[%s1 + $0x128] sm:$0xf]
      %v2574 = vld [vmem:[%s1 + $0x12c] sm:$0xf]
      %v2575 = vld [vmem:[%s1 + $0x130] sm:$0xf]
      %v2576 = vld [vmem:[%s1 + $0x134] sm:$0xf]
      %v2577 = vld [vmem:[%s1 + $0x138] sm:$0xf]
      %v2578 = vld [vmem:[%s1 + $0x13c] sm:$0xf]
      %v2579 = vunpack.c.l.b16 %v2192
      %v2580 = vunpack.c.l.b16 %v2202
      %v2581 = vunpack.c.l.b16 %v2216
      %v2582 = vunpack.c.l.b16 %v2226
      %v2583 = vunpack.c.l.b16 %v2240
      %v2584 = vunpack.c.l.b16 %v2250
      %v2585 = vunpack.c.l.b16 %v2264
      %v2586 = vunpack.c.l.b16 %v2274
      %v2587 = vunpack.c.l.b16 %v2288
      %v2588 = vunpack.c.l.b16 %v2298
      %v2589 = vunpack.c.l.b16 %v2312
      %v2590 = vunpack.c.l.b16 %v2322
      %v2591 = vunpack.c.l.b16 %v2336
      %v2592 = vunpack.c.l.b16 %v2346
      %v2593 = vunpack.c.l.b16 %v2360
      %v2594 = vunpack.c.l.b16 %v2370
      %v2595 = vunpack.c.l.b16 %v2384
      %v2596 = vunpack.c.l.b16 %v2394
      %v2597 = vunpack.c.l.b16 %v2408
      %v2598 = vunpack.c.l.b16 %v2418
      %v2599 = vunpack.c.l.b16 %v2432
      %v2600 = vunpack.c.l.b16 %v2442
      %v2601 = vunpack.c.l.b16 %v2456
      %v2602 = vunpack.c.l.b16 %v2466
      %v2603 = vunpack.c.l.b16 %v2480
      %v2604 = vunpack.c.l.b16 %v2490
      %v2605 = vunpack.c.l.b16 %v2504
      %v2606 = vunpack.c.l.b16 %v2514
      %v2607 = vunpack.c.l.b16 %v2528
      %v2608 = vunpack.c.l.b16 %v2538
      %v2609 = vunpack.c.l.b16 %v2552
      %v2610 = vunpack.c.l.b16 %v2562
      %v2611 = vpack.c.b16 %v2580, %v2579
      %v2612 = vpack.c.b16 %v2582, %v2581
      %v2613 = vpack.c.b16 %v2584, %v2583
      %v2614 = vpack.c.b16 %v2586, %v2585
      %v2615 = vpack.c.b16 %v2588, %v2587
      %v2616 = vpack.c.b16 %v2590, %v2589
      %v2617 = vpack.c.b16 %v2592, %v2591
      %v2618 = vpack.c.b16 %v2594, %v2593
      %v2619 = vpack.c.b16 %v2596, %v2595
      %v2620 = vpack.c.b16 %v2598, %v2597
      %v2621 = vpack.c.b16 %v2600, %v2599
      %v2622 = vpack.c.b16 %v2602, %v2601
      %v2623 = vpack.c.b16 %v2604, %v2603
      %v2624 = vpack.c.b16 %v2606, %v2605
      %v2625 = vpack.c.b16 %v2608, %v2607
      %v2626 = vpack.c.b16 %v2610, %v2609
      %v2659 = vunpack.c.l.b16 %v2563
      %v2660 = vunpack.c.l.b16 %v2564
      %v2661 = vunpack.c.l.b16 %v2565
      %v2662 = vunpack.c.l.b16 %v2566
      %v2663 = vunpack.c.l.b16 %v2567
      %v2664 = vunpack.c.l.b16 %v2568
      %v2665 = vunpack.c.l.b16 %v2569
      %v2666 = vunpack.c.l.b16 %v2570
      %v2667 = vunpack.c.l.b16 %v2571
      %v2668 = vunpack.c.l.b16 %v2572
      %v2669 = vunpack.c.l.b16 %v2573
      %v2670 = vunpack.c.l.b16 %v2574
      %v2671 = vunpack.c.l.b16 %v2575
      %v2672 = vunpack.c.l.b16 %v2576
      %v2673 = vunpack.c.l.b16 %v2577
      %v2674 = vunpack.c.l.b16 %v2578
      %v2675 = vpack.c.b16 %v2660, %v2659
      %v2676 = vpack.c.b16 %v2662, %v2661
      %v2677 = vpack.c.b16 %v2664, %v2663
      %v2678 = vpack.c.b16 %v2666, %v2665
      %v2679 = vpack.c.b16 %v2668, %v2667
      %v2680 = vpack.c.b16 %v2670, %v2669
      %v2681 = vpack.c.b16 %v2672, %v2671
      %v2682 = vpack.c.b16 %v2674, %v2673
      %2691 = vmatprep.subr.bf16.mxu0 0
      %2692 = vmatpush1.bf16.msra.mxu0 %v2675
      %2693 = vmatprep.subr.bf16.mxu0 0
      %2694 = vmatpush1.bf16.msra.mxu0 %v2676
      %2695 = vmatprep.subr.bf16.mxu0 0
      %2696 = vmatpush1.bf16.msra.mxu0 %v2677
      %2697 = vmatprep.subr.bf16.mxu0 0
      %2698 = vmatpush1.bf16.msra.mxu0 %v2678
      %2699 = vmatprep.subr.bf16.mxu0 0
      %2700 = vmatpush1.bf16.msra.mxu0 %v2679
      %2701 = vmatprep.subr.bf16.mxu0 0
      %2702 = vmatpush1.bf16.msra.mxu0 %v2680
      %2703 = vmatprep.subr.bf16.mxu0 0
      %2704 = vmatpush1.bf16.msra.mxu0 %v2681
      %2705 = vmatprep.subr.bf16.mxu0 0
      %2706 = vmatpush1.bf16.msra.mxu0 %v2682
      %2707 = vmatprep.subr.bf16.mxu0 0
      %2708 = vmatpush1.bf16.msra.mxu0 0
      %2709 = vmatprep.subr.bf16.mxu0 0
      %2710 = vmatpush1.bf16.msra.mxu0 0
      %2711 = vmatprep.subr.bf16.mxu0 0
      %2712 = vmatpush1.bf16.msra.mxu0 0
      %2713 = vmatprep.subr.bf16.mxu0 0
      %2714 = vmatpush1.bf16.msra.mxu0 0
      %2715 = vmatprep.subr.bf16.mxu0 0
      %2716 = vmatpush1.bf16.msra.mxu0 0
      %2717 = vmatprep.subr.bf16.mxu0 0
      %2718 = vmatpush1.bf16.msra.mxu0 0
      %2719 = vmatprep.subr.bf16.mxu0 0
      %2720 = vmatpush1.bf16.msra.mxu0 0
      %2721 = vmatprep.subr.bf16.mxu0 0
      %2722 = vmatpush1.bf16.msra.mxu0 0
      %2723 = vmatprep.mubr.bf16.mxu0 0
      %2724 = vmatmul.mubr.bf16.gmra.mrb[0].mxu0 %v2611
      %v2725 = vpop.f32.mrb[0].mxu0
      %v2726 = vadd.f32 0.0, %v2725
      %v2727 = vpop.f32.mrb[0].mxu0
      %v2728 = vpop.f32.mrb[0].mxu0
      %v2729 = vadd.f32 0.0, %v2728
      %v2730 = vpop.f32.mrb[0].mxu0
      %2731 = vmatprep.mubr.bf16.mxu0 0
      %2732 = vmatmul.mubr.bf16.gmra.mrb[0].mxu0 %v2612
      %v2733 = vpop.f32.mrb[0].mxu0
      %v2734 = vadd.f32 0.0, %v2733
      %v2735 = vpop.f32.mrb[0].mxu0
      %v2736 = vpop.f32.mrb[0].mxu0
      %v2737 = vadd.f32 0.0, %v2736
      %v2738 = vpop.f32.mrb[0].mxu0
      %2739 = vmatprep.mubr.bf16.mxu0 0
      %2740 = vmatmul.mubr.bf16.gmra.mrb[0].mxu0 %v2613
      %v2741 = vpop.f32.mrb[0].mxu0
      %v2742 = vadd.f32 0.0, %v2741
      %v2743 = vpop.f32.mrb[0].mxu0
      %v2744 = vpop.f32.mrb[0].mxu0
      %v2745 = vadd.f32 0.0, %v2744
      %v2746 = vpop.f32.mrb[0].mxu0
      %2747 = vmatprep.mubr.bf16.mxu0 0
      %2748 = vmatmul.mubr.bf16.gmra.mrb[0].mxu0 %v2614
      %v2749 = vpop.f32.mrb[0].mxu0
      %v2750 = vadd.f32 0.0, %v2749
      %v2751 = vpop.f32.mrb[0].mxu0
      %v2752 = vpop.f32.mrb[0].mxu0
      %v2753 = vadd.f32 0.0, %v2752
      %v2754 = vpop.f32.mrb[0].mxu0
      %2755 = vmatprep.mubr.bf16.mxu0 0
      %2756 = vmatmul.mubr.bf16.gmra.mrb[0].mxu0 %v2615
      %v2757 = vpop.f32.mrb[0].mxu0
      %v2758 = vadd.f32 0.0, %v2757
      %v2759 = vpop.f32.mrb[0].mxu0
      %v2760 = vpop.f32.mrb[0].mxu0
      %v2761 = vadd.f32 0.0, %v2760
      %v2762 = vpop.f32.mrb[0].mxu0
      %2763 = vmatprep.mubr.bf16.mxu0 0
      %2764 = vmatmul.mubr.bf16.gmra.mrb[0].mxu0 %v2616
      %v2765 = vpop.f32.mrb[0].mxu0
      %v2766 = vadd.f32 0.0, %v2765
      %v2767 = vpop.f32.mrb[0].mxu0
      %v2768 = vpop.f32.mrb[0].mxu0
      %v2769 = vadd.f32 0.0, %v2768
      %v2770 = vpop.f32.mrb[0].mxu0
      %2771 = vmatprep.mubr.bf16.mxu0 0
      %2772 = vmatmul.mubr.bf16.gmra.mrb[0].mxu0 %v2617
      %v2773 = vpop.f32.mrb[0].mxu0
      %v2774 = vadd.f32 0.0, %v2773
      %v2775 = vpop.f32.mrb[0].mxu0
      %v2776 = vpop.f32.mrb[0].mxu0
      %v2777 = vadd.f32 0.0, %v2776
      %v2778 = vpop.f32.mrb[0].mxu0
      %2779 = vmatprep.mubr.bf16.mxu0 0
      %2780 = vmatmul.mubr.bf16.gmra.mrb[0].mxu0 %v2618
      %v2781 = vpop.f32.mrb[0].mxu0
      %v2782 = vadd.f32 0.0, %v2781
      %v2783 = vpop.f32.mrb[0].mxu0
      %v2784 = vpop.f32.mrb[0].mxu0
      %v2785 = vadd.f32 0.0, %v2784
      %v2786 = vpop.f32.mrb[0].mxu0
      %2787 = vmatprep.mubr.bf16.mxu0 0
      %2788 = vmatmul.mubr.bf16.gmra.mrb[0].mxu0 %v2619
      %v2789 = vpop.f32.mrb[0].mxu0
      %v2790 = vadd.f32 0.0, %v2789
      %v2791 = vpop.f32.mrb[0].mxu0
      %v2792 = vpop.f32.mrb[0].mxu0
      %v2793 = vadd.f32 0.0, %v2792
      %v2794 = vpop.f32.mrb[0].mxu0
      %2795 = vmatprep.mubr.bf16.mxu0 0
      %2796 = vmatmul.mubr.bf16.gmra.mrb[0].mxu0 %v2620
      %v2797 = vpop.f32.mrb[0].mxu0
      %v2798 = vadd.f32 0.0, %v2797
      %v2799 = vpop.f32.mrb[0].mxu0
      %v2800 = vpop.f32.mrb[0].mxu0
      %v2801 = vadd.f32 0.0, %v2800
      %v2802 = vpop.f32.mrb[0].mxu0
      %2803 = vmatprep.mubr.bf16.mxu0 0
      %2804 = vmatmul.mubr.bf16.gmra.mrb[0].mxu0 %v2621
      %v2805 = vpop.f32.mrb[0].mxu0
      %v2806 = vadd.f32 0.0, %v2805
      %v2807 = vpop.f32.mrb[0].mxu0
      %v2808 = vpop.f32.mrb[0].mxu0
      %v2809 = vadd.f32 0.0, %v2808
      %v2810 = vpop.f32.mrb[0].mxu0
      %2811 = vmatprep.mubr.bf16.mxu0 0
      %2812 = vmatmul.mubr.bf16.gmra.mrb[0].mxu0 %v2622
      %v2813 = vpop.f32.mrb[0].mxu0
      %v2814 = vadd.f32 0.0, %v2813
      %v2815 = vpop.f32.mrb[0].mxu0
      %v2816 = vpop.f32.mrb[0].mxu0
      %v2817 = vadd.f32 0.0, %v2816
      %v2818 = vpop.f32.mrb[0].mxu0
      %2819 = vmatprep.mubr.bf16.mxu0 0
      %2820 = vmatmul.mubr.bf16.gmra.mrb[0].mxu0 %v2623
      %v2821 = vpop.f32.mrb[0].mxu0
      %v2822 = vadd.f32 0.0, %v2821
      %v2823 = vpop.f32.mrb[0].mxu0
      %v2824 = vpop.f32.mrb[0].mxu0
      %v2825 = vadd.f32 0.0, %v2824
      %v2826 = vpop.f32.mrb[0].mxu0
      %2827 = vmatprep.mubr.bf16.mxu0 0
      %2828 = vmatmul.mubr.bf16.gmra.mrb[0].mxu0 %v2624
      %v2829 = vpop.f32.mrb[0].mxu0
      %v2830 = vadd.f32 0.0, %v2829
      %v2831 = vpop.f32.mrb[0].mxu0
      %v2832 = vpop.f32.mrb[0].mxu0
      %v2833 = vadd.f32 0.0, %v2832
      %v2834 = vpop.f32.mrb[0].mxu0
      %2835 = vmatprep.mubr.bf16.mxu0 0
      %2836 = vmatmul.mubr.bf16.gmra.mrb[0].mxu0 %v2625
      %v2837 = vpop.f32.mrb[0].mxu0
      %v2838 = vadd.f32 0.0, %v2837
      %v2839 = vpop.f32.mrb[0].mxu0
      %v2840 = vpop.f32.mrb[0].mxu0
      %v2841 = vadd.f32 0.0, %v2840
      %v2842 = vpop.f32.mrb[0].mxu0
      %2843 = vmatprep.mubr.bf16.mxu0 0
      %2844 = vmatmul.mubr.bf16.gmra.mrb[0].mxu0 %v2626
      %v2845 = vpop.f32.mrb[0].mxu0
      %v2846 = vadd.f32 0.0, %v2845
      %v2847 = vpop.f32.mrb[0].mxu0
      %v2848 = vpop.f32.mrb[0].mxu0
      %v2849 = vadd.f32 0.0, %v2848
      %v2850 = vpop.f32.mrb[0].mxu0
      %2851 = vdwg.mxu0
      %v2852 = vadd.f32 %v2099, %v2726
      %v2853 = vadd.f32 %v2100, %v2729
      %v2854 = vadd.f32 %v2101, %v2734
      %v2855 = vadd.f32 %v2102, %v2737
      %v2856 = vadd.f32 %v2103, %v2742
      %v2857 = vadd.f32 %v2104, %v2745
      %v2858 = vadd.f32 %v2105, %v2750
      %v2859 = vadd.f32 %v2106, %v2753
      %v2860 = vadd.f32 %v2107, %v2758
      %v2861 = vadd.f32 %v2108, %v2761
      %v2862 = vadd.f32 %v2109, %v2766
      %v2863 = vadd.f32 %v2110, %v2769
      %v2864 = vadd.f32 %v2111, %v2774
      %v2865 = vadd.f32 %v2112, %v2777
      %v2866 = vadd.f32 %v2113, %v2782
      %v2867 = vadd.f32 %v2114, %v2785
      %v2868 = vadd.f32 %v2115, %v2790
      %v2869 = vadd.f32 %v2116, %v2793
      %v2870 = vadd.f32 %v2117, %v2798
      %v2871 = vadd.f32 %v2118, %v2801
      %v2872 = vadd.f32 %v2119, %v2806
      %v2873 = vadd.f32 %v2120, %v2809
      %v2874 = vadd.f32 %v2121, %v2814
      %v2875 = vadd.f32 %v2122, %v2817
      %v2876 = vadd.f32 %v2123, %v2822
      %v2877 = vadd.f32 %v2124, %v2825
      %v2878 = vadd.f32 %v2125, %v2830
      %v2879 = vadd.f32 %v2126, %v2833
      %v2880 = vadd.f32 %v2127, %v2838
      %v2881 = vadd.f32 %v2128, %v2841
      %v2882 = vadd.f32 %v2129, %v2846
      %v2883 = vadd.f32 %v2130, %v2849
      %v2884 = vld [vmem:[%s1745] sm:$0xe]
      %v2885 = vld [vmem:[%s1745 + $0xc] sm:$0xe]
      %v2886 = vld [vmem:[%s1745 + $0x18] sm:$0xe]
      %v2887 = vld [vmem:[%s1745 + $0x24] sm:$0xe]
      %v2888 = vld [vmem:[%s1745 + $0x30] sm:$0xe]
      %v2889 = vld [vmem:[%s1745 + $0x3c] sm:$0xe]
      %v2890 = vld [vmem:[%s1745 + $0x48] sm:$0xe]
      %v2891 = vld [vmem:[%s1745 + $0x54] sm:$0xe]
      %v2892 = vld [vmem:[%s1745 + $0x60] sm:$0xe]
      %v2893 = vld [vmem:[%s1745 + $0x6c] sm:$0xe]
      %v2894 = vld [vmem:[%s1745 + $0x78] sm:$0xe]
      %v2895 = vld [vmem:[%s1745 + $0x84] sm:$0xe]
      %v2896 = vld [vmem:[%s1745 + $0x90] sm:$0xe]
      %v2897 = vld [vmem:[%s1745 + $0x9c] sm:$0xe]
      %v2898 = vld [vmem:[%s1745 + $0xa8] sm:$0xe]
      %v2899 = vld [vmem:[%s1745 + $0xb4] sm:$0xe]
      %v2948 = vrot.slane %v2884, 5
      %v2949 = vrot.slane %v2948, 4
      %v2950 = vrot.slane %v2132, 5
      %v2951 = vsel %vm1311, %v2949, %v2950
      %v2952 = vrot.slane %v2950, 4
      %v2953 = vrot.slane %v2133, 5
      %v2954 = vsel %vm1311, %v2952, %v2953
      %v2955 = vrot.slane %v2885, 5
      %v2956 = vrot.slane %v2955, 4
      %v2957 = vrot.slane %v2135, 5
      %v2958 = vsel %vm1311, %v2956, %v2957
      %v2959 = vrot.slane %v2957, 4
      %v2960 = vrot.slane %v2136, 5
      %v2961 = vsel %vm1311, %v2959, %v2960
      %v2962 = vrot.slane %v2886, 5
      %v2963 = vrot.slane %v2962, 4
      %v2964 = vrot.slane %v2138, 5
      %v2965 = vsel %vm1311, %v2963, %v2964
      %v2966 = vrot.slane %v2964, 4
      %v2967 = vrot.slane %v2139, 5
      %v2968 = vsel %vm1311, %v2966, %v2967
      %v2969 = vrot.slane %v2887, 5
      %v2970 = vrot.slane %v2969, 4
      %v2971 = vrot.slane %v2141, 5
      %v2972 = vsel %vm1311, %v2970, %v2971
      %v2973 = vrot.slane %v2971, 4
      %v2974 = vrot.slane %v2142, 5
      %v2975 = vsel %vm1311, %v2973, %v2974
      %v2976 = vrot.slane %v2888, 5
      %v2977 = vrot.slane %v2976, 4
      %v2978 = vrot.slane %v2144, 5
      %v2979 = vsel %vm1311, %v2977, %v2978
      %v2980 = vrot.slane %v2978, 4
      %v2981 = vrot.slane %v2145, 5
      %v2982 = vsel %vm1311, %v2980, %v2981
      %v2983 = vrot.slane %v2889, 5
      %v2984 = vrot.slane %v2983, 4
      %v2985 = vrot.slane %v2147, 5
      %v2986 = vsel %vm1311, %v2984, %v2985
      %v2987 = vrot.slane %v2985, 4
      %v2988 = vrot.slane %v2148, 5
      %v2989 = vsel %vm1311, %v2987, %v2988
      %v2990 = vrot.slane %v2890, 5
      %v2991 = vrot.slane %v2990, 4
      %v2992 = vrot.slane %v2150, 5
      %v2993 = vsel %vm1311, %v2991, %v2992
      %v2994 = vrot.slane %v2992, 4
      %v2995 = vrot.slane %v2151, 5
      %v2996 = vsel %vm1311, %v2994, %v2995
      %v2997 = vrot.slane %v2891, 5
      %v2998 = vrot.slane %v2997, 4
      %v2999 = vrot.slane %v2153, 5
      %v3000 = vsel %vm1311, %v2998, %v2999
      %v3001 = vrot.slane %v2999, 4
      %v3002 = vrot.slane %v2154, 5
      %v3003 = vsel %vm1311, %v3001, %v3002
      %v3004 = vrot.slane %v2892, 5
      %v3005 = vrot.slane %v3004, 4
      %v3006 = vrot.slane %v2156, 5
      %v3007 = vsel %vm1311, %v3005, %v3006
      %v3008 = vrot.slane %v3006, 4
      %v3009 = vrot.slane %v2157, 5
      %v3010 = vsel %vm1311, %v3008, %v3009
      %v3011 = vrot.slane %v2893, 5
      %v3012 = vrot.slane %v3011, 4
      %v3013 = vrot.slane %v2159, 5
      %v3014 = vsel %vm1311, %v3012, %v3013
      %v3015 = vrot.slane %v3013, 4
      %v3016 = vrot.slane %v2160, 5
      %v3017 = vsel %vm1311, %v3015, %v3016
      %v3018 = vrot.slane %v2894, 5
      %v3019 = vrot.slane %v3018, 4
      %v3020 = vrot.slane %v2162, 5
      %v3021 = vsel %vm1311, %v3019, %v3020
      %v3022 = vrot.slane %v3020, 4
      %v3023 = vrot.slane %v2163, 5
      %v3024 = vsel %vm1311, %v3022, %v3023
      %v3025 = vrot.slane %v2895, 5
      %v3026 = vrot.slane %v3025, 4
      %v3027 = vrot.slane %v2165, 5
      %v3028 = vsel %vm1311, %v3026, %v3027
      %v3029 = vrot.slane %v3027, 4
      %v3030 = vrot.slane %v2166, 5
      %v3031 = vsel %vm1311, %v3029, %v3030
      %v3032 = vrot.slane %v2896, 5
      %v3033 = vrot.slane %v3032, 4
      %v3034 = vrot.slane %v2168, 5
      %v3035 = vsel %vm1311, %v3033, %v3034
      %v3036 = vrot.slane %v3034, 4
      %v3037 = vrot.slane %v2169, 5
      %v3038 = vsel %vm1311, %v3036, %v3037
      %v3039 = vrot.slane %v2897, 5
      %v3040 = vrot.slane %v3039, 4
      %v3041 = vrot.slane %v2171, 5
      %v3042 = vsel %vm1311, %v3040, %v3041
      %v3043 = vrot.slane %v3041, 4
      %v3044 = vrot.slane %v2172, 5
      %v3045 = vsel %vm1311, %v3043, %v3044
      %v3046 = vrot.slane %v2898, 5
      %v3047 = vrot.slane %v3046, 4
      %v3048 = vrot.slane %v2174, 5
      %v3049 = vsel %vm1311, %v3047, %v3048
      %v3050 = vrot.slane %v3048, 4
      %v3051 = vrot.slane %v2175, 5
      %v3052 = vsel %vm1311, %v3050, %v3051
      %v3053 = vrot.slane %v2899, 5
      %v3054 = vrot.slane %v3053, 4
      %v3055 = vrot.slane %v2177, 5
      %v3056 = vsel %vm1311, %v3054, %v3055
      %v3057 = vrot.slane %v3055, 4
      %v3058 = vrot.slane %v2178, 5
      %v3059 = vsel %vm1311, %v3057, %v3058
      %v3060 = vld [vmem:[%s1 + $0x140] sm:$0xf]
      %v3061 = vld [vmem:[%s1 + $0x144] sm:$0xf]
      %v3062 = vld [vmem:[%s1 + $0x148] sm:$0xf]
      %v3063 = vld [vmem:[%s1 + $0x14c] sm:$0xf]
      %v3064 = vld [vmem:[%s1 + $0x150] sm:$0xf]
      %v3065 = vld [vmem:[%s1 + $0x154] sm:$0xf]
      %v3066 = vld [vmem:[%s1 + $0x158] sm:$0xf]
      %v3067 = vld [vmem:[%s1 + $0x15c] sm:$0xf]
      %v3068 = vld [vmem:[%s1 + $0x160] sm:$0xf]
      %v3069 = vld [vmem:[%s1 + $0x164] sm:$0xf]
      %v3070 = vld [vmem:[%s1 + $0x168] sm:$0xf]
      %v3071 = vld [vmem:[%s1 + $0x16c] sm:$0xf]
      %v3072 = vld [vmem:[%s1 + $0x170] sm:$0xf]
      %v3073 = vld [vmem:[%s1 + $0x174] sm:$0xf]
      %v3074 = vld [vmem:[%s1 + $0x178] sm:$0xf]
      %v3075 = vld [vmem:[%s1 + $0x17c] sm:$0xf]
      %v3076 = vunpack.c.l.b16 %v2951
      %v3077 = vunpack.c.l.b16 %v2954
      %v3078 = vunpack.c.l.b16 %v2958
      %v3079 = vunpack.c.l.b16 %v2961
      %v3080 = vunpack.c.l.b16 %v2965
      %v3081 = vunpack.c.l.b16 %v2968
      %v3082 = vunpack.c.l.b16 %v2972
      %v3083 = vunpack.c.l.b16 %v2975
      %v3084 = vunpack.c.l.b16 %v2979
      %v3085 = vunpack.c.l.b16 %v2982
      %v3086 = vunpack.c.l.b16 %v2986
      %v3087 = vunpack.c.l.b16 %v2989
      %v3088 = vunpack.c.l.b16 %v2993
      %v3089 = vunpack.c.l.b16 %v2996
      %v3090 = vunpack.c.l.b16 %v3000
      %v3091 = vunpack.c.l.b16 %v3003
      %v3092 = vunpack.c.l.b16 %v3007
      %v3093 = vunpack.c.l.b16 %v3010
      %v3094 = vunpack.c.l.b16 %v3014
      %v3095 = vunpack.c.l.b16 %v3017
      %v3096 = vunpack.c.l.b16 %v3021
      %v3097 = vunpack.c.l.b16 %v3024
      %v3098 = vunpack.c.l.b16 %v3028
      %v3099 = vunpack.c.l.b16 %v3031
      %v3100 = vunpack.c.l.b16 %v3035
      %v3101 = vunpack.c.l.b16 %v3038
      %v3102 = vunpack.c.l.b16 %v3042
      %v3103 = vunpack.c.l.b16 %v3045
      %v3104 = vunpack.c.l.b16 %v3049
      %v3105 = vunpack.c.l.b16 %v3052
      %v3106 = vunpack.c.l.b16 %v3056
      %v3107 = vunpack.c.l.b16 %v3059
      %v3108 = vpack.c.b16 %v3077, %v3076
      %v3109 = vpack.c.b16 %v3079, %v3078
      %v3110 = vpack.c.b16 %v3081, %v3080
      %v3111 = vpack.c.b16 %v3083, %v3082
      %v3112 = vpack.c.b16 %v3085, %v3084
      %v3113 = vpack.c.b16 %v3087, %v3086
      %v3114 = vpack.c.b16 %v3089, %v3088
      %v3115 = vpack.c.b16 %v3091, %v3090
      %v3116 = vpack.c.b16 %v3093, %v3092
      %v3117 = vpack.c.b16 %v3095, %v3094
      %v3118 = vpack.c.b16 %v3097, %v3096
      %v3119 = vpack.c.b16 %v3099, %v3098
      %v3120 = vpack.c.b16 %v3101, %v3100
      %v3121 = vpack.c.b16 %v3103, %v3102
      %v3122 = vpack.c.b16 %v3105, %v3104
      %v3123 = vpack.c.b16 %v3107, %v3106
      %v3156 = vunpack.c.l.b16 %v3060
      %v3157 = vunpack.c.l.b16 %v3061
      %v3158 = vunpack.c.l.b16 %v3062
      %v3159 = vunpack.c.l.b16 %v3063
      %v3160 = vunpack.c.l.b16 %v3064
      %v3161 = vunpack.c.l.b16 %v3065
      %v3162 = vunpack.c.l.b16 %v3066
      %v3163 = vunpack.c.l.b16 %v3067
      %v3164 = vunpack.c.l.b16 %v3068
      %v3165 = vunpack.c.l.b16 %v3069
      %v3166 = vunpack.c.l.b16 %v3070
      %v3167 = vunpack.c.l.b16 %v3071
      %v3168 = vunpack.c.l.b16 %v3072
      %v3169 = vunpack.c.l.b16 %v3073
      %v3170 = vunpack.c.l.b16 %v3074
      %v3171 = vunpack.c.l.b16 %v3075
      %v3172 = vpack.c.b16 %v3157, %v3156
      %v3173 = vpack.c.b16 %v3159, %v3158
      %v3174 = vpack.c.b16 %v3161, %v3160
      %v3175 = vpack.c.b16 %v3163, %v3162
      %v3176 = vpack.c.b16 %v3165, %v3164
      %v3177 = vpack.c.b16 %v3167, %v3166
      %v3178 = vpack.c.b16 %v3169, %v3168
      %v3179 = vpack.c.b16 %v3171, %v3170
      %3188 = vmatprep.subr.bf16.mxu0 0
      %3189 = vmatpush1.bf16.msra.mxu0 %v3172
      %3190 = vmatprep.subr.bf16.mxu0 0
      %3191 = vmatpush1.bf16.msra.mxu0 %v3173
      %3192 = vmatprep.subr.bf16.mxu0 0
      %3193 = vmatpush1.bf16.msra.mxu0 %v3174
      %3194 = vmatprep.subr.bf16.mxu0 0
      %3195 = vmatpush1.bf16.msra.mxu0 %v3175
      %3196 = vmatprep.subr.bf16.mxu0 0
      %3197 = vmatpush1.bf16.msra.mxu0 %v3176
      %3198 = vmatprep.subr.bf16.mxu0 0
      %3199 = vmatpush1.bf16.msra.mxu0 %v3177
      %3200 = vmatprep.subr.bf16.mxu0 0
      %3201 = vmatpush1.bf16.msra.mxu0 %v3178
      %3202 = vmatprep.subr.bf16.mxu0 0
      %3203 = vmatpush1.bf16.msra.mxu0 %v3179
      %3204 = vmatprep.subr.bf16.mxu0 0
      %3205 = vmatpush1.bf16.msra.mxu0 0
      %3206 = vmatprep.subr.bf16.mxu0 0
      %3207 = vmatpush1.bf16.msra.mxu0 0
      %3208 = vmatprep.subr.bf16.mxu0 0
      %3209 = vmatpush1.bf16.msra.mxu0 0
      %3210 = vmatprep.subr.bf16.mxu0 0
      %3211 = vmatpush1.bf16.msra.mxu0 0
      %3212 = vmatprep.subr.bf16.mxu0 0
      %3213 = vmatpush1.bf16.msra.mxu0 0
      %3214 = vmatprep.subr.bf16.mxu0 0
      %3215 = vmatpush1.bf16.msra.mxu0 0
      %3216 = vmatprep.subr.bf16.mxu0 0
      %3217 = vmatpush1.bf16.msra.mxu0 0
      %3218 = vmatprep.subr.bf16.mxu0 0
      %3219 = vmatpush1.bf16.msra.mxu0 0
      %3220 = vmatprep.mubr.bf16.mxu0 0
      %3221 = vmatmul.mubr.bf16.gmra.mrb[0].mxu0 %v3108
      %v3222 = vpop.f32.mrb[0].mxu0
      %v3223 = vadd.f32 0.0, %v3222
      %v3224 = vpop.f32.mrb[0].mxu0
      %v3225 = vpop.f32.mrb[0].mxu0
      %v3226 = vadd.f32 0.0, %v3225
      %v3227 = vpop.f32.mrb[0].mxu0
      %3228 = vmatprep.mubr.bf16.mxu0 0
      %3229 = vmatmul.mubr.bf16.gmra.mrb[0].mxu0 %v3109
      %v3230 = vpop.f32.mrb[0].mxu0
      %v3231 = vadd.f32 0.0, %v3230
      %v3232 = vpop.f32.mrb[0].mxu0
      %v3233 = vpop.f32.mrb[0].mxu0
      %v3234 = vadd.f32 0.0, %v3233
      %v3235 = vpop.f32.mrb[0].mxu0
      %3236 = vmatprep.mubr.bf16.mxu0 0
      %3237 = vmatmul.mubr.bf16.gmra.mrb[0].mxu0 %v3110
      %v3238 = vpop.f32.mrb[0].mxu0
      %v3239 = vadd.f32 0.0, %v3238
      %v3240 = vpop.f32.mrb[0].mxu0
      %v3241 = vpop.f32.mrb[0].mxu0
      %v3242 = vadd.f32 0.0, %v3241
      %v3243 = vpop.f32.mrb[0].mxu0
      %3244 = vmatprep.mubr.bf16.mxu0 0
      %3245 = vmatmul.mubr.bf16.gmra.mrb[0].mxu0 %v3111
      %v3246 = vpop.f32.mrb[0].mxu0
      %v3247 = vadd.f32 0.0, %v3246
      %v3248 = vpop.f32.mrb[0].mxu0
      %v3249 = vpop.f32.mrb[0].mxu0
      %v3250 = vadd.f32 0.0, %v3249
      %v3251 = vpop.f32.mrb[0].mxu0
      %3252 = vmatprep.mubr.bf16.mxu0 0
      %3253 = vmatmul.mubr.bf16.gmra.mrb[0].mxu0 %v3112
      %v3254 = vpop.f32.mrb[0].mxu0
      %v3255 = vadd.f32 0.0, %v3254
      %v3256 = vpop.f32.mrb[0].mxu0
      %v3257 = vpop.f32.mrb[0].mxu0
      %v3258 = vadd.f32 0.0, %v3257
      %v3259 = vpop.f32.mrb[0].mxu0
      %3260 = vmatprep.mubr.bf16.mxu0 0
      %3261 = vmatmul.mubr.bf16.gmra.mrb[0].mxu0 %v3113
      %v3262 = vpop.f32.mrb[0].mxu0
      %v3263 = vadd.f32 0.0, %v3262
      %v3264 = vpop.f32.mrb[0].mxu0
      %v3265 = vpop.f32.mrb[0].mxu0
      %v3266 = vadd.f32 0.0, %v3265
      %v3267 = vpop.f32.mrb[0].mxu0
      %3268 = vmatprep.mubr.bf16.mxu0 0
      %3269 = vmatmul.mubr.bf16.gmra.mrb[0].mxu0 %v3114
      %v3270 = vpop.f32.mrb[0].mxu0
      %v3271 = vadd.f32 0.0, %v3270
      %v3272 = vpop.f32.mrb[0].mxu0
      %v3273 = vpop.f32.mrb[0].mxu0
      %v3274 = vadd.f32 0.0, %v3273
      %v3275 = vpop.f32.mrb[0].mxu0
      %3276 = vmatprep.mubr.bf16.mxu0 0
      %3277 = vmatmul.mubr.bf16.gmra.mrb[0].mxu0 %v3115
      %v3278 = vpop.f32.mrb[0].mxu0
      %v3279 = vadd.f32 0.0, %v3278
      %v3280 = vpop.f32.mrb[0].mxu0
      %v3281 = vpop.f32.mrb[0].mxu0
      %v3282 = vadd.f32 0.0, %v3281
      %v3283 = vpop.f32.mrb[0].mxu0
      %3284 = vmatprep.mubr.bf16.mxu0 0
      %3285 = vmatmul.mubr.bf16.gmra.mrb[0].mxu0 %v3116
      %v3286 = vpop.f32.mrb[0].mxu0
      %v3287 = vadd.f32 0.0, %v3286
      %v3288 = vpop.f32.mrb[0].mxu0
      %v3289 = vpop.f32.mrb[0].mxu0
      %v3290 = vadd.f32 0.0, %v3289
      %v3291 = vpop.f32.mrb[0].mxu0
      %3292 = vmatprep.mubr.bf16.mxu0 0
      %3293 = vmatmul.mubr.bf16.gmra.mrb[0].mxu0 %v3117
      %v3294 = vpop.f32.mrb[0].mxu0
      %v3295 = vadd.f32 0.0, %v3294
      %v3296 = vpop.f32.mrb[0].mxu0
      %v3297 = vpop.f32.mrb[0].mxu0
      %v3298 = vadd.f32 0.0, %v3297
      %v3299 = vpop.f32.mrb[0].mxu0
      %3300 = vmatprep.mubr.bf16.mxu0 0
      %3301 = vmatmul.mubr.bf16.gmra.mrb[0].mxu0 %v3118
      %v3302 = vpop.f32.mrb[0].mxu0
      %v3303 = vadd.f32 0.0, %v3302
      %v3304 = vpop.f32.mrb[0].mxu0
      %v3305 = vpop.f32.mrb[0].mxu0
      %v3306 = vadd.f32 0.0, %v3305
      %v3307 = vpop.f32.mrb[0].mxu0
      %3308 = vmatprep.mubr.bf16.mxu0 0
      %3309 = vmatmul.mubr.bf16.gmra.mrb[0].mxu0 %v3119
      %v3310 = vpop.f32.mrb[0].mxu0
      %v3311 = vadd.f32 0.0, %v3310
      %v3312 = vpop.f32.mrb[0].mxu0
      %v3313 = vpop.f32.mrb[0].mxu0
      %v3314 = vadd.f32 0.0, %v3313
      %v3315 = vpop.f32.mrb[0].mxu0
      %3316 = vmatprep.mubr.bf16.mxu0 0
      %3317 = vmatmul.mubr.bf16.gmra.mrb[0].mxu0 %v3120
      %v3318 = vpop.f32.mrb[0].mxu0
      %v3319 = vadd.f32 0.0, %v3318
      %v3320 = vpop.f32.mrb[0].mxu0
      %v3321 = vpop.f32.mrb[0].mxu0
      %v3322 = vadd.f32 0.0, %v3321
      %v3323 = vpop.f32.mrb[0].mxu0
      %3324 = vmatprep.mubr.bf16.mxu0 0
      %3325 = vmatmul.mubr.bf16.gmra.mrb[0].mxu0 %v3121
      %v3326 = vpop.f32.mrb[0].mxu0
      %v3327 = vadd.f32 0.0, %v3326
      %v3328 = vpop.f32.mrb[0].mxu0
      %v3329 = vpop.f32.mrb[0].mxu0
      %v3330 = vadd.f32 0.0, %v3329
      %v3331 = vpop.f32.mrb[0].mxu0
      %3332 = vmatprep.mubr.bf16.mxu0 0
      %3333 = vmatmul.mubr.bf16.gmra.mrb[0].mxu0 %v3122
      %v3334 = vpop.f32.mrb[0].mxu0
      %v3335 = vadd.f32 0.0, %v3334
      %v3336 = vpop.f32.mrb[0].mxu0
      %v3337 = vpop.f32.mrb[0].mxu0
      %v3338 = vadd.f32 0.0, %v3337
      %v3339 = vpop.f32.mrb[0].mxu0
      %3340 = vmatprep.mubr.bf16.mxu0 0
      %3341 = vmatmul.mubr.bf16.gmra.mrb[0].mxu0 %v3123
      %v3342 = vpop.f32.mrb[0].mxu0
      %v3343 = vadd.f32 0.0, %v3342
      %v3344 = vpop.f32.mrb[0].mxu0
      %v3345 = vpop.f32.mrb[0].mxu0
      %v3346 = vadd.f32 0.0, %v3345
      %v3347 = vpop.f32.mrb[0].mxu0
      %3348 = vdwg.mxu0
      %v3349 = vadd.f32 %v2852, %v3223
      %v3350 = vadd.f32 %v2853, %v3226
      %v3351 = vadd.f32 %v2854, %v3231
      %v3352 = vadd.f32 %v2855, %v3234
      %v3353 = vadd.f32 %v2856, %v3239
      %v3354 = vadd.f32 %v2857, %v3242
      %v3355 = vadd.f32 %v2858, %v3247
      %v3356 = vadd.f32 %v2859, %v3250
      %v3357 = vadd.f32 %v2860, %v3255
      %v3358 = vadd.f32 %v2861, %v3258
      %v3359 = vadd.f32 %v2862, %v3263
      %v3360 = vadd.f32 %v2863, %v3266
      %v3361 = vadd.f32 %v2864, %v3271
      %v3362 = vadd.f32 %v2865, %v3274
      %v3363 = vadd.f32 %v2866, %v3279
      %v3364 = vadd.f32 %v2867, %v3282
      %v3365 = vadd.f32 %v2868, %v3287
      %v3366 = vadd.f32 %v2869, %v3290
      %v3367 = vadd.f32 %v2870, %v3295
      %v3368 = vadd.f32 %v2871, %v3298
      %v3369 = vadd.f32 %v2872, %v3303
      %v3370 = vadd.f32 %v2873, %v3306
      %v3371 = vadd.f32 %v2874, %v3311
      %v3372 = vadd.f32 %v2875, %v3314
      %v3373 = vadd.f32 %v2876, %v3319
      %v3374 = vadd.f32 %v2877, %v3322
      %v3375 = vadd.f32 %v2878, %v3327
      %v3376 = vadd.f32 %v2879, %v3330
      %v3377 = vadd.f32 %v2880, %v3335
      %v3378 = vadd.f32 %v2881, %v3338
      %v3379 = vadd.f32 %v2882, %v3343
      %v3380 = vadd.f32 %v2883, %v3346
      %s3381 = scalar_lea.vmem %s203, 24
      %v3382 = vld [vmem:[%s3381] sm:$0xf]
      %v3383 = vld [vmem:[%s3381 + $0x4] sm:$0xf]
      %v3384 = vld [vmem:[%s3381 + $0xc] sm:$0xf]
      %v3385 = vld [vmem:[%s3381 + $0x10] sm:$0xf]
      %v3386 = vld [vmem:[%s3381 + $0x18] sm:$0xf]
      %v3387 = vld [vmem:[%s3381 + $0x1c] sm:$0xf]
      %v3388 = vld [vmem:[%s3381 + $0x24] sm:$0xf]
      %v3389 = vld [vmem:[%s3381 + $0x28] sm:$0xf]
      %v3390 = vld [vmem:[%s3381 + $0x30] sm:$0xf]
      %v3391 = vld [vmem:[%s3381 + $0x34] sm:$0xf]
      %v3392 = vld [vmem:[%s3381 + $0x3c] sm:$0xf]
      %v3393 = vld [vmem:[%s3381 + $0x40] sm:$0xf]
      %v3394 = vld [vmem:[%s3381 + $0x48] sm:$0xf]
      %v3395 = vld [vmem:[%s3381 + $0x4c] sm:$0xf]
      %v3396 = vld [vmem:[%s3381 + $0x54] sm:$0xf]
      %v3397 = vld [vmem:[%s3381 + $0x58] sm:$0xf]
      %v3398 = vld [vmem:[%s3381 + $0x60] sm:$0xf]
      %v3399 = vld [vmem:[%s3381 + $0x64] sm:$0xf]
      %v3400 = vld [vmem:[%s3381 + $0x6c] sm:$0xf]
      %v3401 = vld [vmem:[%s3381 + $0x70] sm:$0xf]
      %v3402 = vld [vmem:[%s3381 + $0x78] sm:$0xf]
      %v3403 = vld [vmem:[%s3381 + $0x7c] sm:$0xf]
      %v3404 = vld [vmem:[%s3381 + $0x84] sm:$0xf]
      %v3405 = vld [vmem:[%s3381 + $0x88] sm:$0xf]
      %v3406 = vld [vmem:[%s3381 + $0x90] sm:$0xf]
      %v3407 = vld [vmem:[%s3381 + $0x94] sm:$0xf]
      %v3408 = vld [vmem:[%s3381 + $0x9c] sm:$0xf]
      %v3409 = vld [vmem:[%s3381 + $0xa0] sm:$0xf]
      %v3410 = vld [vmem:[%s3381 + $0xa8] sm:$0xf]
      %v3411 = vld [vmem:[%s3381 + $0xac] sm:$0xf]
      %v3412 = vld [vmem:[%s3381 + $0xb4] sm:$0xf]
      %v3413 = vld [vmem:[%s3381 + $0xb8] sm:$0xf]
      %v3414 = vld [vmem:[%s1 + $0x180] sm:$0xf]
      %v3415 = vld [vmem:[%s1 + $0x184] sm:$0xf]
      %v3416 = vld [vmem:[%s1 + $0x188] sm:$0xf]
      %v3417 = vld [vmem:[%s1 + $0x18c] sm:$0xf]
      %v3418 = vld [vmem:[%s1 + $0x190] sm:$0xf]
      %v3419 = vld [vmem:[%s1 + $0x194] sm:$0xf]
      %v3420 = vld [vmem:[%s1 + $0x198] sm:$0xf]
      %v3421 = vld [vmem:[%s1 + $0x19c] sm:$0xf]
      %v3422 = vld [vmem:[%s1 + $0x1a0] sm:$0xf]
      %v3423 = vld [vmem:[%s1 + $0x1a4] sm:$0xf]
      %v3424 = vld [vmem:[%s1 + $0x1a8] sm:$0xf]
      %v3425 = vld [vmem:[%s1 + $0x1ac] sm:$0xf]
      %v3426 = vld [vmem:[%s1 + $0x1b0] sm:$0xf]
      %v3427 = vld [vmem:[%s1 + $0x1b4] sm:$0xf]
      %v3428 = vld [vmem:[%s1 + $0x1b8] sm:$0xf]
      %v3429 = vld [vmem:[%s1 + $0x1bc] sm:$0xf]
      %v3462 = vunpack.c.l.b16 %v3382
      %v3463 = vunpack.c.l.b16 %v3383
      %v3464 = vunpack.c.l.b16 %v3384
      %v3465 = vunpack.c.l.b16 %v3385
      %v3466 = vunpack.c.l.b16 %v3386
      %v3467 = vunpack.c.l.b16 %v3387
      %v3468 = vunpack.c.l.b16 %v3388
      %v3469 = vunpack.c.l.b16 %v3389
      %v3470 = vunpack.c.l.b16 %v3390
      %v3471 = vunpack.c.l.b16 %v3391
      %v3472 = vunpack.c.l.b16 %v3392
      %v3473 = vunpack.c.l.b16 %v3393
      %v3474 = vunpack.c.l.b16 %v3394
      %v3475 = vunpack.c.l.b16 %v3395
      %v3476 = vunpack.c.l.b16 %v3396
      %v3477 = vunpack.c.l.b16 %v3397
      %v3478 = vunpack.c.l.b16 %v3398
      %v3479 = vunpack.c.l.b16 %v3399
      %v3480 = vunpack.c.l.b16 %v3400
      %v3481 = vunpack.c.l.b16 %v3401
      %v3482 = vunpack.c.l.b16 %v3402
      %v3483 = vunpack.c.l.b16 %v3403
      %v3484 = vunpack.c.l.b16 %v3404
      %v3485 = vunpack.c.l.b16 %v3405
      %v3486 = vunpack.c.l.b16 %v3406
      %v3487 = vunpack.c.l.b16 %v3407
      %v3488 = vunpack.c.l.b16 %v3408
      %v3489 = vunpack.c.l.b16 %v3409
      %v3490 = vunpack.c.l.b16 %v3410
      %v3491 = vunpack.c.l.b16 %v3411
      %v3492 = vunpack.c.l.b16 %v3412
      %v3493 = vunpack.c.l.b16 %v3413
      %v3494 = vpack.c.b16 %v3463, %v3462
      %v3495 = vpack.c.b16 %v3465, %v3464
      %v3496 = vpack.c.b16 %v3467, %v3466
      %v3497 = vpack.c.b16 %v3469, %v3468
      %v3498 = vpack.c.b16 %v3471, %v3470
      %v3499 = vpack.c.b16 %v3473, %v3472
      %v3500 = vpack.c.b16 %v3475, %v3474
      %v3501 = vpack.c.b16 %v3477, %v3476
      %v3502 = vpack.c.b16 %v3479, %v3478
      %v3503 = vpack.c.b16 %v3481, %v3480
      %v3504 = vpack.c.b16 %v3483, %v3482
      %v3505 = vpack.c.b16 %v3485, %v3484
      %v3506 = vpack.c.b16 %v3487, %v3486
      %v3507 = vpack.c.b16 %v3489, %v3488
      %v3508 = vpack.c.b16 %v3491, %v3490
      %v3509 = vpack.c.b16 %v3493, %v3492
      %v3542 = vunpack.c.l.b16 %v3414
      %v3543 = vunpack.c.l.b16 %v3415
      %v3544 = vunpack.c.l.b16 %v3416
      %v3545 = vunpack.c.l.b16 %v3417
      %v3546 = vunpack.c.l.b16 %v3418
      %v3547 = vunpack.c.l.b16 %v3419
      %v3548 = vunpack.c.l.b16 %v3420
      %v3549 = vunpack.c.l.b16 %v3421
      %v3550 = vunpack.c.l.b16 %v3422
      %v3551 = vunpack.c.l.b16 %v3423
      %v3552 = vunpack.c.l.b16 %v3424
      %v3553 = vunpack.c.l.b16 %v3425
      %v3554 = vunpack.c.l.b16 %v3426
      %v3555 = vunpack.c.l.b16 %v3427
      %v3556 = vunpack.c.l.b16 %v3428
      %v3557 = vunpack.c.l.b16 %v3429
      %v3558 = vpack.c.b16 %v3543, %v3542
      %v3559 = vpack.c.b16 %v3545, %v3544
      %v3560 = vpack.c.b16 %v3547, %v3546
      %v3561 = vpack.c.b16 %v3549, %v3548
      %v3562 = vpack.c.b16 %v3551, %v3550
      %v3563 = vpack.c.b16 %v3553, %v3552
      %v3564 = vpack.c.b16 %v3555, %v3554
      %v3565 = vpack.c.b16 %v3557, %v3556
      %3574 = vmatprep.subr.bf16.mxu0 0
      %3575 = vmatpush1.bf16.msra.mxu0 %v3558
      %3576 = vmatprep.subr.bf16.mxu0 0
      %3577 = vmatpush1.bf16.msra.mxu0 %v3559
      %3578 = vmatprep.subr.bf16.mxu0 0
      %3579 = vmatpush1.bf16.msra.mxu0 %v3560
      %3580 = vmatprep.subr.bf16.mxu0 0
      %3581 = vmatpush1.bf16.msra.mxu0 %v3561
      %3582 = vmatprep.subr.bf16.mxu0 0
      %3583 = vmatpush1.bf16.msra.mxu0 %v3562
      %3584 = vmatprep.subr.bf16.mxu0 0
      %3585 = vmatpush1.bf16.msra.mxu0 %v3563
      %3586 = vmatprep.subr.bf16.mxu0 0
      %3587 = vmatpush1.bf16.msra.mxu0 %v3564
      %3588 = vmatprep.subr.bf16.mxu0 0
      %3589 = vmatpush1.bf16.msra.mxu0 %v3565
      %3590 = vmatprep.subr.bf16.mxu0 0
      %3591 = vmatpush1.bf16.msra.mxu0 0
      %3592 = vmatprep.subr.bf16.mxu0 0
      %3593 = vmatpush1.bf16.msra.mxu0 0
      %3594 = vmatprep.subr.bf16.mxu0 0
      %3595 = vmatpush1.bf16.msra.mxu0 0
      %3596 = vmatprep.subr.bf16.mxu0 0
      %3597 = vmatpush1.bf16.msra.mxu0 0
      %3598 = vmatprep.subr.bf16.mxu0 0
      %3599 = vmatpush1.bf16.msra.mxu0 0
      %3600 = vmatprep.subr.bf16.mxu0 0
      %3601 = vmatpush1.bf16.msra.mxu0 0
      %3602 = vmatprep.subr.bf16.mxu0 0
      %3603 = vmatpush1.bf16.msra.mxu0 0
      %3604 = vmatprep.subr.bf16.mxu0 0
      %3605 = vmatpush1.bf16.msra.mxu0 0
      %3606 = vmatprep.mubr.bf16.mxu0 0
      %3607 = vmatmul.mubr.bf16.gmra.mrb[0].mxu0 %v3494
      %v3608 = vpop.f32.mrb[0].mxu0
      %v3609 = vadd.f32 0.0, %v3608
      %v3610 = vpop.f32.mrb[0].mxu0
      %v3611 = vpop.f32.mrb[0].mxu0
      %v3612 = vadd.f32 0.0, %v3611
      %v3613 = vpop.f32.mrb[0].mxu0
      %3614 = vmatprep.mubr.bf16.mxu0 0
      %3615 = vmatmul.mubr.bf16.gmra.mrb[0].mxu0 %v3495
      %v3616 = vpop.f32.mrb[0].mxu0
      %v3617 = vadd.f32 0.0, %v3616
      %v3618 = vpop.f32.mrb[0].mxu0
      %v3619 = vpop.f32.mrb[0].mxu0
      %v3620 = vadd.f32 0.0, %v3619
      %v3621 = vpop.f32.mrb[0].mxu0
      %3622 = vmatprep.mubr.bf16.mxu0 0
      %3623 = vmatmul.mubr.bf16.gmra.mrb[0].mxu0 %v3496
      %v3624 = vpop.f32.mrb[0].mxu0
      %v3625 = vadd.f32 0.0, %v3624
      %v3626 = vpop.f32.mrb[0].mxu0
      %v3627 = vpop.f32.mrb[0].mxu0
      %v3628 = vadd.f32 0.0, %v3627
      %v3629 = vpop.f32.mrb[0].mxu0
      %3630 = vmatprep.mubr.bf16.mxu0 0
      %3631 = vmatmul.mubr.bf16.gmra.mrb[0].mxu0 %v3497
      %v3632 = vpop.f32.mrb[0].mxu0
      %v3633 = vadd.f32 0.0, %v3632
      %v3634 = vpop.f32.mrb[0].mxu0
      %v3635 = vpop.f32.mrb[0].mxu0
      %v3636 = vadd.f32 0.0, %v3635
      %v3637 = vpop.f32.mrb[0].mxu0
      %3638 = vmatprep.mubr.bf16.mxu0 0
      %3639 = vmatmul.mubr.bf16.gmra.mrb[0].mxu0 %v3498
      %v3640 = vpop.f32.mrb[0].mxu0
      %v3641 = vadd.f32 0.0, %v3640
      %v3642 = vpop.f32.mrb[0].mxu0
      %v3643 = vpop.f32.mrb[0].mxu0
      %v3644 = vadd.f32 0.0, %v3643
      %v3645 = vpop.f32.mrb[0].mxu0
      %3646 = vmatprep.mubr.bf16.mxu0 0
      %3647 = vmatmul.mubr.bf16.gmra.mrb[0].mxu0 %v3499
      %v3648 = vpop.f32.mrb[0].mxu0
      %v3649 = vadd.f32 0.0, %v3648
      %v3650 = vpop.f32.mrb[0].mxu0
      %v3651 = vpop.f32.mrb[0].mxu0
      %v3652 = vadd.f32 0.0, %v3651
      %v3653 = vpop.f32.mrb[0].mxu0
      %3654 = vmatprep.mubr.bf16.mxu0 0
      %3655 = vmatmul.mubr.bf16.gmra.mrb[0].mxu0 %v3500
      %v3656 = vpop.f32.mrb[0].mxu0
      %v3657 = vadd.f32 0.0, %v3656
      %v3658 = vpop.f32.mrb[0].mxu0
      %v3659 = vpop.f32.mrb[0].mxu0
      %v3660 = vadd.f32 0.0, %v3659
      %v3661 = vpop.f32.mrb[0].mxu0
      %3662 = vmatprep.mubr.bf16.mxu0 0
      %3663 = vmatmul.mubr.bf16.gmra.mrb[0].mxu0 %v3501
      %v3664 = vpop.f32.mrb[0].mxu0
      %v3665 = vadd.f32 0.0, %v3664
      %v3666 = vpop.f32.mrb[0].mxu0
      %v3667 = vpop.f32.mrb[0].mxu0
      %v3668 = vadd.f32 0.0, %v3667
      %v3669 = vpop.f32.mrb[0].mxu0
      %3670 = vmatprep.mubr.bf16.mxu0 0
      %3671 = vmatmul.mubr.bf16.gmra.mrb[0].mxu0 %v3502
      %v3672 = vpop.f32.mrb[0].mxu0
      %v3673 = vadd.f32 0.0, %v3672
      %v3674 = vpop.f32.mrb[0].mxu0
      %v3675 = vpop.f32.mrb[0].mxu0
      %v3676 = vadd.f32 0.0, %v3675
      %v3677 = vpop.f32.mrb[0].mxu0
      %3678 = vmatprep.mubr.bf16.mxu0 0
      %3679 = vmatmul.mubr.bf16.gmra.mrb[0].mxu0 %v3503
      %v3680 = vpop.f32.mrb[0].mxu0
      %v3681 = vadd.f32 0.0, %v3680
      %v3682 = vpop.f32.mrb[0].mxu0
      %v3683 = vpop.f32.mrb[0].mxu0
      %v3684 = vadd.f32 0.0, %v3683
      %v3685 = vpop.f32.mrb[0].mxu0
      %3686 = vmatprep.mubr.bf16.mxu0 0
      %3687 = vmatmul.mubr.bf16.gmra.mrb[0].mxu0 %v3504
      %v3688 = vpop.f32.mrb[0].mxu0
      %v3689 = vadd.f32 0.0, %v3688
      %v3690 = vpop.f32.mrb[0].mxu0
      %v3691 = vpop.f32.mrb[0].mxu0
      %v3692 = vadd.f32 0.0, %v3691
      %v3693 = vpop.f32.mrb[0].mxu0
      %3694 = vmatprep.mubr.bf16.mxu0 0
      %3695 = vmatmul.mubr.bf16.gmra.mrb[0].mxu0 %v3505
      %v3696 = vpop.f32.mrb[0].mxu0
      %v3697 = vadd.f32 0.0, %v3696
      %v3698 = vpop.f32.mrb[0].mxu0
      %v3699 = vpop.f32.mrb[0].mxu0
      %v3700 = vadd.f32 0.0, %v3699
      %v3701 = vpop.f32.mrb[0].mxu0
      %3702 = vmatprep.mubr.bf16.mxu0 0
      %3703 = vmatmul.mubr.bf16.gmra.mrb[0].mxu0 %v3506
      %v3704 = vpop.f32.mrb[0].mxu0
      %v3705 = vadd.f32 0.0, %v3704
      %v3706 = vpop.f32.mrb[0].mxu0
      %v3707 = vpop.f32.mrb[0].mxu0
      %v3708 = vadd.f32 0.0, %v3707
      %v3709 = vpop.f32.mrb[0].mxu0
      %3710 = vmatprep.mubr.bf16.mxu0 0
      %3711 = vmatmul.mubr.bf16.gmra.mrb[0].mxu0 %v3507
      %v3712 = vpop.f32.mrb[0].mxu0
      %v3713 = vadd.f32 0.0, %v3712
      %v3714 = vpop.f32.mrb[0].mxu0
      %v3715 = vpop.f32.mrb[0].mxu0
      %v3716 = vadd.f32 0.0, %v3715
      %v3717 = vpop.f32.mrb[0].mxu0
      %3718 = vmatprep.mubr.bf16.mxu0 0
      %3719 = vmatmul.mubr.bf16.gmra.mrb[0].mxu0 %v3508
      %v3720 = vpop.f32.mrb[0].mxu0
      %v3721 = vadd.f32 0.0, %v3720
      %v3722 = vpop.f32.mrb[0].mxu0
      %v3723 = vpop.f32.mrb[0].mxu0
      %v3724 = vadd.f32 0.0, %v3723
      %v3725 = vpop.f32.mrb[0].mxu0
      %3726 = vmatprep.mubr.bf16.mxu0 0
      %3727 = vmatmul.mubr.bf16.gmra.mrb[0].mxu0 %v3509
      %v3728 = vpop.f32.mrb[0].mxu0
      %v3729 = vadd.f32 0.0, %v3728
      %v3730 = vpop.f32.mrb[0].mxu0
      %v3731 = vpop.f32.mrb[0].mxu0
      %v3732 = vadd.f32 0.0, %v3731
      %v3733 = vpop.f32.mrb[0].mxu0
      %3734 = vdwg.mxu0
      %v3735 = vadd.f32 %v3349, %v3609
      %v3736 = vadd.f32 %v3350, %v3612
      %v3737 = vadd.f32 %v3351, %v3617
      %v3738 = vadd.f32 %v3352, %v3620
      %v3739 = vadd.f32 %v3353, %v3625
      %v3740 = vadd.f32 %v3354, %v3628
      %v3741 = vadd.f32 %v3355, %v3633
      %v3742 = vadd.f32 %v3356, %v3636
      %v3743 = vadd.f32 %v3357, %v3641
      %v3744 = vadd.f32 %v3358, %v3644
      %v3745 = vadd.f32 %v3359, %v3649
      %v3746 = vadd.f32 %v3360, %v3652
      %v3747 = vadd.f32 %v3361, %v3657
      %v3748 = vadd.f32 %v3362, %v3660
      %v3749 = vadd.f32 %v3363, %v3665
      %v3750 = vadd.f32 %v3364, %v3668
      %v3751 = vadd.f32 %v3365, %v3673
      %v3752 = vadd.f32 %v3366, %v3676
      %v3753 = vadd.f32 %v3367, %v3681
      %v3754 = vadd.f32 %v3368, %v3684
      %v3755 = vadd.f32 %v3369, %v3689
      %v3756 = vadd.f32 %v3370, %v3692
      %v3757 = vadd.f32 %v3371, %v3697
      %v3758 = vadd.f32 %v3372, %v3700
      %v3759 = vadd.f32 %v3373, %v3705
      %v3760 = vadd.f32 %v3374, %v3708
      %v3761 = vadd.f32 %v3375, %v3713
      %v3762 = vadd.f32 %v3376, %v3716
      %v3763 = vadd.f32 %v3377, %v3721
      %v3764 = vadd.f32 %v3378, %v3724
      %v3765 = vadd.f32 %v3379, %v3729
      %v3766 = vadd.f32 %v3380, %v3732
      %v3767 = vld [vmem:[%s3381] sm:$0xf]
      %v3768 = vld [vmem:[%s3381 + $0x4] sm:$0xf]
      %v3769 = vld [vmem:[%s3381 + $0x8] sm:$0x1]
      %v3770 = vld [vmem:[%s3381 + $0xc] sm:$0xf]
      %v3771 = vld [vmem:[%s3381 + $0x10] sm:$0xf]
      %v3772 = vld [vmem:[%s3381 + $0x14] sm:$0x1]
      %v3773 = vld [vmem:[%s3381 + $0x18] sm:$0xf]
      %v3774 = vld [vmem:[%s3381 + $0x1c] sm:$0xf]
      %v3775 = vld [vmem:[%s3381 + $0x20] sm:$0x1]
      %v3776 = vld [vmem:[%s3381 + $0x24] sm:$0xf]
      %v3777 = vld [vmem:[%s3381 + $0x28] sm:$0xf]
      %v3778 = vld [vmem:[%s3381 + $0x2c] sm:$0x1]
      %v3779 = vld [vmem:[%s3381 + $0x30] sm:$0xf]
      %v3780 = vld [vmem:[%s3381 + $0x34] sm:$0xf]
      %v3781 = vld [vmem:[%s3381 + $0x38] sm:$0x1]
      %v3782 = vld [vmem:[%s3381 + $0x3c] sm:$0xf]
      %v3783 = vld [vmem:[%s3381 + $0x40] sm:$0xf]
      %v3784 = vld [vmem:[%s3381 + $0x44] sm:$0x1]
      %v3785 = vld [vmem:[%s3381 + $0x48] sm:$0xf]
      %v3786 = vld [vmem:[%s3381 + $0x4c] sm:$0xf]
      %v3787 = vld [vmem:[%s3381 + $0x50] sm:$0x1]
      %v3788 = vld [vmem:[%s3381 + $0x54] sm:$0xf]
      %v3789 = vld [vmem:[%s3381 + $0x58] sm:$0xf]
      %v3790 = vld [vmem:[%s3381 + $0x5c] sm:$0x1]
      %v3791 = vld [vmem:[%s3381 + $0x60] sm:$0xf]
      %v3792 = vld [vmem:[%s3381 + $0x64] sm:$0xf]
      %v3793 = vld [vmem:[%s3381 + $0x68] sm:$0x1]
      %v3794 = vld [vmem:[%s3381 + $0x6c] sm:$0xf]
      %v3795 = vld [vmem:[%s3381 + $0x70] sm:$0xf]
      %v3796 = vld [vmem:[%s3381 + $0x74] sm:$0x1]
      %v3797 = vld [vmem:[%s3381 + $0x78] sm:$0xf]
      %v3798 = vld [vmem:[%s3381 + $0x7c] sm:$0xf]
      %v3799 = vld [vmem:[%s3381 + $0x80] sm:$0x1]
      %v3800 = vld [vmem:[%s3381 + $0x84] sm:$0xf]
      %v3801 = vld [vmem:[%s3381 + $0x88] sm:$0xf]
      %v3802 = vld [vmem:[%s3381 + $0x8c] sm:$0x1]
      %v3803 = vld [vmem:[%s3381 + $0x90] sm:$0xf]
      %v3804 = vld [vmem:[%s3381 + $0x94] sm:$0xf]
      %v3805 = vld [vmem:[%s3381 + $0x98] sm:$0x1]
      %v3806 = vld [vmem:[%s3381 + $0x9c] sm:$0xf]
      %v3807 = vld [vmem:[%s3381 + $0xa0] sm:$0xf]
      %v3808 = vld [vmem:[%s3381 + $0xa4] sm:$0x1]
      %v3809 = vld [vmem:[%s3381 + $0xa8] sm:$0xf]
      %v3810 = vld [vmem:[%s3381 + $0xac] sm:$0xf]
      %v3811 = vld [vmem:[%s3381 + $0xb0] sm:$0x1]
      %v3812 = vld [vmem:[%s3381 + $0xb4] sm:$0xf]
      %v3813 = vld [vmem:[%s3381 + $0xb8] sm:$0xf]
      %v3814 = vld [vmem:[%s3381 + $0xbc] sm:$0x1]
      %v3816 = vshrl.u32 %v3767, 16
      %v3818 = vrot.slane %v3816, 4
      %v3819 = vshll.u32 %v3767, 16
      %v3821 = vrot.slane %v3819, 5
      %v3822 = vor.u32 %v3818, %v3821
      %v3823 = vrot.slane %v3822, 4
      %v3825 = vshll.u32 %v3768, 16
      %v3827 = vrot.slane %v3825, 5
      %v3828 = vsel %vm282, %v3823, %v3827
      %v3829 = vshrl.u32 %v3768, 16
      %v3831 = vrot.slane %v3829, 4
      %v3832 = vor.u32 %v3831, %v3827
      %v3833 = vrot.slane %v3832, 4
      %v3835 = vshll.u32 %v3769, 16
      %v3837 = vrot.slane %v3835, 5
      %v3838 = vsel %vm282, %v3833, %v3837
      %v3840 = vshrl.u32 %v3770, 16
      %v3842 = vrot.slane %v3840, 4
      %v3843 = vshll.u32 %v3770, 16
      %v3845 = vrot.slane %v3843, 5
      %v3846 = vor.u32 %v3842, %v3845
      %v3847 = vrot.slane %v3846, 4
      %v3849 = vshll.u32 %v3771, 16
      %v3851 = vrot.slane %v3849, 5
      %v3852 = vsel %vm282, %v3847, %v3851
      %v3853 = vshrl.u32 %v3771, 16
      %v3855 = vrot.slane %v3853, 4
      %v3856 = vor.u32 %v3855, %v3851
      %v3857 = vrot.slane %v3856, 4
      %v3859 = vshll.u32 %v3772, 16
      %v3861 = vrot.slane %v3859, 5
      %v3862 = vsel %vm282, %v3857, %v3861
      %v3864 = vshrl.u32 %v3773, 16
      %v3866 = vrot.slane %v3864, 4
      %v3867 = vshll.u32 %v3773, 16
      %v3869 = vrot.slane %v3867, 5
      %v3870 = vor.u32 %v3866, %v3869
      %v3871 = vrot.slane %v3870, 4
      %v3873 = vshll.u32 %v3774, 16
      %v3875 = vrot.slane %v3873, 5
      %v3876 = vsel %vm282, %v3871, %v3875
      %v3877 = vshrl.u32 %v3774, 16
      %v3879 = vrot.slane %v3877, 4
      %v3880 = vor.u32 %v3879, %v3875
      %v3881 = vrot.slane %v3880, 4
      %v3883 = vshll.u32 %v3775, 16
      %v3885 = vrot.slane %v3883, 5
      %v3886 = vsel %vm282, %v3881, %v3885
      %v3888 = vshrl.u32 %v3776, 16
      %v3890 = vrot.slane %v3888, 4
      %v3891 = vshll.u32 %v3776, 16
      %v3893 = vrot.slane %v3891, 5
      %v3894 = vor.u32 %v3890, %v3893
      %v3895 = vrot.slane %v3894, 4
      %v3897 = vshll.u32 %v3777, 16
      %v3899 = vrot.slane %v3897, 5
      %v3900 = vsel %vm282, %v3895, %v3899
      %v3901 = vshrl.u32 %v3777, 16
      %v3903 = vrot.slane %v3901, 4
      %v3904 = vor.u32 %v3903, %v3899
      %v3905 = vrot.slane %v3904, 4
      %v3907 = vshll.u32 %v3778, 16
      %v3909 = vrot.slane %v3907, 5
      %v3910 = vsel %vm282, %v3905, %v3909
      %v3912 = vshrl.u32 %v3779, 16
      %v3914 = vrot.slane %v3912, 4
      %v3915 = vshll.u32 %v3779, 16
      %v3917 = vrot.slane %v3915, 5
      %v3918 = vor.u32 %v3914, %v3917
      %v3919 = vrot.slane %v3918, 4
      %v3921 = vshll.u32 %v3780, 16
      %v3923 = vrot.slane %v3921, 5
      %v3924 = vsel %vm282, %v3919, %v3923
      %v3925 = vshrl.u32 %v3780, 16
      %v3927 = vrot.slane %v3925, 4
      %v3928 = vor.u32 %v3927, %v3923
      %v3929 = vrot.slane %v3928, 4
      %v3931 = vshll.u32 %v3781, 16
      %v3933 = vrot.slane %v3931, 5
      %v3934 = vsel %vm282, %v3929, %v3933
      %v3936 = vshrl.u32 %v3782, 16
      %v3938 = vrot.slane %v3936, 4
      %v3939 = vshll.u32 %v3782, 16
      %v3941 = vrot.slane %v3939, 5
      %v3942 = vor.u32 %v3938, %v3941
      %v3943 = vrot.slane %v3942, 4
      %v3945 = vshll.u32 %v3783, 16
      %v3947 = vrot.slane %v3945, 5
      %v3948 = vsel %vm282, %v3943, %v3947
      %v3949 = vshrl.u32 %v3783, 16
      %v3951 = vrot.slane %v3949, 4
      %v3952 = vor.u32 %v3951, %v3947
      %v3953 = vrot.slane %v3952, 4
      %v3955 = vshll.u32 %v3784, 16
      %v3957 = vrot.slane %v3955, 5
      %v3958 = vsel %vm282, %v3953, %v3957
      %v3960 = vshrl.u32 %v3785, 16
      %v3962 = vrot.slane %v3960, 4
      %v3963 = vshll.u32 %v3785, 16
      %v3965 = vrot.slane %v3963, 5
      %v3966 = vor.u32 %v3962, %v3965
      %v3967 = vrot.slane %v3966, 4
      %v3969 = vshll.u32 %v3786, 16
      %v3971 = vrot.slane %v3969, 5
      %v3972 = vsel %vm282, %v3967, %v3971
      %v3973 = vshrl.u32 %v3786, 16
      %v3975 = vrot.slane %v3973, 4
      %v3976 = vor.u32 %v3975, %v3971
      %v3977 = vrot.slane %v3976, 4
      %v3979 = vshll.u32 %v3787, 16
      %v3981 = vrot.slane %v3979, 5
      %v3982 = vsel %vm282, %v3977, %v3981
      %v3984 = vshrl.u32 %v3788, 16
      %v3986 = vrot.slane %v3984, 4
      %v3987 = vshll.u32 %v3788, 16
      %v3989 = vrot.slane %v3987, 5
      %v3990 = vor.u32 %v3986, %v3989
      %v3991 = vrot.slane %v3990, 4
      %v3993 = vshll.u32 %v3789, 16
      %v3995 = vrot.slane %v3993, 5
      %v3996 = vsel %vm282, %v3991, %v3995
      %v3997 = vshrl.u32 %v3789, 16
      %v3999 = vrot.slane %v3997, 4
      %v4000 = vor.u32 %v3999, %v3995
      %v4001 = vrot.slane %v4000, 4
      %v4003 = vshll.u32 %v3790, 16
      %v4005 = vrot.slane %v4003, 5
      %v4006 = vsel %vm282, %v4001, %v4005
      %v4008 = vshrl.u32 %v3791, 16
      %v4010 = vrot.slane %v4008, 4
      %v4011 = vshll.u32 %v3791, 16
      %v4013 = vrot.slane %v4011, 5
      %v4014 = vor.u32 %v4010, %v4013
      %v4015 = vrot.slane %v4014, 4
      %v4017 = vshll.u32 %v3792, 16
      %v4019 = vrot.slane %v4017, 5
      %v4020 = vsel %vm282, %v4015, %v4019
      %v4021 = vshrl.u32 %v3792, 16
      %v4023 = vrot.slane %v4021, 4
      %v4024 = vor.u32 %v4023, %v4019
      %v4025 = vrot.slane %v4024, 4
      %v4027 = vshll.u32 %v3793, 16
      %v4029 = vrot.slane %v4027, 5
      %v4030 = vsel %vm282, %v4025, %v4029
      %v4032 = vshrl.u32 %v3794, 16
      %v4034 = vrot.slane %v4032, 4
      %v4035 = vshll.u32 %v3794, 16
      %v4037 = vrot.slane %v4035, 5
      %v4038 = vor.u32 %v4034, %v4037
      %v4039 = vrot.slane %v4038, 4
      %v4041 = vshll.u32 %v3795, 16
      %v4043 = vrot.slane %v4041, 5
      %v4044 = vsel %vm282, %v4039, %v4043
      %v4045 = vshrl.u32 %v3795, 16
      %v4047 = vrot.slane %v4045, 4
      %v4048 = vor.u32 %v4047, %v4043
      %v4049 = vrot.slane %v4048, 4
      %v4051 = vshll.u32 %v3796, 16
      %v4053 = vrot.slane %v4051, 5
      %v4054 = vsel %vm282, %v4049, %v4053
      %v4056 = vshrl.u32 %v3797, 16
      %v4058 = vrot.slane %v4056, 4
      %v4059 = vshll.u32 %v3797, 16
      %v4061 = vrot.slane %v4059, 5
      %v4062 = vor.u32 %v4058, %v4061
      %v4063 = vrot.slane %v4062, 4
      %v4065 = vshll.u32 %v3798, 16
      %v4067 = vrot.slane %v4065, 5
      %v4068 = vsel %vm282, %v4063, %v4067
      %v4069 = vshrl.u32 %v3798, 16
      %v4071 = vrot.slane %v4069, 4
      %v4072 = vor.u32 %v4071, %v4067
      %v4073 = vrot.slane %v4072, 4
      %v4075 = vshll.u32 %v3799, 16
      %v4077 = vrot.slane %v4075, 5
      %v4078 = vsel %vm282, %v4073, %v4077
      %v4080 = vshrl.u32 %v3800, 16
      %v4082 = vrot.slane %v4080, 4
      %v4083 = vshll.u32 %v3800, 16
      %v4085 = vrot.slane %v4083, 5
      %v4086 = vor.u32 %v4082, %v4085
      %v4087 = vrot.slane %v4086, 4
      %v4089 = vshll.u32 %v3801, 16
      %v4091 = vrot.slane %v4089, 5
      %v4092 = vsel %vm282, %v4087, %v4091
      %v4093 = vshrl.u32 %v3801, 16
      %v4095 = vrot.slane %v4093, 4
      %v4096 = vor.u32 %v4095, %v4091
      %v4097 = vrot.slane %v4096, 4
      %v4099 = vshll.u32 %v3802, 16
      %v4101 = vrot.slane %v4099, 5
      %v4102 = vsel %vm282, %v4097, %v4101
      %v4104 = vshrl.u32 %v3803, 16
      %v4106 = vrot.slane %v4104, 4
      %v4107 = vshll.u32 %v3803, 16
      %v4109 = vrot.slane %v4107, 5
      %v4110 = vor.u32 %v4106, %v4109
      %v4111 = vrot.slane %v4110, 4
      %v4113 = vshll.u32 %v3804, 16
      %v4115 = vrot.slane %v4113, 5
      %v4116 = vsel %vm282, %v4111, %v4115
      %v4117 = vshrl.u32 %v3804, 16
      %v4119 = vrot.slane %v4117, 4
      %v4120 = vor.u32 %v4119, %v4115
      %v4121 = vrot.slane %v4120, 4
      %v4123 = vshll.u32 %v3805, 16
      %v4125 = vrot.slane %v4123, 5
      %v4126 = vsel %vm282, %v4121, %v4125
      %v4128 = vshrl.u32 %v3806, 16
      %v4130 = vrot.slane %v4128, 4
      %v4131 = vshll.u32 %v3806, 16
      %v4133 = vrot.slane %v4131, 5
      %v4134 = vor.u32 %v4130, %v4133
      %v4135 = vrot.slane %v4134, 4
      %v4137 = vshll.u32 %v3807, 16
      %v4139 = vrot.slane %v4137, 5
      %v4140 = vsel %vm282, %v4135, %v4139
      %v4141 = vshrl.u32 %v3807, 16
      %v4143 = vrot.slane %v4141, 4
      %v4144 = vor.u32 %v4143, %v4139
      %v4145 = vrot.slane %v4144, 4
      %v4147 = vshll.u32 %v3808, 16
      %v4149 = vrot.slane %v4147, 5
      %v4150 = vsel %vm282, %v4145, %v4149
      %v4152 = vshrl.u32 %v3809, 16
      %v4154 = vrot.slane %v4152, 4
      %v4155 = vshll.u32 %v3809, 16
      %v4157 = vrot.slane %v4155, 5
      %v4158 = vor.u32 %v4154, %v4157
      %v4159 = vrot.slane %v4158, 4
      %v4161 = vshll.u32 %v3810, 16
      %v4163 = vrot.slane %v4161, 5
      %v4164 = vsel %vm282, %v4159, %v4163
      %v4165 = vshrl.u32 %v3810, 16
      %v4167 = vrot.slane %v4165, 4
      %v4168 = vor.u32 %v4167, %v4163
      %v4169 = vrot.slane %v4168, 4
      %v4171 = vshll.u32 %v3811, 16
      %v4173 = vrot.slane %v4171, 5
      %v4174 = vsel %vm282, %v4169, %v4173
      %v4176 = vshrl.u32 %v3812, 16
      %v4178 = vrot.slane %v4176, 4
      %v4179 = vshll.u32 %v3812, 16
      %v4181 = vrot.slane %v4179, 5
      %v4182 = vor.u32 %v4178, %v4181
      %v4183 = vrot.slane %v4182, 4
      %v4185 = vshll.u32 %v3813, 16
      %v4187 = vrot.slane %v4185, 5
      %v4188 = vsel %vm282, %v4183, %v4187
      %v4189 = vshrl.u32 %v3813, 16
      %v4191 = vrot.slane %v4189, 4
      %v4192 = vor.u32 %v4191, %v4187
      %v4193 = vrot.slane %v4192, 4
      %v4195 = vshll.u32 %v3814, 16
      %v4197 = vrot.slane %v4195, 5
      %v4198 = vsel %vm282, %v4193, %v4197
      %v4199 = vld [vmem:[%s1 + $0x1c0] sm:$0xf]
      %v4200 = vld [vmem:[%s1 + $0x1c4] sm:$0xf]
      %v4201 = vld [vmem:[%s1 + $0x1c8] sm:$0xf]
      %v4202 = vld [vmem:[%s1 + $0x1cc] sm:$0xf]
      %v4203 = vld [vmem:[%s1 + $0x1d0] sm:$0xf]
      %v4204 = vld [vmem:[%s1 + $0x1d4] sm:$0xf]
      %v4205 = vld [vmem:[%s1 + $0x1d8] sm:$0xf]
      %v4206 = vld [vmem:[%s1 + $0x1dc] sm:$0xf]
      %v4207 = vld [vmem:[%s1 + $0x1e0] sm:$0xf]
      %v4208 = vld [vmem:[%s1 + $0x1e4] sm:$0xf]
      %v4209 = vld [vmem:[%s1 + $0x1e8] sm:$0xf]
      %v4210 = vld [vmem:[%s1 + $0x1ec] sm:$0xf]
      %v4211 = vld [vmem:[%s1 + $0x1f0] sm:$0xf]
      %v4212 = vld [vmem:[%s1 + $0x1f4] sm:$0xf]
      %v4213 = vld [vmem:[%s1 + $0x1f8] sm:$0xf]
      %v4214 = vld [vmem:[%s1 + $0x1fc] sm:$0xf]
      %v4215 = vunpack.c.l.b16 %v3828
      %v4216 = vunpack.c.l.b16 %v3838
      %v4217 = vunpack.c.l.b16 %v3852
      %v4218 = vunpack.c.l.b16 %v3862
      %v4219 = vunpack.c.l.b16 %v3876
      %v4220 = vunpack.c.l.b16 %v3886
      %v4221 = vunpack.c.l.b16 %v3900
      %v4222 = vunpack.c.l.b16 %v3910
      %v4223 = vunpack.c.l.b16 %v3924
      %v4224 = vunpack.c.l.b16 %v3934
      %v4225 = vunpack.c.l.b16 %v3948
      %v4226 = vunpack.c.l.b16 %v3958
      %v4227 = vunpack.c.l.b16 %v3972
      %v4228 = vunpack.c.l.b16 %v3982
      %v4229 = vunpack.c.l.b16 %v3996
      %v4230 = vunpack.c.l.b16 %v4006
      %v4231 = vunpack.c.l.b16 %v4020
      %v4232 = vunpack.c.l.b16 %v4030
      %v4233 = vunpack.c.l.b16 %v4044
      %v4234 = vunpack.c.l.b16 %v4054
      %v4235 = vunpack.c.l.b16 %v4068
      %v4236 = vunpack.c.l.b16 %v4078
      %v4237 = vunpack.c.l.b16 %v4092
      %v4238 = vunpack.c.l.b16 %v4102
      %v4239 = vunpack.c.l.b16 %v4116
      %v4240 = vunpack.c.l.b16 %v4126
      %v4241 = vunpack.c.l.b16 %v4140
      %v4242 = vunpack.c.l.b16 %v4150
      %v4243 = vunpack.c.l.b16 %v4164
      %v4244 = vunpack.c.l.b16 %v4174
      %v4245 = vunpack.c.l.b16 %v4188
      %v4246 = vunpack.c.l.b16 %v4198
      %v4247 = vpack.c.b16 %v4216, %v4215
      %v4248 = vpack.c.b16 %v4218, %v4217
      %v4249 = vpack.c.b16 %v4220, %v4219
      %v4250 = vpack.c.b16 %v4222, %v4221
      %v4251 = vpack.c.b16 %v4224, %v4223
      %v4252 = vpack.c.b16 %v4226, %v4225
      %v4253 = vpack.c.b16 %v4228, %v4227
      %v4254 = vpack.c.b16 %v4230, %v4229
      %v4255 = vpack.c.b16 %v4232, %v4231
      %v4256 = vpack.c.b16 %v4234, %v4233
      %v4257 = vpack.c.b16 %v4236, %v4235
      %v4258 = vpack.c.b16 %v4238, %v4237
      %v4259 = vpack.c.b16 %v4240, %v4239
      %v4260 = vpack.c.b16 %v4242, %v4241
      %v4261 = vpack.c.b16 %v4244, %v4243
      %v4262 = vpack.c.b16 %v4246, %v4245
      %v4295 = vunpack.c.l.b16 %v4199
      %v4296 = vunpack.c.l.b16 %v4200
      %v4297 = vunpack.c.l.b16 %v4201
      %v4298 = vunpack.c.l.b16 %v4202
      %v4299 = vunpack.c.l.b16 %v4203
      %v4300 = vunpack.c.l.b16 %v4204
      %v4301 = vunpack.c.l.b16 %v4205
      %v4302 = vunpack.c.l.b16 %v4206
      %v4303 = vunpack.c.l.b16 %v4207
      %v4304 = vunpack.c.l.b16 %v4208
      %v4305 = vunpack.c.l.b16 %v4209
      %v4306 = vunpack.c.l.b16 %v4210
      %v4307 = vunpack.c.l.b16 %v4211
      %v4308 = vunpack.c.l.b16 %v4212
      %v4309 = vunpack.c.l.b16 %v4213
      %v4310 = vunpack.c.l.b16 %v4214
      %v4311 = vpack.c.b16 %v4296, %v4295
      %v4312 = vpack.c.b16 %v4298, %v4297
      %v4313 = vpack.c.b16 %v4300, %v4299
      %v4314 = vpack.c.b16 %v4302, %v4301
      %v4315 = vpack.c.b16 %v4304, %v4303
      %v4316 = vpack.c.b16 %v4306, %v4305
      %v4317 = vpack.c.b16 %v4308, %v4307
      %v4318 = vpack.c.b16 %v4310, %v4309
      %4327 = vmatprep.subr.bf16.mxu0 0
      %4328 = vmatpush1.bf16.msra.mxu0 %v4311
      %4329 = vmatprep.subr.bf16.mxu0 0
      %4330 = vmatpush1.bf16.msra.mxu0 %v4312
      %4331 = vmatprep.subr.bf16.mxu0 0
      %4332 = vmatpush1.bf16.msra.mxu0 %v4313
      %4333 = vmatprep.subr.bf16.mxu0 0
      %4334 = vmatpush1.bf16.msra.mxu0 %v4314
      %4335 = vmatprep.subr.bf16.mxu0 0
      %4336 = vmatpush1.bf16.msra.mxu0 %v4315
      %4337 = vmatprep.subr.bf16.mxu0 0
      %4338 = vmatpush1.bf16.msra.mxu0 %v4316
      %4339 = vmatprep.subr.bf16.mxu0 0
      %4340 = vmatpush1.bf16.msra.mxu0 %v4317
      %4341 = vmatprep.subr.bf16.mxu0 0
      %4342 = vmatpush1.bf16.msra.mxu0 %v4318
      %4343 = vmatprep.subr.bf16.mxu0 0
      %4344 = vmatpush1.bf16.msra.mxu0 0
      %4345 = vmatprep.subr.bf16.mxu0 0
      %4346 = vmatpush1.bf16.msra.mxu0 0
      %4347 = vmatprep.subr.bf16.mxu0 0
      %4348 = vmatpush1.bf16.msra.mxu0 0
      %4349 = vmatprep.subr.bf16.mxu0 0
      %4350 = vmatpush1.bf16.msra.mxu0 0
      %4351 = vmatprep.subr.bf16.mxu0 0
      %4352 = vmatpush1.bf16.msra.mxu0 0
      %4353 = vmatprep.subr.bf16.mxu0 0
      %4354 = vmatpush1.bf16.msra.mxu0 0
      %4355 = vmatprep.subr.bf16.mxu0 0
      %4356 = vmatpush1.bf16.msra.mxu0 0
      %4357 = vmatprep.subr.bf16.mxu0 0
      %4358 = vmatpush1.bf16.msra.mxu0 0
      %4359 = vmatprep.mubr.bf16.mxu0 0
      %4360 = vmatmul.mubr.bf16.gmra.mrb[0].mxu0 %v4247
      %v4361 = vpop.f32.mrb[0].mxu0
      %v4362 = vadd.f32 0.0, %v4361
      %v4363 = vpop.f32.mrb[0].mxu0
      %v4364 = vpop.f32.mrb[0].mxu0
      %v4365 = vadd.f32 0.0, %v4364
      %v4366 = vpop.f32.mrb[0].mxu0
      %4367 = vmatprep.mubr.bf16.mxu0 0
      %4368 = vmatmul.mubr.bf16.gmra.mrb[0].mxu0 %v4248
      %v4369 = vpop.f32.mrb[0].mxu0
      %v4370 = vadd.f32 0.0, %v4369
      %v4371 = vpop.f32.mrb[0].mxu0
      %v4372 = vpop.f32.mrb[0].mxu0
      %v4373 = vadd.f32 0.0, %v4372
      %v4374 = vpop.f32.mrb[0].mxu0
      %4375 = vmatprep.mubr.bf16.mxu0 0
      %4376 = vmatmul.mubr.bf16.gmra.mrb[0].mxu0 %v4249
      %v4377 = vpop.f32.mrb[0].mxu0
      %v4378 = vadd.f32 0.0, %v4377
      %v4379 = vpop.f32.mrb[0].mxu0
      %v4380 = vpop.f32.mrb[0].mxu0
      %v4381 = vadd.f32 0.0, %v4380
      %v4382 = vpop.f32.mrb[0].mxu0
      %4383 = vmatprep.mubr.bf16.mxu0 0
      %4384 = vmatmul.mubr.bf16.gmra.mrb[0].mxu0 %v4250
      %v4385 = vpop.f32.mrb[0].mxu0
      %v4386 = vadd.f32 0.0, %v4385
      %v4387 = vpop.f32.mrb[0].mxu0
      %v4388 = vpop.f32.mrb[0].mxu0
      %v4389 = vadd.f32 0.0, %v4388
      %v4390 = vpop.f32.mrb[0].mxu0
      %4391 = vmatprep.mubr.bf16.mxu0 0
      %4392 = vmatmul.mubr.bf16.gmra.mrb[0].mxu0 %v4251
      %v4393 = vpop.f32.mrb[0].mxu0
      %v4394 = vadd.f32 0.0, %v4393
      %v4395 = vpop.f32.mrb[0].mxu0
      %v4396 = vpop.f32.mrb[0].mxu0
      %v4397 = vadd.f32 0.0, %v4396
      %v4398 = vpop.f32.mrb[0].mxu0
      %4399 = vmatprep.mubr.bf16.mxu0 0
      %4400 = vmatmul.mubr.bf16.gmra.mrb[0].mxu0 %v4252
      %v4401 = vpop.f32.mrb[0].mxu0
      %v4402 = vadd.f32 0.0, %v4401
      %v4403 = vpop.f32.mrb[0].mxu0
      %v4404 = vpop.f32.mrb[0].mxu0
      %v4405 = vadd.f32 0.0, %v4404
      %v4406 = vpop.f32.mrb[0].mxu0
      %4407 = vmatprep.mubr.bf16.mxu0 0
      %4408 = vmatmul.mubr.bf16.gmra.mrb[0].mxu0 %v4253
      %v4409 = vpop.f32.mrb[0].mxu0
      %v4410 = vadd.f32 0.0, %v4409
      %v4411 = vpop.f32.mrb[0].mxu0
      %v4412 = vpop.f32.mrb[0].mxu0
      %v4413 = vadd.f32 0.0, %v4412
      %v4414 = vpop.f32.mrb[0].mxu0
      %4415 = vmatprep.mubr.bf16.mxu0 0
      %4416 = vmatmul.mubr.bf16.gmra.mrb[0].mxu0 %v4254
      %v4417 = vpop.f32.mrb[0].mxu0
      %v4418 = vadd.f32 0.0, %v4417
      %v4419 = vpop.f32.mrb[0].mxu0
      %v4420 = vpop.f32.mrb[0].mxu0
      %v4421 = vadd.f32 0.0, %v4420
      %v4422 = vpop.f32.mrb[0].mxu0
      %4423 = vmatprep.mubr.bf16.mxu0 0
      %4424 = vmatmul.mubr.bf16.gmra.mrb[0].mxu0 %v4255
      %v4425 = vpop.f32.mrb[0].mxu0
      %v4426 = vadd.f32 0.0, %v4425
      %v4427 = vpop.f32.mrb[0].mxu0
      %v4428 = vpop.f32.mrb[0].mxu0
      %v4429 = vadd.f32 0.0, %v4428
      %v4430 = vpop.f32.mrb[0].mxu0
      %4431 = vmatprep.mubr.bf16.mxu0 0
      %4432 = vmatmul.mubr.bf16.gmra.mrb[0].mxu0 %v4256
      %v4433 = vpop.f32.mrb[0].mxu0
      %v4434 = vadd.f32 0.0, %v4433
      %v4435 = vpop.f32.mrb[0].mxu0
      %v4436 = vpop.f32.mrb[0].mxu0
      %v4437 = vadd.f32 0.0, %v4436
      %v4438 = vpop.f32.mrb[0].mxu0
      %4439 = vmatprep.mubr.bf16.mxu0 0
      %4440 = vmatmul.mubr.bf16.gmra.mrb[0].mxu0 %v4257
      %v4441 = vpop.f32.mrb[0].mxu0
      %v4442 = vadd.f32 0.0, %v4441
      %v4443 = vpop.f32.mrb[0].mxu0
      %v4444 = vpop.f32.mrb[0].mxu0
      %v4445 = vadd.f32 0.0, %v4444
      %v4446 = vpop.f32.mrb[0].mxu0
      %4447 = vmatprep.mubr.bf16.mxu0 0
      %4448 = vmatmul.mubr.bf16.gmra.mrb[0].mxu0 %v4258
      %v4449 = vpop.f32.mrb[0].mxu0
      %v4450 = vadd.f32 0.0, %v4449
      %v4451 = vpop.f32.mrb[0].mxu0
      %v4452 = vpop.f32.mrb[0].mxu0
      %v4453 = vadd.f32 0.0, %v4452
      %v4454 = vpop.f32.mrb[0].mxu0
      %4455 = vmatprep.mubr.bf16.mxu0 0
      %4456 = vmatmul.mubr.bf16.gmra.mrb[0].mxu0 %v4259
      %v4457 = vpop.f32.mrb[0].mxu0
      %v4458 = vadd.f32 0.0, %v4457
      %v4459 = vpop.f32.mrb[0].mxu0
      %v4460 = vpop.f32.mrb[0].mxu0
      %v4461 = vadd.f32 0.0, %v4460
      %v4462 = vpop.f32.mrb[0].mxu0
      %4463 = vmatprep.mubr.bf16.mxu0 0
      %4464 = vmatmul.mubr.bf16.gmra.mrb[0].mxu0 %v4260
      %v4465 = vpop.f32.mrb[0].mxu0
      %v4466 = vadd.f32 0.0, %v4465
      %v4467 = vpop.f32.mrb[0].mxu0
      %v4468 = vpop.f32.mrb[0].mxu0
      %v4469 = vadd.f32 0.0, %v4468
      %v4470 = vpop.f32.mrb[0].mxu0
      %4471 = vmatprep.mubr.bf16.mxu0 0
      %4472 = vmatmul.mubr.bf16.gmra.mrb[0].mxu0 %v4261
      %v4473 = vpop.f32.mrb[0].mxu0
      %v4474 = vadd.f32 0.0, %v4473
      %v4475 = vpop.f32.mrb[0].mxu0
      %v4476 = vpop.f32.mrb[0].mxu0
      %v4477 = vadd.f32 0.0, %v4476
      %v4478 = vpop.f32.mrb[0].mxu0
      %4479 = vmatprep.mubr.bf16.mxu0 0
      %4480 = vmatmul.mubr.bf16.gmra.mrb[0].mxu0 %v4262
      %v4481 = vpop.f32.mrb[0].mxu0
      %v4482 = vadd.f32 0.0, %v4481
      %v4483 = vpop.f32.mrb[0].mxu0
      %v4484 = vpop.f32.mrb[0].mxu0
      %v4485 = vadd.f32 0.0, %v4484
      %v4486 = vpop.f32.mrb[0].mxu0
      %4487 = vdwg.mxu0
      %v4488 = vadd.f32 %v3735, %v4362
      %v4489 = vadd.f32 %v3736, %v4365
      %v4490 = vadd.f32 %v3737, %v4370
      %v4491 = vadd.f32 %v3738, %v4373
      %v4492 = vadd.f32 %v3739, %v4378
      %v4493 = vadd.f32 %v3740, %v4381
      %v4494 = vadd.f32 %v3741, %v4386
      %v4495 = vadd.f32 %v3742, %v4389
      %v4496 = vadd.f32 %v3743, %v4394
      %v4497 = vadd.f32 %v3744, %v4397
      %v4498 = vadd.f32 %v3745, %v4402
      %v4499 = vadd.f32 %v3746, %v4405
      %v4500 = vadd.f32 %v3747, %v4410
      %v4501 = vadd.f32 %v3748, %v4413
      %v4502 = vadd.f32 %v3749, %v4418
      %v4503 = vadd.f32 %v3750, %v4421
      %v4504 = vadd.f32 %v3751, %v4426
      %v4505 = vadd.f32 %v3752, %v4429
      %v4506 = vadd.f32 %v3753, %v4434
      %v4507 = vadd.f32 %v3754, %v4437
      %v4508 = vadd.f32 %v3755, %v4442
      %v4509 = vadd.f32 %v3756, %v4445
      %v4510 = vadd.f32 %v3757, %v4450
      %v4511 = vadd.f32 %v3758, %v4453
      %v4512 = vadd.f32 %v3759, %v4458
      %v4513 = vadd.f32 %v3760, %v4461
      %v4514 = vadd.f32 %v3761, %v4466
      %v4515 = vadd.f32 %v3762, %v4469
      %v4516 = vadd.f32 %v3763, %v4474
      %v4517 = vadd.f32 %v3764, %v4477
      %v4518 = vadd.f32 %v3765, %v4482
      %v4519 = vadd.f32 %v3766, %v4485
      %v4520 = vld [vmem:[%s3381] sm:$0xe]
      %v4521 = vld [vmem:[%s3381 + $0xc] sm:$0xe]
      %v4522 = vld [vmem:[%s3381 + $0x18] sm:$0xe]
      %v4523 = vld [vmem:[%s3381 + $0x24] sm:$0xe]
      %v4524 = vld [vmem:[%s3381 + $0x30] sm:$0xe]
      %v4525 = vld [vmem:[%s3381 + $0x3c] sm:$0xe]
      %v4526 = vld [vmem:[%s3381 + $0x48] sm:$0xe]
      %v4527 = vld [vmem:[%s3381 + $0x54] sm:$0xe]
      %v4528 = vld [vmem:[%s3381 + $0x60] sm:$0xe]
      %v4529 = vld [vmem:[%s3381 + $0x6c] sm:$0xe]
      %v4530 = vld [vmem:[%s3381 + $0x78] sm:$0xe]
      %v4531 = vld [vmem:[%s3381 + $0x84] sm:$0xe]
      %v4532 = vld [vmem:[%s3381 + $0x90] sm:$0xe]
      %v4533 = vld [vmem:[%s3381 + $0x9c] sm:$0xe]
      %v4534 = vld [vmem:[%s3381 + $0xa8] sm:$0xe]
      %v4535 = vld [vmem:[%s3381 + $0xb4] sm:$0xe]
      %v4584 = vrot.slane %v4520, 5
      %v4585 = vrot.slane %v4584, 4
      %v4586 = vrot.slane %v3768, 5
      %v4587 = vsel %vm1311, %v4585, %v4586
      %v4588 = vrot.slane %v4586, 4
      %v4589 = vrot.slane %v3769, 5
      %v4590 = vsel %vm1311, %v4588, %v4589
      %v4591 = vrot.slane %v4521, 5
      %v4592 = vrot.slane %v4591, 4
      %v4593 = vrot.slane %v3771, 5
      %v4594 = vsel %vm1311, %v4592, %v4593
      %v4595 = vrot.slane %v4593, 4
      %v4596 = vrot.slane %v3772, 5
      %v4597 = vsel %vm1311, %v4595, %v4596
      %v4598 = vrot.slane %v4522, 5
      %v4599 = vrot.slane %v4598, 4
      %v4600 = vrot.slane %v3774, 5
      %v4601 = vsel %vm1311, %v4599, %v4600
      %v4602 = vrot.slane %v4600, 4
      %v4603 = vrot.slane %v3775, 5
      %v4604 = vsel %vm1311, %v4602, %v4603
      %v4605 = vrot.slane %v4523, 5
      %v4606 = vrot.slane %v4605, 4
      %v4607 = vrot.slane %v3777, 5
      %v4608 = vsel %vm1311, %v4606, %v4607
      %v4609 = vrot.slane %v4607, 4
      %v4610 = vrot.slane %v3778, 5
      %v4611 = vsel %vm1311, %v4609, %v4610
      %v4612 = vrot.slane %v4524, 5
      %v4613 = vrot.slane %v4612, 4
      %v4614 = vrot.slane %v3780, 5
      %v4615 = vsel %vm1311, %v4613, %v4614
      %v4616 = vrot.slane %v4614, 4
      %v4617 = vrot.slane %v3781, 5
      %v4618 = vsel %vm1311, %v4616, %v4617
      %v4619 = vrot.slane %v4525, 5
      %v4620 = vrot.slane %v4619, 4
      %v4621 = vrot.slane %v3783, 5
      %v4622 = vsel %vm1311, %v4620, %v4621
      %v4623 = vrot.slane %v4621, 4
      %v4624 = vrot.slane %v3784, 5
      %v4625 = vsel %vm1311, %v4623, %v4624
      %v4626 = vrot.slane %v4526, 5
      %v4627 = vrot.slane %v4626, 4
      %v4628 = vrot.slane %v3786, 5
      %v4629 = vsel %vm1311, %v4627, %v4628
      %v4630 = vrot.slane %v4628, 4
      %v4631 = vrot.slane %v3787, 5
      %v4632 = vsel %vm1311, %v4630, %v4631
      %v4633 = vrot.slane %v4527, 5
      %v4634 = vrot.slane %v4633, 4
      %v4635 = vrot.slane %v3789, 5
      %v4636 = vsel %vm1311, %v4634, %v4635
      %v4637 = vrot.slane %v4635, 4
      %v4638 = vrot.slane %v3790, 5
      %v4639 = vsel %vm1311, %v4637, %v4638
      %v4640 = vrot.slane %v4528, 5
      %v4641 = vrot.slane %v4640, 4
      %v4642 = vrot.slane %v3792, 5
      %v4643 = vsel %vm1311, %v4641, %v4642
      %v4644 = vrot.slane %v4642, 4
      %v4645 = vrot.slane %v3793, 5
      %v4646 = vsel %vm1311, %v4644, %v4645
      %v4647 = vrot.slane %v4529, 5
      %v4648 = vrot.slane %v4647, 4
      %v4649 = vrot.slane %v3795, 5
      %v4650 = vsel %vm1311, %v4648, %v4649
      %v4651 = vrot.slane %v4649, 4
      %v4652 = vrot.slane %v3796, 5
      %v4653 = vsel %vm1311, %v4651, %v4652
      %v4654 = vrot.slane %v4530, 5
      %v4655 = vrot.slane %v4654, 4
      %v4656 = vrot.slane %v3798, 5
      %v4657 = vsel %vm1311, %v4655, %v4656
      %v4658 = vrot.slane %v4656, 4
      %v4659 = vrot.slane %v3799, 5
      %v4660 = vsel %vm1311, %v4658, %v4659
      %v4661 = vrot.slane %v4531, 5
      %v4662 = vrot.slane %v4661, 4
      %v4663 = vrot.slane %v3801, 5
      %v4664 = vsel %vm1311, %v4662, %v4663
      %v4665 = vrot.slane %v4663, 4
      %v4666 = vrot.slane %v3802, 5
      %v4667 = vsel %vm1311, %v4665, %v4666
      %v4668 = vrot.slane %v4532, 5
      %v4669 = vrot.slane %v4668, 4
      %v4670 = vrot.slane %v3804, 5
      %v4671 = vsel %vm1311, %v4669, %v4670
      %v4672 = vrot.slane %v4670, 4
      %v4673 = vrot.slane %v3805, 5
      %v4674 = vsel %vm1311, %v4672, %v4673
      %v4675 = vrot.slane %v4533, 5
      %v4676 = vrot.slane %v4675, 4
      %v4677 = vrot.slane %v3807, 5
      %v4678 = vsel %vm1311, %v4676, %v4677
      %v4679 = vrot.slane %v4677, 4
      %v4680 = vrot.slane %v3808, 5
      %v4681 = vsel %vm1311, %v4679, %v4680
      %v4682 = vrot.slane %v4534, 5
      %v4683 = vrot.slane %v4682, 4
      %v4684 = vrot.slane %v3810, 5
      %v4685 = vsel %vm1311, %v4683, %v4684
      %v4686 = vrot.slane %v4684, 4
      %v4687 = vrot.slane %v3811, 5
      %v4688 = vsel %vm1311, %v4686, %v4687
      %v4689 = vrot.slane %v4535, 5
      %v4690 = vrot.slane %v4689, 4
      %v4691 = vrot.slane %v3813, 5
      %v4692 = vsel %vm1311, %v4690, %v4691
      %v4693 = vrot.slane %v4691, 4
      %v4694 = vrot.slane %v3814, 5
      %v4695 = vsel %vm1311, %v4693, %v4694
      %v4696 = vld [vmem:[%s1 + $0x200] sm:$0xf]
      %v4697 = vld [vmem:[%s1 + $0x204] sm:$0xf]
      %v4698 = vld [vmem:[%s1 + $0x208] sm:$0xf]
      %v4699 = vld [vmem:[%s1 + $0x20c] sm:$0xf]
      %v4700 = vld [vmem:[%s1 + $0x210] sm:$0xf]
      %v4701 = vld [vmem:[%s1 + $0x214] sm:$0xf]
      %v4702 = vld [vmem:[%s1 + $0x218] sm:$0xf]
      %v4703 = vld [vmem:[%s1 + $0x21c] sm:$0xf]
      %v4704 = vld [vmem:[%s1 + $0x220] sm:$0xf]
      %v4705 = vld [vmem:[%s1 + $0x224] sm:$0xf]
      %v4706 = vld [vmem:[%s1 + $0x228] sm:$0xf]
      %v4707 = vld [vmem:[%s1 + $0x22c] sm:$0xf]
      %v4708 = vld [vmem:[%s1 + $0x230] sm:$0xf]
      %v4709 = vld [vmem:[%s1 + $0x234] sm:$0xf]
      %v4710 = vld [vmem:[%s1 + $0x238] sm:$0xf]
      %v4711 = vld [vmem:[%s1 + $0x23c] sm:$0xf]
      %v4712 = vunpack.c.l.b16 %v4587
      %v4713 = vunpack.c.l.b16 %v4590
      %v4714 = vunpack.c.l.b16 %v4594
      %v4715 = vunpack.c.l.b16 %v4597
      %v4716 = vunpack.c.l.b16 %v4601
      %v4717 = vunpack.c.l.b16 %v4604
      %v4718 = vunpack.c.l.b16 %v4608
      %v4719 = vunpack.c.l.b16 %v4611
      %v4720 = vunpack.c.l.b16 %v4615
      %v4721 = vunpack.c.l.b16 %v4618
      %v4722 = vunpack.c.l.b16 %v4622
      %v4723 = vunpack.c.l.b16 %v4625
      %v4724 = vunpack.c.l.b16 %v4629
      %v4725 = vunpack.c.l.b16 %v4632
      %v4726 = vunpack.c.l.b16 %v4636
      %v4727 = vunpack.c.l.b16 %v4639
      %v4728 = vunpack.c.l.b16 %v4643
      %v4729 = vunpack.c.l.b16 %v4646
      %v4730 = vunpack.c.l.b16 %v4650
      %v4731 = vunpack.c.l.b16 %v4653
      %v4732 = vunpack.c.l.b16 %v4657
      %v4733 = vunpack.c.l.b16 %v4660
      %v4734 = vunpack.c.l.b16 %v4664
      %v4735 = vunpack.c.l.b16 %v4667
      %v4736 = vunpack.c.l.b16 %v4671
      %v4737 = vunpack.c.l.b16 %v4674
      %v4738 = vunpack.c.l.b16 %v4678
      %v4739 = vunpack.c.l.b16 %v4681
      %v4740 = vunpack.c.l.b16 %v4685
      %v4741 = vunpack.c.l.b16 %v4688
      %v4742 = vunpack.c.l.b16 %v4692
      %v4743 = vunpack.c.l.b16 %v4695
      %v4744 = vpack.c.b16 %v4713, %v4712
      %v4745 = vpack.c.b16 %v4715, %v4714
      %v4746 = vpack.c.b16 %v4717, %v4716
      %v4747 = vpack.c.b16 %v4719, %v4718
      %v4748 = vpack.c.b16 %v4721, %v4720
      %v4749 = vpack.c.b16 %v4723, %v4722
      %v4750 = vpack.c.b16 %v4725, %v4724
      %v4751 = vpack.c.b16 %v4727, %v4726
      %v4752 = vpack.c.b16 %v4729, %v4728
      %v4753 = vpack.c.b16 %v4731, %v4730
      %v4754 = vpack.c.b16 %v4733, %v4732
      %v4755 = vpack.c.b16 %v4735, %v4734
      %v4756 = vpack.c.b16 %v4737, %v4736
      %v4757 = vpack.c.b16 %v4739, %v4738
      %v4758 = vpack.c.b16 %v4741, %v4740
      %v4759 = vpack.c.b16 %v4743, %v4742
      %v4792 = vunpack.c.l.b16 %v4696
      %v4793 = vunpack.c.l.b16 %v4697
      %v4794 = vunpack.c.l.b16 %v4698
      %v4795 = vunpack.c.l.b16 %v4699
      %v4796 = vunpack.c.l.b16 %v4700
      %v4797 = vunpack.c.l.b16 %v4701
      %v4798 = vunpack.c.l.b16 %v4702
      %v4799 = vunpack.c.l.b16 %v4703
      %v4800 = vunpack.c.l.b16 %v4704
      %v4801 = vunpack.c.l.b16 %v4705
      %v4802 = vunpack.c.l.b16 %v4706
      %v4803 = vunpack.c.l.b16 %v4707
      %v4804 = vunpack.c.l.b16 %v4708
      %v4805 = vunpack.c.l.b16 %v4709
      %v4806 = vunpack.c.l.b16 %v4710
      %v4807 = vunpack.c.l.b16 %v4711
      %v4808 = vpack.c.b16 %v4793, %v4792
      %v4809 = vpack.c.b16 %v4795, %v4794
      %v4810 = vpack.c.b16 %v4797, %v4796
      %v4811 = vpack.c.b16 %v4799, %v4798
      %v4812 = vpack.c.b16 %v4801, %v4800
      %v4813 = vpack.c.b16 %v4803, %v4802
      %v4814 = vpack.c.b16 %v4805, %v4804
      %v4815 = vpack.c.b16 %v4807, %v4806
      %4824 = vmatprep.subr.bf16.mxu0 0
      %4825 = vmatpush1.bf16.msra.mxu0 %v4808
      %4826 = vmatprep.subr.bf16.mxu0 0
      %4827 = vmatpush1.bf16.msra.mxu0 %v4809
      %4828 = vmatprep.subr.bf16.mxu0 0
      %4829 = vmatpush1.bf16.msra.mxu0 %v4810
      %4830 = vmatprep.subr.bf16.mxu0 0
      %4831 = vmatpush1.bf16.msra.mxu0 %v4811
      %4832 = vmatprep.subr.bf16.mxu0 0
      %4833 = vmatpush1.bf16.msra.mxu0 %v4812
      %4834 = vmatprep.subr.bf16.mxu0 0
      %4835 = vmatpush1.bf16.msra.mxu0 %v4813
      %4836 = vmatprep.subr.bf16.mxu0 0
      %4837 = vmatpush1.bf16.msra.mxu0 %v4814
      %4838 = vmatprep.subr.bf16.mxu0 0
      %4839 = vmatpush1.bf16.msra.mxu0 %v4815
      %4840 = vmatprep.subr.bf16.mxu0 0
      %4841 = vmatpush1.bf16.msra.mxu0 0
      %4842 = vmatprep.subr.bf16.mxu0 0
      %4843 = vmatpush1.bf16.msra.mxu0 0
      %4844 = vmatprep.subr.bf16.mxu0 0
      %4845 = vmatpush1.bf16.msra.mxu0 0
      %4846 = vmatprep.subr.bf16.mxu0 0
      %4847 = vmatpush1.bf16.msra.mxu0 0
      %4848 = vmatprep.subr.bf16.mxu0 0
      %4849 = vmatpush1.bf16.msra.mxu0 0
      %4850 = vmatprep.subr.bf16.mxu0 0
      %4851 = vmatpush1.bf16.msra.mxu0 0
      %4852 = vmatprep.subr.bf16.mxu0 0
      %4853 = vmatpush1.bf16.msra.mxu0 0
      %4854 = vmatprep.subr.bf16.mxu0 0
      %4855 = vmatpush1.bf16.msra.mxu0 0
      %4856 = vmatprep.mubr.bf16.mxu0 0
      %4857 = vmatmul.mubr.bf16.gmra.mrb[0].mxu0 %v4744
      %v4858 = vpop.f32.mrb[0].mxu0
      %v4859 = vadd.f32 0.0, %v4858
      %v4860 = vpop.f32.mrb[0].mxu0
      %v4861 = vpop.f32.mrb[0].mxu0
      %v4862 = vadd.f32 0.0, %v4861
      %v4863 = vpop.f32.mrb[0].mxu0
      %4864 = vmatprep.mubr.bf16.mxu0 0
      %4865 = vmatmul.mubr.bf16.gmra.mrb[0].mxu0 %v4745
      %v4866 = vpop.f32.mrb[0].mxu0
      %v4867 = vadd.f32 0.0, %v4866
      %v4868 = vpop.f32.mrb[0].mxu0
      %v4869 = vpop.f32.mrb[0].mxu0
      %v4870 = vadd.f32 0.0, %v4869
      %v4871 = vpop.f32.mrb[0].mxu0
      %4872 = vmatprep.mubr.bf16.mxu0 0
      %4873 = vmatmul.mubr.bf16.gmra.mrb[0].mxu0 %v4746
      %v4874 = vpop.f32.mrb[0].mxu0
      %v4875 = vadd.f32 0.0, %v4874
      %v4876 = vpop.f32.mrb[0].mxu0
      %v4877 = vpop.f32.mrb[0].mxu0
      %v4878 = vadd.f32 0.0, %v4877
      %v4879 = vpop.f32.mrb[0].mxu0
      %4880 = vmatprep.mubr.bf16.mxu0 0
      %4881 = vmatmul.mubr.bf16.gmra.mrb[0].mxu0 %v4747
      %v4882 = vpop.f32.mrb[0].mxu0
      %v4883 = vadd.f32 0.0, %v4882
      %v4884 = vpop.f32.mrb[0].mxu0
      %v4885 = vpop.f32.mrb[0].mxu0
      %v4886 = vadd.f32 0.0, %v4885
      %v4887 = vpop.f32.mrb[0].mxu0
      %4888 = vmatprep.mubr.bf16.mxu0 0
      %4889 = vmatmul.mubr.bf16.gmra.mrb[0].mxu0 %v4748
      %v4890 = vpop.f32.mrb[0].mxu0
      %v4891 = vadd.f32 0.0, %v4890
      %v4892 = vpop.f32.mrb[0].mxu0
      %v4893 = vpop.f32.mrb[0].mxu0
      %v4894 = vadd.f32 0.0, %v4893
      %v4895 = vpop.f32.mrb[0].mxu0
      %4896 = vmatprep.mubr.bf16.mxu0 0
      %4897 = vmatmul.mubr.bf16.gmra.mrb[0].mxu0 %v4749
      %v4898 = vpop.f32.mrb[0].mxu0
      %v4899 = vadd.f32 0.0, %v4898
      %v4900 = vpop.f32.mrb[0].mxu0
      %v4901 = vpop.f32.mrb[0].mxu0
      %v4902 = vadd.f32 0.0, %v4901
      %v4903 = vpop.f32.mrb[0].mxu0
      %4904 = vmatprep.mubr.bf16.mxu0 0
      %4905 = vmatmul.mubr.bf16.gmra.mrb[0].mxu0 %v4750
      %v4906 = vpop.f32.mrb[0].mxu0
      %v4907 = vadd.f32 0.0, %v4906
      %v4908 = vpop.f32.mrb[0].mxu0
      %v4909 = vpop.f32.mrb[0].mxu0
      %v4910 = vadd.f32 0.0, %v4909
      %v4911 = vpop.f32.mrb[0].mxu0
      %4912 = vmatprep.mubr.bf16.mxu0 0
      %4913 = vmatmul.mubr.bf16.gmra.mrb[0].mxu0 %v4751
      %v4914 = vpop.f32.mrb[0].mxu0
      %v4915 = vadd.f32 0.0, %v4914
      %v4916 = vpop.f32.mrb[0].mxu0
      %v4917 = vpop.f32.mrb[0].mxu0
      %v4918 = vadd.f32 0.0, %v4917
      %v4919 = vpop.f32.mrb[0].mxu0
      %4920 = vmatprep.mubr.bf16.mxu0 0
      %4921 = vmatmul.mubr.bf16.gmra.mrb[0].mxu0 %v4752
      %v4922 = vpop.f32.mrb[0].mxu0
      %v4923 = vadd.f32 0.0, %v4922
      %v4924 = vpop.f32.mrb[0].mxu0
      %v4925 = vpop.f32.mrb[0].mxu0
      %v4926 = vadd.f32 0.0, %v4925
      %v4927 = vpop.f32.mrb[0].mxu0
      %4928 = vmatprep.mubr.bf16.mxu0 0
      %4929 = vmatmul.mubr.bf16.gmra.mrb[0].mxu0 %v4753
      %v4930 = vpop.f32.mrb[0].mxu0
      %v4931 = vadd.f32 0.0, %v4930
      %v4932 = vpop.f32.mrb[0].mxu0
      %v4933 = vpop.f32.mrb[0].mxu0
      %v4934 = vadd.f32 0.0, %v4933
      %v4935 = vpop.f32.mrb[0].mxu0
      %4936 = vmatprep.mubr.bf16.mxu0 0
      %4937 = vmatmul.mubr.bf16.gmra.mrb[0].mxu0 %v4754
      %v4938 = vpop.f32.mrb[0].mxu0
      %v4939 = vadd.f32 0.0, %v4938
      %v4940 = vpop.f32.mrb[0].mxu0
      %v4941 = vpop.f32.mrb[0].mxu0
      %v4942 = vadd.f32 0.0, %v4941
      %v4943 = vpop.f32.mrb[0].mxu0
      %4944 = vmatprep.mubr.bf16.mxu0 0
      %4945 = vmatmul.mubr.bf16.gmra.mrb[0].mxu0 %v4755
      %v4946 = vpop.f32.mrb[0].mxu0
      %v4947 = vadd.f32 0.0, %v4946
      %v4948 = vpop.f32.mrb[0].mxu0
      %v4949 = vpop.f32.mrb[0].mxu0
      %v4950 = vadd.f32 0.0, %v4949
      %v4951 = vpop.f32.mrb[0].mxu0
      %4952 = vmatprep.mubr.bf16.mxu0 0
      %4953 = vmatmul.mubr.bf16.gmra.mrb[0].mxu0 %v4756
      %v4954 = vpop.f32.mrb[0].mxu0
      %v4955 = vadd.f32 0.0, %v4954
      %v4956 = vpop.f32.mrb[0].mxu0
      %v4957 = vpop.f32.mrb[0].mxu0
      %v4958 = vadd.f32 0.0, %v4957
      %v4959 = vpop.f32.mrb[0].mxu0
      %4960 = vmatprep.mubr.bf16.mxu0 0
      %4961 = vmatmul.mubr.bf16.gmra.mrb[0].mxu0 %v4757
      %v4962 = vpop.f32.mrb[0].mxu0
      %v4963 = vadd.f32 0.0, %v4962
      %v4964 = vpop.f32.mrb[0].mxu0
      %v4965 = vpop.f32.mrb[0].mxu0
      %v4966 = vadd.f32 0.0, %v4965
      %v4967 = vpop.f32.mrb[0].mxu0
      %4968 = vmatprep.mubr.bf16.mxu0 0
      %4969 = vmatmul.mubr.bf16.gmra.mrb[0].mxu0 %v4758
      %v4970 = vpop.f32.mrb[0].mxu0
      %v4971 = vadd.f32 0.0, %v4970
      %v4972 = vpop.f32.mrb[0].mxu0
      %v4973 = vpop.f32.mrb[0].mxu0
      %v4974 = vadd.f32 0.0, %v4973
      %v4975 = vpop.f32.mrb[0].mxu0
      %4976 = vmatprep.mubr.bf16.mxu0 0
      %4977 = vmatmul.mubr.bf16.gmra.mrb[0].mxu0 %v4759
      %v4978 = vpop.f32.mrb[0].mxu0
      %v4979 = vadd.f32 0.0, %v4978
      %v4980 = vpop.f32.mrb[0].mxu0
      %v4981 = vpop.f32.mrb[0].mxu0
      %v4982 = vadd.f32 0.0, %v4981
      %v4983 = vpop.f32.mrb[0].mxu0
      %4984 = vdwg.mxu0
      %v4985 = vadd.f32 %v4488, %v4859
      %v4986 = vadd.f32 %v4489, %v4862
      %v4987 = vadd.f32 %v4490, %v4867
      %v4988 = vadd.f32 %v4491, %v4870
      %v4989 = vadd.f32 %v4492, %v4875
      %v4990 = vadd.f32 %v4493, %v4878
      %v4991 = vadd.f32 %v4494, %v4883
      %v4992 = vadd.f32 %v4495, %v4886
      %v4993 = vadd.f32 %v4496, %v4891
      %v4994 = vadd.f32 %v4497, %v4894
      %v4995 = vadd.f32 %v4498, %v4899
      %v4996 = vadd.f32 %v4499, %v4902
      %v4997 = vadd.f32 %v4500, %v4907
      %v4998 = vadd.f32 %v4501, %v4910
      %v4999 = vadd.f32 %v4502, %v4915
      %v5000 = vadd.f32 %v4503, %v4918
      %v5001 = vadd.f32 %v4504, %v4923
      %v5002 = vadd.f32 %v4505, %v4926
      %v5003 = vadd.f32 %v4506, %v4931
      %v5004 = vadd.f32 %v4507, %v4934
      %v5005 = vadd.f32 %v4508, %v4939
      %v5006 = vadd.f32 %v4509, %v4942
      %v5007 = vadd.f32 %v4510, %v4947
      %v5008 = vadd.f32 %v4511, %v4950
      %v5009 = vadd.f32 %v4512, %v4955
      %v5010 = vadd.f32 %v4513, %v4958
      %v5011 = vadd.f32 %v4514, %v4963
      %v5012 = vadd.f32 %v4515, %v4966
      %v5013 = vadd.f32 %v4516, %v4971
      %v5014 = vadd.f32 %v4517, %v4974
      %v5015 = vadd.f32 %v4518, %v4979
      %v5016 = vadd.f32 %v4519, %v4982
      %v5017 = vadd.f32 %v4985, %v4986
      %v5018 = vadd.f32 %v5017, %v4987
      %v5019 = vadd.f32 %v5018, %v4988
      %v5020 = vadd.f32 %v5019, %v4989
      %v5021 = vadd.f32 %v5020, %v4990
      %v5022 = vadd.f32 %v5021, %v4991
      %v5023 = vadd.f32 %v5022, %v4992
      %v5024 = vadd.f32 %v5023, %v4993
      %v5025 = vadd.f32 %v5024, %v4994
      %v5026 = vadd.f32 %v5025, %v4995
      %v5027 = vadd.f32 %v5026, %v4996
      %v5028 = vadd.f32 %v5027, %v4997
      %v5029 = vadd.f32 %v5028, %v4998
      %v5030 = vadd.f32 %v5029, %v4999
      %v5031 = vadd.f32 %v5030, %v5000
      %v5032 = vadd.f32 %v5031, %v5001
      %v5033 = vadd.f32 %v5032, %v5002
      %v5034 = vadd.f32 %v5033, %v5003
      %v5035 = vadd.f32 %v5034, %v5004
      %v5036 = vadd.f32 %v5035, %v5005
      %v5037 = vadd.f32 %v5036, %v5006
      %v5038 = vadd.f32 %v5037, %v5007
      %v5039 = vadd.f32 %v5038, %v5008
      %v5040 = vadd.f32 %v5039, %v5009
      %v5041 = vadd.f32 %v5040, %v5010
      %v5042 = vadd.f32 %v5041, %v5011
      %v5043 = vadd.f32 %v5042, %v5012
      %v5044 = vadd.f32 %v5043, %v5013
      %v5045 = vadd.f32 %v5044, %v5014
      %v5046 = vadd.f32 %v5045, %v5015
      %v5047 = vadd.f32 %v5046, %v5016
      %v5048 = vrot.slane %v5047, 4
      %v5049 = vadd.f32 %v5047, %v5048
      %v5050 = vrot.slane %v5049, 2
      %v5051 = vadd.f32 %v5049, %v5050
      %v5052 = vrot.slane %v5051, 1
      %v5053 = vadd.f32 %v5051, %v5052
      %5054 = vst [vmem:[%s211] sm:$0x1] %v5053
      %v5055 = vmul.f32 %v4985, %v4985
      %v5056 = vmul.f32 %v4986, %v4986
      %v5057 = vmul.f32 %v4987, %v4987
      %v5058 = vmul.f32 %v4988, %v4988
      %v5059 = vmul.f32 %v4989, %v4989
      %v5060 = vmul.f32 %v4990, %v4990
      %v5061 = vmul.f32 %v4991, %v4991
      %v5062 = vmul.f32 %v4992, %v4992
      %v5063 = vmul.f32 %v4993, %v4993
      %v5064 = vmul.f32 %v4994, %v4994
      %v5065 = vmul.f32 %v4995, %v4995
      %v5066 = vmul.f32 %v4996, %v4996
      %v5067 = vmul.f32 %v4997, %v4997
      %v5068 = vmul.f32 %v4998, %v4998
      %v5069 = vmul.f32 %v4999, %v4999
      %v5070 = vmul.f32 %v5000, %v5000
      %v5071 = vmul.f32 %v5001, %v5001
      %v5072 = vmul.f32 %v5002, %v5002
      %v5073 = vmul.f32 %v5003, %v5003
      %v5074 = vmul.f32 %v5004, %v5004
      %v5075 = vmul.f32 %v5005, %v5005
      %v5076 = vmul.f32 %v5006, %v5006
      %v5077 = vmul.f32 %v5007, %v5007
      %v5078 = vmul.f32 %v5008, %v5008
      %v5079 = vmul.f32 %v5009, %v5009
      %v5080 = vmul.f32 %v5010, %v5010
      %v5081 = vmul.f32 %v5011, %v5011
      %v5082 = vmul.f32 %v5012, %v5012
      %v5083 = vmul.f32 %v5013, %v5013
      %v5084 = vmul.f32 %v5014, %v5014
      %v5085 = vmul.f32 %v5015, %v5015
      %v5086 = vmul.f32 %v5016, %v5016
      %v5087 = vadd.f32 %v5055, %v5056
      %v5088 = vadd.f32 %v5087, %v5057
      %v5089 = vadd.f32 %v5088, %v5058
      %v5090 = vadd.f32 %v5089, %v5059
      %v5091 = vadd.f32 %v5090, %v5060
      %v5092 = vadd.f32 %v5091, %v5061
      %v5093 = vadd.f32 %v5092, %v5062
      %v5094 = vadd.f32 %v5093, %v5063
      %v5095 = vadd.f32 %v5094, %v5064
      %v5096 = vadd.f32 %v5095, %v5065
      %v5097 = vadd.f32 %v5096, %v5066
      %v5098 = vadd.f32 %v5097, %v5067
      %v5099 = vadd.f32 %v5098, %v5068
      %v5100 = vadd.f32 %v5099, %v5069
      %v5101 = vadd.f32 %v5100, %v5070
      %v5102 = vadd.f32 %v5101, %v5071
      %v5103 = vadd.f32 %v5102, %v5072
      %v5104 = vadd.f32 %v5103, %v5073
      %v5105 = vadd.f32 %v5104, %v5074
      %v5106 = vadd.f32 %v5105, %v5075
      %v5107 = vadd.f32 %v5106, %v5076
      %v5108 = vadd.f32 %v5107, %v5077
      %v5109 = vadd.f32 %v5108, %v5078
      %v5110 = vadd.f32 %v5109, %v5079
      %v5111 = vadd.f32 %v5110, %v5080
      %v5112 = vadd.f32 %v5111, %v5081
      %v5113 = vadd.f32 %v5112, %v5082
      %v5114 = vadd.f32 %v5113, %v5083
      %v5115 = vadd.f32 %v5114, %v5084
      %v5116 = vadd.f32 %v5115, %v5085
      %v5117 = vadd.f32 %v5116, %v5086
      %v5118 = vrot.slane %v5117, 4
      %v5119 = vadd.f32 %v5117, %v5118
      %v5120 = vrot.slane %v5119, 2
      %v5121 = vadd.f32 %v5119, %v5120
      %v5122 = vrot.slane %v5121, 1
      %v5123 = vadd.f32 %v5121, %v5122
      %5124 = vst [vmem:[%s214] sm:$0x1] %v5123
      %5125 = vst [vmem:[%s208] sm:$0xff] %v4985
      %5126 = vst [vmem:[%s208 + $0x8] sm:$0xff] %v4986
      %5127 = vst [vmem:[%s208 + $0x10] sm:$0xff] %v4987
      %5128 = vst [vmem:[%s208 + $0x18] sm:$0xff] %v4988
      %5129 = vst [vmem:[%s208 + $0x20] sm:$0xff] %v4989
      %5130 = vst [vmem:[%s208 + $0x28] sm:$0xff] %v4990
      %5131 = vst [vmem:[%s208 + $0x30] sm:$0xff] %v4991
      %5132 = vst [vmem:[%s208 + $0x38] sm:$0xff] %v4992
      %5133 = vst [vmem:[%s208 + $0x40] sm:$0xff] %v4993
      %5134 = vst [vmem:[%s208 + $0x48] sm:$0xff] %v4994
      %5135 = vst [vmem:[%s208 + $0x50] sm:$0xff] %v4995
      %5136 = vst [vmem:[%s208 + $0x58] sm:$0xff] %v4996
      %5137 = vst [vmem:[%s208 + $0x60] sm:$0xff] %v4997
      %5138 = vst [vmem:[%s208 + $0x68] sm:$0xff] %v4998
      %5139 = vst [vmem:[%s208 + $0x70] sm:$0xff] %v4999
      %5140 = vst [vmem:[%s208 + $0x78] sm:$0xff] %v5000
      %5141 = vst [vmem:[%s208 + $0x80] sm:$0xff] %v5001
      %5142 = vst [vmem:[%s208 + $0x88] sm:$0xff] %v5002
      %5143 = vst [vmem:[%s208 + $0x90] sm:$0xff] %v5003
      %5144 = vst [vmem:[%s208 + $0x98] sm:$0xff] %v5004
      %5145 = vst [vmem:[%s208 + $0xa0] sm:$0xff] %v5005
      %5146 = vst [vmem:[%s208 + $0xa8] sm:$0xff] %v5006
      %5147 = vst [vmem:[%s208 + $0xb0] sm:$0xff] %v5007
      %5148 = vst [vmem:[%s208 + $0xb8] sm:$0xff] %v5008
      %5149 = vst [vmem:[%s208 + $0xc0] sm:$0xff] %v5009
      %5150 = vst [vmem:[%s208 + $0xc8] sm:$0xff] %v5010
      %5151 = vst [vmem:[%s208 + $0xd0] sm:$0xff] %v5011
      %5152 = vst [vmem:[%s208 + $0xd8] sm:$0xff] %v5012
      %5153 = vst [vmem:[%s208 + $0xe0] sm:$0xff] %v5013
      %5154 = vst [vmem:[%s208 + $0xe8] sm:$0xff] %v5014
      %5155 = vst [vmem:[%s208 + $0xf0] sm:$0xff] %v5015
      %5156 = vst [vmem:[%s208 + $0xf8] sm:$0xff] %v5016
      %p5157 = scmp.lt.s32.totalorder %s16, 1
      %s5158 = scalar_select %p5157, %s16, 1
      %s5159 = smul.addr %s5158, 32
      %s5160 = smul.addr %s5159, 8
      %s5161 = scalar_lea.vmem %s2, %s5160
      %p5162 = scmp.lt.s32.totalorder %s16, 1
      %s5163 = scalar_select %p5162, %s16, 1
      %s5164 = scalar_lea.vmem %s3, %s5163
      %p5165 = scmp.lt.s32.totalorder %s16, 1
      %s5166 = scalar_select %p5165, %s16, 1
      %s5167 = scalar_lea.vmem %s4, %s5166
      // Predicated region
      $region29: #{basic_block_forward.3} parent=27 // pred_check
        %p5168 = pneg %p81
      $region30: #{basic_block_forward.3} parent=27 // pred_check_branch
        %5170 = sbr.rel (%p5168) target = $region32
      $region31: #{basic_block_forward.3} parent=27 // pred_region
        _
      $region32: #{basic_block_forward.3} parent=27 // pred_fallthru
        _
      // Predicated region
      $region33: #{basic_block_forward.3} parent=27 // pred_check
        %p5171 = pneg %p107
      $region34: #{basic_block_forward.3} parent=27 // pred_check_branch
        %5173 = sbr.rel (%p5171) target = $region36
      $region35: #{basic_block_forward.3} parent=27 // pred_region
        _
      $region36: #{basic_block_forward.3} parent=27 // pred_fallthru
        _
      // Predicated region
      $region37: #{basic_block_forward.3} parent=27 // pred_check
        %p5174 = pneg %p133
      $region38: #{basic_block_forward.3} parent=27 // pred_check_branch
        %5176 = sbr.rel (%p5174) target = $region40
      $region39: #{basic_block_forward.3} parent=27 // pred_region
        _
      $region40: #{basic_block_forward.3} parent=27 // pred_fallthru
        _
    $region28: #{basic_block_forward.3} parent=5 // pred_fallthru
      _
    %p5177 = scmp.le.s32.totalorder 2, %s11
    // Predicated region
    $region41: #{basic_block_forward.3} parent=5 // pred_check
      %p5178 = pneg %p5177
    $region42: #{basic_block_forward.3} parent=5 // pred_check_branch
      %5180 = sbr.rel (%p5178) target = $region44
    $region43: #{basic_block_forward.3} parent=5 // pred_region
      %s5181 = ssub.s32 %s11, 2
      // Predicated region
      $region45: #{basic_block_forward.3} parent=43 // pred_check
        %p5182 = pneg %p87
      $region46: #{basic_block_forward.3} parent=43 // pred_check_branch
        %5184 = sbr.rel (%p5182) target = $region48
      $region47: #{basic_block_forward.3} parent=43 // pred_region
        %p5185 = scmp.lt.s32.totalorder %s17, 1
        %s5186 = scalar_select %p5185, %s17, 1
        %s5187 = smul.addr %s5186, 32
        %s5188 = smul.addr %s5187, 8
        %s5189 = scalar_lea.vmem %s2, %s5188
      $region48: #{basic_block_forward.3} parent=43 // pred_fallthru
        _
      // Predicated region
      $region49: #{basic_block_forward.3} parent=43 // pred_check
        %p5190 = pneg %p113
      $region50: #{basic_block_forward.3} parent=43 // pred_check_branch
        %5192 = sbr.rel (%p5190) target = $region52
      $region51: #{basic_block_forward.3} parent=43 // pred_region
        %p5193 = scmp.lt.s32.totalorder %s17, 1
        %s5194 = scalar_select %p5193, %s17, 1
        %s5195 = scalar_lea.vmem %s3, %s5194
      $region52: #{basic_block_forward.3} parent=43 // pred_fallthru
        _
      // Predicated region
      $region53: #{basic_block_forward.3} parent=43 // pred_check
        %p5196 = pneg %p139
      $region54: #{basic_block_forward.3} parent=43 // pred_check_branch
        %5198 = sbr.rel (%p5196) target = $region56
      $region55: #{basic_block_forward.3} parent=43 // pred_region
        %p5199 = scmp.lt.s32.totalorder %s17, 1
        %s5200 = scalar_select %p5199, %s17, 1
        %s5201 = scalar_lea.vmem %s4, %s5200
      $region56: #{basic_block_forward.3} parent=43 // pred_fallthru
        _
    $region44: #{basic_block_forward.3} parent=5 // pred_fallthru
      _
  $region6: #{basic_block_forward.3} parent=0 // loop_footer
    %s15 = sadd.s32 1, %s11
  $region7: #{basic_block_forward.3} parent=0 // loop_footer_branch
    %10 = sbr.rel target = $region3
  $region8: #{basic_block_forward.3} parent=0 // loop_exit
    _

</llo_original>
